<compile_context>
chip_gen: v6e
topology: v6e:2x2x1
jax: 0.10.0
libtpu: 0.0.40
codegen_flags: <defaults>
</compile_context>

<pallas_src>
import jax
import jax.numpy as jnp
import numpy as np
from jax.experimental import pallas as pl
from jax.experimental.pallas import tpu as pltpu

_LANES = 128          # lane width of the per-row loss outputs (unmasked full-vreg stores)
_BIG = 1e30           # span max-pool "minus infinity" sentinel (f32/bf16-safe)


# ----------------------------------------------------------------------------
# Fused kernel.  Grid = (row_blocks, seq_chunks); one step sees an (R, S_TILE, D)
# slice of enc_hidden, updates three running span-maxes, and on the last seq chunk
# runs the proj/classifier/CE epilogue for all three branches.
# ----------------------------------------------------------------------------
def _proto_aux_kernel(enc_ref,                                   # (R, St, D) enc dtype
                      rel_se_ref, head_se_ref, tail_se_ref,      # (R, 2, 1) int32 [start, end)
                      rel_dec_ref, head_dec_ref, tail_dec_ref,   # (R, D) f32 (pre-gathered rows)
                      w_rel_a_ref, w_rel_b_ref, b_rel_p_ref, w_rel_c_ref, b_rel_c_ref,
                      w_hd_a_ref, w_hd_b_ref, b_hd_p_ref, w_hd_c_ref, b_hd_c_ref,
                      rel_out_ref, head_out_ref, tail_out_ref,   # (R, 128) f32 per-row losses
                      rel_acc, head_acc, tail_acc):              # (R, D) f32 scratch
    j = pl.program_id(1)

    @pl.when(j == 0)
    def _init():
        neg = jnp.full_like(rel_acc, -_BIG)
        rel_acc[...] = neg
        head_acc[...] = neg
        tail_acc[...] = neg

    enc = enc_ref[...]                                           # (R, St, D), native dtype
    r, st, _ = enc.shape
    neg_big = jnp.asarray(-_BIG, dtype=enc.dtype)
    # Global sequence position of this chunk, kept natively 3-D (no relayouts).
    pos = j * st + jax.lax.broadcasted_iota(jnp.int32, (r, st, 1), 1)   # (R, St, 1)

    def chunk_max(se_ref):
        se = se_ref[...]                                         # (R, 2, 1) int32
        start = se[:, 0:1, :]                                    # (R, 1, 1)
        end = se[:, 1:2, :]                                      # (R, 1, 1)
        inside = (pos >= start) & (pos < end)                    # (R, St, 1) bool
        # select (no convert/mul/add), stays in the streamed dtype; bf16 max is exact.
        masked = jnp.where(inside, enc, neg_big)                 # (R, St, D)
        return jnp.max(masked, axis=1).astype(jnp.float32)       # (R, D) f32

    rel_acc[...] = jnp.maximum(rel_acc[...], chunk_max(rel_se_ref))
    head_acc[...] = jnp.maximum(head_acc[...], chunk_max(head_se_ref))
    tail_acc[...] = jnp.maximum(tail_acc[...], chunk_max(tail_se_ref))

    @pl.when(j == pl.num_programs(1) - 1)
    def _finalize():
        w_rel_a, w_rel_b = w_rel_a_ref[...], w_rel_b_ref[...]
        w_hd_a, w_hd_b = w_hd_a_ref[...], w_hd_b_ref[...]        # shared by head & tail
        cdt = w_rel_a.dtype                                      # bf16 or f32 MXU operands

        def branch_loss(proto, dec, w_a, w_b, b_p, w_c, b_c):
            # concat([proto, dec], -1) @ W_proj  ==  proto @ W_top + dec @ W_bot
            acc = jnp.dot(proto.astype(cdt), w_a, preferred_element_type=jnp.float32)
            acc = acc + jnp.dot(dec.astype(cdt), w_b, preferred_element_type=jnp.float32)
            states = jnp.maximum(acc + b_p, 0.0)                 # (R, D) ReLU, f32
            logits = jnp.dot(states.astype(cdt), w_c,
                             preferred_element_type=jnp.float32) + b_c   # (R, 2)
            # 2-class CE vs class 1  ==  softplus(logit0 - logit1), stable form.
            # (log1p lowering availability varies; the log(1+x) term is added to
            #  max(margin,0) so absolute f32 accuracy is already sufficient.)
            margin = logits[:, 0:1] - logits[:, 1:2]             # (R, 1)
            return jnp.maximum(margin, 0.0) + jnp.log(1.0 + jnp.exp(-jnp.abs(margin)))

        rel_l = branch_loss(rel_acc[...], rel_dec_ref[...],
                            w_rel_a, w_rel_b, b_rel_p_ref[...],
                            w_rel_c_ref[...], b_rel_c_ref[...])
        head_l = branch_loss(head_acc[...], head_dec_ref[...],
                             w_hd_a, w_hd_b, b_hd_p_ref[...],
                             w_hd_c_ref[...], b_hd_c_ref[...])
        tail_l = branch_loss(tail_acc[...], tail_dec_ref[...],
                             w_hd_a, w_hd_b, b_hd_p_ref[...],
                             w_hd_c_ref[...], b_hd_c_ref[...])

        # Lane-dense per-row outputs (no serial accumulator; row axis stays parallel).
        rel_out_ref[...] = jnp.broadcast_to(rel_l, (r, _LANES))
        head_out_ref[...] = jnp.broadcast_to(head_l, (r, _LANES))
        tail_out_ref[...] = jnp.broadcast_to(tail_l, (r, _LANES))


# ----------------------------------------------------------------------------
# Wrapper helpers.
# ----------------------------------------------------------------------------
def _round_up(x, m):
    return (x + m - 1) // m * m


def _vmem_capacity_bytes():
    try:
        cap = int(getattr(pltpu.get_tpu_info(), "vmem_capacity_bytes"))
        if cap > 0:
            return cap
    except Exception:
        pass
    return 64 * 1024 * 1024          # conservative (v7x per-TensorCore)


def _choose_tiles(n, s_len, d, enc_itemsize, weight_itemsize, capacity_bytes):
    """Pick (row_tile R, seq_tile S_TILE, vmem_limit_bytes), generation-aware."""
    cap_budget = int(capacity_bytes * 0.72)          # ~46 MiB on v7x, ~92 MiB on v5e/v6e
    # Weight residency: 4 (D,D) halves + 2 classifiers + biases; budget for 2 pipeline
    # buffers in case single-buffering (pl.Buffered(1)) is unavailable.
    weight_bytes = 2 * ((4 * d * d + 2 * d * 2) * weight_itemsize + (2 * d + 4) * 4)
    slack = 6 << 20

    s_tile = s_len if s_len <= 128 else 128          # multiple of 16 or the full S
    while True:
        per_row = (3 * s_tile * d * enc_itemsize     # enc block x2 buffers + 1 select/max temp
                   + 3 * d * 4                       # running-max accumulators (f32)
                   + 3 * 2 * d * 4                   # gathered decoder rows (f32, x2 buffers)
                   + 3 * 2 * _LANES * 4              # per-row loss outputs (x2 buffers)
                   + 64)                             # span tables + slop
        budget = cap_budget - weight_bytes - slack
        r = budget // per_row
        if r >= 8 or s_tile == s_len or s_tile <= 16:
            break
        s_tile = max(16, s_tile // 2)                # shrink the seq chunk before giving up

    r = max(int(r), 8)
    r = (r // 256) * 256 if r >= 256 else (r // 8) * 8   # MXU-friendly rounding
    r = int(min(r, 1024))
    if n >= 8:
        r = min(r, (n // 8) * 8)                     # never a block taller than the array
    else:
        r = 8

    need = r * per_row + weight_bytes + slack
    vmem_limit = int(min(max(cap_budget, need), int(capacity_bytes * 0.9)))
    return int(r), int(s_tile), vmem_limit


def proto_aux_losses(enc_hidden, dec_hidden,
                     rel_pos, rel_dec_proto,
                     head_pos, head_dec_proto,
                     tail_pos, tail_dec_proto,
                     params, *,
                     use_bf16_matmul=True,
                     row_tile=None, seq_tile=None, vmem_limit_bytes=None):
    """Fused rel/head/tail prototype aux losses. Returns (rel, head, tail) sums."""
    n, s_len, d = enc_hidden.shape
    b, rel_num, _ = rel_pos.shape
    _, head_num, _ = head_pos.shape
    if n != b * rel_num or n != b * head_num:
        raise ValueError("enc_hidden rows must equal B*rel_num == B*head_num")

    # ---- decoder-row gathers: small (N, D) XLA gathers, f32 for the epilogue ------
    rows = jnp.arange(n, dtype=jnp.int32)
    rel_dec = dec_hidden[rows // rel_num, rel_dec_proto[rows // rel_num, 0]].astype(jnp.float32)
    head_dec = dec_hidden[rows, head_dec_proto[rows // head_num, 0]].astype(jnp.float32)
    tail_dec = dec_hidden[rows, tail_dec_proto[rows // head_num, 0]].astype(jnp.float32)

    # ---- span tables, kept 3-D so the kernel never reshapes -----------------------
    def spans(pos2):
        return pos2.reshape(-1, 2).astype(jnp.int32)[:, :, None]        # (N, 2, 1)

    rel_se, head_se, tail_se = spans(rel_pos), spans(head_pos), spans(tail_pos)

    # ---- tiling / VMEM budget (generation-aware) -----------------------------------
    cdt = jnp.bfloat16 if use_bf16_matmul else jnp.float32
    enc_itemsize = jnp.dtype(enc_hidden.dtype).itemsize
    r_auto, s_auto, vmem_auto = _choose_tiles(
        n, s_len, d, enc_itemsize, jnp.dtype(cdt).itemsize, _vmem_capacity_bytes())
    r = int(row_tile) if row_tile is not None else r_auto
    s_tile = int(seq_tile) if seq_tile is not None else s_auto
    vmem_limit = int(vmem_limit_bytes) if vmem_limit_bytes is not None else vmem_auto

    num_row_blocks = int(pl.cdiv(n, r))
    num_seq_chunks = int(pl.cdiv(s_len, s_tile))
    n_pad = num_row_blocks * r
    if n_pad > n:
        # Only the small per-row side tables are padded; enc_hidden streams unpadded.
        # The ragged tail block's garbage rows have empty (0,0) spans, so jnp.where
        # never lets their values through, and they are sliced away below.
        pad = lambda x: jnp.pad(x, ((0, n_pad - n),) + ((0, 0),) * (x.ndim - 1))
        rel_se, head_se, tail_se = pad(rel_se), pad(head_se), pad(tail_se)
        rel_dec, head_dec, tail_dec = pad(rel_dec), pad(head_dec), pad(tail_dec)

    # ---- weights: split W_proj into two (D, D) halves, optional bf16 cast ----------
    def prep(w_proj, b_proj, w_cls, b_cls):
        w_proj = jnp.asarray(w_proj).astype(cdt)                 # (2D, D), (in, out)
        return (w_proj[:d], w_proj[d:],
                jnp.asarray(b_proj, jnp.float32).reshape(1, d),
                jnp.asarray(w_cls).astype(cdt),                  # (D, 2)
                jnp.asarray(b_cls, jnp.float32).reshape(1, 2))

    w_rel_a, w_rel_b, b_rel_p, w_rel_c, b_rel_c = prep(
        params["w_proj_rel"], params["b_proj_rel"],
        params["w_cls_rel"], params["b_cls_rel"])
    w_hd_a, w_hd_b, b_hd_p, w_hd_c, b_hd_c = prep(
        params["w_proj_head"], params["b_proj_head"],
        params["w_cls_head"], params["b_cls_head"])

    def row_spec(*trail):
        zeros = (0,) * len(trail)
        return pl.BlockSpec((r,) + trail, lambda i, j, _z=zeros: (i,) + _z)

    out_specs = (row_spec(_LANES), row_spec(_LANES), row_spec(_LANES))
    out_shape = tuple(jax.ShapeDtypeStruct((n_pad, _LANES), jnp.float32) for _ in range(3))
    scratch = [pltpu.VMEM((r, d), jnp.float32)] * 3

    def run(single_buffer_weights):
        const_kw = {}
        if single_buffer_weights and hasattr(pl, "Buffered"):
            const_kw = dict(pipeline_mode=pl.Buffered(1))        # weights loaded once, 1 buffer

        def const_spec(shape):
            zeros = (0,) * len(shape)
            return pl.BlockSpec(shape, lambda i, j, _z=zeros: _z, **const_kw)

        in_specs = [
            pl.BlockSpec((r, s_tile, d), lambda i, j: (i, j, 0)),       # enc chunk
            row_spec(2, 1), row_spec(2, 1), row_spec(2, 1),             # rel/head/tail spans
            row_spec(d), row_spec(d), row_spec(d),                      # gathered decoder rows
            const_spec((d, d)), const_spec((d, d)), const_spec((1, d)),
            const_spec((d, 2)), const_spec((1, 2)),                     # rel weights
            const_spec((d, d)), const_spec((d, d)), const_spec((1, d)),
            const_spec((d, 2)), const_spec((1, 2)),                     # head/tail weights
        ]
        out = pl.pallas_call(
            _proto_aux_kernel,
            grid=(num_row_blocks, num_seq_chunks),
            in_specs=in_specs,
            out_specs=out_specs,
            out_shape=out_shape,
            scratch_shapes=scratch,
            compiler_params=pltpu.CompilerParams(
                dimension_semantics=("parallel", "arbitrary"),   # rows megacore-splittable
                vmem_limit_bytes=vmem_limit),
        )(enc_hidden, rel_se, head_se, tail_se, rel_dec, head_dec, tail_dec,
          w_rel_a, w_rel_b, b_rel_p, w_rel_c, b_rel_c,
          w_hd_a, w_hd_b, b_hd_p, w_hd_c, b_hd_c)
        return jax.block_until_ready(out)

    try:
        rel_rows, head_rows, tail_rows = run(True)
    except Exception:
        # Older JAX without single-buffered pipeline_mode support: plain double-buffered.
        rel_rows, head_rows, tail_rows = run(False)

    rel_loss = jnp.sum(rel_rows[:n, 0])
    head_loss = jnp.sum(head_rows[:n, 0])
    tail_loss = jnp.sum(tail_rows[:n, 0])
    return rel_loss, head_loss, tail_loss


def proto_t5_aux_forward(base_loss, enc_hidden, dec_hidden,
                         rel_pos, rel_dec_proto,
                         head_pos, head_dec_proto,
                         tail_pos, tail_dec_proto,
                         params, aux_loss_weight=0.1, use_bf16_matmul=True,
                         **tile_kwargs):
    """ProtoT5.forward aux-loss path (both rel and head/tail branches present)."""
    rel_loss, head_loss, tail_loss = proto_aux_losses(
        enc_hidden, dec_hidden, rel_pos, rel_dec_proto,
        head_pos, head_dec_proto, tail_pos, tail_dec_proto,
        params, use_bf16_matmul=use_bf16_matmul, **tile_kwargs)
    total = (base_loss + aux_loss_weight * rel_loss
             + aux_loss_weight * (head_loss + tail_loss))
    return total, {"rel": rel_loss, "head": head_loss, "tail": tail_loss}


# ----------------------------------------------------------------------------
# Pure-JAX reference mirroring the PyTorch math (for verification).
# ----------------------------------------------------------------------------
def _ref_branch_loss(enc_rows, dec_rows, starts, ends, w_proj, b_proj, w_cls, b_cls):
    _, s_len, _ = enc_rows.shape
    idx = jnp.arange(s_len)
    mask = (idx[None, :] >= starts[:, None]) & (idx[None, :] < ends[:, None])
    proto = jnp.max(jnp.where(mask[:, :, None], enc_rows, -_BIG), axis=1)
    hidden = jnp.concatenate([proto, dec_rows], axis=-1)
    states = jax.nn.relu(hidden @ w_proj + b_proj.reshape(-1))
    logits = states @ w_cls + b_cls.reshape(-1)
    return jnp.sum(jax.nn.logsumexp(logits, axis=-1) - logits[:, 1])


def _ref_aux_losses(enc_hidden, dec_hidden, rel_pos, rel_dec_proto,
                    head_pos, head_dec_proto, tail_pos, tail_dec_proto, params):
    n = enc_hidden.shape[0]
    rel_num = rel_pos.shape[1]
    head_num = head_pos.shape[1]
    rows = jnp.arange(n)

    rel_se = rel_pos.reshape(-1, 2)
    rel_dec = dec_hidden[rows // rel_num, rel_dec_proto[rows // rel_num, 0]]
    rel = _ref_branch_loss(enc_hidden, rel_dec, rel_se[:, 0], rel_se[:, 1],
                           params["w_proj_rel"], params["b_proj_rel"],
                           params["w_cls_rel"], params["b_cls_rel"])

    head_se = head_pos.reshape(-1, 2)
    tail_se = tail_pos.reshape(-1, 2)
    head_dec = dec_hidden[rows, head_dec_proto[rows // head_num, 0]]
    tail_dec = dec_hidden[rows, tail_dec_proto[rows // head_num, 0]]
    head = _ref_branch_loss(enc_hidden, head_dec, head_se[:, 0], head_se[:, 1],
                            params["w_proj_head"], params["b_proj_head"],
                            params["w_cls_head"], params["b_cls_head"])
    tail = _ref_branch_loss(enc_hidden, tail_dec, tail_se[:, 0], tail_se[:, 1],
                            params["w_proj_head"], params["b_proj_head"],
                            params["w_cls_head"], params["b_cls_head"])
    return rel, head, tail


if __name__ == "__main__":
    # Small, T5-forward-implied shapes.  N = B*rel_num = 12 is deliberately not a
    # multiple of the 8-row tile so the ragged last row block is exercised.
    B, rel_num, head_num = 3, 4, 4
    N = B * rel_num
    S, Sd, D = 40, 8, 128

    key = jax.random.PRNGKey(0)
    keys = jax.random.split(key, 10)

    enc_hidden = jax.random.normal(keys[0], (N, S, D), jnp.float32)
    dec_hidden = jax.random.normal(keys[1], (N, Sd, D), jnp.float32)

    # nn.Linear(2d, d) / nn.Linear(d, 2) weights, stored pre-transposed as (in, out).
    def lin(kw, kb, fan_in, fan_out):
        bound = 1.0 / np.sqrt(fan_in)
        w = jax.random.uniform(kw, (fan_in, fan_out), jnp.float32, -bound, bound)
        bb = jax.random.uniform(kb, (1, fan_out), jnp.float32, -bound, bound)
        return w, bb

    w_proj_rel, b_proj_rel = lin(keys[2], keys[3], 2 * D, D)
    w_cls_rel, b_cls_rel = lin(keys[4], keys[5], D, 2)
    w_proj_head, b_proj_head = lin(keys[6], keys[7], 2 * D, D)
    w_cls_head, b_cls_head = lin(keys[8], keys[9], D, 2)
    params = dict(w_proj_rel=w_proj_rel, b_proj_rel=b_proj_rel,
                  w_cls_rel=w_cls_rel, b_cls_rel=b_cls_rel,
                  w_proj_head=w_proj_head, b_proj_head=b_proj_head,
                  w_cls_head=w_cls_head, b_cls_head=b_cls_head)

    # Span positions (start < end <= S) and decoder gather indices.
    starts_np = np.array([[1, 3, 0, 5], [2, 0, 4, 1], [7, 9, 12, 20]], dtype=np.int32)
    lens_np = np.array([[4, 6, 3, 7], [5, 2, 8, 3], [6, 10, 15, 19]], dtype=np.int32)
    rel_pos = jnp.stack([jnp.asarray(starts_np),
                         jnp.asarray(starts_np + lens_np)], axis=-1)       # (B, rel_num, 2)
    head_pos = jnp.stack([jnp.asarray(starts_np + 1),
                          jnp.asarray(starts_np + 1 + lens_np)], axis=-1)
    tail_pos = jnp.stack([jnp.asarray(starts_np),
                          jnp.asarray(starts_np + 2)], axis=-1)
    rel_dec_proto = jnp.array([[2], [5], [7]], dtype=jnp.int32)            # (B, 1)
    head_dec_proto = jnp.array([[1], [3], [0]], dtype=jnp.int32)
    tail_dec_proto = jnp.array([[0], [7], [4]], dtype=jnp.int32)

    base_loss = jnp.float32(2.0)       # stand-in for outputs.loss from the T5

    rel_ref, head_ref, tail_ref = _ref_aux_losses(
        enc_hidden, dec_hidden, rel_pos, rel_dec_proto,
        head_pos, head_dec_proto, tail_pos, tail_dec_proto, params)
    total_ref = base_loss + 0.1 * rel_ref + 0.1 * (head_ref + tail_ref)

    # 1) f32 path, default (auto) tiles: exact-semantics check (ragged row block).
    total_f32, aux_f32 = proto_t5_aux_forward(
        base_loss, enc_hidden, dec_hidden, rel_pos, rel_dec_proto,
        head_pos, head_dec_proto, tail_pos, tail_dec_proto, params,
        use_bf16_matmul=False)
    total_f32 = jax.block_until_ready(total_f32)
    np.testing.assert_allclose(np.asarray(aux_f32["rel"]), np.asarray(rel_ref),
                               rtol=5e-4, atol=5e-4)
    np.testing.assert_allclose(np.asarray(aux_f32["head"]), np.asarray(head_ref),
                               rtol=5e-4, atol=5e-4)
    np.testing.assert_allclose(np.asarray(aux_f32["tail"]), np.asarray(tail_ref),
                               rtol=5e-4, atol=5e-4)
    np.testing.assert_allclose(np.asarray(total_f32), np.asarray(total_ref),
                               rtol=5e-4, atol=5e-4)

    # 2) f32 path with forced seq chunking (S=40 -> chunks of 16, ragged last chunk):
    #    exercises the running-max accumulator across the "arbitrary" grid axis.
    total_chunked, _ = proto_t5_aux_forward(
        base_loss, enc_hidden, dec_hidden, rel_pos, rel_dec_proto,
        head_pos, head_dec_proto, tail_pos, tail_dec_proto, params,
        use_bf16_matmul=False, row_tile=8, seq_tile=16)
    total_chunked = jax.block_until_ready(total_chunked)
    np.testing.assert_allclose(np.asarray(total_chunked), np.asarray(total_ref),
                               rtol=5e-4, atol=5e-4)

    # 3) bf16 streaming path: enc_hidden handed over (and streamed) in bf16, bf16 MXU
    #    operands with f32 accumulate.  Compare against the reference evaluated on the
    #    same bf16-rounded encoder states (remaining error is bf16 matmul rounding).
    enc_bf16 = enc_hidden.astype(jnp.bfloat16)
    rel_rb, head_rb, tail_rb = _ref_aux_losses(
        enc_bf16.astype(jnp.float32), dec_hidden, rel_pos, rel_dec_proto,
        head_pos, head_dec_proto, tail_pos, tail_dec_proto, params)
    total_ref_bf16 = base_loss + 0.1 * rel_rb + 0.1 * (head_rb + tail_rb)
    total_bf16, _ = proto_t5_aux_forward(
        base_loss, enc_bf16, dec_hidden, rel_pos, rel_dec_proto,
        head_pos, head_dec_proto, tail_pos, tail_dec_proto, params,
        use_bf16_matmul=True)
    total_bf16 = jax.block_until_ready(total_bf16)
    np.testing.assert_allclose(np.asarray(total_bf16), np.asarray(total_ref_bf16),
                               rtol=3e-2, atol=3e-2)

    print("KERNEL_OK")
</pallas_src>

<mosaic_0001>
module attributes {stable_mosaic.version = 11 : i64} {
  func.func @_proto_aux_kernel(%arg0: i32, %arg1: i32, %arg2: memref<8x40x128xf32, #tpu.memory_space<vmem>>, %arg3: memref<8x2x1xi32, #tpu.memory_space<vmem>>, %arg4: memref<8x2x1xi32, #tpu.memory_space<vmem>>, %arg5: memref<8x2x1xi32, #tpu.memory_space<vmem>>, %arg6: memref<8x128xf32, #tpu.memory_space<vmem>>, %arg7: memref<8x128xf32, #tpu.memory_space<vmem>>, %arg8: memref<8x128xf32, #tpu.memory_space<vmem>>, %arg9: memref<128x128xf32, #tpu.memory_space<vmem>>, %arg10: memref<128x128xf32, #tpu.memory_space<vmem>>, %arg11: memref<1x128xf32, #tpu.memory_space<vmem>>, %arg12: memref<128x2xf32, #tpu.memory_space<vmem>>, %arg13: memref<1x2xf32, #tpu.memory_space<vmem>>, %arg14: memref<128x128xf32, #tpu.memory_space<vmem>>, %arg15: memref<128x128xf32, #tpu.memory_space<vmem>>, %arg16: memref<1x128xf32, #tpu.memory_space<vmem>>, %arg17: memref<128x2xf32, #tpu.memory_space<vmem>>, %arg18: memref<1x2xf32, #tpu.memory_space<vmem>>, %arg19: memref<8x128xf32, #tpu.memory_space<vmem>>, %arg20: memref<8x128xf32, #tpu.memory_space<vmem>>, %arg21: memref<8x128xf32, #tpu.memory_space<vmem>>, %arg22: memref<8x128xf32, #tpu.memory_space<vmem>>, %arg23: memref<8x128xf32, #tpu.memory_space<vmem>>, %arg24: memref<8x128xf32, #tpu.memory_space<vmem>>) attributes {dimension_semantics = [#tpu.dimension_semantics<parallel>, #tpu.dimension_semantics<arbitrary>], iteration_bounds = array<i64: 2, 1>, scalar_prefetch = 0 : i64, scratch_operands = 3 : i64, tpu.core_type = #tpu.core_type<tc>, window_params = [{transform_indices = @transform_0, window_bounds = array<i64: 8, 40, 128>}, {transform_indices = @transform_1, window_bounds = array<i64: 8, 2, 1>}, {transform_indices = @transform_2, window_bounds = array<i64: 8, 2, 1>}, {transform_indices = @transform_3, window_bounds = array<i64: 8, 2, 1>}, {transform_indices = @transform_4, window_bounds = array<i64: 8, 128>}, {transform_indices = @transform_5, window_bounds = array<i64: 8, 128>}, {transform_indices = @transform_6, window_bounds = array<i64: 8, 128>}, {pipeline_mode = #tpu.pipeline_mode<synchronous>, transform_indices = @transform_7, window_bounds = array<i64: 128, 128>}, {pipeline_mode = #tpu.pipeline_mode<synchronous>, transform_indices = @transform_8, window_bounds = array<i64: 128, 128>}, {pipeline_mode = #tpu.pipeline_mode<synchronous>, transform_indices = @transform_9, window_bounds = array<i64: 1, 128>}, {pipeline_mode = #tpu.pipeline_mode<synchronous>, transform_indices = @transform_10, window_bounds = array<i64: 128, 2>}, {pipeline_mode = #tpu.pipeline_mode<synchronous>, transform_indices = @transform_11, window_bounds = array<i64: 1, 2>}, {pipeline_mode = #tpu.pipeline_mode<synchronous>, transform_indices = @transform_12, window_bounds = array<i64: 128, 128>}, {pipeline_mode = #tpu.pipeline_mode<synchronous>, transform_indices = @transform_13, window_bounds = array<i64: 128, 128>}, {pipeline_mode = #tpu.pipeline_mode<synchronous>, transform_indices = @transform_14, window_bounds = array<i64: 1, 128>}, {pipeline_mode = #tpu.pipeline_mode<synchronous>, transform_indices = @transform_15, window_bounds = array<i64: 128, 2>}, {pipeline_mode = #tpu.pipeline_mode<synchronous>, transform_indices = @transform_16, window_bounds = array<i64: 1, 2>}, {transform_indices = @transform_17, window_bounds = array<i64: 8, 128>}, {transform_indices = @transform_18, window_bounds = array<i64: 8, 128>}, {transform_indices = @transform_19, window_bounds = array<i64: 8, 128>}]} {
    %c0_i32 = arith.constant 0 : i32
    %0 = arith.cmpi eq, %arg1, %c0_i32 : i32
    %1 = arith.extui %0 : i1 to i32
    %c0_i32_0 = arith.constant 0 : i32
    %2 = arith.cmpi ne, %1, %c0_i32_0 : i32
    scf.if %2 {
      %cst_31 = arith.constant -1.000000e+30 : f32
      %59 = vector.broadcast %cst_31 : f32 to vector<8x128xf32>
      %c0_32 = arith.constant 0 : index
      %c0_33 = arith.constant 0 : index
      %60 = vector.load %arg22[%c0_32, %c0_33] : memref<8x128xf32, #tpu.memory_space<vmem>>, vector<8x128xf32>
      tpu.vector_store %arg22[%c0_32, %c0_33], %59 {strides = array<i32>} : memref<8x128xf32, #tpu.memory_space<vmem>>, vector<8x128xf32>,
      %c0_34 = arith.constant 0 : index
      %c0_35 = arith.constant 0 : index
      %61 = vector.load %arg23[%c0_34, %c0_35] : memref<8x128xf32, #tpu.memory_space<vmem>>, vector<8x128xf32>
      tpu.vector_store %arg23[%c0_34, %c0_35], %59 {strides = array<i32>} : memref<8x128xf32, #tpu.memory_space<vmem>>, vector<8x128xf32>,
      %c0_36 = arith.constant 0 : index
      %c0_37 = arith.constant 0 : index
      %62 = vector.load %arg24[%c0_36, %c0_37] : memref<8x128xf32, #tpu.memory_space<vmem>>, vector<8x128xf32>
      tpu.vector_store %arg24[%c0_36, %c0_37], %59 {strides = array<i32>} : memref<8x128xf32, #tpu.memory_space<vmem>>, vector<8x128xf32>,
    } else {
    }
    %c0 = arith.constant 0 : index
    %c0_1 = arith.constant 0 : index
    %c0_2 = arith.constant 0 : index
    %3 = vector.load %arg2[%c0, %c0_1, %c0_2] : memref<8x40x128xf32, #tpu.memory_space<vmem>>, vector<8x40x128xf32>
    %c40_i32 = arith.constant 40 : i32
    %4 = arith.muli %arg1, %c40_i32 : i32
    %5 = tpu.iota {dimensions = array<i32: 1>} : vector<8x40x1xi32>
    %6 = vector.broadcast %4 : i32 to vector<8x40x1xi32>
    %7 = arith.addi %6, %5 : vector<8x40x1xi32>
    %c0_3 = arith.constant 0 : index
    %c0_4 = arith.constant 0 : index
    %8 = vector.load %arg22[%c0_3, %c0_4] : memref<8x128xf32, #tpu.memory_space<vmem>>, vector<8x128xf32>
    %c0_5 = arith.constant 0 : index
    %c0_6 = arith.constant 0 : index
    %c0_7 = arith.constant 0 : index
    %9 = vector.load %arg3[%c0_5, %c0_6, %c0_7] : memref<8x2x1xi32, #tpu.memory_space<vmem>>, vector<8x2x1xi32>
    %10 = vector.extract_strided_slice %9 {offsets = [0, 0, 0], sizes = [8, 1, 1], strides = [1, 1, 1]} : vector<8x2x1xi32> to vector<8x1x1xi32>
    %11 = vector.extract_strided_slice %9 {offsets = [0, 1, 0], sizes = [8, 1, 1], strides = [1, 1, 1]} : vector<8x2x1xi32> to vector<8x1x1xi32>
    %12 = vector.broadcast %10 : vector<8x1x1xi32> to vector<8x40x1xi32>
    %13 = arith.cmpi sge, %7, %12 : vector<8x40x1xi32>
    %14 = vector.broadcast %11 : vector<8x1x1xi32> to vector<8x40x1xi32>
    %15 = arith.cmpi slt, %7, %14 : vector<8x40x1xi32>
    %16 = arith.andi %13, %15 : vector<8x40x1xi1>
    %cst = arith.constant -1.000000e+30 : f32
    %17 = vector.shape_cast %16 : vector<8x40x1xi1> to vector<8x40x1xi1>
    %18 = vector.broadcast %17 : vector<8x40x1xi1> to vector<8x40x128xi1>
    %19 = vector.broadcast %cst : f32 to vector<8x40x128xf32>
    %20 = arith.select %18, %3, %19 : vector<8x40x128xi1>, vector<8x40x128xf32>
    %cst_8 = arith.constant dense<0xFF800000> : vector<8x128xf32>
    %21 = vector.multi_reduction <maximumf>, %20, %cst_8 [1] : vector<8x40x128xf32> to vector<8x128xf32>
    %22 = arith.maximumf %8, %21 : vector<8x128xf32>
    %c0_9 = arith.constant 0 : index
    %c0_10 = arith.constant 0 : index
    %23 = vector.load %arg22[%c0_9, %c0_10] : memref<8x128xf32, #tpu.memory_space<vmem>>, vector<8x128xf32>
    tpu.vector_store %arg22[%c0_9, %c0_10], %22 {strides = array<i32>} : memref<8x128xf32, #tpu.memory_space<vmem>>, vector<8x128xf32>,
    %c0_11 = arith.constant 0 : index
    %c0_12 = arith.constant 0 : index
    %24 = vector.load %arg23[%c0_11, %c0_12] : memref<8x128xf32, #tpu.memory_space<vmem>>, vector<8x128xf32>
    %c0_13 = arith.constant 0 : index
    %c0_14 = arith.constant 0 : index
    %c0_15 = arith.constant 0 : index
    %25 = vector.load %arg4[%c0_13, %c0_14, %c0_15] : memref<8x2x1xi32, #tpu.memory_space<vmem>>, vector<8x2x1xi32>
    %26 = vector.extract_strided_slice %25 {offsets = [0, 0, 0], sizes = [8, 1, 1], strides = [1, 1, 1]} : vector<8x2x1xi32> to vector<8x1x1xi32>
    %27 = vector.extract_strided_slice %25 {offsets = [0, 1, 0], sizes = [8, 1, 1], strides = [1, 1, 1]} : vector<8x2x1xi32> to vector<8x1x1xi32>
    %28 = vector.broadcast %26 : vector<8x1x1xi32> to vector<8x40x1xi32>
    %29 = arith.cmpi sge, %7, %28 : vector<8x40x1xi32>
    %30 = vector.broadcast %27 : vector<8x1x1xi32> to vector<8x40x1xi32>
    %31 = arith.cmpi slt, %7, %30 : vector<8x40x1xi32>
    %32 = arith.andi %29, %31 : vector<8x40x1xi1>
    %cst_16 = arith.constant -1.000000e+30 : f32
    %33 = vector.shape_cast %32 : vector<8x40x1xi1> to vector<8x40x1xi1>
    %34 = vector.broadcast %33 : vector<8x40x1xi1> to vector<8x40x128xi1>
    %35 = vector.broadcast %cst_16 : f32 to vector<8x40x128xf32>
    %36 = arith.select %34, %3, %35 : vector<8x40x128xi1>, vector<8x40x128xf32>
    %cst_17 = arith.constant dense<0xFF800000> : vector<8x128xf32>
    %37 = vector.multi_reduction <maximumf>, %36, %cst_17 [1] : vector<8x40x128xf32> to vector<8x128xf32>
    %38 = arith.maximumf %24, %37 : vector<8x128xf32>
    %c0_18 = arith.constant 0 : index
    %c0_19 = arith.constant 0 : index
    %39 = vector.load %arg23[%c0_18, %c0_19] : memref<8x128xf32, #tpu.memory_space<vmem>>, vector<8x128xf32>
    tpu.vector_store %arg23[%c0_18, %c0_19], %38 {strides = array<i32>} : memref<8x128xf32, #tpu.memory_space<vmem>>, vector<8x128xf32>,
    %c0_20 = arith.constant 0 : index
    %c0_21 = arith.constant 0 : index
    %40 = vector.load %arg24[%c0_20, %c0_21] : memref<8x128xf32, #tpu.memory_space<vmem>>, vector<8x128xf32>
    %c0_22 = arith.constant 0 : index
    %c0_23 = arith.constant 0 : index
    %c0_24 = arith.constant 0 : index
    %41 = vector.load %arg5[%c0_22, %c0_23, %c0_24] : memref<8x2x1xi32, #tpu.memory_space<vmem>>, vector<8x2x1xi32>
    %42 = vector.extract_strided_slice %41 {offsets = [0, 0, 0], sizes = [8, 1, 1], strides = [1, 1, 1]} : vector<8x2x1xi32> to vector<8x1x1xi32>
    %43 = vector.extract_strided_slice %41 {offsets = [0, 1, 0], sizes = [8, 1, 1], strides = [1, 1, 1]} : vector<8x2x1xi32> to vector<8x1x1xi32>
    %44 = vector.broadcast %42 : vector<8x1x1xi32> to vector<8x40x1xi32>
    %45 = arith.cmpi sge, %7, %44 : vector<8x40x1xi32>
    %46 = vector.broadcast %43 : vector<8x1x1xi32> to vector<8x40x1xi32>
    %47 = arith.cmpi slt, %7, %46 : vector<8x40x1xi32>
    %48 = arith.andi %45, %47 : vector<8x40x1xi1>
    %cst_25 = arith.constant -1.000000e+30 : f32
    %49 = vector.shape_cast %48 : vector<8x40x1xi1> to vector<8x40x1xi1>
    %50 = vector.broadcast %49 : vector<8x40x1xi1> to vector<8x40x128xi1>
    %51 = vector.broadcast %cst_25 : f32 to vector<8x40x128xf32>
    %52 = arith.select %50, %3, %51 : vector<8x40x128xi1>, vector<8x40x128xf32>
    %cst_26 = arith.constant dense<0xFF800000> : vector<8x128xf32>
    %53 = vector.multi_reduction <maximumf>, %52, %cst_26 [1] : vector<8x40x128xf32> to vector<8x128xf32>
    %54 = arith.maximumf %40, %53 : vector<8x128xf32>
    %c0_27 = arith.constant 0 : index
    %c0_28 = arith.constant 0 : index
    %55 = vector.load %arg24[%c0_27, %c0_28] : memref<8x128xf32, #tpu.memory_space<vmem>>, vector<8x128xf32>
    tpu.vector_store %arg24[%c0_27, %c0_28], %54 {strides = array<i32>} : memref<8x128xf32, #tpu.memory_space<vmem>>, vector<8x128xf32>,
    %c0_i32_29 = arith.constant 0 : i32
    %56 = arith.cmpi eq, %arg1, %c0_i32_29 : i32
    %57 = arith.extui %56 : i1 to i32
    %c0_i32_30 = arith.constant 0 : i32
    %58 = arith.cmpi ne, %57, %c0_i32_30 : i32
    scf.if %58 {
      %c0_31 = arith.constant 0 : index
      %c0_32 = arith.constant 0 : index
      %59 = vector.load %arg9[%c0_31, %c0_32] : memref<128x128xf32, #tpu.memory_space<vmem>>, vector<128x128xf32>
      %c0_33 = arith.constant 0 : index
      %c0_34 = arith.constant 0 : index
      %60 = vector.load %arg10[%c0_33, %c0_34] : memref<128x128xf32, #tpu.memory_space<vmem>>, vector<128x128xf32>
      %c0_35 = arith.constant 0 : index
      %c0_36 = arith.constant 0 : index
      %61 = vector.load %arg14[%c0_35, %c0_36] : memref<128x128xf32, #tpu.memory_space<vmem>>, vector<128x128xf32>
      %c0_37 = arith.constant 0 : index
      %c0_38 = arith.constant 0 : index
      %62 = vector.load %arg15[%c0_37, %c0_38] : memref<128x128xf32, #tpu.memory_space<vmem>>, vector<128x128xf32>
      %c0_39 = arith.constant 0 : index
      %c0_40 = arith.constant 0 : index
      %63 = vector.load %arg22[%c0_39, %c0_40] : memref<8x128xf32, #tpu.memory_space<vmem>>, vector<8x128xf32>
      %c0_41 = arith.constant 0 : index
      %c0_42 = arith.constant 0 : index
      %64 = vector.load %arg6[%c0_41, %c0_42] : memref<8x128xf32, #tpu.memory_space<vmem>>, vector<8x128xf32>
      %c0_43 = arith.constant 0 : index
      %c0_44 = arith.constant 0 : index
      %65 = vector.load %arg11[%c0_43, %c0_44] : memref<1x128xf32, #tpu.memory_space<vmem>>, vector<1x128xf32>
      %c0_45 = arith.constant 0 : index
      %c0_46 = arith.constant 0 : index
      %66 = vector.load %arg12[%c0_45, %c0_46] : memref<128x2xf32, #tpu.memory_space<vmem>>, vector<128x2xf32>
      %c0_47 = arith.constant 0 : index
      %c0_48 = arith.constant 0 : index
      %67 = vector.load %arg13[%c0_47, %c0_48] : memref<1x2xf32, #tpu.memory_space<vmem>>, vector<1x2xf32>
      %cst_49 = arith.constant dense<0.000000e+00> : vector<8x128xf32>
      %68 = tpu.matmul %63, %59, %cst_49 {dimension_numbers = #tpu.dot_dimension_numbers<[1], [0], [0], [1], [0, 0, 1, 1], [], []>} : vector<8x128xf32>, vector<128x128xf32>, vector<8x128xf32> -> vector<8x128xf32>
      %cst_50 = arith.constant dense<0.000000e+00> : vector<8x128xf32>
      %69 = tpu.matmul %64, %60, %cst_50 {dimension_numbers = #tpu.dot_dimension_numbers<[1], [0], [0], [1], [0, 0, 1, 1], [], []>} : vector<8x128xf32>, vector<128x128xf32>, vector<8x128xf32> -> vector<8x128xf32>
      %70 = arith.addf %68, %69 : vector<8x128xf32>
      %71 = vector.broadcast %65 : vector<1x128xf32> to vector<8x128xf32>
      %72 = arith.addf %70, %71 : vector<8x128xf32>
      %cst_51 = arith.constant 0.000000e+00 : f32
      %73 = vector.broadcast %cst_51 : f32 to vector<8x128xf32>
      %74 = arith.maximumf %72, %73 : vector<8x128xf32>
      %cst_52 = arith.constant dense<0.000000e+00> : vector<8x2xf32>
      %75 = tpu.matmul %74, %66, %cst_52 {dimension_numbers = #tpu.dot_dimension_numbers<[1], [0], [0], [1], [0, 0, 1, 1], [], []>} : vector<8x128xf32>, vector<128x2xf32>, vector<8x2xf32> -> vector<8x2xf32>
      %76 = vector.broadcast %67 : vector<1x2xf32> to vector<8x2xf32>
      %77 = arith.addf %75, %76 : vector<8x2xf32>
      %78 = vector.extract_strided_slice %77 {offsets = [0, 0], sizes = [8, 1], strides = [1, 1]} : vector<8x2xf32> to vector<8x1xf32>
      %79 = vector.extract_strided_slice %77 {offsets = [0, 1], sizes = [8, 1], strides = [1, 1]} : vector<8x2xf32> to vector<8x1xf32>
      %80 = arith.subf %78, %79 : vector<8x1xf32>
      %cst_53 = arith.constant 0.000000e+00 : f32
      %81 = vector.broadcast %cst_53 : f32 to vector<8x1xf32>
      %82 = arith.maximumf %80, %81 : vector<8x1xf32>
      %83 = math.absf %80 : vector<8x1xf32>
      %cst_54 = arith.constant 0.000000e+00 : f32
      %84 = vector.broadcast %cst_54 : f32 to vector<8x1xf32>
      %85 = arith.subf %84, %83 : vector<8x1xf32>
      %86 = math.exp %85 : vector<8x1xf32>
      %cst_55 = arith.constant 1.000000e+00 : f32
      %87 = vector.broadcast %cst_55 : f32 to vector<8x1xf32>
      %88 = arith.addf %87, %86 : vector<8x1xf32>
      %89 = math.log %88 : vector<8x1xf32>
      %90 = arith.addf %82, %89 : vector<8x1xf32>
      %c0_56 = arith.constant 0 : index
      %c0_57 = arith.constant 0 : index
      %91 = vector.load %arg23[%c0_56, %c0_57] : memref<8x128xf32, #tpu.memory_space<vmem>>, vector<8x128xf32>
      %c0_58 = arith.constant 0 : index
      %c0_59 = arith.constant 0 : index
      %92 = vector.load %arg7[%c0_58, %c0_59] : memref<8x128xf32, #tpu.memory_space<vmem>>, vector<8x128xf32>
      %c0_60 = arith.constant 0 : index
      %c0_61 = arith.constant 0 : index
      %93 = vector.load %arg16[%c0_60, %c0_61] : memref<1x128xf32, #tpu.memory_space<vmem>>, vector<1x128xf32>
      %c0_62 = arith.constant 0 : index
      %c0_63 = arith.constant 0 : index
      %94 = vector.load %arg17[%c0_62, %c0_63] : memref<128x2xf32, #tpu.memory_space<vmem>>, vector<128x2xf32>
      %c0_64 = arith.constant 0 : index
      %c0_65 = arith.constant 0 : index
      %95 = vector.load %arg18[%c0_64, %c0_65] : memref<1x2xf32, #tpu.memory_space<vmem>>, vector<1x2xf32>
      %cst_66 = arith.constant dense<0.000000e+00> : vector<8x128xf32>
      %96 = tpu.matmul %91, %61, %cst_66 {dimension_numbers = #tpu.dot_dimension_numbers<[1], [0], [0], [1], [0, 0, 1, 1], [], []>} : vector<8x128xf32>, vector<128x128xf32>, vector<8x128xf32> -> vector<8x128xf32>
      %cst_67 = arith.constant dense<0.000000e+00> : vector<8x128xf32>
      %97 = tpu.matmul %92, %62, %cst_67 {dimension_numbers = #tpu.dot_dimension_numbers<[1], [0], [0], [1], [0, 0, 1, 1], [], []>} : vector<8x128xf32>, vector<128x128xf32>, vector<8x128xf32> -> vector<8x128xf32>
      %98 = arith.addf %96, %97 : vector<8x128xf32>
      %99 = vector.broadcast %93 : vector<1x128xf32> to vector<8x128xf32>
      %100 = arith.addf %98, %99 : vector<8x128xf32>
      %cst_68 = arith.constant 0.000000e+00 : f32
      %101 = vector.broadcast %cst_68 : f32 to vector<8x128xf32>
      %102 = arith.maximumf %100, %101 : vector<8x128xf32>
      %cst_69 = arith.constant dense<0.000000e+00> : vector<8x2xf32>
      %103 = tpu.matmul %102, %94, %cst_69 {dimension_numbers = #tpu.dot_dimension_numbers<[1], [0], [0], [1], [0, 0, 1, 1], [], []>} : vector<8x128xf32>, vector<128x2xf32>, vector<8x2xf32> -> vector<8x2xf32>
      %104 = vector.broadcast %95 : vector<1x2xf32> to vector<8x2xf32>
      %105 = arith.addf %103, %104 : vector<8x2xf32>
      %106 = vector.extract_strided_slice %105 {offsets = [0, 0], sizes = [8, 1], strides = [1, 1]} : vector<8x2xf32> to vector<8x1xf32>
      %107 = vector.extract_strided_slice %105 {offsets = [0, 1], sizes = [8, 1], strides = [1, 1]} : vector<8x2xf32> to vector<8x1xf32>
      %108 = arith.subf %106, %107 : vector<8x1xf32>
      %cst_70 = arith.constant 0.000000e+00 : f32
      %109 = vector.broadcast %cst_70 : f32 to vector<8x1xf32>
      %110 = arith.maximumf %108, %109 : vector<8x1xf32>
      %111 = math.absf %108 : vector<8x1xf32>
      %cst_71 = arith.constant 0.000000e+00 : f32
      %112 = vector.broadcast %cst_71 : f32 to vector<8x1xf32>
      %113 = arith.subf %112, %111 : vector<8x1xf32>
      %114 = math.exp %113 : vector<8x1xf32>
      %cst_72 = arith.constant 1.000000e+00 : f32
      %115 = vector.broadcast %cst_72 : f32 to vector<8x1xf32>
      %116 = arith.addf %115, %114 : vector<8x1xf32>
      %117 = math.log %116 : vector<8x1xf32>
      %118 = arith.addf %110, %117 : vector<8x1xf32>
      %c0_73 = arith.constant 0 : index
      %c0_74 = arith.constant 0 : index
      %119 = vector.load %arg24[%c0_73, %c0_74] : memref<8x128xf32, #tpu.memory_space<vmem>>, vector<8x128xf32>
      %c0_75 = arith.constant 0 : index
      %c0_76 = arith.constant 0 : index
      %120 = vector.load %arg8[%c0_75, %c0_76] : memref<8x128xf32, #tpu.memory_space<vmem>>, vector<8x128xf32>
      %c0_77 = arith.constant 0 : index
      %c0_78 = arith.constant 0 : index
      %121 = vector.load %arg16[%c0_77, %c0_78] : memref<1x128xf32, #tpu.memory_space<vmem>>, vector<1x128xf32>
      %c0_79 = arith.constant 0 : index
      %c0_80 = arith.constant 0 : index
      %122 = vector.load %arg17[%c0_79, %c0_80] : memref<128x2xf32, #tpu.memory_space<vmem>>, vector<128x2xf32>
      %c0_81 = arith.constant 0 : index
      %c0_82 = arith.constant 0 : index
      %123 = vector.load %arg18[%c0_81, %c0_82] : memref<1x2xf32, #tpu.memory_space<vmem>>, vector<1x2xf32>
      %cst_83 = arith.constant dense<0.000000e+00> : vector<8x128xf32>
      %124 = tpu.matmul %119, %61, %cst_83 {dimension_numbers = #tpu.dot_dimension_numbers<[1], [0], [0], [1], [0, 0, 1, 1], [], []>} : vector<8x128xf32>, vector<128x128xf32>, vector<8x128xf32> -> vector<8x128xf32>
      %cst_84 = arith.constant dense<0.000000e+00> : vector<8x128xf32>
      %125 = tpu.matmul %120, %62, %cst_84 {dimension_numbers = #tpu.dot_dimension_numbers<[1], [0], [0], [1], [0, 0, 1, 1], [], []>} : vector<8x128xf32>, vector<128x128xf32>, vector<8x128xf32> -> vector<8x128xf32>
      %126 = arith.addf %124, %125 : vector<8x128xf32>
      %127 = vector.broadcast %121 : vector<1x128xf32> to vector<8x128xf32>
      %128 = arith.addf %126, %127 : vector<8x128xf32>
      %cst_85 = arith.constant 0.000000e+00 : f32
      %129 = vector.broadcast %cst_85 : f32 to vector<8x128xf32>
      %130 = arith.maximumf %128, %129 : vector<8x128xf32>
      %cst_86 = arith.constant dense<0.000000e+00> : vector<8x2xf32>
      %131 = tpu.matmul %130, %122, %cst_86 {dimension_numbers = #tpu.dot_dimension_numbers<[1], [0], [0], [1], [0, 0, 1, 1], [], []>} : vector<8x128xf32>, vector<128x2xf32>, vector<8x2xf32> -> vector<8x2xf32>
      %132 = vector.broadcast %123 : vector<1x2xf32> to vector<8x2xf32>
      %133 = arith.addf %131, %132 : vector<8x2xf32>
      %134 = vector.extract_strided_slice %133 {offsets = [0, 0], sizes = [8, 1], strides = [1, 1]} : vector<8x2xf32> to vector<8x1xf32>
      %135 = vector.extract_strided_slice %133 {offsets = [0, 1], sizes = [8, 1], strides = [1, 1]} : vector<8x2xf32> to vector<8x1xf32>
      %136 = arith.subf %134, %135 : vector<8x1xf32>
      %cst_87 = arith.constant 0.000000e+00 : f32
      %137 = vector.broadcast %cst_87 : f32 to vector<8x1xf32>
      %138 = arith.maximumf %136, %137 : vector<8x1xf32>
      %139 = math.absf %136 : vector<8x1xf32>
      %cst_88 = arith.constant 0.000000e+00 : f32
      %140 = vector.broadcast %cst_88 : f32 to vector<8x1xf32>
      %141 = arith.subf %140, %139 : vector<8x1xf32>
      %142 = math.exp %141 : vector<8x1xf32>
      %cst_89 = arith.constant 1.000000e+00 : f32
      %143 = vector.broadcast %cst_89 : f32 to vector<8x1xf32>
      %144 = arith.addf %143, %142 : vector<8x1xf32>
      %145 = math.log %144 : vector<8x1xf32>
      %146 = arith.addf %138, %145 : vector<8x1xf32>
      %147 = vector.shape_cast %90 : vector<8x1xf32> to vector<8x1xf32>
      %148 = vector.broadcast %147 : vector<8x1xf32> to vector<8x128xf32>
      %c0_90 = arith.constant 0 : index
      %c0_91 = arith.constant 0 : index
      %149 = vector.load %arg19[%c0_90, %c0_91] : memref<8x128xf32, #tpu.memory_space<vmem>>, vector<8x128xf32>
      tpu.vector_store %arg19[%c0_90, %c0_91], %148 {strides = array<i32>} : memref<8x128xf32, #tpu.memory_space<vmem>>, vector<8x128xf32>,
      %150 = vector.shape_cast %118 : vector<8x1xf32> to vector<8x1xf32>
      %151 = vector.broadcast %150 : vector<8x1xf32> to vector<8x128xf32>
      %c0_92 = arith.constant 0 : index
      %c0_93 = arith.constant 0 : index
      %152 = vector.load %arg20[%c0_92, %c0_93] : memref<8x128xf32, #tpu.memory_space<vmem>>, vector<8x128xf32>
      tpu.vector_store %arg20[%c0_92, %c0_93], %151 {strides = array<i32>} : memref<8x128xf32, #tpu.memory_space<vmem>>, vector<8x128xf32>,
      %153 = vector.shape_cast %146 : vector<8x1xf32> to vector<8x1xf32>
      %154 = vector.broadcast %153 : vector<8x1xf32> to vector<8x128xf32>
      %c0_94 = arith.constant 0 : index
      %c0_95 = arith.constant 0 : index
      %155 = vector.load %arg21[%c0_94, %c0_95] : memref<8x128xf32, #tpu.memory_space<vmem>>, vector<8x128xf32>
      tpu.vector_store %arg21[%c0_94, %c0_95], %154 {strides = array<i32>} : memref<8x128xf32, #tpu.memory_space<vmem>>, vector<8x128xf32>,
    } else {
    }
    return
  }
  func.func @transform_0(%arg0: i32, %arg1: i32) -> (i32, i32, i32) {
    %c0_i32 = arith.constant 0 : i32
    %c0_i32_0 = arith.constant 0 : i32
    return %arg0, %arg1, %c0_i32 : i32, i32, i32
  }
  func.func @transform_1(%arg0: i32, %arg1: i32) -> (i32, i32, i32) {
    %c0_i32 = arith.constant 0 : i32
    %c0_i32_0 = arith.constant 0 : i32
    %c0_i32_1 = arith.constant 0 : i32
    return %arg0, %c0_i32, %c0_i32_0 : i32, i32, i32
  }
  func.func @transform_2(%arg0: i32, %arg1: i32) -> (i32, i32, i32) {
    %c0_i32 = arith.constant 0 : i32
    %c0_i32_0 = arith.constant 0 : i32
    %c0_i32_1 = arith.constant 0 : i32
    return %arg0, %c0_i32, %c0_i32_0 : i32, i32, i32
  }
  func.func @transform_3(%arg0: i32, %arg1: i32) -> (i32, i32, i32) {
    %c0_i32 = arith.constant 0 : i32
    %c0_i32_0 = arith.constant 0 : i32
    %c0_i32_1 = arith.constant 0 : i32
    return %arg0, %c0_i32, %c0_i32_0 : i32, i32, i32
  }
  func.func @transform_4(%arg0: i32, %arg1: i32) -> (i32, i32) {
    %c0_i32 = arith.constant 0 : i32
    %c0_i32_0 = arith.constant 0 : i32
    return %arg0, %c0_i32 : i32, i32
  }
  func.func @transform_5(%arg0: i32, %arg1: i32) -> (i32, i32) {
    %c0_i32 = arith.constant 0 : i32
    %c0_i32_0 = arith.constant 0 : i32
    return %arg0, %c0_i32 : i32, i32
  }
  func.func @transform_6(%arg0: i32, %arg1: i32) -> (i32, i32) {
    %c0_i32 = arith.constant 0 : i32
    %c0_i32_0 = arith.constant 0 : i32
    return %arg0, %c0_i32 : i32, i32
  }
  func.func @transform_7(%arg0: i32, %arg1: i32) -> (i32, i32) {
    %c0_i32 = arith.constant 0 : i32
    %c0_i32_0 = arith.constant 0 : i32
    %c0_i32_1 = arith.constant 0 : i32
    return %c0_i32, %c0_i32_0 : i32, i32
  }
  func.func @transform_8(%arg0: i32, %arg1: i32) -> (i32, i32) {
    %c0_i32 = arith.constant 0 : i32
    %c0_i32_0 = arith.constant 0 : i32
    %c0_i32_1 = arith.constant 0 : i32
    return %c0_i32, %c0_i32_0 : i32, i32
  }
  func.func @transform_9(%arg0: i32, %arg1: i32) -> (i32, i32) {
    %c0_i32 = arith.constant 0 : i32
    %c0_i32_0 = arith.constant 0 : i32
    %c0_i32_1 = arith.constant 0 : i32
    return %c0_i32, %c0_i32_0 : i32, i32
  }
  func.func @transform_10(%arg0: i32, %arg1: i32) -> (i32, i32) {
    %c0_i32 = arith.constant 0 : i32
    %c0_i32_0 = arith.constant 0 : i32
    %c0_i32_1 = arith.constant 0 : i32
    return %c0_i32, %c0_i32_0 : i32, i32
  }
  func.func @transform_11(%arg0: i32, %arg1: i32) -> (i32, i32) {
    %c0_i32 = arith.constant 0 : i32
    %c0_i32_0 = arith.constant 0 : i32
    %c0_i32_1 = arith.constant 0 : i32
    return %c0_i32, %c0_i32_0 : i32, i32
  }
  func.func @transform_12(%arg0: i32, %arg1: i32) -> (i32, i32) {
    %c0_i32 = arith.constant 0 : i32
    %c0_i32_0 = arith.constant 0 : i32
    %c0_i32_1 = arith.constant 0 : i32
    return %c0_i32, %c0_i32_0 : i32, i32
  }
  func.func @transform_13(%arg0: i32, %arg1: i32) -> (i32, i32) {
    %c0_i32 = arith.constant 0 : i32
    %c0_i32_0 = arith.constant 0 : i32
    %c0_i32_1 = arith.constant 0 : i32
    return %c0_i32, %c0_i32_0 : i32, i32
  }
  func.func @transform_14(%arg0: i32, %arg1: i32) -> (i32, i32) {
    %c0_i32 = arith.constant 0 : i32
    %c0_i32_0 = arith.constant 0 : i32
    %c0_i32_1 = arith.constant 0 : i32
    return %c0_i32, %c0_i32_0 : i32, i32
  }
  func.func @transform_15(%arg0: i32, %arg1: i32) -> (i32, i32) {
    %c0_i32 = arith.constant 0 : i32
    %c0_i32_0 = arith.constant 0 : i32
    %c0_i32_1 = arith.constant 0 : i32
    return %c0_i32, %c0_i32_0 : i32, i32
  }
  func.func @transform_16(%arg0: i32, %arg1: i32) -> (i32, i32) {
    %c0_i32 = arith.constant 0 : i32
    %c0_i32_0 = arith.constant 0 : i32
    %c0_i32_1 = arith.constant 0 : i32
    return %c0_i32, %c0_i32_0 : i32, i32
  }
  func.func @transform_17(%arg0: i32, %arg1: i32) -> (i32, i32) {
    %c0_i32 = arith.constant 0 : i32
    %c0_i32_0 = arith.constant 0 : i32
    return %arg0, %c0_i32 : i32, i32
  }
  func.func @transform_18(%arg0: i32, %arg1: i32) -> (i32, i32) {
    %c0_i32 = arith.constant 0 : i32
    %c0_i32_0 = arith.constant 0 : i32
    return %arg0, %c0_i32 : i32, i32
  }
  func.func @transform_19(%arg0: i32, %arg1: i32) -> (i32, i32) {
    %c0_i32 = arith.constant 0 : i32
    %c0_i32_0 = arith.constant 0 : i32
    return %arg0, %c0_i32 : i32, i32
  }
}

module attributes {stable_mosaic.version = 11 : i64} {
  func.func @_proto_aux_kernel(%arg0: i32, %arg1: i32, %arg2: memref<8x40x128xf32, #tpu.memory_space<vmem>>, %arg3: memref<8x2x1xi32, #tpu.memory_space<vmem>>, %arg4: memref<8x2x1xi32, #tpu.memory_space<vmem>>, %arg5: memref<8x2x1xi32, #tpu.memory_space<vmem>>, %arg6: memref<8x128xf32, #tpu.memory_space<vmem>>, %arg7: memref<8x128xf32, #tpu.memory_space<vmem>>, %arg8: memref<8x128xf32, #tpu.memory_space<vmem>>, %arg9: memref<128x128xf32, #tpu.memory_space<vmem>>, %arg10: memref<128x128xf32, #tpu.memory_space<vmem>>, %arg11: memref<1x128xf32, #tpu.memory_space<vmem>>, %arg12: memref<128x2xf32, #tpu.memory_space<vmem>>, %arg13: memref<1x2xf32, #tpu.memory_space<vmem>>, %arg14: memref<128x128xf32, #tpu.memory_space<vmem>>, %arg15: memref<128x128xf32, #tpu.memory_space<vmem>>, %arg16: memref<1x128xf32, #tpu.memory_space<vmem>>, %arg17: memref<128x2xf32, #tpu.memory_space<vmem>>, %arg18: memref<1x2xf32, #tpu.memory_space<vmem>>, %arg19: memref<8x128xf32, #tpu.memory_space<vmem>>, %arg20: memref<8x128xf32, #tpu.memory_space<vmem>>, %arg21: memref<8x128xf32, #tpu.memory_space<vmem>>, %arg22: memref<8x128xf32, #tpu.memory_space<vmem>>, %arg23: memref<8x128xf32, #tpu.memory_space<vmem>>, %arg24: memref<8x128xf32, #tpu.memory_space<vmem>>) attributes {dimension_semantics = [#tpu.dimension_semantics<parallel>, #tpu.dimension_semantics<arbitrary>], iteration_bounds = array<i64: 2, 1>, scalar_prefetch = 0 : i64, scratch_operands = 3 : i64, tpu.core_type = #tpu.core_type<tc>, window_params = [{transform_indices = @transform_0, window_bounds = array<i64: 8, 40, 128>}, {transform_indices = @transform_1, window_bounds = array<i64: 8, 2, 1>}, {transform_indices = @transform_2, window_bounds = array<i64: 8, 2, 1>}, {transform_indices = @transform_3, window_bounds = array<i64: 8, 2, 1>}, {transform_indices = @transform_4, window_bounds = array<i64: 8, 128>}, {transform_indices = @transform_5, window_bounds = array<i64: 8, 128>}, {transform_indices = @transform_6, window_bounds = array<i64: 8, 128>}, {pipeline_mode = #tpu.pipeline_mode<synchronous>, transform_indices = @transform_7, window_bounds = array<i64: 128, 128>}, {pipeline_mode = #tpu.pipeline_mode<synchronous>, transform_indices = @transform_8, window_bounds = array<i64: 128, 128>}, {pipeline_mode = #tpu.pipeline_mode<synchronous>, transform_indices = @transform_9, window_bounds = array<i64: 1, 128>}, {pipeline_mode = #tpu.pipeline_mode<synchronous>, transform_indices = @transform_10, window_bounds = array<i64: 128, 2>}, {pipeline_mode = #tpu.pipeline_mode<synchronous>, transform_indices = @transform_11, window_bounds = array<i64: 1, 2>}, {pipeline_mode = #tpu.pipeline_mode<synchronous>, transform_indices = @transform_12, window_bounds = array<i64: 128, 128>}, {pipeline_mode = #tpu.pipeline_mode<synchronous>, transform_indices = @transform_13, window_bounds = array<i64: 128, 128>}, {pipeline_mode = #tpu.pipeline_mode<synchronous>, transform_indices = @transform_14, window_bounds = array<i64: 1, 128>}, {pipeline_mode = #tpu.pipeline_mode<synchronous>, transform_indices = @transform_15, window_bounds = array<i64: 128, 2>}, {pipeline_mode = #tpu.pipeline_mode<synchronous>, transform_indices = @transform_16, window_bounds = array<i64: 1, 2>}, {transform_indices = @transform_17, window_bounds = array<i64: 8, 128>}, {transform_indices = @transform_18, window_bounds = array<i64: 8, 128>}, {transform_indices = @transform_19, window_bounds = array<i64: 8, 128>}]} {
    %c0_i32 = arith.constant 0 : i32
    %0 = arith.cmpi eq, %arg1, %c0_i32 : i32
    %1 = arith.extui %0 : i1 to i32
    %c0_i32_0 = arith.constant 0 : i32
    %2 = arith.cmpi ne, %1, %c0_i32_0 : i32
    scf.if %2 {
      %cst_31 = arith.constant -1.000000e+30 : f32
      %59 = vector.broadcast %cst_31 : f32 to vector<8x128xf32>
      %c0_32 = arith.constant 0 : index
      %c0_33 = arith.constant 0 : index
      %60 = vector.load %arg22[%c0_32, %c0_33] : memref<8x128xf32, #tpu.memory_space<vmem>>, vector<8x128xf32>
      tpu.vector_store %arg22[%c0_32, %c0_33], %59 {strides = array<i32>} : memref<8x128xf32, #tpu.memory_space<vmem>>, vector<8x128xf32>,
      %c0_34 = arith.constant 0 : index
      %c0_35 = arith.constant 0 : index
      %61 = vector.load %arg23[%c0_34, %c0_35] : memref<8x128xf32, #tpu.memory_space<vmem>>, vector<8x128xf32>
      tpu.vector_store %arg23[%c0_34, %c0_35], %59 {strides = array<i32>} : memref<8x128xf32, #tpu.memory_space<vmem>>, vector<8x128xf32>,
      %c0_36 = arith.constant 0 : index
      %c0_37 = arith.constant 0 : index
      %62 = vector.load %arg24[%c0_36, %c0_37] : memref<8x128xf32, #tpu.memory_space<vmem>>, vector<8x128xf32>
      tpu.vector_store %arg24[%c0_36, %c0_37], %59 {strides = array<i32>} : memref<8x128xf32, #tpu.memory_space<vmem>>, vector<8x128xf32>,
    } else {
    }
    %c0 = arith.constant 0 : index
    %c0_1 = arith.constant 0 : index
    %c0_2 = arith.constant 0 : index
    %3 = vector.load %arg2[%c0, %c0_1, %c0_2] : memref<8x40x128xf32, #tpu.memory_space<vmem>>, vector<8x40x128xf32>
    %c40_i32 = arith.constant 40 : i32
    %4 = arith.muli %arg1, %c40_i32 : i32
    %5 = tpu.iota {dimensions = array<i32: 1>} : vector<8x40x1xi32>
    %6 = vector.broadcast %4 : i32 to vector<8x40x1xi32>
    %7 = arith.addi %6, %5 : vector<8x40x1xi32>
    %c0_3 = arith.constant 0 : index
    %c0_4 = arith.constant 0 : index
    %8 = vector.load %arg22[%c0_3, %c0_4] : memref<8x128xf32, #tpu.memory_space<vmem>>, vector<8x128xf32>
    %c0_5 = arith.constant 0 : index
    %c0_6 = arith.constant 0 : index
    %c0_7 = arith.constant 0 : index
    %9 = vector.load %arg3[%c0_5, %c0_6, %c0_7] : memref<8x2x1xi32, #tpu.memory_space<vmem>>, vector<8x2x1xi32>
    %10 = vector.extract_strided_slice %9 {offsets = [0, 0, 0], sizes = [8, 1, 1], strides = [1, 1, 1]} : vector<8x2x1xi32> to vector<8x1x1xi32>
    %11 = vector.extract_strided_slice %9 {offsets = [0, 1, 0], sizes = [8, 1, 1], strides = [1, 1, 1]} : vector<8x2x1xi32> to vector<8x1x1xi32>
    %12 = vector.broadcast %10 : vector<8x1x1xi32> to vector<8x40x1xi32>
    %13 = arith.cmpi sge, %7, %12 : vector<8x40x1xi32>
    %14 = vector.broadcast %11 : vector<8x1x1xi32> to vector<8x40x1xi32>
    %15 = arith.cmpi slt, %7, %14 : vector<8x40x1xi32>
    %16 = arith.andi %13, %15 : vector<8x40x1xi1>
    %cst = arith.constant -1.000000e+30 : f32
    %17 = vector.shape_cast %16 : vector<8x40x1xi1> to vector<8x40x1xi1>
    %18 = vector.broadcast %17 : vector<8x40x1xi1> to vector<8x40x128xi1>
    %19 = vector.broadcast %cst : f32 to vector<8x40x128xf32>
    %20 = arith.select %18, %3, %19 : vector<8x40x128xi1>, vector<8x40x128xf32>
    %cst_8 = arith.constant dense<0xFF800000> : vector<8x128xf32>
    %21 = vector.multi_reduction <maximumf>, %20, %cst_8 [1] : vector<8x40x128xf32> to vector<8x128xf32>
    %22 = arith.maximumf %8, %21 : vector<8x128xf32>
    %c0_9 = arith.constant 0 : index
    %c0_10 = arith.constant 0 : index
    %23 = vector.load %arg22[%c0_9, %c0_10] : memref<8x128xf32, #tpu.memory_space<vmem>>, vector<8x128xf32>
    tpu.vector_store %arg22[%c0_9, %c0_10], %22 {strides = array<i32>} : memref<8x128xf32, #tpu.memory_space<vmem>>, vector<8x128xf32>,
    %c0_11 = arith.constant 0 : index
    %c0_12 = arith.constant 0 : index
    %24 = vector.load %arg23[%c0_11, %c0_12] : memref<8x128xf32, #tpu.memory_space<vmem>>, vector<8x128xf32>
    %c0_13 = arith.constant 0 : index
    %c0_14 = arith.constant 0 : index
    %c0_15 = arith.constant 0 : index
    %25 = vector.load %arg4[%c0_13, %c0_14, %c0_15] : memref<8x2x1xi32, #tpu.memory_space<vmem>>, vector<8x2x1xi32>
    %26 = vector.extract_strided_slice %25 {offsets = [0, 0, 0], sizes = [8, 1, 1], strides = [1, 1, 1]} : vector<8x2x1xi32> to vector<8x1x1xi32>
    %27 = vector.extract_strided_slice %25 {offsets = [0, 1, 0], sizes = [8, 1, 1], strides = [1, 1, 1]} : vector<8x2x1xi32> to vector<8x1x1xi32>
    %28 = vector.broadcast %26 : vector<8x1x1xi32> to vector<8x40x1xi32>
    %29 = arith.cmpi sge, %7, %28 : vector<8x40x1xi32>
    %30 = vector.broadcast %27 : vector<8x1x1xi32> to vector<8x40x1xi32>
    %31 = arith.cmpi slt, %7, %30 : vector<8x40x1xi32>
    %32 = arith.andi %29, %31 : vector<8x40x1xi1>
    %cst_16 = arith.constant -1.000000e+30 : f32
    %33 = vector.shape_cast %32 : vector<8x40x1xi1> to vector<8x40x1xi1>
    %34 = vector.broadcast %33 : vector<8x40x1xi1> to vector<8x40x128xi1>
    %35 = vector.broadcast %cst_16 : f32 to vector<8x40x128xf32>
    %36 = arith.select %34, %3, %35 : vector<8x40x128xi1>, vector<8x40x128xf32>
    %cst_17 = arith.constant dense<0xFF800000> : vector<8x128xf32>
    %37 = vector.multi_reduction <maximumf>, %36, %cst_17 [1] : vector<8x40x128xf32> to vector<8x128xf32>
    %38 = arith.maximumf %24, %37 : vector<8x128xf32>
    %c0_18 = arith.constant 0 : index
    %c0_19 = arith.constant 0 : index
    %39 = vector.load %arg23[%c0_18, %c0_19] : memref<8x128xf32, #tpu.memory_space<vmem>>, vector<8x128xf32>
    tpu.vector_store %arg23[%c0_18, %c0_19], %38 {strides = array<i32>} : memref<8x128xf32, #tpu.memory_space<vmem>>, vector<8x128xf32>,
    %c0_20 = arith.constant 0 : index
    %c0_21 = arith.constant 0 : index
    %40 = vector.load %arg24[%c0_20, %c0_21] : memref<8x128xf32, #tpu.memory_space<vmem>>, vector<8x128xf32>
    %c0_22 = arith.constant 0 : index
    %c0_23 = arith.constant 0 : index
    %c0_24 = arith.constant 0 : index
    %41 = vector.load %arg5[%c0_22, %c0_23, %c0_24] : memref<8x2x1xi32, #tpu.memory_space<vmem>>, vector<8x2x1xi32>
    %42 = vector.extract_strided_slice %41 {offsets = [0, 0, 0], sizes = [8, 1, 1], strides = [1, 1, 1]} : vector<8x2x1xi32> to vector<8x1x1xi32>
    %43 = vector.extract_strided_slice %41 {offsets = [0, 1, 0], sizes = [8, 1, 1], strides = [1, 1, 1]} : vector<8x2x1xi32> to vector<8x1x1xi32>
    %44 = vector.broadcast %42 : vector<8x1x1xi32> to vector<8x40x1xi32>
    %45 = arith.cmpi sge, %7, %44 : vector<8x40x1xi32>
    %46 = vector.broadcast %43 : vector<8x1x1xi32> to vector<8x40x1xi32>
    %47 = arith.cmpi slt, %7, %46 : vector<8x40x1xi32>
    %48 = arith.andi %45, %47 : vector<8x40x1xi1>
    %cst_25 = arith.constant -1.000000e+30 : f32
    %49 = vector.shape_cast %48 : vector<8x40x1xi1> to vector<8x40x1xi1>
    %50 = vector.broadcast %49 : vector<8x40x1xi1> to vector<8x40x128xi1>
    %51 = vector.broadcast %cst_25 : f32 to vector<8x40x128xf32>
    %52 = arith.select %50, %3, %51 : vector<8x40x128xi1>, vector<8x40x128xf32>
    %cst_26 = arith.constant dense<0xFF800000> : vector<8x128xf32>
    %53 = vector.multi_reduction <maximumf>, %52, %cst_26 [1] : vector<8x40x128xf32> to vector<8x128xf32>
    %54 = arith.maximumf %40, %53 : vector<8x128xf32>
    %c0_27 = arith.constant 0 : index
    %c0_28 = arith.constant 0 : index
    %55 = vector.load %arg24[%c0_27, %c0_28] : memref<8x128xf32, #tpu.memory_space<vmem>>, vector<8x128xf32>
    tpu.vector_store %arg24[%c0_27, %c0_28], %54 {strides = array<i32>} : memref<8x128xf32, #tpu.memory_space<vmem>>, vector<8x128xf32>,
    %c0_i32_29 = arith.constant 0 : i32
    %56 = arith.cmpi eq, %arg1, %c0_i32_29 : i32
    %57 = arith.extui %56 : i1 to i32
    %c0_i32_30 = arith.constant 0 : i32
    %58 = arith.cmpi ne, %57, %c0_i32_30 : i32
    scf.if %58 {
      %c0_31 = arith.constant 0 : index
      %c0_32 = arith.constant 0 : index
      %59 = vector.load %arg9[%c0_31, %c0_32] : memref<128x128xf32, #tpu.memory_space<vmem>>, vector<128x128xf32>
      %c0_33 = arith.constant 0 : index
      %c0_34 = arith.constant 0 : index
      %60 = vector.load %arg10[%c0_33, %c0_34] : memref<128x128xf32, #tpu.memory_space<vmem>>, vector<128x128xf32>
      %c0_35 = arith.constant 0 : index
      %c0_36 = arith.constant 0 : index
      %61 = vector.load %arg14[%c0_35, %c0_36] : memref<128x128xf32, #tpu.memory_space<vmem>>, vector<128x128xf32>
      %c0_37 = arith.constant 0 : index
      %c0_38 = arith.constant 0 : index
      %62 = vector.load %arg15[%c0_37, %c0_38] : memref<128x128xf32, #tpu.memory_space<vmem>>, vector<128x128xf32>
      %c0_39 = arith.constant 0 : index
      %c0_40 = arith.constant 0 : index
      %63 = vector.load %arg22[%c0_39, %c0_40] : memref<8x128xf32, #tpu.memory_space<vmem>>, vector<8x128xf32>
      %c0_41 = arith.constant 0 : index
      %c0_42 = arith.constant 0 : index
      %64 = vector.load %arg6[%c0_41, %c0_42] : memref<8x128xf32, #tpu.memory_space<vmem>>, vector<8x128xf32>
      %c0_43 = arith.constant 0 : index
      %c0_44 = arith.constant 0 : index
      %65 = vector.load %arg11[%c0_43, %c0_44] : memref<1x128xf32, #tpu.memory_space<vmem>>, vector<1x128xf32>
      %c0_45 = arith.constant 0 : index
      %c0_46 = arith.constant 0 : index
      %66 = vector.load %arg12[%c0_45, %c0_46] : memref<128x2xf32, #tpu.memory_space<vmem>>, vector<128x2xf32>
      %c0_47 = arith.constant 0 : index
      %c0_48 = arith.constant 0 : index
      %67 = vector.load %arg13[%c0_47, %c0_48] : memref<1x2xf32, #tpu.memory_space<vmem>>, vector<1x2xf32>
      %cst_49 = arith.constant dense<0.000000e+00> : vector<8x128xf32>
      %68 = tpu.matmul %63, %59, %cst_49 {dimension_numbers = #tpu.dot_dimension_numbers<[1], [0], [0], [1], [0, 0, 1, 1], [], []>} : vector<8x128xf32>, vector<128x128xf32>, vector<8x128xf32> -> vector<8x128xf32>
      %cst_50 = arith.constant dense<0.000000e+00> : vector<8x128xf32>
      %69 = tpu.matmul %64, %60, %cst_50 {dimension_numbers = #tpu.dot_dimension_numbers<[1], [0], [0], [1], [0, 0, 1, 1], [], []>} : vector<8x128xf32>, vector<128x128xf32>, vector<8x128xf32> -> vector<8x128xf32>
      %70 = arith.addf %68, %69 : vector<8x128xf32>
      %71 = vector.broadcast %65 : vector<1x128xf32> to vector<8x128xf32>
      %72 = arith.addf %70, %71 : vector<8x128xf32>
      %cst_51 = arith.constant 0.000000e+00 : f32
      %73 = vector.broadcast %cst_51 : f32 to vector<8x128xf32>
      %74 = arith.maximumf %72, %73 : vector<8x128xf32>
      %cst_52 = arith.constant dense<0.000000e+00> : vector<8x2xf32>
      %75 = tpu.matmul %74, %66, %cst_52 {dimension_numbers = #tpu.dot_dimension_numbers<[1], [0], [0], [1], [0, 0, 1, 1], [], []>} : vector<8x128xf32>, vector<128x2xf32>, vector<8x2xf32> -> vector<8x2xf32>
      %76 = vector.broadcast %67 : vector<1x2xf32> to vector<8x2xf32>
      %77 = arith.addf %75, %76 : vector<8x2xf32>
      %78 = vector.extract_strided_slice %77 {offsets = [0, 0], sizes = [8, 1], strides = [1, 1]} : vector<8x2xf32> to vector<8x1xf32>
      %79 = vector.extract_strided_slice %77 {offsets = [0, 1], sizes = [8, 1], strides = [1, 1]} : vector<8x2xf32> to vector<8x1xf32>
      %80 = arith.subf %78, %79 : vector<8x1xf32>
      %cst_53 = arith.constant 0.000000e+00 : f32
      %81 = vector.broadcast %cst_53 : f32 to vector<8x1xf32>
      %82 = arith.maximumf %80, %81 : vector<8x1xf32>
      %83 = math.absf %80 : vector<8x1xf32>
      %cst_54 = arith.constant 0.000000e+00 : f32
      %84 = vector.broadcast %cst_54 : f32 to vector<8x1xf32>
      %85 = arith.subf %84, %83 : vector<8x1xf32>
      %86 = math.exp %85 : vector<8x1xf32>
      %cst_55 = arith.constant 1.000000e+00 : f32
      %87 = vector.broadcast %cst_55 : f32 to vector<8x1xf32>
      %88 = arith.addf %87, %86 : vector<8x1xf32>
      %89 = math.log %88 : vector<8x1xf32>
      %90 = arith.addf %82, %89 : vector<8x1xf32>
      %c0_56 = arith.constant 0 : index
      %c0_57 = arith.constant 0 : index
      %91 = vector.load %arg23[%c0_56, %c0_57] : memref<8x128xf32, #tpu.memory_space<vmem>>, vector<8x128xf32>
      %c0_58 = arith.constant 0 : index
      %c0_59 = arith.constant 0 : index
      %92 = vector.load %arg7[%c0_58, %c0_59] : memref<8x128xf32, #tpu.memory_space<vmem>>, vector<8x128xf32>
      %c0_60 = arith.constant 0 : index
      %c0_61 = arith.constant 0 : index
      %93 = vector.load %arg16[%c0_60, %c0_61] : memref<1x128xf32, #tpu.memory_space<vmem>>, vector<1x128xf32>
      %c0_62 = arith.constant 0 : index
      %c0_63 = arith.constant 0 : index
      %94 = vector.load %arg17[%c0_62, %c0_63] : memref<128x2xf32, #tpu.memory_space<vmem>>, vector<128x2xf32>
      %c0_64 = arith.constant 0 : index
      %c0_65 = arith.constant 0 : index
      %95 = vector.load %arg18[%c0_64, %c0_65] : memref<1x2xf32, #tpu.memory_space<vmem>>, vector<1x2xf32>
      %cst_66 = arith.constant dense<0.000000e+00> : vector<8x128xf32>
      %96 = tpu.matmul %91, %61, %cst_66 {dimension_numbers = #tpu.dot_dimension_numbers<[1], [0], [0], [1], [0, 0, 1, 1], [], []>} : vector<8x128xf32>, vector<128x128xf32>, vector<8x128xf32> -> vector<8x128xf32>
      %cst_67 = arith.constant dense<0.000000e+00> : vector<8x128xf32>
      %97 = tpu.matmul %92, %62, %cst_67 {dimension_numbers = #tpu.dot_dimension_numbers<[1], [0], [0], [1], [0, 0, 1, 1], [], []>} : vector<8x128xf32>, vector<128x128xf32>, vector<8x128xf32> -> vector<8x128xf32>
      %98 = arith.addf %96, %97 : vector<8x128xf32>
      %99 = vector.broadcast %93 : vector<1x128xf32> to vector<8x128xf32>
      %100 = arith.addf %98, %99 : vector<8x128xf32>
      %cst_68 = arith.constant 0.000000e+00 : f32
      %101 = vector.broadcast %cst_68 : f32 to vector<8x128xf32>
      %102 = arith.maximumf %100, %101 : vector<8x128xf32>
      %cst_69 = arith.constant dense<0.000000e+00> : vector<8x2xf32>
      %103 = tpu.matmul %102, %94, %cst_69 {dimension_numbers = #tpu.dot_dimension_numbers<[1], [0], [0], [1], [0, 0, 1, 1], [], []>} : vector<8x128xf32>, vector<128x2xf32>, vector<8x2xf32> -> vector<8x2xf32>
      %104 = vector.broadcast %95 : vector<1x2xf32> to vector<8x2xf32>
      %105 = arith.addf %103, %104 : vector<8x2xf32>
      %106 = vector.extract_strided_slice %105 {offsets = [0, 0], sizes = [8, 1], strides = [1, 1]} : vector<8x2xf32> to vector<8x1xf32>
      %107 = vector.extract_strided_slice %105 {offsets = [0, 1], sizes = [8, 1], strides = [1, 1]} : vector<8x2xf32> to vector<8x1xf32>
      %108 = arith.subf %106, %107 : vector<8x1xf32>
      %cst_70 = arith.constant 0.000000e+00 : f32
      %109 = vector.broadcast %cst_70 : f32 to vector<8x1xf32>
      %110 = arith.maximumf %108, %109 : vector<8x1xf32>
      %111 = math.absf %108 : vector<8x1xf32>
      %cst_71 = arith.constant 0.000000e+00 : f32
      %112 = vector.broadcast %cst_71 : f32 to vector<8x1xf32>
      %113 = arith.subf %112, %111 : vector<8x1xf32>
      %114 = math.exp %113 : vector<8x1xf32>
      %cst_72 = arith.constant 1.000000e+00 : f32
      %115 = vector.broadcast %cst_72 : f32 to vector<8x1xf32>
      %116 = arith.addf %115, %114 : vector<8x1xf32>
      %117 = math.log %116 : vector<8x1xf32>
      %118 = arith.addf %110, %117 : vector<8x1xf32>
      %c0_73 = arith.constant 0 : index
      %c0_74 = arith.constant 0 : index
      %119 = vector.load %arg24[%c0_73, %c0_74] : memref<8x128xf32, #tpu.memory_space<vmem>>, vector<8x128xf32>
      %c0_75 = arith.constant 0 : index
      %c0_76 = arith.constant 0 : index
      %120 = vector.load %arg8[%c0_75, %c0_76] : memref<8x128xf32, #tpu.memory_space<vmem>>, vector<8x128xf32>
      %c0_77 = arith.constant 0 : index
      %c0_78 = arith.constant 0 : index
      %121 = vector.load %arg16[%c0_77, %c0_78] : memref<1x128xf32, #tpu.memory_space<vmem>>, vector<1x128xf32>
      %c0_79 = arith.constant 0 : index
      %c0_80 = arith.constant 0 : index
      %122 = vector.load %arg17[%c0_79, %c0_80] : memref<128x2xf32, #tpu.memory_space<vmem>>, vector<128x2xf32>
      %c0_81 = arith.constant 0 : index
      %c0_82 = arith.constant 0 : index
      %123 = vector.load %arg18[%c0_81, %c0_82] : memref<1x2xf32, #tpu.memory_space<vmem>>, vector<1x2xf32>
      %cst_83 = arith.constant dense<0.000000e+00> : vector<8x128xf32>
      %124 = tpu.matmul %119, %61, %cst_83 {dimension_numbers = #tpu.dot_dimension_numbers<[1], [0], [0], [1], [0, 0, 1, 1], [], []>} : vector<8x128xf32>, vector<128x128xf32>, vector<8x128xf32> -> vector<8x128xf32>
      %cst_84 = arith.constant dense<0.000000e+00> : vector<8x128xf32>
      %125 = tpu.matmul %120, %62, %cst_84 {dimension_numbers = #tpu.dot_dimension_numbers<[1], [0], [0], [1], [0, 0, 1, 1], [], []>} : vector<8x128xf32>, vector<128x128xf32>, vector<8x128xf32> -> vector<8x128xf32>
      %126 = arith.addf %124, %125 : vector<8x128xf32>
      %127 = vector.broadcast %121 : vector<1x128xf32> to vector<8x128xf32>
      %128 = arith.addf %126, %127 : vector<8x128xf32>
      %cst_85 = arith.constant 0.000000e+00 : f32
      %129 = vector.broadcast %cst_85 : f32 to vector<8x128xf32>
      %130 = arith.maximumf %128, %129 : vector<8x128xf32>
      %cst_86 = arith.constant dense<0.000000e+00> : vector<8x2xf32>
      %131 = tpu.matmul %130, %122, %cst_86 {dimension_numbers = #tpu.dot_dimension_numbers<[1], [0], [0], [1], [0, 0, 1, 1], [], []>} : vector<8x128xf32>, vector<128x2xf32>, vector<8x2xf32> -> vector<8x2xf32>
      %132 = vector.broadcast %123 : vector<1x2xf32> to vector<8x2xf32>
      %133 = arith.addf %131, %132 : vector<8x2xf32>
      %134 = vector.extract_strided_slice %133 {offsets = [0, 0], sizes = [8, 1], strides = [1, 1]} : vector<8x2xf32> to vector<8x1xf32>
      %135 = vector.extract_strided_slice %133 {offsets = [0, 1], sizes = [8, 1], strides = [1, 1]} : vector<8x2xf32> to vector<8x1xf32>
      %136 = arith.subf %134, %135 : vector<8x1xf32>
      %cst_87 = arith.constant 0.000000e+00 : f32
      %137 = vector.broadcast %cst_87 : f32 to vector<8x1xf32>
      %138 = arith.maximumf %136, %137 : vector<8x1xf32>
      %139 = math.absf %136 : vector<8x1xf32>
      %cst_88 = arith.constant 0.000000e+00 : f32
      %140 = vector.broadcast %cst_88 : f32 to vector<8x1xf32>
      %141 = arith.subf %140, %139 : vector<8x1xf32>
      %142 = math.exp %141 : vector<8x1xf32>
      %cst_89 = arith.constant 1.000000e+00 : f32
      %143 = vector.broadcast %cst_89 : f32 to vector<8x1xf32>
      %144 = arith.addf %143, %142 : vector<8x1xf32>
      %145 = math.log %144 : vector<8x1xf32>
      %146 = arith.addf %138, %145 : vector<8x1xf32>
      %147 = vector.shape_cast %90 : vector<8x1xf32> to vector<8x1xf32>
      %148 = vector.broadcast %147 : vector<8x1xf32> to vector<8x128xf32>
      %c0_90 = arith.constant 0 : index
      %c0_91 = arith.constant 0 : index
      %149 = vector.load %arg19[%c0_90, %c0_91] : memref<8x128xf32, #tpu.memory_space<vmem>>, vector<8x128xf32>
      tpu.vector_store %arg19[%c0_90, %c0_91], %148 {strides = array<i32>} : memref<8x128xf32, #tpu.memory_space<vmem>>, vector<8x128xf32>,
      %150 = vector.shape_cast %118 : vector<8x1xf32> to vector<8x1xf32>
      %151 = vector.broadcast %150 : vector<8x1xf32> to vector<8x128xf32>
      %c0_92 = arith.constant 0 : index
      %c0_93 = arith.constant 0 : index
      %152 = vector.load %arg20[%c0_92, %c0_93] : memref<8x128xf32, #tpu.memory_space<vmem>>, vector<8x128xf32>
      tpu.vector_store %arg20[%c0_92, %c0_93], %151 {strides = array<i32>} : memref<8x128xf32, #tpu.memory_space<vmem>>, vector<8x128xf32>,
      %153 = vector.shape_cast %146 : vector<8x1xf32> to vector<8x1xf32>
      %154 = vector.broadcast %153 : vector<8x1xf32> to vector<8x128xf32>
      %c0_94 = arith.constant 0 : index
      %c0_95 = arith.constant 0 : index
      %155 = vector.load %arg21[%c0_94, %c0_95] : memref<8x128xf32, #tpu.memory_space<vmem>>, vector<8x128xf32>
      tpu.vector_store %arg21[%c0_94, %c0_95], %154 {strides = array<i32>} : memref<8x128xf32, #tpu.memory_space<vmem>>, vector<8x128xf32>,
    } else {
    }
    return
  }
  func.func @transform_0(%arg0: i32, %arg1: i32) -> (i32, i32, i32) {
    %c0_i32 = arith.constant 0 : i32
    %c0_i32_0 = arith.constant 0 : i32
    return %arg0, %arg1, %c0_i32 : i32, i32, i32
  }
  func.func @transform_1(%arg0: i32, %arg1: i32) -> (i32, i32, i32) {
    %c0_i32 = arith.constant 0 : i32
    %c0_i32_0 = arith.constant 0 : i32
    %c0_i32_1 = arith.constant 0 : i32
    return %arg0, %c0_i32, %c0_i32_0 : i32, i32, i32
  }
  func.func @transform_2(%arg0: i32, %arg1: i32) -> (i32, i32, i32) {
    %c0_i32 = arith.constant 0 : i32
    %c0_i32_0 = arith.constant 0 : i32
    %c0_i32_1 = arith.constant 0 : i32
    return %arg0, %c0_i32, %c0_i32_0 : i32, i32, i32
  }
  func.func @transform_3(%arg0: i32, %arg1: i32) -> (i32, i32, i32) {
    %c0_i32 = arith.constant 0 : i32
    %c0_i32_0 = arith.constant 0 : i32
    %c0_i32_1 = arith.constant 0 : i32
    return %arg0, %c0_i32, %c0_i32_0 : i32, i32, i32
  }
  func.func @transform_4(%arg0: i32, %arg1: i32) -> (i32, i32) {
    %c0_i32 = arith.constant 0 : i32
    %c0_i32_0 = arith.constant 0 : i32
    return %arg0, %c0_i32 : i32, i32
  }
  func.func @transform_5(%arg0: i32, %arg1: i32) -> (i32, i32) {
    %c0_i32 = arith.constant 0 : i32
    %c0_i32_0 = arith.constant 0 : i32
    return %arg0, %c0_i32 : i32, i32
  }
  func.func @transform_6(%arg0: i32, %arg1: i32) -> (i32, i32) {
    %c0_i32 = arith.constant 0 : i32
    %c0_i32_0 = arith.constant 0 : i32
    return %arg0, %c0_i32 : i32, i32
  }
  func.func @transform_7(%arg0: i32, %arg1: i32) -> (i32, i32) {
    %c0_i32 = arith.constant 0 : i32
    %c0_i32_0 = arith.constant 0 : i32
    %c0_i32_1 = arith.constant 0 : i32
    return %c0_i32, %c0_i32_0 : i32, i32
  }
  func.func @transform_8(%arg0: i32, %arg1: i32) -> (i32, i32) {
    %c0_i32 = arith.constant 0 : i32
    %c0_i32_0 = arith.constant 0 : i32
    %c0_i32_1 = arith.constant 0 : i32
    return %c0_i32, %c0_i32_0 : i32, i32
  }
  func.func @transform_9(%arg0: i32, %arg1: i32) -> (i32, i32) {
    %c0_i32 = arith.constant 0 : i32
    %c0_i32_0 = arith.constant 0 : i32
    %c0_i32_1 = arith.constant 0 : i32
    return %c0_i32, %c0_i32_0 : i32, i32
  }
  func.func @transform_10(%arg0: i32, %arg1: i32) -> (i32, i32) {
    %c0_i32 = arith.constant 0 : i32
    %c0_i32_0 = arith.constant 0 : i32
    %c0_i32_1 = arith.constant 0 : i32
    return %c0_i32, %c0_i32_0 : i32, i32
  }
  func.func @transform_11(%arg0: i32, %arg1: i32) -> (i32, i32) {
    %c0_i32 = arith.constant 0 : i32
    %c0_i32_0 = arith.constant 0 : i32
    %c0_i32_1 = arith.constant 0 : i32
    return %c0_i32, %c0_i32_0 : i32, i32
  }
  func.func @transform_12(%arg0: i32, %arg1: i32) -> (i32, i32) {
    %c0_i32 = arith.constant 0 : i32
    %c0_i32_0 = arith.constant 0 : i32
    %c0_i32_1 = arith.constant 0 : i32
    return %c0_i32, %c0_i32_0 : i32, i32
  }
  func.func @transform_13(%arg0: i32, %arg1: i32) -> (i32, i32) {
    %c0_i32 = arith.constant 0 : i32
    %c0_i32_0 = arith.constant 0 : i32
    %c0_i32_1 = arith.constant 0 : i32
    return %c0_i32, %c0_i32_0 : i32, i32
  }
  func.func @transform_14(%arg0: i32, %arg1: i32) -> (i32, i32) {
    %c0_i32 = arith.constant 0 : i32
    %c0_i32_0 = arith.constant 0 : i32
    %c0_i32_1 = arith.constant 0 : i32
    return %c0_i32, %c0_i32_0 : i32, i32
  }
  func.func @transform_15(%arg0: i32, %arg1: i32) -> (i32, i32) {
    %c0_i32 = arith.constant 0 : i32
    %c0_i32_0 = arith.constant 0 : i32
    %c0_i32_1 = arith.constant 0 : i32
    return %c0_i32, %c0_i32_0 : i32, i32
  }
  func.func @transform_16(%arg0: i32, %arg1: i32) -> (i32, i32) {
    %c0_i32 = arith.constant 0 : i32
    %c0_i32_0 = arith.constant 0 : i32
    %c0_i32_1 = arith.constant 0 : i32
    return %c0_i32, %c0_i32_0 : i32, i32
  }
  func.func @transform_17(%arg0: i32, %arg1: i32) -> (i32, i32) {
    %c0_i32 = arith.constant 0 : i32
    %c0_i32_0 = arith.constant 0 : i32
    return %arg0, %c0_i32 : i32, i32
  }
  func.func @transform_18(%arg0: i32, %arg1: i32) -> (i32, i32) {
    %c0_i32 = arith.constant 0 : i32
    %c0_i32_0 = arith.constant 0 : i32
    return %arg0, %c0_i32 : i32, i32
  }
  func.func @transform_19(%arg0: i32, %arg1: i32) -> (i32, i32) {
    %c0_i32 = arith.constant 0 : i32
    %c0_i32_0 = arith.constant 0 : i32
    return %arg0, %c0_i32 : i32, i32
  }
}

</mosaic_0001>

<llo_original>
// kernel: tpu_custom_call.1
$region0: #{tpu_custom_call.1}
  #allocation0 [shape = 'u32[]', space=smem, size = 0x4, offset = 0x4, fixed_abs, tag = 'smem constant byte address 0x4 - core index']
  #allocation1 [shape = 'u32[144,128]{1,0:T(1,128)}', space=vmem, size = 0x12000, scoped, tag = 'internal scratch']
  #allocation2 [shape = 'f32[8,128]{1,0:T(8,128)}', space=vmem, size = 0x1000, scoped, tag = 'scratch operand']
  #allocation3 [shape = 'f32[8,128]{1,0:T(8,128)}', space=vmem, size = 0x1000, scoped, tag = 'scratch operand']
  #allocation4 [shape = 'f32[8,128]{1,0:T(8,128)}', space=vmem, size = 0x1000, scoped, tag = 'scratch operand']
  %s0 = inlined_call_operand.hbm [shape: f32[12,40,128], index: 0, kind: input, shape index: {}]
  %s1 = inlined_call_operand.vmem [shape: s32[16,2,1], index: 1, kind: input, shape index: {}]
  %s2 = inlined_call_operand.vmem [shape: s32[16,2,1], index: 2, kind: input, shape index: {}]
  %s3 = inlined_call_operand.vmem [shape: s32[16,2,1], index: 3, kind: input, shape index: {}]
  %s4 = inlined_call_operand.vmem [shape: f32[16,128], index: 4, kind: input, shape index: {}]
  %s5 = inlined_call_operand.vmem [shape: f32[16,128], index: 5, kind: input, shape index: {}]
  %s6 = inlined_call_operand.vmem [shape: f32[16,128], index: 6, kind: input, shape index: {}]
  %s7 = inlined_call_operand.vmem [shape: f32[128,128], index: 7, kind: input, shape index: {}]
  %s8 = inlined_call_operand.vmem [shape: f32[128,128], index: 8, kind: input, shape index: {}]
  %s9 = inlined_call_operand.vmem [shape: f32[1,128], index: 9, kind: input, shape index: {}]
  %s10 = inlined_call_operand.vmem [shape: f32[128,2], index: 10, kind: input, shape index: {}]
  %s11 = inlined_call_operand.vmem [shape: f32[1,2], index: 11, kind: input, shape index: {}]
  %s12 = inlined_call_operand.hbm [shape: f32[128,128], index: 12, kind: input, shape index: {}]
  %s13 = inlined_call_operand.hbm [shape: f32[128,128], index: 13, kind: input, shape index: {}]
  %s14 = inlined_call_operand.vmem [shape: f32[1,128], index: 14, kind: input, shape index: {}]
  %s15 = inlined_call_operand.vmem [shape: f32[128,2], index: 15, kind: input, shape index: {}]
  %s16 = inlined_call_operand.vmem [shape: f32[1,2], index: 16, kind: input, shape index: {}]
  %s17 = inlined_call_operand.hbm [shape: f32[16,128], index: 17, kind: output, shape index: {0}]
  %s18 = inlined_call_operand.hbm [shape: f32[16,128], index: 18, kind: output, shape index: {1}]
  %s19 = inlined_call_operand.hbm [shape: f32[16,128], index: 19, kind: output, shape index: {2}]
  %20 = xla_tuple %s17, %s18, %s19
  %s21 = sld [smem:[#allocation0]]
  $region137: #{tpu_custom_call.1} parent=0
    _
  %s23 = ssub.s32 1, %s21
  %s24 = scalar_select 0, %s23, %s21
  $region1: #{tpu_custom_call.1} parent=0
    #allocation5 [shape = 'u8[327680]{0}', space=vmem, size = 0x50000, scoped, tag = 'input window, operand 0']
    #allocation6 [shape = 's32[2]{0}', space=sflag, size = 0x8, scoped, tag = 'scoped memory for tpu_custom_call.1']
    #allocation7 [shape = 's32[2]{0}', space=sflag, size = 0x8, scoped, tag = 'scoped memory for tpu_custom_call.1']
    #allocation8 [shape = 'u8[65536]{0}', space=vmem, size = 0x10000, scoped, tag = 'input window, operand 12, single buffered']
    #allocation9 [shape = 's32[1]{0}', space=sflag, size = 0x4, scoped, tag = 'scoped memory for tpu_custom_call.1']
    #allocation10 [shape = 'u8[65536]{0}', space=vmem, size = 0x10000, scoped, tag = 'input window, operand 13, single buffered']
    #allocation11 [shape = 'u8[8192]{0}', space=vmem, size = 0x2000, scoped, tag = 'output window, operand 0']
    #allocation12 [shape = 'u8[8192]{0}', space=vmem, size = 0x2000, scoped, tag = 'output window, operand 1']
    #allocation13 [shape = 's32[2]{0}', space=sflag, size = 0x8, scoped, tag = 'scoped memory for tpu_custom_call.1']
    #allocation14 [shape = 'u8[8192]{0}', space=vmem, size = 0x2000, scoped, tag = 'output window, operand 2']
    %25 = vsyncpa [#allocation6], 0
    %s26 = scalar_lea.sflag [#allocation6], 1
    %27 = vsyncpa %s26, 0
    %28 = vsyncpa [#allocation9], 0
    %29 = vsyncpa [#allocation7], 0
    %s30 = scalar_lea.sflag [#allocation7], 1
    %31 = vsyncpa %s30, 0
    %32 = vsyncpa [#allocation13], 0
    %s33 = scalar_lea.sflag [#allocation13], 1
    %34 = vsyncpa %s33, 0
    loop: start=0, step=1, limit=4
    $region2: #{tpu_custom_call.1} parent=1 // loop_pre_header
      _
    $region3: #{tpu_custom_call.1} parent=1 // loop_header
      %s36 = sphi 0, %s40
      %p37 = scmp.ge.s32.totalorder %s36, 4
      %s43 = sphi 0, %s55
      %s44 = sphi 0, %s51
      %s45 = sphi 0, %s43
      %s46 = sphi 0, %s44
      %s47 = sphi 0, %s45
      %s48 = sphi 0, %s46
      %s60 = sphi 0, %s62
      %s63 = sphi 0, %s60
      %s64 = sphi 0, %s63
      %s80 = sphi 0, %s64
      %s86 = sphi 0, %s88
      %s89 = sphi 0, %s86
      %s90 = sphi 0, %s89
      %s106 = sphi 0, %s90
      %s112 = sphi 0, %s114
      %s115 = sphi 0, %s112
      %s116 = sphi 0, %s115
      %s132 = sphi 0, %s116
      %s138 = sphi 0, %s140
      %s141 = sphi 0, %s138
      %s142 = sphi 0, %s141
      %s158 = sphi 0, %s142
      %s164 = sphi 0, %s166
      %s167 = sphi 0, %s164
      %s168 = sphi 0, %s167
      %s184 = sphi 0, %s168
      %s190 = sphi 0, %s192
      %s193 = sphi 0, %s190
      %s194 = sphi 0, %s193
      %s210 = sphi 0, %s194
      %s216 = sphi 0, %s218
      %s219 = sphi 0, %s216
      %s220 = sphi 0, %s219
      %s236 = sphi 0, %s220
      %s240 = sphi 0, %s240
      %s242 = sphi 0, %s240
      %s243 = sphi 0, %s242
      %s257 = sphi 0, %s243
      %s261 = sphi 0, %s261
      %s263 = sphi 0, %s261
      %s264 = sphi 0, %s263
      %s278 = sphi 0, %s264
      %s282 = sphi 0, %s282
      %s284 = sphi 0, %s282
      %s285 = sphi 0, %s284
      %s299 = sphi 0, %s285
      %s303 = sphi 0, %s303
      %s305 = sphi 0, %s303
      %s306 = sphi 0, %s305
      %s320 = sphi 0, %s306
      %s324 = sphi 0, %s324
      %s326 = sphi 0, %s324
      %s327 = sphi 0, %s326
      %s341 = sphi 0, %s327
      %s345 = sphi 0, %s345
      %s347 = sphi 0, %s345
      %s348 = sphi 0, %s347
      %s362 = sphi 0, %s348
      %s366 = sphi 0, %s366
      %s368 = sphi 0, %s366
      %s369 = sphi 0, %s368
      %s383 = sphi 0, %s369
      %s387 = sphi 0, %s387
      %s389 = sphi 0, %s387
      %s390 = sphi 0, %s389
      %s404 = sphi 0, %s390
      %s408 = sphi 0, %s408
      %s410 = sphi 0, %s408
      %s411 = sphi 0, %s410
      %s425 = sphi 0, %s411
      %s429 = sphi 0, %s429
      %s431 = sphi 0, %s429
      %s432 = sphi 0, %s431
      %s446 = sphi 0, %s432
      %s452 = sphi 0, %s454
      %s455 = sphi 0, %s452
      %s456 = sphi 0, %s455
      %s472 = sphi 0, %s456
      %s478 = sphi 0, %s480
      %s481 = sphi 0, %s478
      %s482 = sphi 0, %s481
      %s498 = sphi 0, %s482
      %s504 = sphi 0, %s506
      %s507 = sphi 0, %s504
      %s508 = sphi 0, %s507
      %s524 = sphi 0, %s508
    $region4: #{tpu_custom_call.1} parent=1 // loop_header_branch
      %39 = sbr.rel (%p37) target = $region8
    $region5: #{tpu_custom_call.1} parent=1 // loop_body
      %s41 = ssub.s32 %s36, 1
      %s42 = ssub.s32 %s36, 2
      %s49 = sadd.s32 1, %s44
      %p50 = scmp.ge.s32.totalorder %s49, 1
      %s51 = scalar_select %p50, 0, %s49
      %s52 = sadd.s32 1, %s43
      %s53 = scalar_select %p50, %s52, %s43
      %p54 = scmp.ge.s32.totalorder %s53, 2
      %s55 = scalar_select %p54, 0, %s53
      %s56 = ssub.s32 %s43, %s55
      %s57 = ssub.s32 %s44, %s51
      %s58 = sor.u32 %s56, %s57
      %p59 = scmp.eq.s32.totalorder %s58, 0
      %s61 = sadd.s32 %s60, 1
      %s62 = scalar_select %p59, %s60, %s61
      %p65 = pneg %p59
      %p66 = scmp.eq.s32.totalorder %s36, 1
      %p67 = por %p65, %p66
      %p68 = scmp.ne.s32.totalorder %s60, %s63
      %p69 = scmp.eq.s32.totalorder %s36, 0
      %p70 = por %p68, %p69
      %p71 = scmp.ne.s32.totalorder %s60, %s63
      %p72 = scmp.eq.s32.totalorder %s41, 1
      %p73 = por %p71, %p72
      %p74 = scmp.ne.s32.totalorder %s63, %s64
      %p75 = scmp.eq.s32.totalorder %s41, 0
      %p76 = por %p74, %p75
      %p77 = scmp.ne.s32.totalorder %s63, %s64
      %p78 = scmp.eq.s32.totalorder %s42, 1
      %p79 = por %p77, %p78
      %p81 = scmp.ne.s32.totalorder %s64, %s80
      %p82 = scmp.eq.s32.totalorder %s42, 0
      %p83 = por %p81, %p82
      %s84 = ssub.s32 %s43, %s55
      %p85 = scmp.eq.s32.totalorder %s84, 0
      %s87 = sadd.s32 %s86, 1
      %s88 = scalar_select %p85, %s86, %s87
      %p91 = pneg %p85
      %p92 = scmp.eq.s32.totalorder %s36, 1
      %p93 = por %p91, %p92
      %p94 = scmp.ne.s32.totalorder %s86, %s89
      %p95 = scmp.eq.s32.totalorder %s36, 0
      %p96 = por %p94, %p95
      %p97 = scmp.ne.s32.totalorder %s86, %s89
      %p98 = scmp.eq.s32.totalorder %s41, 1
      %p99 = por %p97, %p98
      %p100 = scmp.ne.s32.totalorder %s89, %s90
      %p101 = scmp.eq.s32.totalorder %s41, 0
      %p102 = por %p100, %p101
      %p103 = scmp.ne.s32.totalorder %s89, %s90
      %p104 = scmp.eq.s32.totalorder %s42, 1
      %p105 = por %p103, %p104
      %p107 = scmp.ne.s32.totalorder %s90, %s106
      %p108 = scmp.eq.s32.totalorder %s42, 0
      %p109 = por %p107, %p108
      %s110 = ssub.s32 %s43, %s55
      %p111 = scmp.eq.s32.totalorder %s110, 0
      %s113 = sadd.s32 %s112, 1
      %s114 = scalar_select %p111, %s112, %s113
      %p117 = pneg %p111
      %p118 = scmp.eq.s32.totalorder %s36, 1
      %p119 = por %p117, %p118
      %p120 = scmp.ne.s32.totalorder %s112, %s115
      %p121 = scmp.eq.s32.totalorder %s36, 0
      %p122 = por %p120, %p121
      %p123 = scmp.ne.s32.totalorder %s112, %s115
      %p124 = scmp.eq.s32.totalorder %s41, 1
      %p125 = por %p123, %p124
      %p126 = scmp.ne.s32.totalorder %s115, %s116
      %p127 = scmp.eq.s32.totalorder %s41, 0
      %p128 = por %p126, %p127
      %p129 = scmp.ne.s32.totalorder %s115, %s116
      %p130 = scmp.eq.s32.totalorder %s42, 1
      %p131 = por %p129, %p130
      %p133 = scmp.ne.s32.totalorder %s116, %s132
      %p134 = scmp.eq.s32.totalorder %s42, 0
      %p135 = por %p133, %p134
      %s136 = ssub.s32 %s43, %s55
      %p137 = scmp.eq.s32.totalorder %s136, 0
      %s139 = sadd.s32 %s138, 1
      %s140 = scalar_select %p137, %s138, %s139
      %p143 = pneg %p137
      %p144 = scmp.eq.s32.totalorder %s36, 1
      %p145 = por %p143, %p144
      %p146 = scmp.ne.s32.totalorder %s138, %s141
      %p147 = scmp.eq.s32.totalorder %s36, 0
      %p148 = por %p146, %p147
      %p149 = scmp.ne.s32.totalorder %s138, %s141
      %p150 = scmp.eq.s32.totalorder %s41, 1
      %p151 = por %p149, %p150
      %p152 = scmp.ne.s32.totalorder %s141, %s142
      %p153 = scmp.eq.s32.totalorder %s41, 0
      %p154 = por %p152, %p153
      %p155 = scmp.ne.s32.totalorder %s141, %s142
      %p156 = scmp.eq.s32.totalorder %s42, 1
      %p157 = por %p155, %p156
      %p159 = scmp.ne.s32.totalorder %s142, %s158
      %p160 = scmp.eq.s32.totalorder %s42, 0
      %p161 = por %p159, %p160
      %s162 = ssub.s32 %s43, %s55
      %p163 = scmp.eq.s32.totalorder %s162, 0
      %s165 = sadd.s32 %s164, 1
      %s166 = scalar_select %p163, %s164, %s165
      %p169 = pneg %p163
      %p170 = scmp.eq.s32.totalorder %s36, 1
      %p171 = por %p169, %p170
      %p172 = scmp.ne.s32.totalorder %s164, %s167
      %p173 = scmp.eq.s32.totalorder %s36, 0
      %p174 = por %p172, %p173
      %p175 = scmp.ne.s32.totalorder %s164, %s167
      %p176 = scmp.eq.s32.totalorder %s41, 1
      %p177 = por %p175, %p176
      %p178 = scmp.ne.s32.totalorder %s167, %s168
      %p179 = scmp.eq.s32.totalorder %s41, 0
      %p180 = por %p178, %p179
      %p181 = scmp.ne.s32.totalorder %s167, %s168
      %p182 = scmp.eq.s32.totalorder %s42, 1
      %p183 = por %p181, %p182
      %p185 = scmp.ne.s32.totalorder %s168, %s184
      %p186 = scmp.eq.s32.totalorder %s42, 0
      %p187 = por %p185, %p186
      %s188 = ssub.s32 %s43, %s55
      %p189 = scmp.eq.s32.totalorder %s188, 0
      %s191 = sadd.s32 %s190, 1
      %s192 = scalar_select %p189, %s190, %s191
      %p195 = pneg %p189
      %p196 = scmp.eq.s32.totalorder %s36, 1
      %p197 = por %p195, %p196
      %p198 = scmp.ne.s32.totalorder %s190, %s193
      %p199 = scmp.eq.s32.totalorder %s36, 0
      %p200 = por %p198, %p199
      %p201 = scmp.ne.s32.totalorder %s190, %s193
      %p202 = scmp.eq.s32.totalorder %s41, 1
      %p203 = por %p201, %p202
      %p204 = scmp.ne.s32.totalorder %s193, %s194
      %p205 = scmp.eq.s32.totalorder %s41, 0
      %p206 = por %p204, %p205
      %p207 = scmp.ne.s32.totalorder %s193, %s194
      %p208 = scmp.eq.s32.totalorder %s42, 1
      %p209 = por %p207, %p208
      %p211 = scmp.ne.s32.totalorder %s194, %s210
      %p212 = scmp.eq.s32.totalorder %s42, 0
      %p213 = por %p211, %p212
      %s214 = ssub.s32 %s43, %s55
      %p215 = scmp.eq.s32.totalorder %s214, 0
      %s217 = sadd.s32 %s216, 1
      %s218 = scalar_select %p215, %s216, %s217
      %p221 = pneg %p215
      %p222 = scmp.eq.s32.totalorder %s36, 1
      %p223 = por %p221, %p222
      %p224 = scmp.ne.s32.totalorder %s216, %s219
      %p225 = scmp.eq.s32.totalorder %s36, 0
      %p226 = por %p224, %p225
      %p227 = scmp.ne.s32.totalorder %s216, %s219
      %p228 = scmp.eq.s32.totalorder %s41, 1
      %p229 = por %p227, %p228
      %p230 = scmp.ne.s32.totalorder %s219, %s220
      %p231 = scmp.eq.s32.totalorder %s41, 0
      %p232 = por %p230, %p231
      %p233 = scmp.ne.s32.totalorder %s219, %s220
      %p234 = scmp.eq.s32.totalorder %s42, 1
      %p235 = por %p233, %p234
      %p237 = scmp.ne.s32.totalorder %s220, %s236
      %p238 = scmp.eq.s32.totalorder %s42, 0
      %p239 = por %p237, %p238
      %s241 = sadd.s32 %s240, 1
      %p244 = scmp.eq.s32.totalorder %s36, 1
      %p245 = scmp.ne.s32.totalorder %s240, %s242
      %p246 = scmp.eq.s32.totalorder %s36, 0
      %p247 = por %p245, %p246
      %p248 = scmp.ne.s32.totalorder %s240, %s242
      %p249 = scmp.eq.s32.totalorder %s41, 1
      %p250 = por %p248, %p249
      %p251 = scmp.ne.s32.totalorder %s242, %s243
      %p252 = scmp.eq.s32.totalorder %s41, 0
      %p253 = por %p251, %p252
      %p254 = scmp.ne.s32.totalorder %s242, %s243
      %p255 = scmp.eq.s32.totalorder %s42, 1
      %p256 = por %p254, %p255
      %p258 = scmp.ne.s32.totalorder %s243, %s257
      %p259 = scmp.eq.s32.totalorder %s42, 0
      %p260 = por %p258, %p259
      %s262 = sadd.s32 %s261, 1
      %p265 = scmp.eq.s32.totalorder %s36, 1
      %p266 = scmp.ne.s32.totalorder %s261, %s263
      %p267 = scmp.eq.s32.totalorder %s36, 0
      %p268 = por %p266, %p267
      %p269 = scmp.ne.s32.totalorder %s261, %s263
      %p270 = scmp.eq.s32.totalorder %s41, 1
      %p271 = por %p269, %p270
      %p272 = scmp.ne.s32.totalorder %s263, %s264
      %p273 = scmp.eq.s32.totalorder %s41, 0
      %p274 = por %p272, %p273
      %p275 = scmp.ne.s32.totalorder %s263, %s264
      %p276 = scmp.eq.s32.totalorder %s42, 1
      %p277 = por %p275, %p276
      %p279 = scmp.ne.s32.totalorder %s264, %s278
      %p280 = scmp.eq.s32.totalorder %s42, 0
      %p281 = por %p279, %p280
      %s283 = sadd.s32 %s282, 1
      %p286 = scmp.eq.s32.totalorder %s36, 1
      %p287 = scmp.ne.s32.totalorder %s282, %s284
      %p288 = scmp.eq.s32.totalorder %s36, 0
      %p289 = por %p287, %p288
      %p290 = scmp.ne.s32.totalorder %s282, %s284
      %p291 = scmp.eq.s32.totalorder %s41, 1
      %p292 = por %p290, %p291
      %p293 = scmp.ne.s32.totalorder %s284, %s285
      %p294 = scmp.eq.s32.totalorder %s41, 0
      %p295 = por %p293, %p294
      %p296 = scmp.ne.s32.totalorder %s284, %s285
      %p297 = scmp.eq.s32.totalorder %s42, 1
      %p298 = por %p296, %p297
      %p300 = scmp.ne.s32.totalorder %s285, %s299
      %p301 = scmp.eq.s32.totalorder %s42, 0
      %p302 = por %p300, %p301
      %s304 = sadd.s32 %s303, 1
      %p307 = scmp.eq.s32.totalorder %s36, 1
      %p308 = scmp.ne.s32.totalorder %s303, %s305
      %p309 = scmp.eq.s32.totalorder %s36, 0
      %p310 = por %p308, %p309
      %p311 = scmp.ne.s32.totalorder %s303, %s305
      %p312 = scmp.eq.s32.totalorder %s41, 1
      %p313 = por %p311, %p312
      %p314 = scmp.ne.s32.totalorder %s305, %s306
      %p315 = scmp.eq.s32.totalorder %s41, 0
      %p316 = por %p314, %p315
      %p317 = scmp.ne.s32.totalorder %s305, %s306
      %p318 = scmp.eq.s32.totalorder %s42, 1
      %p319 = por %p317, %p318
      %p321 = scmp.ne.s32.totalorder %s306, %s320
      %p322 = scmp.eq.s32.totalorder %s42, 0
      %p323 = por %p321, %p322
      %s325 = sadd.s32 %s324, 1
      %p328 = scmp.eq.s32.totalorder %s36, 1
      %p329 = scmp.ne.s32.totalorder %s324, %s326
      %p330 = scmp.eq.s32.totalorder %s36, 0
      %p331 = por %p329, %p330
      %p332 = scmp.ne.s32.totalorder %s324, %s326
      %p333 = scmp.eq.s32.totalorder %s41, 1
      %p334 = por %p332, %p333
      %p335 = scmp.ne.s32.totalorder %s326, %s327
      %p336 = scmp.eq.s32.totalorder %s41, 0
      %p337 = por %p335, %p336
      %p338 = scmp.ne.s32.totalorder %s326, %s327
      %p339 = scmp.eq.s32.totalorder %s42, 1
      %p340 = por %p338, %p339
      %p342 = scmp.ne.s32.totalorder %s327, %s341
      %p343 = scmp.eq.s32.totalorder %s42, 0
      %p344 = por %p342, %p343
      %s346 = sadd.s32 %s345, 1
      %p349 = scmp.eq.s32.totalorder %s36, 1
      %p350 = scmp.ne.s32.totalorder %s345, %s347
      %p351 = scmp.eq.s32.totalorder %s36, 0
      %p352 = por %p350, %p351
      %p353 = scmp.ne.s32.totalorder %s345, %s347
      %p354 = scmp.eq.s32.totalorder %s41, 1
      %p355 = por %p353, %p354
      %p356 = scmp.ne.s32.totalorder %s347, %s348
      %p357 = scmp.eq.s32.totalorder %s41, 0
      %p358 = por %p356, %p357
      %p359 = scmp.ne.s32.totalorder %s347, %s348
      %p360 = scmp.eq.s32.totalorder %s42, 1
      %p361 = por %p359, %p360
      %p363 = scmp.ne.s32.totalorder %s348, %s362
      %p364 = scmp.eq.s32.totalorder %s42, 0
      %p365 = por %p363, %p364
      %s367 = sadd.s32 %s366, 1
      %p370 = scmp.eq.s32.totalorder %s36, 1
      %p371 = scmp.ne.s32.totalorder %s366, %s368
      %p372 = scmp.eq.s32.totalorder %s36, 0
      %p373 = por %p371, %p372
      %p374 = scmp.ne.s32.totalorder %s366, %s368
      %p375 = scmp.eq.s32.totalorder %s41, 1
      %p376 = por %p374, %p375
      %p377 = scmp.ne.s32.totalorder %s368, %s369
      %p378 = scmp.eq.s32.totalorder %s41, 0
      %p379 = por %p377, %p378
      %p380 = scmp.ne.s32.totalorder %s368, %s369
      %p381 = scmp.eq.s32.totalorder %s42, 1
      %p382 = por %p380, %p381
      %p384 = scmp.ne.s32.totalorder %s369, %s383
      %p385 = scmp.eq.s32.totalorder %s42, 0
      %p386 = por %p384, %p385
      %s388 = sadd.s32 %s387, 1
      %p391 = scmp.eq.s32.totalorder %s36, 1
      %p392 = scmp.ne.s32.totalorder %s387, %s389
      %p393 = scmp.eq.s32.totalorder %s36, 0
      %p394 = por %p392, %p393
      %p395 = scmp.ne.s32.totalorder %s387, %s389
      %p396 = scmp.eq.s32.totalorder %s41, 1
      %p397 = por %p395, %p396
      %p398 = scmp.ne.s32.totalorder %s389, %s390
      %p399 = scmp.eq.s32.totalorder %s41, 0
      %p400 = por %p398, %p399
      %p401 = scmp.ne.s32.totalorder %s389, %s390
      %p402 = scmp.eq.s32.totalorder %s42, 1
      %p403 = por %p401, %p402
      %p405 = scmp.ne.s32.totalorder %s390, %s404
      %p406 = scmp.eq.s32.totalorder %s42, 0
      %p407 = por %p405, %p406
      %s409 = sadd.s32 %s408, 1
      %p412 = scmp.eq.s32.totalorder %s36, 1
      %p413 = scmp.ne.s32.totalorder %s408, %s410
      %p414 = scmp.eq.s32.totalorder %s36, 0
      %p415 = por %p413, %p414
      %p416 = scmp.ne.s32.totalorder %s408, %s410
      %p417 = scmp.eq.s32.totalorder %s41, 1
      %p418 = por %p416, %p417
      %p419 = scmp.ne.s32.totalorder %s410, %s411
      %p420 = scmp.eq.s32.totalorder %s41, 0
      %p421 = por %p419, %p420
      %p422 = scmp.ne.s32.totalorder %s410, %s411
      %p423 = scmp.eq.s32.totalorder %s42, 1
      %p424 = por %p422, %p423
      %p426 = scmp.ne.s32.totalorder %s411, %s425
      %p427 = scmp.eq.s32.totalorder %s42, 0
      %p428 = por %p426, %p427
      %s430 = sadd.s32 %s429, 1
      %p433 = scmp.eq.s32.totalorder %s36, 1
      %p434 = scmp.ne.s32.totalorder %s429, %s431
      %p435 = scmp.eq.s32.totalorder %s36, 0
      %p436 = por %p434, %p435
      %p437 = scmp.ne.s32.totalorder %s429, %s431
      %p438 = scmp.eq.s32.totalorder %s41, 1
      %p439 = por %p437, %p438
      %p440 = scmp.ne.s32.totalorder %s431, %s432
      %p441 = scmp.eq.s32.totalorder %s41, 0
      %p442 = por %p440, %p441
      %p443 = scmp.ne.s32.totalorder %s431, %s432
      %p444 = scmp.eq.s32.totalorder %s42, 1
      %p445 = por %p443, %p444
      %p447 = scmp.ne.s32.totalorder %s432, %s446
      %p448 = scmp.eq.s32.totalorder %s42, 0
      %p449 = por %p447, %p448
      %s450 = ssub.s32 %s43, %s55
      %p451 = scmp.eq.s32.totalorder %s450, 0
      %s453 = sadd.s32 %s452, 1
      %s454 = scalar_select %p451, %s452, %s453
      %p457 = pneg %p451
      %p458 = scmp.eq.s32.totalorder %s36, 1
      %p459 = por %p457, %p458
      %p460 = scmp.ne.s32.totalorder %s452, %s455
      %p461 = scmp.eq.s32.totalorder %s36, 0
      %p462 = por %p460, %p461
      %p463 = scmp.ne.s32.totalorder %s452, %s455
      %p464 = scmp.eq.s32.totalorder %s41, 1
      %p465 = por %p463, %p464
      %p466 = scmp.ne.s32.totalorder %s455, %s456
      %p467 = scmp.eq.s32.totalorder %s41, 0
      %p468 = por %p466, %p467
      %p469 = scmp.ne.s32.totalorder %s455, %s456
      %p470 = scmp.eq.s32.totalorder %s42, 1
      %p471 = por %p469, %p470
      %p473 = scmp.ne.s32.totalorder %s456, %s472
      %p474 = scmp.eq.s32.totalorder %s42, 0
      %p475 = por %p473, %p474
      %s476 = ssub.s32 %s43, %s55
      %p477 = scmp.eq.s32.totalorder %s476, 0
      %s479 = sadd.s32 %s478, 1
      %s480 = scalar_select %p477, %s478, %s479
      %p483 = pneg %p477
      %p484 = scmp.eq.s32.totalorder %s36, 1
      %p485 = por %p483, %p484
      %p486 = scmp.ne.s32.totalorder %s478, %s481
      %p487 = scmp.eq.s32.totalorder %s36, 0
      %p488 = por %p486, %p487
      %p489 = scmp.ne.s32.totalorder %s478, %s481
      %p490 = scmp.eq.s32.totalorder %s41, 1
      %p491 = por %p489, %p490
      %p492 = scmp.ne.s32.totalorder %s481, %s482
      %p493 = scmp.eq.s32.totalorder %s41, 0
      %p494 = por %p492, %p493
      %p495 = scmp.ne.s32.totalorder %s481, %s482
      %p496 = scmp.eq.s32.totalorder %s42, 1
      %p497 = por %p495, %p496
      %p499 = scmp.ne.s32.totalorder %s482, %s498
      %p500 = scmp.eq.s32.totalorder %s42, 0
      %p501 = por %p499, %p500
      %s502 = ssub.s32 %s43, %s55
      %p503 = scmp.eq.s32.totalorder %s502, 0
      %s505 = sadd.s32 %s504, 1
      %s506 = scalar_select %p503, %s504, %s505
      %p509 = pneg %p503
      %p510 = scmp.eq.s32.totalorder %s36, 1
      %p511 = por %p509, %p510
      %p512 = scmp.ne.s32.totalorder %s504, %s507
      %p513 = scmp.eq.s32.totalorder %s36, 0
      %p514 = por %p512, %p513
      %p515 = scmp.ne.s32.totalorder %s504, %s507
      %p516 = scmp.eq.s32.totalorder %s41, 1
      %p517 = por %p515, %p516
      %p518 = scmp.ne.s32.totalorder %s507, %s508
      %p519 = scmp.eq.s32.totalorder %s41, 0
      %p520 = por %p518, %p519
      %p521 = scmp.ne.s32.totalorder %s507, %s508
      %p522 = scmp.eq.s32.totalorder %s42, 1
      %p523 = por %p521, %p522
      %p525 = scmp.ne.s32.totalorder %s508, %s524
      %p526 = scmp.eq.s32.totalorder %s42, 0
      %p527 = por %p525, %p526
      %p528 = scmp.le.s32.totalorder 1, %s36
      %p529 = scmp.lt.s32.totalorder %s36, 3
      %p530 = pnand %p528, %p529
      %p531 = pneg %p530
      // Predicated region
      $region9: #{tpu_custom_call.1} parent=5 // pred_check
        _
      $region10: #{tpu_custom_call.1} parent=5 // pred_check_branch
        %533 = sbr.rel (%p530) target = $region12
      $region11: #{tpu_custom_call.1} parent=5 // pred_region
        %s534 = ssub.s32 %s36, 1
        // Predicated region
        $region13: #{tpu_custom_call.1} parent=11 // pred_check
          %p535 = pneg %p253
        $region14: #{tpu_custom_call.1} parent=11 // pred_check_branch
          %537 = sbr.rel (%p535) target = $region16
        $region15: #{tpu_custom_call.1} parent=11 // pred_region
          _
        $region16: #{tpu_custom_call.1} parent=11 // pred_fallthru
          _
        // Predicated region
        $region17: #{tpu_custom_call.1} parent=11 // pred_check
          %p538 = pneg %p274
        $region18: #{tpu_custom_call.1} parent=11 // pred_check_branch
          %540 = sbr.rel (%p538) target = $region20
        $region19: #{tpu_custom_call.1} parent=11 // pred_region
          _
        $region20: #{tpu_custom_call.1} parent=11 // pred_fallthru
          _
        // Predicated region
        $region21: #{tpu_custom_call.1} parent=11 // pred_check
          %p541 = pneg %p295
        $region22: #{tpu_custom_call.1} parent=11 // pred_check_branch
          %543 = sbr.rel (%p541) target = $region24
        $region23: #{tpu_custom_call.1} parent=11 // pred_region
          _
        $region24: #{tpu_custom_call.1} parent=11 // pred_fallthru
          _
        // Predicated region
        $region25: #{tpu_custom_call.1} parent=11 // pred_check
          %p544 = pneg %p316
        $region26: #{tpu_custom_call.1} parent=11 // pred_check_branch
          %546 = sbr.rel (%p544) target = $region28
        $region27: #{tpu_custom_call.1} parent=11 // pred_region
          _
        $region28: #{tpu_custom_call.1} parent=11 // pred_fallthru
          _
        // Predicated region
        $region29: #{tpu_custom_call.1} parent=11 // pred_check
          %p547 = pneg %p337
        $region30: #{tpu_custom_call.1} parent=11 // pred_check_branch
          %549 = sbr.rel (%p547) target = $region32
        $region31: #{tpu_custom_call.1} parent=11 // pred_region
          _
        $region32: #{tpu_custom_call.1} parent=11 // pred_fallthru
          _
        // Predicated region
        $region33: #{tpu_custom_call.1} parent=11 // pred_check
          %p550 = pneg %p358
        $region34: #{tpu_custom_call.1} parent=11 // pred_check_branch
          %552 = sbr.rel (%p550) target = $region36
        $region35: #{tpu_custom_call.1} parent=11 // pred_region
          %s554 = ssub.s32 2048, 2048
          %555 = vsyncadd [#allocation9], %s554
          %s556 = sshll.u32 [#allocation8], 4
          %s557 = int_to_ptr.vmem [resolvable:$true] %s556
          %562 = dma.hbm_to_vmem [thread:$0]  %s12, 2048, %s557, [#allocation9], 128, 128, 8
        $region36: #{tpu_custom_call.1} parent=11 // pred_fallthru
          _
        // Predicated region
        $region37: #{tpu_custom_call.1} parent=11 // pred_check
          %p563 = pneg %p379
        $region38: #{tpu_custom_call.1} parent=11 // pred_check_branch
          %565 = sbr.rel (%p563) target = $region40
        $region39: #{tpu_custom_call.1} parent=11 // pred_region
          %s567 = ssub.s32 2048, 2048
          %568 = vsyncadd [#allocation9], %s567
          %s569 = sshll.u32 [#allocation10], 4
          %s570 = int_to_ptr.vmem [resolvable:$true] %s569
          %575 = dma.hbm_to_vmem [thread:$0]  %s13, 2048, %s570, [#allocation9], 128, 128, 8
        $region40: #{tpu_custom_call.1} parent=11 // pred_fallthru
          _
        // Predicated region
        $region41: #{tpu_custom_call.1} parent=11 // pred_check
          %p576 = pneg %p400
        $region42: #{tpu_custom_call.1} parent=11 // pred_check_branch
          %578 = sbr.rel (%p576) target = $region44
        $region43: #{tpu_custom_call.1} parent=11 // pred_region
          _
        $region44: #{tpu_custom_call.1} parent=11 // pred_fallthru
          _
        // Predicated region
        $region45: #{tpu_custom_call.1} parent=11 // pred_check
          %p579 = pneg %p421
        $region46: #{tpu_custom_call.1} parent=11 // pred_check_branch
          %581 = sbr.rel (%p579) target = $region48
        $region47: #{tpu_custom_call.1} parent=11 // pred_region
          _
        $region48: #{tpu_custom_call.1} parent=11 // pred_fallthru
          _
        // Predicated region
        $region49: #{tpu_custom_call.1} parent=11 // pred_check
          %p582 = pneg %p442
        $region50: #{tpu_custom_call.1} parent=11 // pred_check_branch
          %584 = sbr.rel (%p582) target = $region52
        $region51: #{tpu_custom_call.1} parent=11 // pred_region
          _
        $region52: #{tpu_custom_call.1} parent=11 // pred_fallthru
          _
      $region12: #{tpu_custom_call.1} parent=5 // pred_fallthru
        _
      %p585 = scmp.lt.s32.totalorder %s36, 2
      // Predicated region
      $region53: #{tpu_custom_call.1} parent=5 // pred_check
        %p586 = pneg %p585
      $region54: #{tpu_custom_call.1} parent=5 // pred_check_branch
        %588 = sbr.rel (%p586) target = $region56
      $region55: #{tpu_custom_call.1} parent=5 // pred_region
        // Predicated region
        $region57: #{tpu_custom_call.1} parent=55 // pred_check
          %p589 = pneg %p70
        $region58: #{tpu_custom_call.1} parent=55 // pred_check_branch
          %591 = sbr.rel (%p589) target = $region60
        $region59: #{tpu_custom_call.1} parent=55 // pred_region
          %s592 = sand.u32 %s60, 1
          %s593 = scalar_lea.sflag [#allocation6], %s592
          %s594 = sand.u32 %s60, 1
          %s595 = smul.addr %s594, 320
          %s596 = scalar_lea.vmem [#allocation5], %s595
          %s597 = smul.u32 8, %s43
          %s598 = smul.u32 5, %s44
          %s599 = ssub.s32 12, %s597
          %p600 = scmp.lt.s32.totalorder %s599, 8
          %s601 = scalar_select %p600, %s599, 8
          %s602 = smul.u32 128, %s601
          %s603 = smul.u32 %s602, 5
          %s605 = ssub.s32 5120, %s603
          %606 = vsyncadd %s593, %s605
          %p607 = scmp.ne.s32.totalorder 0, %s603
          %s608 = smul.addr %s597, 5
          %s609 = sadd.s32 %s598, %s608
          %s610 = smul.addr %s609, 128
          %s611 = scalar_lea.hbm %s0, %s610
          %s612 = smul.u32 %s601, 5
          %s613 = smul.u32 8, %s612
          %s614 = sshll.u32 %s596, 4
          %s615 = int_to_ptr.vmem [resolvable:$true] %s614
          %s616 = sshll.u32 %s613, 4
          %620 = dma.hbm_to_vmem [thread:$0]  (%p607), %s611, %s616, %s615, %s593, 128, 128, 8
        $region60: #{tpu_custom_call.1} parent=55 // pred_fallthru
          _
        // Predicated region
        $region61: #{tpu_custom_call.1} parent=55 // pred_check
          %p621 = pneg %p96
        $region62: #{tpu_custom_call.1} parent=55 // pred_check_branch
          %623 = sbr.rel (%p621) target = $region64
        $region63: #{tpu_custom_call.1} parent=55 // pred_region
          %s624 = smul.u32 8, %s43
          %p625 = scmp.lt.s32.totalorder %s624, 15
          %s626 = scalar_select %p625, %s624, 15
          %s627 = smul.addr %s626, 2
          %s628 = scalar_lea.vmem %s1, %s627
          %s629 = smul.u32 8, %s43
        $region64: #{tpu_custom_call.1} parent=55 // pred_fallthru
          _
        // Predicated region
        $region65: #{tpu_custom_call.1} parent=55 // pred_check
          %p630 = pneg %p122
        $region66: #{tpu_custom_call.1} parent=55 // pred_check_branch
          %632 = sbr.rel (%p630) target = $region68
        $region67: #{tpu_custom_call.1} parent=55 // pred_region
          %s633 = smul.u32 8, %s43
          %p634 = scmp.lt.s32.totalorder %s633, 15
          %s635 = scalar_select %p634, %s633, 15
          %s636 = smul.addr %s635, 2
          %s637 = scalar_lea.vmem %s2, %s636
          %s638 = smul.u32 8, %s43
        $region68: #{tpu_custom_call.1} parent=55 // pred_fallthru
          _
        // Predicated region
        $region69: #{tpu_custom_call.1} parent=55 // pred_check
          %p639 = pneg %p148
        $region70: #{tpu_custom_call.1} parent=55 // pred_check_branch
          %641 = sbr.rel (%p639) target = $region72
        $region71: #{tpu_custom_call.1} parent=55 // pred_region
          %s642 = smul.u32 8, %s43
          %p643 = scmp.lt.s32.totalorder %s642, 15
          %s644 = scalar_select %p643, %s642, 15
          %s645 = smul.addr %s644, 2
          %s646 = scalar_lea.vmem %s3, %s645
          %s647 = smul.u32 8, %s43
        $region72: #{tpu_custom_call.1} parent=55 // pred_fallthru
          _
        // Predicated region
        $region73: #{tpu_custom_call.1} parent=55 // pred_check
          %p648 = pneg %p174
        $region74: #{tpu_custom_call.1} parent=55 // pred_check_branch
          %650 = sbr.rel (%p648) target = $region76
        $region75: #{tpu_custom_call.1} parent=55 // pred_region
          %p651 = scmp.lt.s32.totalorder %s43, 1
          %s652 = scalar_select %p651, %s43, 1
          %s653 = smul.addr %s652, 8
          %s654 = scalar_lea.vmem %s4, %s653
        $region76: #{tpu_custom_call.1} parent=55 // pred_fallthru
          _
        // Predicated region
        $region77: #{tpu_custom_call.1} parent=55 // pred_check
          %p655 = pneg %p200
        $region78: #{tpu_custom_call.1} parent=55 // pred_check_branch
          %657 = sbr.rel (%p655) target = $region80
        $region79: #{tpu_custom_call.1} parent=55 // pred_region
          %p658 = scmp.lt.s32.totalorder %s43, 1
          %s659 = scalar_select %p658, %s43, 1
          %s660 = smul.addr %s659, 8
          %s661 = scalar_lea.vmem %s5, %s660
        $region80: #{tpu_custom_call.1} parent=55 // pred_fallthru
          _
        // Predicated region
        $region81: #{tpu_custom_call.1} parent=55 // pred_check
          %p662 = pneg %p226
        $region82: #{tpu_custom_call.1} parent=55 // pred_check_branch
          %664 = sbr.rel (%p662) target = $region84
        $region83: #{tpu_custom_call.1} parent=55 // pred_region
          %p665 = scmp.lt.s32.totalorder %s43, 1
          %s666 = scalar_select %p665, %s43, 1
          %s667 = smul.addr %s666, 8
          %s668 = scalar_lea.vmem %s6, %s667
        $region84: #{tpu_custom_call.1} parent=55 // pred_fallthru
          _
      $region56: #{tpu_custom_call.1} parent=5 // pred_fallthru
        _
      %p669 = scmp.le.s32.totalorder 1, %s36
      %p670 = scmp.lt.s32.totalorder %s36, 3
      %p671 = pnand %p669, %p670
      %p672 = pneg %p671
      // Predicated region
      $region85: #{tpu_custom_call.1} parent=5 // pred_check
        _
      $region86: #{tpu_custom_call.1} parent=5 // pred_check_branch
        %674 = sbr.rel (%p671) target = $region88
      $region87: #{tpu_custom_call.1} parent=5 // pred_region
        %s675 = ssub.s32 %s36, 1
        %s676 = sand.u32 %s63, 1
        %s677 = scalar_lea.sflag [#allocation6], %s676
        %s678 = sand.u32 %s63, 1
        %s679 = smul.addr %s678, 320
        %s680 = scalar_lea.vmem [#allocation5], %s679
        // Predicated region
        $region89: #{tpu_custom_call.1} parent=87 // pred_check
          %p681 = pneg %p76
        $region90: #{tpu_custom_call.1} parent=87 // pred_check_branch
          %683 = sbr.rel (%p681) target = $region92
        $region91: #{tpu_custom_call.1} parent=87 // pred_region
          %684 = dma.done %s677, 5120
        $region92: #{tpu_custom_call.1} parent=87 // pred_fallthru
          _
        // Predicated region
        $region93: #{tpu_custom_call.1} parent=87 // pred_check
          %p685 = pneg %p358
        $region94: #{tpu_custom_call.1} parent=87 // pred_check_branch
          %687 = sbr.rel (%p685) target = $region96
        $region95: #{tpu_custom_call.1} parent=87 // pred_region
          %688 = dma.done [#allocation9], 2048
        $region96: #{tpu_custom_call.1} parent=87 // pred_fallthru
          _
        // Predicated region
        $region97: #{tpu_custom_call.1} parent=87 // pred_check
          %p689 = pneg %p379
        $region98: #{tpu_custom_call.1} parent=87 // pred_check_branch
          %691 = sbr.rel (%p689) target = $region100
        $region99: #{tpu_custom_call.1} parent=87 // pred_region
          %692 = dma.done [#allocation9], 2048
        $region100: #{tpu_custom_call.1} parent=87 // pred_fallthru
          _
        %s693 = sand.u32 %s63, 1
        %s694 = scalar_lea.sflag [#allocation6], %s693
        %s695 = sand.u32 %s63, 1
        %s696 = smul.addr %s695, 320
        %s697 = scalar_lea.vmem [#allocation5], %s696
        %p698 = pneg %p76
        %p699 = pneg %p73
        %s700 = smul.u32 8, %s45
        %p701 = scmp.lt.s32.totalorder %s700, 15
        %s702 = scalar_select %p701, %s700, 15
        %s703 = smul.addr %s702, 2
        %s704 = scalar_lea.vmem %s1, %s703
        %p705 = pneg %p102
        %p706 = pneg %p99
        %s707 = smul.u32 8, %s45
        %p708 = scmp.lt.s32.totalorder %s707, 15
        %s709 = scalar_select %p708, %s707, 15
        %s710 = smul.addr %s709, 2
        %s711 = scalar_lea.vmem %s2, %s710
        %p712 = pneg %p128
        %p713 = pneg %p125
        %s714 = smul.u32 8, %s45
        %p715 = scmp.lt.s32.totalorder %s714, 15
        %s716 = scalar_select %p715, %s714, 15
        %s717 = smul.addr %s716, 2
        %s718 = scalar_lea.vmem %s3, %s717
        %p719 = pneg %p154
        %p720 = pneg %p151
        %p721 = scmp.lt.s32.totalorder %s45, 1
        %s722 = scalar_select %p721, %s45, 1
        %s723 = smul.addr %s722, 8
        %s724 = scalar_lea.vmem %s4, %s723
        %p725 = pneg %p180
        %p726 = pneg %p177
        %p727 = scmp.lt.s32.totalorder %s45, 1
        %s728 = scalar_select %p727, %s45, 1
        %s729 = smul.addr %s728, 8
        %s730 = scalar_lea.vmem %s5, %s729
        %p731 = pneg %p206
        %p732 = pneg %p203
        %p733 = scmp.lt.s32.totalorder %s45, 1
        %s734 = scalar_select %p733, %s45, 1
        %s735 = smul.addr %s734, 8
        %s736 = scalar_lea.vmem %s6, %s735
        %p737 = pneg %p232
        %p738 = pneg %p229
        %p739 = pneg %p253
        %p740 = pneg %p250
        %p741 = pneg %p274
        %p742 = pneg %p271
        %p743 = pneg %p295
        %p744 = pneg %p292
        %p745 = pneg %p316
        %p746 = pneg %p313
        %p747 = pneg %p337
        %p748 = pneg %p334
        %p749 = pneg %p358
        %p750 = pneg %p355
        %p751 = pneg %p379
        %p752 = pneg %p376
        %p753 = pneg %p400
        %p754 = pneg %p397
        %p755 = pneg %p421
        %p756 = pneg %p418
        %p757 = pneg %p442
        %p758 = pneg %p439
        %p759 = pneg %p468
        %p760 = pneg %p465
        %s761 = sand.u32 %s455, 1
        %s762 = scalar_lea.sflag [#allocation7], %s761
        %s763 = sand.u32 %s455, 1
        %s764 = smul.addr %s763, 8
        %s765 = scalar_lea.vmem [#allocation11], %s764
        %p766 = pneg %p494
        %p767 = pneg %p491
        %s768 = sand.u32 %s41, 1
        %s769 = scalar_lea.sflag [#allocation13], %s768
        %s770 = sand.u32 %s481, 1
        %s771 = smul.addr %s770, 8
        %s772 = scalar_lea.vmem [#allocation12], %s771
        %p773 = pneg %p520
        %p774 = pneg %p517
        %s775 = sand.u32 %s41, 1
        %s776 = scalar_lea.sflag [#allocation13], %s775
        %s777 = sand.u32 %s507, 1
        %s778 = smul.addr %s777, 8
        %s779 = scalar_lea.vmem [#allocation14], %s778
        %s780 = smul.u32 8, %s45
        %s781 = smul.u32 5, %s46
        %s782 = ssub.s32 12, %s780
        %p783 = scmp.lt.s32.totalorder %s782, 8
        %s784 = scalar_select %p783, %s782, 8
        %s785 = smul.u32 128, %s784
        %s786 = smul.u32 %s785, 5
        %s787 = smul.u32 8, %s45
        %p788 = scmp.lt.s32.totalorder %s787, 15
        %s789 = scalar_select %p788, %s787, 15
        %s790 = smul.addr %s789, 2
        %s791 = scalar_lea.vmem %s1, %s790
        %s792 = smul.u32 8, %s45
        %s793 = smul.u32 8, %s45
        %p794 = scmp.lt.s32.totalorder %s793, 15
        %s795 = scalar_select %p794, %s793, 15
        %s796 = smul.addr %s795, 2
        %s797 = scalar_lea.vmem %s2, %s796
        %s798 = smul.u32 8, %s45
        %s799 = smul.u32 8, %s45
        %p800 = scmp.lt.s32.totalorder %s799, 15
        %s801 = scalar_select %p800, %s799, 15
        %s802 = smul.addr %s801, 2
        %s803 = scalar_lea.vmem %s3, %s802
        %s804 = smul.u32 8, %s45
        %p805 = scmp.lt.s32.totalorder %s45, 1
        %s806 = scalar_select %p805, %s45, 1
        %s807 = smul.addr %s806, 8
        %s808 = scalar_lea.vmem %s4, %s807
        %p809 = scmp.lt.s32.totalorder %s45, 1
        %s810 = scalar_select %p809, %s45, 1
        %s811 = smul.addr %s810, 8
        %s812 = scalar_lea.vmem %s5, %s811
        %p813 = scmp.lt.s32.totalorder %s45, 1
        %s814 = scalar_select %p813, %s45, 1
        %s815 = smul.addr %s814, 8
        %s816 = scalar_lea.vmem %s6, %s815
        %p817 = scmp.eq.s32.totalorder %s46, 0
        // Predicated region
        $region101: #{tpu_custom_call.1} parent=87 // pred_check
          %p818 = pneg %p817
        $region102: #{tpu_custom_call.1} parent=87 // pred_check_branch
          %820 = sbr.rel (%p818) target = $region104
        $region103: #{tpu_custom_call.1} parent=87 // pred_region
          %821 = vst [vmem:[#allocation2] sm:$0xff] -1e+30
          %822 = vst [vmem:[#allocation3] sm:$0xff] -1e+30
          %823 = vst [vmem:[#allocation4] sm:$0xff] -1e+30
        $region104: #{tpu_custom_call.1} parent=87 // pred_fallthru
          _
        %v824 = vld [vmem:[%s680] sm:$0xff]
        %v825 = vld [vmem:[%s680 + $0x8] sm:$0xff]
        %v826 = vld [vmem:[%s680 + $0x10] sm:$0xff]
        %v827 = vld [vmem:[%s680 + $0x18] sm:$0xff]
        %v828 = vld [vmem:[%s680 + $0x20] sm:$0xff]
        %v829 = vld [vmem:[%s680 + $0x28] sm:$0xff]
        %v830 = vld [vmem:[%s680 + $0x30] sm:$0xff]
        %v831 = vld [vmem:[%s680 + $0x38] sm:$0xff]
        %v832 = vld [vmem:[%s680 + $0x40] sm:$0xff]
        %v833 = vld [vmem:[%s680 + $0x48] sm:$0xff]
        %v834 = vld [vmem:[%s680 + $0x50] sm:$0xff]
        %v835 = vld [vmem:[%s680 + $0x58] sm:$0xff]
        %v836 = vld [vmem:[%s680 + $0x60] sm:$0xff]
        %v837 = vld [vmem:[%s680 + $0x68] sm:$0xff]
        %v838 = vld [vmem:[%s680 + $0x70] sm:$0xff]
        %v839 = vld [vmem:[%s680 + $0x78] sm:$0xff]
        %v840 = vld [vmem:[%s680 + $0x80] sm:$0xff]
        %v841 = vld [vmem:[%s680 + $0x88] sm:$0xff]
        %v842 = vld [vmem:[%s680 + $0x90] sm:$0xff]
        %v843 = vld [vmem:[%s680 + $0x98] sm:$0xff]
        %v844 = vld [vmem:[%s680 + $0xa0] sm:$0xff]
        %v845 = vld [vmem:[%s680 + $0xa8] sm:$0xff]
        %v846 = vld [vmem:[%s680 + $0xb0] sm:$0xff]
        %v847 = vld [vmem:[%s680 + $0xb8] sm:$0xff]
        %v848 = vld [vmem:[%s680 + $0xc0] sm:$0xff]
        %v849 = vld [vmem:[%s680 + $0xc8] sm:$0xff]
        %v850 = vld [vmem:[%s680 + $0xd0] sm:$0xff]
        %v851 = vld [vmem:[%s680 + $0xd8] sm:$0xff]
        %v852 = vld [vmem:[%s680 + $0xe0] sm:$0xff]
        %v853 = vld [vmem:[%s680 + $0xe8] sm:$0xff]
        %v854 = vld [vmem:[%s680 + $0xf0] sm:$0xff]
        %v855 = vld [vmem:[%s680 + $0xf8] sm:$0xff]
        %v856 = vld [vmem:[%s680 + $0x100] sm:$0xff]
        %v857 = vld [vmem:[%s680 + $0x108] sm:$0xff]
        %v858 = vld [vmem:[%s680 + $0x110] sm:$0xff]
        %v859 = vld [vmem:[%s680 + $0x118] sm:$0xff]
        %v860 = vld [vmem:[%s680 + $0x120] sm:$0xff]
        %v861 = vld [vmem:[%s680 + $0x128] sm:$0xff]
        %v862 = vld [vmem:[%s680 + $0x130] sm:$0xff]
        %v863 = vld [vmem:[%s680 + $0x138] sm:$0xff]
        %s864 = smul.u32 %s46, 40
        %v865 = vlaneseq
        %v866 = vshrl.u32 %v865, 7
        %v867 = vadd.s32 %v866, 8
        %v868 = vadd.s32 %v866, 16
        %v869 = vadd.s32 %v866, 24
        %v870 = vadd.s32 %v866, 32
        %v871 = vstv %s864
        %v872 = vadd.s32 %v871, %v866
        %v873 = vadd.s32 %v871, %v867
        %v874 = vadd.s32 %v871, %v868
        %v875 = vadd.s32 %v871, %v869
        %v876 = vadd.s32 %v871, %v870
        %v877 = vld [vmem:[#allocation2] sm:$0xff]
        %v878 = vld [vmem:[%s791] sm:$0x3]
        %v879 = vld [vmem:[%s791 + $0x2] sm:$0x3]
        %v880 = vld [vmem:[%s791 + $0x4] sm:$0x3]
        %v881 = vld [vmem:[%s791 + $0x6] sm:$0x3]
        %v882 = vld [vmem:[%s791 + $0x8] sm:$0x3]
        %v883 = vld [vmem:[%s791 + $0xa] sm:$0x3]
        %v884 = vld [vmem:[%s791 + $0xc] sm:$0x3]
        %v885 = vld [vmem:[%s791 + $0xe] sm:$0x3]
        %v886 = vlaneseq
        %v887 = vshrl.u32 %v886, 7
        %v888 = vsub.s32 0, %v887
        %v889 = vrot.slane %v878, %v888
        %v890 = vlaneseq
        %v891 = vshrl.u32 %v890, 7
        %v892 = vsub.s32 0, %v891
        %v893 = vrot.slane %v879, %v892
        %v894 = vlaneseq
        %v895 = vshrl.u32 %v894, 7
        %v896 = vsub.s32 0, %v895
        %v897 = vrot.slane %v880, %v896
        %v898 = vlaneseq
        %v899 = vshrl.u32 %v898, 7
        %v900 = vsub.s32 0, %v899
        %v901 = vrot.slane %v881, %v900
        %v902 = vlaneseq
        %v903 = vshrl.u32 %v902, 7
        %v904 = vsub.s32 0, %v903
        %v905 = vrot.slane %v882, %v904
        %v906 = vlaneseq
        %v907 = vshrl.u32 %v906, 7
        %v908 = vsub.s32 0, %v907
        %v909 = vrot.slane %v883, %v908
        %v910 = vlaneseq
        %v911 = vshrl.u32 %v910, 7
        %v912 = vsub.s32 0, %v911
        %v913 = vrot.slane %v884, %v912
        %v914 = vlaneseq
        %v915 = vshrl.u32 %v914, 7
        %v916 = vsub.s32 0, %v915
        %v917 = vrot.slane %v885, %v916
        %vm918 = vcmp.ge.s32.totalorder %v872, %v889
        %vm919 = vcmp.ge.s32.totalorder %v873, %v889
        %vm920 = vcmp.ge.s32.totalorder %v874, %v889
        %vm921 = vcmp.ge.s32.totalorder %v875, %v889
        %vm922 = vcmp.ge.s32.totalorder %v876, %v889
        %vm923 = vcmp.ge.s32.totalorder %v872, %v893
        %vm924 = vcmp.ge.s32.totalorder %v873, %v893
        %vm925 = vcmp.ge.s32.totalorder %v874, %v893
        %vm926 = vcmp.ge.s32.totalorder %v875, %v893
        %vm927 = vcmp.ge.s32.totalorder %v876, %v893
        %vm928 = vcmp.ge.s32.totalorder %v872, %v897
        %vm929 = vcmp.ge.s32.totalorder %v873, %v897
        %vm930 = vcmp.ge.s32.totalorder %v874, %v897
        %vm931 = vcmp.ge.s32.totalorder %v875, %v897
        %vm932 = vcmp.ge.s32.totalorder %v876, %v897
        %vm933 = vcmp.ge.s32.totalorder %v872, %v901
        %vm934 = vcmp.ge.s32.totalorder %v873, %v901
        %vm935 = vcmp.ge.s32.totalorder %v874, %v901
        %vm936 = vcmp.ge.s32.totalorder %v875, %v901
        %vm937 = vcmp.ge.s32.totalorder %v876, %v901
        %vm938 = vcmp.ge.s32.totalorder %v872, %v905
        %vm939 = vcmp.ge.s32.totalorder %v873, %v905
        %vm940 = vcmp.ge.s32.totalorder %v874, %v905
        %vm941 = vcmp.ge.s32.totalorder %v875, %v905
        %vm942 = vcmp.ge.s32.totalorder %v876, %v905
        %vm943 = vcmp.ge.s32.totalorder %v872, %v909
        %vm944 = vcmp.ge.s32.totalorder %v873, %v909
        %vm945 = vcmp.ge.s32.totalorder %v874, %v909
        %vm946 = vcmp.ge.s32.totalorder %v875, %v909
        %vm947 = vcmp.ge.s32.totalorder %v876, %v909
        %vm948 = vcmp.ge.s32.totalorder %v872, %v913
        %vm949 = vcmp.ge.s32.totalorder %v873, %v913
        %vm950 = vcmp.ge.s32.totalorder %v874, %v913
        %vm951 = vcmp.ge.s32.totalorder %v875, %v913
        %vm952 = vcmp.ge.s32.totalorder %v876, %v913
        %vm953 = vcmp.ge.s32.totalorder %v872, %v917
        %vm954 = vcmp.ge.s32.totalorder %v873, %v917
        %vm955 = vcmp.ge.s32.totalorder %v874, %v917
        %vm956 = vcmp.ge.s32.totalorder %v875, %v917
        %vm957 = vcmp.ge.s32.totalorder %v876, %v917
        %v958 = vlaneseq
        %v959 = vshrl.u32 %v958, 7
        %v960 = vsub.s32 1, %v959
        %v961 = vrot.slane %v878, %v960
        %v962 = vlaneseq
        %v963 = vshrl.u32 %v962, 7
        %v964 = vsub.s32 1, %v963
        %v965 = vrot.slane %v879, %v964
        %v966 = vlaneseq
        %v967 = vshrl.u32 %v966, 7
        %v968 = vsub.s32 1, %v967
        %v969 = vrot.slane %v880, %v968
        %v970 = vlaneseq
        %v971 = vshrl.u32 %v970, 7
        %v972 = vsub.s32 1, %v971
        %v973 = vrot.slane %v881, %v972
        %v974 = vlaneseq
        %v975 = vshrl.u32 %v974, 7
        %v976 = vsub.s32 1, %v975
        %v977 = vrot.slane %v882, %v976
        %v978 = vlaneseq
        %v979 = vshrl.u32 %v978, 7
        %v980 = vsub.s32 1, %v979
        %v981 = vrot.slane %v883, %v980
        %v982 = vlaneseq
        %v983 = vshrl.u32 %v982, 7
        %v984 = vsub.s32 1, %v983
        %v985 = vrot.slane %v884, %v984
        %v986 = vlaneseq
        %v987 = vshrl.u32 %v986, 7
        %v988 = vsub.s32 1, %v987
        %v989 = vrot.slane %v885, %v988
        %vm990 = vcmp.lt.s32.totalorder %v872, %v961
        %vm991 = vcmp.lt.s32.totalorder %v873, %v961
        %vm992 = vcmp.lt.s32.totalorder %v874, %v961
        %vm993 = vcmp.lt.s32.totalorder %v875, %v961
        %vm994 = vcmp.lt.s32.totalorder %v876, %v961
        %vm995 = vcmp.lt.s32.totalorder %v872, %v965
        %vm996 = vcmp.lt.s32.totalorder %v873, %v965
        %vm997 = vcmp.lt.s32.totalorder %v874, %v965
        %vm998 = vcmp.lt.s32.totalorder %v875, %v965
        %vm999 = vcmp.lt.s32.totalorder %v876, %v965
        %vm1000 = vcmp.lt.s32.totalorder %v872, %v969
        %vm1001 = vcmp.lt.s32.totalorder %v873, %v969
        %vm1002 = vcmp.lt.s32.totalorder %v874, %v969
        %vm1003 = vcmp.lt.s32.totalorder %v875, %v969
        %vm1004 = vcmp.lt.s32.totalorder %v876, %v969
        %vm1005 = vcmp.lt.s32.totalorder %v872, %v973
        %vm1006 = vcmp.lt.s32.totalorder %v873, %v973
        %vm1007 = vcmp.lt.s32.totalorder %v874, %v973
        %vm1008 = vcmp.lt.s32.totalorder %v875, %v973
        %vm1009 = vcmp.lt.s32.totalorder %v876, %v973
        %vm1010 = vcmp.lt.s32.totalorder %v872, %v977
        %vm1011 = vcmp.lt.s32.totalorder %v873, %v977
        %vm1012 = vcmp.lt.s32.totalorder %v874, %v977
        %vm1013 = vcmp.lt.s32.totalorder %v875, %v977
        %vm1014 = vcmp.lt.s32.totalorder %v876, %v977
        %vm1015 = vcmp.lt.s32.totalorder %v872, %v981
        %vm1016 = vcmp.lt.s32.totalorder %v873, %v981
        %vm1017 = vcmp.lt.s32.totalorder %v874, %v981
        %vm1018 = vcmp.lt.s32.totalorder %v875, %v981
        %vm1019 = vcmp.lt.s32.totalorder %v876, %v981
        %vm1020 = vcmp.lt.s32.totalorder %v872, %v985
        %vm1021 = vcmp.lt.s32.totalorder %v873, %v985
        %vm1022 = vcmp.lt.s32.totalorder %v874, %v985
        %vm1023 = vcmp.lt.s32.totalorder %v875, %v985
        %vm1024 = vcmp.lt.s32.totalorder %v876, %v985
        %vm1025 = vcmp.lt.s32.totalorder %v872, %v989
        %vm1026 = vcmp.lt.s32.totalorder %v873, %v989
        %vm1027 = vcmp.lt.s32.totalorder %v874, %v989
        %vm1028 = vcmp.lt.s32.totalorder %v875, %v989
        %vm1029 = vcmp.lt.s32.totalorder %v876, %v989
        %vm1030 = vmand %vm918, %vm990
        %vm1031 = vmand %vm919, %vm991
        %vm1032 = vmand %vm920, %vm992
        %vm1033 = vmand %vm921, %vm993
        %vm1034 = vmand %vm922, %vm994
        %vm1035 = vmand %vm923, %vm995
        %vm1036 = vmand %vm924, %vm996
        %vm1037 = vmand %vm925, %vm997
        %vm1038 = vmand %vm926, %vm998
        %vm1039 = vmand %vm927, %vm999
        %vm1040 = vmand %vm928, %vm1000
        %vm1041 = vmand %vm929, %vm1001
        %vm1042 = vmand %vm930, %vm1002
        %vm1043 = vmand %vm931, %vm1003
        %vm1044 = vmand %vm932, %vm1004
        %vm1045 = vmand %vm933, %vm1005
        %vm1046 = vmand %vm934, %vm1006
        %vm1047 = vmand %vm935, %vm1007
        %vm1048 = vmand %vm936, %vm1008
        %vm1049 = vmand %vm937, %vm1009
        %vm1050 = vmand %vm938, %vm1010
        %vm1051 = vmand %vm939, %vm1011
        %vm1052 = vmand %vm940, %vm1012
        %vm1053 = vmand %vm941, %vm1013
        %vm1054 = vmand %vm942, %vm1014
        %vm1055 = vmand %vm943, %vm1015
        %vm1056 = vmand %vm944, %vm1016
        %vm1057 = vmand %vm945, %vm1017
        %vm1058 = vmand %vm946, %vm1018
        %vm1059 = vmand %vm947, %vm1019
        %vm1060 = vmand %vm948, %vm1020
        %vm1061 = vmand %vm949, %vm1021
        %vm1062 = vmand %vm950, %vm1022
        %vm1063 = vmand %vm951, %vm1023
        %vm1064 = vmand %vm952, %vm1024
        %vm1065 = vmand %vm953, %vm1025
        %vm1066 = vmand %vm954, %vm1026
        %vm1067 = vmand %vm955, %vm1027
        %vm1068 = vmand %vm956, %vm1028
        %vm1069 = vmand %vm957, %vm1029
        %v1070 = vsel %vm1030, 1, 0
        %v1071 = vsel %vm1031, 1, 0
        %v1072 = vsel %vm1032, 1, 0
        %v1073 = vsel %vm1033, 1, 0
        %v1074 = vsel %vm1034, 1, 0
        %v1075 = vsel %vm1035, 1, 0
        %v1076 = vsel %vm1036, 1, 0
        %v1077 = vsel %vm1037, 1, 0
        %v1078 = vsel %vm1038, 1, 0
        %v1079 = vsel %vm1039, 1, 0
        %v1080 = vsel %vm1040, 1, 0
        %v1081 = vsel %vm1041, 1, 0
        %v1082 = vsel %vm1042, 1, 0
        %v1083 = vsel %vm1043, 1, 0
        %v1084 = vsel %vm1044, 1, 0
        %v1085 = vsel %vm1045, 1, 0
        %v1086 = vsel %vm1046, 1, 0
        %v1087 = vsel %vm1047, 1, 0
        %v1088 = vsel %vm1048, 1, 0
        %v1089 = vsel %vm1049, 1, 0
        %v1090 = vsel %vm1050, 1, 0
        %v1091 = vsel %vm1051, 1, 0
        %v1092 = vsel %vm1052, 1, 0
        %v1093 = vsel %vm1053, 1, 0
        %v1094 = vsel %vm1054, 1, 0
        %v1095 = vsel %vm1055, 1, 0
        %v1096 = vsel %vm1056, 1, 0
        %v1097 = vsel %vm1057, 1, 0
        %v1098 = vsel %vm1058, 1, 0
        %v1099 = vsel %vm1059, 1, 0
        %v1100 = vsel %vm1060, 1, 0
        %v1101 = vsel %vm1061, 1, 0
        %v1102 = vsel %vm1062, 1, 0
        %v1103 = vsel %vm1063, 1, 0
        %v1104 = vsel %vm1064, 1, 0
        %v1105 = vsel %vm1065, 1, 0
        %v1106 = vsel %vm1066, 1, 0
        %v1107 = vsel %vm1067, 1, 0
        %v1108 = vsel %vm1068, 1, 0
        %v1109 = vsel %vm1069, 1, 0
        %1110 = vset.pattern.permute.xlu0 0
        %1111 = vperm.xlu0 %1110, %v1070
        %v1112 = vpop.permute.xlu0 %1111
        %1113 = vset.pattern.permute.xlu0 0
        %1114 = vperm.xlu0 %1113, %v1071
        %v1115 = vpop.permute.xlu0 %1114
        %1116 = vset.pattern.permute.xlu0 0
        %1117 = vperm.xlu0 %1116, %v1072
        %v1118 = vpop.permute.xlu0 %1117
        %1119 = vset.pattern.permute.xlu0 0
        %1120 = vperm.xlu0 %1119, %v1073
        %v1121 = vpop.permute.xlu0 %1120
        %1122 = vset.pattern.permute.xlu0 0
        %1123 = vperm.xlu0 %1122, %v1074
        %v1124 = vpop.permute.xlu0 %1123
        %1125 = vset.pattern.permute.xlu0 0
        %1126 = vperm.xlu0 %1125, %v1075
        %v1127 = vpop.permute.xlu0 %1126
        %1128 = vset.pattern.permute.xlu0 0
        %1129 = vperm.xlu0 %1128, %v1076
        %v1130 = vpop.permute.xlu0 %1129
        %1131 = vset.pattern.permute.xlu0 0
        %1132 = vperm.xlu0 %1131, %v1077
        %v1133 = vpop.permute.xlu0 %1132
        %1134 = vset.pattern.permute.xlu0 0
        %1135 = vperm.xlu0 %1134, %v1078
        %v1136 = vpop.permute.xlu0 %1135
        %1137 = vset.pattern.permute.xlu0 0
        %1138 = vperm.xlu0 %1137, %v1079
        %v1139 = vpop.permute.xlu0 %1138
        %1140 = vset.pattern.permute.xlu0 0
        %1141 = vperm.xlu0 %1140, %v1080
        %v1142 = vpop.permute.xlu0 %1141
        %1143 = vset.pattern.permute.xlu0 0
        %1144 = vperm.xlu0 %1143, %v1081
        %v1145 = vpop.permute.xlu0 %1144
        %1146 = vset.pattern.permute.xlu0 0
        %1147 = vperm.xlu0 %1146, %v1082
        %v1148 = vpop.permute.xlu0 %1147
        %1149 = vset.pattern.permute.xlu0 0
        %1150 = vperm.xlu0 %1149, %v1083
        %v1151 = vpop.permute.xlu0 %1150
        %1152 = vset.pattern.permute.xlu0 0
        %1153 = vperm.xlu0 %1152, %v1084
        %v1154 = vpop.permute.xlu0 %1153
        %1155 = vset.pattern.permute.xlu0 0
        %1156 = vperm.xlu0 %1155, %v1085
        %v1157 = vpop.permute.xlu0 %1156
        %1158 = vset.pattern.permute.xlu0 0
        %1159 = vperm.xlu0 %1158, %v1086
        %v1160 = vpop.permute.xlu0 %1159
        %1161 = vset.pattern.permute.xlu0 0
        %1162 = vperm.xlu0 %1161, %v1087
        %v1163 = vpop.permute.xlu0 %1162
        %1164 = vset.pattern.permute.xlu0 0
        %1165 = vperm.xlu0 %1164, %v1088
        %v1166 = vpop.permute.xlu0 %1165
        %1167 = vset.pattern.permute.xlu0 0
        %1168 = vperm.xlu0 %1167, %v1089
        %v1169 = vpop.permute.xlu0 %1168
        %1170 = vset.pattern.permute.xlu0 0
        %1171 = vperm.xlu0 %1170, %v1090
        %v1172 = vpop.permute.xlu0 %1171
        %1173 = vset.pattern.permute.xlu0 0
        %1174 = vperm.xlu0 %1173, %v1091
        %v1175 = vpop.permute.xlu0 %1174
        %1176 = vset.pattern.permute.xlu0 0
        %1177 = vperm.xlu0 %1176, %v1092
        %v1178 = vpop.permute.xlu0 %1177
        %1179 = vset.pattern.permute.xlu0 0
        %1180 = vperm.xlu0 %1179, %v1093
        %v1181 = vpop.permute.xlu0 %1180
        %1182 = vset.pattern.permute.xlu0 0
        %1183 = vperm.xlu0 %1182, %v1094
        %v1184 = vpop.permute.xlu0 %1183
        %1185 = vset.pattern.permute.xlu0 0
        %1186 = vperm.xlu0 %1185, %v1095
        %v1187 = vpop.permute.xlu0 %1186
        %1188 = vset.pattern.permute.xlu0 0
        %1189 = vperm.xlu0 %1188, %v1096
        %v1190 = vpop.permute.xlu0 %1189
        %1191 = vset.pattern.permute.xlu0 0
        %1192 = vperm.xlu0 %1191, %v1097
        %v1193 = vpop.permute.xlu0 %1192
        %1194 = vset.pattern.permute.xlu0 0
        %1195 = vperm.xlu0 %1194, %v1098
        %v1196 = vpop.permute.xlu0 %1195
        %1197 = vset.pattern.permute.xlu0 0
        %1198 = vperm.xlu0 %1197, %v1099
        %v1199 = vpop.permute.xlu0 %1198
        %1200 = vset.pattern.permute.xlu0 0
        %1201 = vperm.xlu0 %1200, %v1100
        %v1202 = vpop.permute.xlu0 %1201
        %1203 = vset.pattern.permute.xlu0 0
        %1204 = vperm.xlu0 %1203, %v1101
        %v1205 = vpop.permute.xlu0 %1204
        %1206 = vset.pattern.permute.xlu0 0
        %1207 = vperm.xlu0 %1206, %v1102
        %v1208 = vpop.permute.xlu0 %1207
        %1209 = vset.pattern.permute.xlu0 0
        %1210 = vperm.xlu0 %1209, %v1103
        %v1211 = vpop.permute.xlu0 %1210
        %1212 = vset.pattern.permute.xlu0 0
        %1213 = vperm.xlu0 %1212, %v1104
        %v1214 = vpop.permute.xlu0 %1213
        %1215 = vset.pattern.permute.xlu0 0
        %1216 = vperm.xlu0 %1215, %v1105
        %v1217 = vpop.permute.xlu0 %1216
        %1218 = vset.pattern.permute.xlu0 0
        %1219 = vperm.xlu0 %1218, %v1106
        %v1220 = vpop.permute.xlu0 %1219
        %1221 = vset.pattern.permute.xlu0 0
        %1222 = vperm.xlu0 %1221, %v1107
        %v1223 = vpop.permute.xlu0 %1222
        %1224 = vset.pattern.permute.xlu0 0
        %1225 = vperm.xlu0 %1224, %v1108
        %v1226 = vpop.permute.xlu0 %1225
        %1227 = vset.pattern.permute.xlu0 0
        %1228 = vperm.xlu0 %1227, %v1109
        %v1229 = vpop.permute.xlu0 %1228
        %vm1230 = vcmp.eq.s32.totalorder %v1112, 1
        %vm1231 = vcmp.eq.s32.totalorder %v1115, 1
        %vm1232 = vcmp.eq.s32.totalorder %v1118, 1
        %vm1233 = vcmp.eq.s32.totalorder %v1121, 1
        %vm1234 = vcmp.eq.s32.totalorder %v1124, 1
        %vm1235 = vcmp.eq.s32.totalorder %v1127, 1
        %vm1236 = vcmp.eq.s32.totalorder %v1130, 1
        %vm1237 = vcmp.eq.s32.totalorder %v1133, 1
        %vm1238 = vcmp.eq.s32.totalorder %v1136, 1
        %vm1239 = vcmp.eq.s32.totalorder %v1139, 1
        %vm1240 = vcmp.eq.s32.totalorder %v1142, 1
        %vm1241 = vcmp.eq.s32.totalorder %v1145, 1
        %vm1242 = vcmp.eq.s32.totalorder %v1148, 1
        %vm1243 = vcmp.eq.s32.totalorder %v1151, 1
        %vm1244 = vcmp.eq.s32.totalorder %v1154, 1
        %vm1245 = vcmp.eq.s32.totalorder %v1157, 1
        %vm1246 = vcmp.eq.s32.totalorder %v1160, 1
        %vm1247 = vcmp.eq.s32.totalorder %v1163, 1
        %vm1248 = vcmp.eq.s32.totalorder %v1166, 1
        %vm1249 = vcmp.eq.s32.totalorder %v1169, 1
        %vm1250 = vcmp.eq.s32.totalorder %v1172, 1
        %vm1251 = vcmp.eq.s32.totalorder %v1175, 1
        %vm1252 = vcmp.eq.s32.totalorder %v1178, 1
        %vm1253 = vcmp.eq.s32.totalorder %v1181, 1
        %vm1254 = vcmp.eq.s32.totalorder %v1184, 1
        %vm1255 = vcmp.eq.s32.totalorder %v1187, 1
        %vm1256 = vcmp.eq.s32.totalorder %v1190, 1
        %vm1257 = vcmp.eq.s32.totalorder %v1193, 1
        %vm1258 = vcmp.eq.s32.totalorder %v1196, 1
        %vm1259 = vcmp.eq.s32.totalorder %v1199, 1
        %vm1260 = vcmp.eq.s32.totalorder %v1202, 1
        %vm1261 = vcmp.eq.s32.totalorder %v1205, 1
        %vm1262 = vcmp.eq.s32.totalorder %v1208, 1
        %vm1263 = vcmp.eq.s32.totalorder %v1211, 1
        %vm1264 = vcmp.eq.s32.totalorder %v1214, 1
        %vm1265 = vcmp.eq.s32.totalorder %v1217, 1
        %vm1266 = vcmp.eq.s32.totalorder %v1220, 1
        %vm1267 = vcmp.eq.s32.totalorder %v1223, 1
        %vm1268 = vcmp.eq.s32.totalorder %v1226, 1
        %vm1269 = vcmp.eq.s32.totalorder %v1229, 1
        %v1270 = vsel %vm1230, %v824, -1e+30
        %v1271 = vsel %vm1231, %v825, -1e+30
        %v1272 = vsel %vm1232, %v826, -1e+30
        %v1273 = vsel %vm1233, %v827, -1e+30
        %v1274 = vsel %vm1234, %v828, -1e+30
        %v1275 = vsel %vm1235, %v829, -1e+30
        %v1276 = vsel %vm1236, %v830, -1e+30
        %v1277 = vsel %vm1237, %v831, -1e+30
        %v1278 = vsel %vm1238, %v832, -1e+30
        %v1279 = vsel %vm1239, %v833, -1e+30
        %v1280 = vsel %vm1240, %v834, -1e+30
        %v1281 = vsel %vm1241, %v835, -1e+30
        %v1282 = vsel %vm1242, %v836, -1e+30
        %v1283 = vsel %vm1243, %v837, -1e+30
        %v1284 = vsel %vm1244, %v838, -1e+30
        %v1285 = vsel %vm1245, %v839, -1e+30
        %v1286 = vsel %vm1246, %v840, -1e+30
        %v1287 = vsel %vm1247, %v841, -1e+30
        %v1288 = vsel %vm1248, %v842, -1e+30
        %v1289 = vsel %vm1249, %v843, -1e+30
        %v1290 = vsel %vm1250, %v844, -1e+30
        %v1291 = vsel %vm1251, %v845, -1e+30
        %v1292 = vsel %vm1252, %v846, -1e+30
        %v1293 = vsel %vm1253, %v847, -1e+30
        %v1294 = vsel %vm1254, %v848, -1e+30
        %v1295 = vsel %vm1255, %v849, -1e+30
        %v1296 = vsel %vm1256, %v850, -1e+30
        %v1297 = vsel %vm1257, %v851, -1e+30
        %v1298 = vsel %vm1258, %v852, -1e+30
        %v1299 = vsel %vm1259, %v853, -1e+30
        %v1300 = vsel %vm1260, %v854, -1e+30
        %v1301 = vsel %vm1261, %v855, -1e+30
        %v1302 = vsel %vm1262, %v856, -1e+30
        %v1303 = vsel %vm1263, %v857, -1e+30
        %v1304 = vsel %vm1264, %v858, -1e+30
        %v1305 = vsel %vm1265, %v859, -1e+30
        %v1306 = vsel %vm1266, %v860, -1e+30
        %v1307 = vsel %vm1267, %v861, -1e+30
        %v1308 = vsel %vm1268, %v862, -1e+30
        %v1309 = vsel %vm1269, %v863, -1e+30
        %v1310 = vmax.f32 %v1270, %v1271
        %v1311 = vmax.f32 %v1310, %v1272
        %v1312 = vmax.f32 %v1311, %v1273
        %v1313 = vmax.f32 %v1312, %v1274
        %v1314 = vrot.slane %v1313, 4
        %v1315 = vmax.f32 %v1313, %v1314
        %v1316 = vrot.slane %v1315, 2
        %v1317 = vmax.f32 %v1315, %v1316
        %v1318 = vrot.slane %v1317, 1
        %v1319 = vmax.f32 %v1317, %v1318
        %v1320 = vmax.f32 %v1275, %v1276
        %v1321 = vmax.f32 %v1320, %v1277
        %v1322 = vmax.f32 %v1321, %v1278
        %v1323 = vmax.f32 %v1322, %v1279
        %v1324 = vrot.slane %v1323, 4
        %v1325 = vmax.f32 %v1323, %v1324
        %v1326 = vrot.slane %v1325, 2
        %v1327 = vmax.f32 %v1325, %v1326
        %v1328 = vrot.slane %v1327, 1
        %v1329 = vmax.f32 %v1327, %v1328
        %v1330 = vmax.f32 %v1280, %v1281
        %v1331 = vmax.f32 %v1330, %v1282
        %v1332 = vmax.f32 %v1331, %v1283
        %v1333 = vmax.f32 %v1332, %v1284
        %v1334 = vrot.slane %v1333, 4
        %v1335 = vmax.f32 %v1333, %v1334
        %v1336 = vrot.slane %v1335, 2
        %v1337 = vmax.f32 %v1335, %v1336
        %v1338 = vrot.slane %v1337, 1
        %v1339 = vmax.f32 %v1337, %v1338
        %v1340 = vmax.f32 %v1285, %v1286
        %v1341 = vmax.f32 %v1340, %v1287
        %v1342 = vmax.f32 %v1341, %v1288
        %v1343 = vmax.f32 %v1342, %v1289
        %v1344 = vrot.slane %v1343, 4
        %v1345 = vmax.f32 %v1343, %v1344
        %v1346 = vrot.slane %v1345, 2
        %v1347 = vmax.f32 %v1345, %v1346
        %v1348 = vrot.slane %v1347, 1
        %v1349 = vmax.f32 %v1347, %v1348
        %v1350 = vmax.f32 %v1290, %v1291
        %v1351 = vmax.f32 %v1350, %v1292
        %v1352 = vmax.f32 %v1351, %v1293
        %v1353 = vmax.f32 %v1352, %v1294
        %v1354 = vrot.slane %v1353, 4
        %v1355 = vmax.f32 %v1353, %v1354
        %v1356 = vrot.slane %v1355, 2
        %v1357 = vmax.f32 %v1355, %v1356
        %v1358 = vrot.slane %v1357, 1
        %v1359 = vmax.f32 %v1357, %v1358
        %v1360 = vmax.f32 %v1295, %v1296
        %v1361 = vmax.f32 %v1360, %v1297
        %v1362 = vmax.f32 %v1361, %v1298
        %v1363 = vmax.f32 %v1362, %v1299
        %v1364 = vrot.slane %v1363, 4
        %v1365 = vmax.f32 %v1363, %v1364
        %v1366 = vrot.slane %v1365, 2
        %v1367 = vmax.f32 %v1365, %v1366
        %v1368 = vrot.slane %v1367, 1
        %v1369 = vmax.f32 %v1367, %v1368
        %v1370 = vmax.f32 %v1300, %v1301
        %v1371 = vmax.f32 %v1370, %v1302
        %v1372 = vmax.f32 %v1371, %v1303
        %v1373 = vmax.f32 %v1372, %v1304
        %v1374 = vrot.slane %v1373, 4
        %v1375 = vmax.f32 %v1373, %v1374
        %v1376 = vrot.slane %v1375, 2
        %v1377 = vmax.f32 %v1375, %v1376
        %v1378 = vrot.slane %v1377, 1
        %v1379 = vmax.f32 %v1377, %v1378
        %v1380 = vmax.f32 %v1305, %v1306
        %v1381 = vmax.f32 %v1380, %v1307
        %v1382 = vmax.f32 %v1381, %v1308
        %v1383 = vmax.f32 %v1382, %v1309
        %v1384 = vrot.slane %v1383, 4
        %v1385 = vmax.f32 %v1383, %v1384
        %v1386 = vrot.slane %v1385, 2
        %v1387 = vmax.f32 %v1385, %v1386
        %v1388 = vrot.slane %v1387, 1
        %v1389 = vmax.f32 %v1387, %v1388
        %vm1398 = vcmask 1041409
        %v1399 = vsel %vm1398, %v1329, %v1319
        %vm1400 = vcmask 1042434
        %v1401 = vsel %vm1400, %v1339, %v1399
        %vm1402 = vcmask 1043459
        %v1403 = vsel %vm1402, %v1349, %v1401
        %vm1404 = vcmask 1044484
        %v1405 = vsel %vm1404, %v1359, %v1403
        %vm1406 = vcmask 1045509
        %v1407 = vsel %vm1406, %v1369, %v1405
        %vm1408 = vcmask 1046534
        %v1409 = vsel %vm1408, %v1379, %v1407
        %vm1410 = vcmask 1047559
        %v1411 = vsel %vm1410, %v1389, %v1409
        %v1413 = vmax.f32 %v877, %v1411
        %1414 = vst [vmem:[#allocation2] sm:$0xff] %v1413
        %v1415 = vld [vmem:[#allocation3] sm:$0xff]
        %v1416 = vld [vmem:[%s797] sm:$0x3]
        %v1417 = vld [vmem:[%s797 + $0x2] sm:$0x3]
        %v1418 = vld [vmem:[%s797 + $0x4] sm:$0x3]
        %v1419 = vld [vmem:[%s797 + $0x6] sm:$0x3]
        %v1420 = vld [vmem:[%s797 + $0x8] sm:$0x3]
        %v1421 = vld [vmem:[%s797 + $0xa] sm:$0x3]
        %v1422 = vld [vmem:[%s797 + $0xc] sm:$0x3]
        %v1423 = vld [vmem:[%s797 + $0xe] sm:$0x3]
        %v1424 = vlaneseq
        %v1425 = vshrl.u32 %v1424, 7
        %v1426 = vsub.s32 0, %v1425
        %v1427 = vrot.slane %v1416, %v1426
        %v1428 = vlaneseq
        %v1429 = vshrl.u32 %v1428, 7
        %v1430 = vsub.s32 0, %v1429
        %v1431 = vrot.slane %v1417, %v1430
        %v1432 = vlaneseq
        %v1433 = vshrl.u32 %v1432, 7
        %v1434 = vsub.s32 0, %v1433
        %v1435 = vrot.slane %v1418, %v1434
        %v1436 = vlaneseq
        %v1437 = vshrl.u32 %v1436, 7
        %v1438 = vsub.s32 0, %v1437
        %v1439 = vrot.slane %v1419, %v1438
        %v1440 = vlaneseq
        %v1441 = vshrl.u32 %v1440, 7
        %v1442 = vsub.s32 0, %v1441
        %v1443 = vrot.slane %v1420, %v1442
        %v1444 = vlaneseq
        %v1445 = vshrl.u32 %v1444, 7
        %v1446 = vsub.s32 0, %v1445
        %v1447 = vrot.slane %v1421, %v1446
        %v1448 = vlaneseq
        %v1449 = vshrl.u32 %v1448, 7
        %v1450 = vsub.s32 0, %v1449
        %v1451 = vrot.slane %v1422, %v1450
        %v1452 = vlaneseq
        %v1453 = vshrl.u32 %v1452, 7
        %v1454 = vsub.s32 0, %v1453
        %v1455 = vrot.slane %v1423, %v1454
        %vm1456 = vcmp.ge.s32.totalorder %v872, %v1427
        %vm1457 = vcmp.ge.s32.totalorder %v873, %v1427
        %vm1458 = vcmp.ge.s32.totalorder %v874, %v1427
        %vm1459 = vcmp.ge.s32.totalorder %v875, %v1427
        %vm1460 = vcmp.ge.s32.totalorder %v876, %v1427
        %vm1461 = vcmp.ge.s32.totalorder %v872, %v1431
        %vm1462 = vcmp.ge.s32.totalorder %v873, %v1431
        %vm1463 = vcmp.ge.s32.totalorder %v874, %v1431
        %vm1464 = vcmp.ge.s32.totalorder %v875, %v1431
        %vm1465 = vcmp.ge.s32.totalorder %v876, %v1431
        %vm1466 = vcmp.ge.s32.totalorder %v872, %v1435
        %vm1467 = vcmp.ge.s32.totalorder %v873, %v1435
        %vm1468 = vcmp.ge.s32.totalorder %v874, %v1435
        %vm1469 = vcmp.ge.s32.totalorder %v875, %v1435
        %vm1470 = vcmp.ge.s32.totalorder %v876, %v1435
        %vm1471 = vcmp.ge.s32.totalorder %v872, %v1439
        %vm1472 = vcmp.ge.s32.totalorder %v873, %v1439
        %vm1473 = vcmp.ge.s32.totalorder %v874, %v1439
        %vm1474 = vcmp.ge.s32.totalorder %v875, %v1439
        %vm1475 = vcmp.ge.s32.totalorder %v876, %v1439
        %vm1476 = vcmp.ge.s32.totalorder %v872, %v1443
        %vm1477 = vcmp.ge.s32.totalorder %v873, %v1443
        %vm1478 = vcmp.ge.s32.totalorder %v874, %v1443
        %vm1479 = vcmp.ge.s32.totalorder %v875, %v1443
        %vm1480 = vcmp.ge.s32.totalorder %v876, %v1443
        %vm1481 = vcmp.ge.s32.totalorder %v872, %v1447
        %vm1482 = vcmp.ge.s32.totalorder %v873, %v1447
        %vm1483 = vcmp.ge.s32.totalorder %v874, %v1447
        %vm1484 = vcmp.ge.s32.totalorder %v875, %v1447
        %vm1485 = vcmp.ge.s32.totalorder %v876, %v1447
        %vm1486 = vcmp.ge.s32.totalorder %v872, %v1451
        %vm1487 = vcmp.ge.s32.totalorder %v873, %v1451
        %vm1488 = vcmp.ge.s32.totalorder %v874, %v1451
        %vm1489 = vcmp.ge.s32.totalorder %v875, %v1451
        %vm1490 = vcmp.ge.s32.totalorder %v876, %v1451
        %vm1491 = vcmp.ge.s32.totalorder %v872, %v1455
        %vm1492 = vcmp.ge.s32.totalorder %v873, %v1455
        %vm1493 = vcmp.ge.s32.totalorder %v874, %v1455
        %vm1494 = vcmp.ge.s32.totalorder %v875, %v1455
        %vm1495 = vcmp.ge.s32.totalorder %v876, %v1455
        %v1496 = vlaneseq
        %v1497 = vshrl.u32 %v1496, 7
        %v1498 = vsub.s32 1, %v1497
        %v1499 = vrot.slane %v1416, %v1498
        %v1500 = vlaneseq
        %v1501 = vshrl.u32 %v1500, 7
        %v1502 = vsub.s32 1, %v1501
        %v1503 = vrot.slane %v1417, %v1502
        %v1504 = vlaneseq
        %v1505 = vshrl.u32 %v1504, 7
        %v1506 = vsub.s32 1, %v1505
        %v1507 = vrot.slane %v1418, %v1506
        %v1508 = vlaneseq
        %v1509 = vshrl.u32 %v1508, 7
        %v1510 = vsub.s32 1, %v1509
        %v1511 = vrot.slane %v1419, %v1510
        %v1512 = vlaneseq
        %v1513 = vshrl.u32 %v1512, 7
        %v1514 = vsub.s32 1, %v1513
        %v1515 = vrot.slane %v1420, %v1514
        %v1516 = vlaneseq
        %v1517 = vshrl.u32 %v1516, 7
        %v1518 = vsub.s32 1, %v1517
        %v1519 = vrot.slane %v1421, %v1518
        %v1520 = vlaneseq
        %v1521 = vshrl.u32 %v1520, 7
        %v1522 = vsub.s32 1, %v1521
        %v1523 = vrot.slane %v1422, %v1522
        %v1524 = vlaneseq
        %v1525 = vshrl.u32 %v1524, 7
        %v1526 = vsub.s32 1, %v1525
        %v1527 = vrot.slane %v1423, %v1526
        %vm1528 = vcmp.lt.s32.totalorder %v872, %v1499
        %vm1529 = vcmp.lt.s32.totalorder %v873, %v1499
        %vm1530 = vcmp.lt.s32.totalorder %v874, %v1499
        %vm1531 = vcmp.lt.s32.totalorder %v875, %v1499
        %vm1532 = vcmp.lt.s32.totalorder %v876, %v1499
        %vm1533 = vcmp.lt.s32.totalorder %v872, %v1503
        %vm1534 = vcmp.lt.s32.totalorder %v873, %v1503
        %vm1535 = vcmp.lt.s32.totalorder %v874, %v1503
        %vm1536 = vcmp.lt.s32.totalorder %v875, %v1503
        %vm1537 = vcmp.lt.s32.totalorder %v876, %v1503
        %vm1538 = vcmp.lt.s32.totalorder %v872, %v1507
        %vm1539 = vcmp.lt.s32.totalorder %v873, %v1507
        %vm1540 = vcmp.lt.s32.totalorder %v874, %v1507
        %vm1541 = vcmp.lt.s32.totalorder %v875, %v1507
        %vm1542 = vcmp.lt.s32.totalorder %v876, %v1507
        %vm1543 = vcmp.lt.s32.totalorder %v872, %v1511
        %vm1544 = vcmp.lt.s32.totalorder %v873, %v1511
        %vm1545 = vcmp.lt.s32.totalorder %v874, %v1511
        %vm1546 = vcmp.lt.s32.totalorder %v875, %v1511
        %vm1547 = vcmp.lt.s32.totalorder %v876, %v1511
        %vm1548 = vcmp.lt.s32.totalorder %v872, %v1515
        %vm1549 = vcmp.lt.s32.totalorder %v873, %v1515
        %vm1550 = vcmp.lt.s32.totalorder %v874, %v1515
        %vm1551 = vcmp.lt.s32.totalorder %v875, %v1515
        %vm1552 = vcmp.lt.s32.totalorder %v876, %v1515
        %vm1553 = vcmp.lt.s32.totalorder %v872, %v1519
        %vm1554 = vcmp.lt.s32.totalorder %v873, %v1519
        %vm1555 = vcmp.lt.s32.totalorder %v874, %v1519
        %vm1556 = vcmp.lt.s32.totalorder %v875, %v1519
        %vm1557 = vcmp.lt.s32.totalorder %v876, %v1519
        %vm1558 = vcmp.lt.s32.totalorder %v872, %v1523
        %vm1559 = vcmp.lt.s32.totalorder %v873, %v1523
        %vm1560 = vcmp.lt.s32.totalorder %v874, %v1523
        %vm1561 = vcmp.lt.s32.totalorder %v875, %v1523
        %vm1562 = vcmp.lt.s32.totalorder %v876, %v1523
        %vm1563 = vcmp.lt.s32.totalorder %v872, %v1527
        %vm1564 = vcmp.lt.s32.totalorder %v873, %v1527
        %vm1565 = vcmp.lt.s32.totalorder %v874, %v1527
        %vm1566 = vcmp.lt.s32.totalorder %v875, %v1527
        %vm1567 = vcmp.lt.s32.totalorder %v876, %v1527
        %vm1568 = vmand %vm1456, %vm1528
        %vm1569 = vmand %vm1457, %vm1529
        %vm1570 = vmand %vm1458, %vm1530
        %vm1571 = vmand %vm1459, %vm1531
        %vm1572 = vmand %vm1460, %vm1532
        %vm1573 = vmand %vm1461, %vm1533
        %vm1574 = vmand %vm1462, %vm1534
        %vm1575 = vmand %vm1463, %vm1535
        %vm1576 = vmand %vm1464, %vm1536
        %vm1577 = vmand %vm1465, %vm1537
        %vm1578 = vmand %vm1466, %vm1538
        %vm1579 = vmand %vm1467, %vm1539
        %vm1580 = vmand %vm1468, %vm1540
        %vm1581 = vmand %vm1469, %vm1541
        %vm1582 = vmand %vm1470, %vm1542
        %vm1583 = vmand %vm1471, %vm1543
        %vm1584 = vmand %vm1472, %vm1544
        %vm1585 = vmand %vm1473, %vm1545
        %vm1586 = vmand %vm1474, %vm1546
        %vm1587 = vmand %vm1475, %vm1547
        %vm1588 = vmand %vm1476, %vm1548
        %vm1589 = vmand %vm1477, %vm1549
        %vm1590 = vmand %vm1478, %vm1550
        %vm1591 = vmand %vm1479, %vm1551
        %vm1592 = vmand %vm1480, %vm1552
        %vm1593 = vmand %vm1481, %vm1553
        %vm1594 = vmand %vm1482, %vm1554
        %vm1595 = vmand %vm1483, %vm1555
        %vm1596 = vmand %vm1484, %vm1556
        %vm1597 = vmand %vm1485, %vm1557
        %vm1598 = vmand %vm1486, %vm1558
        %vm1599 = vmand %vm1487, %vm1559
        %vm1600 = vmand %vm1488, %vm1560
        %vm1601 = vmand %vm1489, %vm1561
        %vm1602 = vmand %vm1490, %vm1562
        %vm1603 = vmand %vm1491, %vm1563
        %vm1604 = vmand %vm1492, %vm1564
        %vm1605 = vmand %vm1493, %vm1565
        %vm1606 = vmand %vm1494, %vm1566
        %vm1607 = vmand %vm1495, %vm1567
        %v1608 = vsel %vm1568, 1, 0
        %v1609 = vsel %vm1569, 1, 0
        %v1610 = vsel %vm1570, 1, 0
        %v1611 = vsel %vm1571, 1, 0
        %v1612 = vsel %vm1572, 1, 0
        %v1613 = vsel %vm1573, 1, 0
        %v1614 = vsel %vm1574, 1, 0
        %v1615 = vsel %vm1575, 1, 0
        %v1616 = vsel %vm1576, 1, 0
        %v1617 = vsel %vm1577, 1, 0
        %v1618 = vsel %vm1578, 1, 0
        %v1619 = vsel %vm1579, 1, 0
        %v1620 = vsel %vm1580, 1, 0
        %v1621 = vsel %vm1581, 1, 0
        %v1622 = vsel %vm1582, 1, 0
        %v1623 = vsel %vm1583, 1, 0
        %v1624 = vsel %vm1584, 1, 0
        %v1625 = vsel %vm1585, 1, 0
        %v1626 = vsel %vm1586, 1, 0
        %v1627 = vsel %vm1587, 1, 0
        %v1628 = vsel %vm1588, 1, 0
        %v1629 = vsel %vm1589, 1, 0
        %v1630 = vsel %vm1590, 1, 0
        %v1631 = vsel %vm1591, 1, 0
        %v1632 = vsel %vm1592, 1, 0
        %v1633 = vsel %vm1593, 1, 0
        %v1634 = vsel %vm1594, 1, 0
        %v1635 = vsel %vm1595, 1, 0
        %v1636 = vsel %vm1596, 1, 0
        %v1637 = vsel %vm1597, 1, 0
        %v1638 = vsel %vm1598, 1, 0
        %v1639 = vsel %vm1599, 1, 0
        %v1640 = vsel %vm1600, 1, 0
        %v1641 = vsel %vm1601, 1, 0
        %v1642 = vsel %vm1602, 1, 0
        %v1643 = vsel %vm1603, 1, 0
        %v1644 = vsel %vm1604, 1, 0
        %v1645 = vsel %vm1605, 1, 0
        %v1646 = vsel %vm1606, 1, 0
        %v1647 = vsel %vm1607, 1, 0
        %1648 = vset.pattern.permute.xlu0 0
        %1649 = vperm.xlu0 %1648, %v1608
        %v1650 = vpop.permute.xlu0 %1649
        %1651 = vset.pattern.permute.xlu0 0
        %1652 = vperm.xlu0 %1651, %v1609
        %v1653 = vpop.permute.xlu0 %1652
        %1654 = vset.pattern.permute.xlu0 0
        %1655 = vperm.xlu0 %1654, %v1610
        %v1656 = vpop.permute.xlu0 %1655
        %1657 = vset.pattern.permute.xlu0 0
        %1658 = vperm.xlu0 %1657, %v1611
        %v1659 = vpop.permute.xlu0 %1658
        %1660 = vset.pattern.permute.xlu0 0
        %1661 = vperm.xlu0 %1660, %v1612
        %v1662 = vpop.permute.xlu0 %1661
        %1663 = vset.pattern.permute.xlu0 0
        %1664 = vperm.xlu0 %1663, %v1613
        %v1665 = vpop.permute.xlu0 %1664
        %1666 = vset.pattern.permute.xlu0 0
        %1667 = vperm.xlu0 %1666, %v1614
        %v1668 = vpop.permute.xlu0 %1667
        %1669 = vset.pattern.permute.xlu0 0
        %1670 = vperm.xlu0 %1669, %v1615
        %v1671 = vpop.permute.xlu0 %1670
        %1672 = vset.pattern.permute.xlu0 0
        %1673 = vperm.xlu0 %1672, %v1616
        %v1674 = vpop.permute.xlu0 %1673
        %1675 = vset.pattern.permute.xlu0 0
        %1676 = vperm.xlu0 %1675, %v1617
        %v1677 = vpop.permute.xlu0 %1676
        %1678 = vset.pattern.permute.xlu0 0
        %1679 = vperm.xlu0 %1678, %v1618
        %v1680 = vpop.permute.xlu0 %1679
        %1681 = vset.pattern.permute.xlu0 0
        %1682 = vperm.xlu0 %1681, %v1619
        %v1683 = vpop.permute.xlu0 %1682
        %1684 = vset.pattern.permute.xlu0 0
        %1685 = vperm.xlu0 %1684, %v1620
        %v1686 = vpop.permute.xlu0 %1685
        %1687 = vset.pattern.permute.xlu0 0
        %1688 = vperm.xlu0 %1687, %v1621
        %v1689 = vpop.permute.xlu0 %1688
        %1690 = vset.pattern.permute.xlu0 0
        %1691 = vperm.xlu0 %1690, %v1622
        %v1692 = vpop.permute.xlu0 %1691
        %1693 = vset.pattern.permute.xlu0 0
        %1694 = vperm.xlu0 %1693, %v1623
        %v1695 = vpop.permute.xlu0 %1694
        %1696 = vset.pattern.permute.xlu0 0
        %1697 = vperm.xlu0 %1696, %v1624
        %v1698 = vpop.permute.xlu0 %1697
        %1699 = vset.pattern.permute.xlu0 0
        %1700 = vperm.xlu0 %1699, %v1625
        %v1701 = vpop.permute.xlu0 %1700
        %1702 = vset.pattern.permute.xlu0 0
        %1703 = vperm.xlu0 %1702, %v1626
        %v1704 = vpop.permute.xlu0 %1703
        %1705 = vset.pattern.permute.xlu0 0
        %1706 = vperm.xlu0 %1705, %v1627
        %v1707 = vpop.permute.xlu0 %1706
        %1708 = vset.pattern.permute.xlu0 0
        %1709 = vperm.xlu0 %1708, %v1628
        %v1710 = vpop.permute.xlu0 %1709
        %1711 = vset.pattern.permute.xlu0 0
        %1712 = vperm.xlu0 %1711, %v1629
        %v1713 = vpop.permute.xlu0 %1712
        %1714 = vset.pattern.permute.xlu0 0
        %1715 = vperm.xlu0 %1714, %v1630
        %v1716 = vpop.permute.xlu0 %1715
        %1717 = vset.pattern.permute.xlu0 0
        %1718 = vperm.xlu0 %1717, %v1631
        %v1719 = vpop.permute.xlu0 %1718
        %1720 = vset.pattern.permute.xlu0 0
        %1721 = vperm.xlu0 %1720, %v1632
        %v1722 = vpop.permute.xlu0 %1721
        %1723 = vset.pattern.permute.xlu0 0
        %1724 = vperm.xlu0 %1723, %v1633
        %v1725 = vpop.permute.xlu0 %1724
        %1726 = vset.pattern.permute.xlu0 0
        %1727 = vperm.xlu0 %1726, %v1634
        %v1728 = vpop.permute.xlu0 %1727
        %1729 = vset.pattern.permute.xlu0 0
        %1730 = vperm.xlu0 %1729, %v1635
        %v1731 = vpop.permute.xlu0 %1730
        %1732 = vset.pattern.permute.xlu0 0
        %1733 = vperm.xlu0 %1732, %v1636
        %v1734 = vpop.permute.xlu0 %1733
        %1735 = vset.pattern.permute.xlu0 0
        %1736 = vperm.xlu0 %1735, %v1637
        %v1737 = vpop.permute.xlu0 %1736
        %1738 = vset.pattern.permute.xlu0 0
        %1739 = vperm.xlu0 %1738, %v1638
        %v1740 = vpop.permute.xlu0 %1739
        %1741 = vset.pattern.permute.xlu0 0
        %1742 = vperm.xlu0 %1741, %v1639
        %v1743 = vpop.permute.xlu0 %1742
        %1744 = vset.pattern.permute.xlu0 0
        %1745 = vperm.xlu0 %1744, %v1640
        %v1746 = vpop.permute.xlu0 %1745
        %1747 = vset.pattern.permute.xlu0 0
        %1748 = vperm.xlu0 %1747, %v1641
        %v1749 = vpop.permute.xlu0 %1748
        %1750 = vset.pattern.permute.xlu0 0
        %1751 = vperm.xlu0 %1750, %v1642
        %v1752 = vpop.permute.xlu0 %1751
        %1753 = vset.pattern.permute.xlu0 0
        %1754 = vperm.xlu0 %1753, %v1643
        %v1755 = vpop.permute.xlu0 %1754
        %1756 = vset.pattern.permute.xlu0 0
        %1757 = vperm.xlu0 %1756, %v1644
        %v1758 = vpop.permute.xlu0 %1757
        %1759 = vset.pattern.permute.xlu0 0
        %1760 = vperm.xlu0 %1759, %v1645
        %v1761 = vpop.permute.xlu0 %1760
        %1762 = vset.pattern.permute.xlu0 0
        %1763 = vperm.xlu0 %1762, %v1646
        %v1764 = vpop.permute.xlu0 %1763
        %1765 = vset.pattern.permute.xlu0 0
        %1766 = vperm.xlu0 %1765, %v1647
        %v1767 = vpop.permute.xlu0 %1766
        %vm1768 = vcmp.eq.s32.totalorder %v1650, 1
        %vm1769 = vcmp.eq.s32.totalorder %v1653, 1
        %vm1770 = vcmp.eq.s32.totalorder %v1656, 1
        %vm1771 = vcmp.eq.s32.totalorder %v1659, 1
        %vm1772 = vcmp.eq.s32.totalorder %v1662, 1
        %vm1773 = vcmp.eq.s32.totalorder %v1665, 1
        %vm1774 = vcmp.eq.s32.totalorder %v1668, 1
        %vm1775 = vcmp.eq.s32.totalorder %v1671, 1
        %vm1776 = vcmp.eq.s32.totalorder %v1674, 1
        %vm1777 = vcmp.eq.s32.totalorder %v1677, 1
        %vm1778 = vcmp.eq.s32.totalorder %v1680, 1
        %vm1779 = vcmp.eq.s32.totalorder %v1683, 1
        %vm1780 = vcmp.eq.s32.totalorder %v1686, 1
        %vm1781 = vcmp.eq.s32.totalorder %v1689, 1
        %vm1782 = vcmp.eq.s32.totalorder %v1692, 1
        %vm1783 = vcmp.eq.s32.totalorder %v1695, 1
        %vm1784 = vcmp.eq.s32.totalorder %v1698, 1
        %vm1785 = vcmp.eq.s32.totalorder %v1701, 1
        %vm1786 = vcmp.eq.s32.totalorder %v1704, 1
        %vm1787 = vcmp.eq.s32.totalorder %v1707, 1
        %vm1788 = vcmp.eq.s32.totalorder %v1710, 1
        %vm1789 = vcmp.eq.s32.totalorder %v1713, 1
        %vm1790 = vcmp.eq.s32.totalorder %v1716, 1
        %vm1791 = vcmp.eq.s32.totalorder %v1719, 1
        %vm1792 = vcmp.eq.s32.totalorder %v1722, 1
        %vm1793 = vcmp.eq.s32.totalorder %v1725, 1
        %vm1794 = vcmp.eq.s32.totalorder %v1728, 1
        %vm1795 = vcmp.eq.s32.totalorder %v1731, 1
        %vm1796 = vcmp.eq.s32.totalorder %v1734, 1
        %vm1797 = vcmp.eq.s32.totalorder %v1737, 1
        %vm1798 = vcmp.eq.s32.totalorder %v1740, 1
        %vm1799 = vcmp.eq.s32.totalorder %v1743, 1
        %vm1800 = vcmp.eq.s32.totalorder %v1746, 1
        %vm1801 = vcmp.eq.s32.totalorder %v1749, 1
        %vm1802 = vcmp.eq.s32.totalorder %v1752, 1
        %vm1803 = vcmp.eq.s32.totalorder %v1755, 1
        %vm1804 = vcmp.eq.s32.totalorder %v1758, 1
        %vm1805 = vcmp.eq.s32.totalorder %v1761, 1
        %vm1806 = vcmp.eq.s32.totalorder %v1764, 1
        %vm1807 = vcmp.eq.s32.totalorder %v1767, 1
        %v1808 = vsel %vm1768, %v824, -1e+30
        %v1809 = vsel %vm1769, %v825, -1e+30
        %v1810 = vsel %vm1770, %v826, -1e+30
        %v1811 = vsel %vm1771, %v827, -1e+30
        %v1812 = vsel %vm1772, %v828, -1e+30
        %v1813 = vsel %vm1773, %v829, -1e+30
        %v1814 = vsel %vm1774, %v830, -1e+30
        %v1815 = vsel %vm1775, %v831, -1e+30
        %v1816 = vsel %vm1776, %v832, -1e+30
        %v1817 = vsel %vm1777, %v833, -1e+30
        %v1818 = vsel %vm1778, %v834, -1e+30
        %v1819 = vsel %vm1779, %v835, -1e+30
        %v1820 = vsel %vm1780, %v836, -1e+30
        %v1821 = vsel %vm1781, %v837, -1e+30
        %v1822 = vsel %vm1782, %v838, -1e+30
        %v1823 = vsel %vm1783, %v839, -1e+30
        %v1824 = vsel %vm1784, %v840, -1e+30
        %v1825 = vsel %vm1785, %v841, -1e+30
        %v1826 = vsel %vm1786, %v842, -1e+30
        %v1827 = vsel %vm1787, %v843, -1e+30
        %v1828 = vsel %vm1788, %v844, -1e+30
        %v1829 = vsel %vm1789, %v845, -1e+30
        %v1830 = vsel %vm1790, %v846, -1e+30
        %v1831 = vsel %vm1791, %v847, -1e+30
        %v1832 = vsel %vm1792, %v848, -1e+30
        %v1833 = vsel %vm1793, %v849, -1e+30
        %v1834 = vsel %vm1794, %v850, -1e+30
        %v1835 = vsel %vm1795, %v851, -1e+30
        %v1836 = vsel %vm1796, %v852, -1e+30
        %v1837 = vsel %vm1797, %v853, -1e+30
        %v1838 = vsel %vm1798, %v854, -1e+30
        %v1839 = vsel %vm1799, %v855, -1e+30
        %v1840 = vsel %vm1800, %v856, -1e+30
        %v1841 = vsel %vm1801, %v857, -1e+30
        %v1842 = vsel %vm1802, %v858, -1e+30
        %v1843 = vsel %vm1803, %v859, -1e+30
        %v1844 = vsel %vm1804, %v860, -1e+30
        %v1845 = vsel %vm1805, %v861, -1e+30
        %v1846 = vsel %vm1806, %v862, -1e+30
        %v1847 = vsel %vm1807, %v863, -1e+30
        %v1848 = vmax.f32 %v1808, %v1809
        %v1849 = vmax.f32 %v1848, %v1810
        %v1850 = vmax.f32 %v1849, %v1811
        %v1851 = vmax.f32 %v1850, %v1812
        %v1852 = vrot.slane %v1851, 4
        %v1853 = vmax.f32 %v1851, %v1852
        %v1854 = vrot.slane %v1853, 2
        %v1855 = vmax.f32 %v1853, %v1854
        %v1856 = vrot.slane %v1855, 1
        %v1857 = vmax.f32 %v1855, %v1856
        %v1858 = vmax.f32 %v1813, %v1814
        %v1859 = vmax.f32 %v1858, %v1815
        %v1860 = vmax.f32 %v1859, %v1816
        %v1861 = vmax.f32 %v1860, %v1817
        %v1862 = vrot.slane %v1861, 4
        %v1863 = vmax.f32 %v1861, %v1862
        %v1864 = vrot.slane %v1863, 2
        %v1865 = vmax.f32 %v1863, %v1864
        %v1866 = vrot.slane %v1865, 1
        %v1867 = vmax.f32 %v1865, %v1866
        %v1868 = vmax.f32 %v1818, %v1819
        %v1869 = vmax.f32 %v1868, %v1820
        %v1870 = vmax.f32 %v1869, %v1821
        %v1871 = vmax.f32 %v1870, %v1822
        %v1872 = vrot.slane %v1871, 4
        %v1873 = vmax.f32 %v1871, %v1872
        %v1874 = vrot.slane %v1873, 2
        %v1875 = vmax.f32 %v1873, %v1874
        %v1876 = vrot.slane %v1875, 1
        %v1877 = vmax.f32 %v1875, %v1876
        %v1878 = vmax.f32 %v1823, %v1824
        %v1879 = vmax.f32 %v1878, %v1825
        %v1880 = vmax.f32 %v1879, %v1826
        %v1881 = vmax.f32 %v1880, %v1827
        %v1882 = vrot.slane %v1881, 4
        %v1883 = vmax.f32 %v1881, %v1882
        %v1884 = vrot.slane %v1883, 2
        %v1885 = vmax.f32 %v1883, %v1884
        %v1886 = vrot.slane %v1885, 1
        %v1887 = vmax.f32 %v1885, %v1886
        %v1888 = vmax.f32 %v1828, %v1829
        %v1889 = vmax.f32 %v1888, %v1830
        %v1890 = vmax.f32 %v1889, %v1831
        %v1891 = vmax.f32 %v1890, %v1832
        %v1892 = vrot.slane %v1891, 4
        %v1893 = vmax.f32 %v1891, %v1892
        %v1894 = vrot.slane %v1893, 2
        %v1895 = vmax.f32 %v1893, %v1894
        %v1896 = vrot.slane %v1895, 1
        %v1897 = vmax.f32 %v1895, %v1896
        %v1898 = vmax.f32 %v1833, %v1834
        %v1899 = vmax.f32 %v1898, %v1835
        %v1900 = vmax.f32 %v1899, %v1836
        %v1901 = vmax.f32 %v1900, %v1837
        %v1902 = vrot.slane %v1901, 4
        %v1903 = vmax.f32 %v1901, %v1902
        %v1904 = vrot.slane %v1903, 2
        %v1905 = vmax.f32 %v1903, %v1904
        %v1906 = vrot.slane %v1905, 1
        %v1907 = vmax.f32 %v1905, %v1906
        %v1908 = vmax.f32 %v1838, %v1839
        %v1909 = vmax.f32 %v1908, %v1840
        %v1910 = vmax.f32 %v1909, %v1841
        %v1911 = vmax.f32 %v1910, %v1842
        %v1912 = vrot.slane %v1911, 4
        %v1913 = vmax.f32 %v1911, %v1912
        %v1914 = vrot.slane %v1913, 2
        %v1915 = vmax.f32 %v1913, %v1914
        %v1916 = vrot.slane %v1915, 1
        %v1917 = vmax.f32 %v1915, %v1916
        %v1918 = vmax.f32 %v1843, %v1844
        %v1919 = vmax.f32 %v1918, %v1845
        %v1920 = vmax.f32 %v1919, %v1846
        %v1921 = vmax.f32 %v1920, %v1847
        %v1922 = vrot.slane %v1921, 4
        %v1923 = vmax.f32 %v1921, %v1922
        %v1924 = vrot.slane %v1923, 2
        %v1925 = vmax.f32 %v1923, %v1924
        %v1926 = vrot.slane %v1925, 1
        %v1927 = vmax.f32 %v1925, %v1926
        %v1936 = vsel %vm1398, %v1867, %v1857
        %v1937 = vsel %vm1400, %v1877, %v1936
        %v1938 = vsel %vm1402, %v1887, %v1937
        %v1939 = vsel %vm1404, %v1897, %v1938
        %v1940 = vsel %vm1406, %v1907, %v1939
        %v1941 = vsel %vm1408, %v1917, %v1940
        %v1942 = vsel %vm1410, %v1927, %v1941
        %v1944 = vmax.f32 %v1415, %v1942
        %1945 = vst [vmem:[#allocation3] sm:$0xff] %v1944
        %v1946 = vld [vmem:[#allocation4] sm:$0xff]
        %v1947 = vld [vmem:[%s803] sm:$0x3]
        %v1948 = vld [vmem:[%s803 + $0x2] sm:$0x3]
        %v1949 = vld [vmem:[%s803 + $0x4] sm:$0x3]
        %v1950 = vld [vmem:[%s803 + $0x6] sm:$0x3]
        %v1951 = vld [vmem:[%s803 + $0x8] sm:$0x3]
        %v1952 = vld [vmem:[%s803 + $0xa] sm:$0x3]
        %v1953 = vld [vmem:[%s803 + $0xc] sm:$0x3]
        %v1954 = vld [vmem:[%s803 + $0xe] sm:$0x3]
        %v1955 = vlaneseq
        %v1956 = vshrl.u32 %v1955, 7
        %v1957 = vsub.s32 0, %v1956
        %v1958 = vrot.slane %v1947, %v1957
        %v1959 = vlaneseq
        %v1960 = vshrl.u32 %v1959, 7
        %v1961 = vsub.s32 0, %v1960
        %v1962 = vrot.slane %v1948, %v1961
        %v1963 = vlaneseq
        %v1964 = vshrl.u32 %v1963, 7
        %v1965 = vsub.s32 0, %v1964
        %v1966 = vrot.slane %v1949, %v1965
        %v1967 = vlaneseq
        %v1968 = vshrl.u32 %v1967, 7
        %v1969 = vsub.s32 0, %v1968
        %v1970 = vrot.slane %v1950, %v1969
        %v1971 = vlaneseq
        %v1972 = vshrl.u32 %v1971, 7
        %v1973 = vsub.s32 0, %v1972
        %v1974 = vrot.slane %v1951, %v1973
        %v1975 = vlaneseq
        %v1976 = vshrl.u32 %v1975, 7
        %v1977 = vsub.s32 0, %v1976
        %v1978 = vrot.slane %v1952, %v1977
        %v1979 = vlaneseq
        %v1980 = vshrl.u32 %v1979, 7
        %v1981 = vsub.s32 0, %v1980
        %v1982 = vrot.slane %v1953, %v1981
        %v1983 = vlaneseq
        %v1984 = vshrl.u32 %v1983, 7
        %v1985 = vsub.s32 0, %v1984
        %v1986 = vrot.slane %v1954, %v1985
        %vm1987 = vcmp.ge.s32.totalorder %v872, %v1958
        %vm1988 = vcmp.ge.s32.totalorder %v873, %v1958
        %vm1989 = vcmp.ge.s32.totalorder %v874, %v1958
        %vm1990 = vcmp.ge.s32.totalorder %v875, %v1958
        %vm1991 = vcmp.ge.s32.totalorder %v876, %v1958
        %vm1992 = vcmp.ge.s32.totalorder %v872, %v1962
        %vm1993 = vcmp.ge.s32.totalorder %v873, %v1962
        %vm1994 = vcmp.ge.s32.totalorder %v874, %v1962
        %vm1995 = vcmp.ge.s32.totalorder %v875, %v1962
        %vm1996 = vcmp.ge.s32.totalorder %v876, %v1962
        %vm1997 = vcmp.ge.s32.totalorder %v872, %v1966
        %vm1998 = vcmp.ge.s32.totalorder %v873, %v1966
        %vm1999 = vcmp.ge.s32.totalorder %v874, %v1966
        %vm2000 = vcmp.ge.s32.totalorder %v875, %v1966
        %vm2001 = vcmp.ge.s32.totalorder %v876, %v1966
        %vm2002 = vcmp.ge.s32.totalorder %v872, %v1970
        %vm2003 = vcmp.ge.s32.totalorder %v873, %v1970
        %vm2004 = vcmp.ge.s32.totalorder %v874, %v1970
        %vm2005 = vcmp.ge.s32.totalorder %v875, %v1970
        %vm2006 = vcmp.ge.s32.totalorder %v876, %v1970
        %vm2007 = vcmp.ge.s32.totalorder %v872, %v1974
        %vm2008 = vcmp.ge.s32.totalorder %v873, %v1974
        %vm2009 = vcmp.ge.s32.totalorder %v874, %v1974
        %vm2010 = vcmp.ge.s32.totalorder %v875, %v1974
        %vm2011 = vcmp.ge.s32.totalorder %v876, %v1974
        %vm2012 = vcmp.ge.s32.totalorder %v872, %v1978
        %vm2013 = vcmp.ge.s32.totalorder %v873, %v1978
        %vm2014 = vcmp.ge.s32.totalorder %v874, %v1978
        %vm2015 = vcmp.ge.s32.totalorder %v875, %v1978
        %vm2016 = vcmp.ge.s32.totalorder %v876, %v1978
        %vm2017 = vcmp.ge.s32.totalorder %v872, %v1982
        %vm2018 = vcmp.ge.s32.totalorder %v873, %v1982
        %vm2019 = vcmp.ge.s32.totalorder %v874, %v1982
        %vm2020 = vcmp.ge.s32.totalorder %v875, %v1982
        %vm2021 = vcmp.ge.s32.totalorder %v876, %v1982
        %vm2022 = vcmp.ge.s32.totalorder %v872, %v1986
        %vm2023 = vcmp.ge.s32.totalorder %v873, %v1986
        %vm2024 = vcmp.ge.s32.totalorder %v874, %v1986
        %vm2025 = vcmp.ge.s32.totalorder %v875, %v1986
        %vm2026 = vcmp.ge.s32.totalorder %v876, %v1986
        %v2027 = vlaneseq
        %v2028 = vshrl.u32 %v2027, 7
        %v2029 = vsub.s32 1, %v2028
        %v2030 = vrot.slane %v1947, %v2029
        %v2031 = vlaneseq
        %v2032 = vshrl.u32 %v2031, 7
        %v2033 = vsub.s32 1, %v2032
        %v2034 = vrot.slane %v1948, %v2033
        %v2035 = vlaneseq
        %v2036 = vshrl.u32 %v2035, 7
        %v2037 = vsub.s32 1, %v2036
        %v2038 = vrot.slane %v1949, %v2037
        %v2039 = vlaneseq
        %v2040 = vshrl.u32 %v2039, 7
        %v2041 = vsub.s32 1, %v2040
        %v2042 = vrot.slane %v1950, %v2041
        %v2043 = vlaneseq
        %v2044 = vshrl.u32 %v2043, 7
        %v2045 = vsub.s32 1, %v2044
        %v2046 = vrot.slane %v1951, %v2045
        %v2047 = vlaneseq
        %v2048 = vshrl.u32 %v2047, 7
        %v2049 = vsub.s32 1, %v2048
        %v2050 = vrot.slane %v1952, %v2049
        %v2051 = vlaneseq
        %v2052 = vshrl.u32 %v2051, 7
        %v2053 = vsub.s32 1, %v2052
        %v2054 = vrot.slane %v1953, %v2053
        %v2055 = vlaneseq
        %v2056 = vshrl.u32 %v2055, 7
        %v2057 = vsub.s32 1, %v2056
        %v2058 = vrot.slane %v1954, %v2057
        %vm2059 = vcmp.lt.s32.totalorder %v872, %v2030
        %vm2060 = vcmp.lt.s32.totalorder %v873, %v2030
        %vm2061 = vcmp.lt.s32.totalorder %v874, %v2030
        %vm2062 = vcmp.lt.s32.totalorder %v875, %v2030
        %vm2063 = vcmp.lt.s32.totalorder %v876, %v2030
        %vm2064 = vcmp.lt.s32.totalorder %v872, %v2034
        %vm2065 = vcmp.lt.s32.totalorder %v873, %v2034
        %vm2066 = vcmp.lt.s32.totalorder %v874, %v2034
        %vm2067 = vcmp.lt.s32.totalorder %v875, %v2034
        %vm2068 = vcmp.lt.s32.totalorder %v876, %v2034
        %vm2069 = vcmp.lt.s32.totalorder %v872, %v2038
        %vm2070 = vcmp.lt.s32.totalorder %v873, %v2038
        %vm2071 = vcmp.lt.s32.totalorder %v874, %v2038
        %vm2072 = vcmp.lt.s32.totalorder %v875, %v2038
        %vm2073 = vcmp.lt.s32.totalorder %v876, %v2038
        %vm2074 = vcmp.lt.s32.totalorder %v872, %v2042
        %vm2075 = vcmp.lt.s32.totalorder %v873, %v2042
        %vm2076 = vcmp.lt.s32.totalorder %v874, %v2042
        %vm2077 = vcmp.lt.s32.totalorder %v875, %v2042
        %vm2078 = vcmp.lt.s32.totalorder %v876, %v2042
        %vm2079 = vcmp.lt.s32.totalorder %v872, %v2046
        %vm2080 = vcmp.lt.s32.totalorder %v873, %v2046
        %vm2081 = vcmp.lt.s32.totalorder %v874, %v2046
        %vm2082 = vcmp.lt.s32.totalorder %v875, %v2046
        %vm2083 = vcmp.lt.s32.totalorder %v876, %v2046
        %vm2084 = vcmp.lt.s32.totalorder %v872, %v2050
        %vm2085 = vcmp.lt.s32.totalorder %v873, %v2050
        %vm2086 = vcmp.lt.s32.totalorder %v874, %v2050
        %vm2087 = vcmp.lt.s32.totalorder %v875, %v2050
        %vm2088 = vcmp.lt.s32.totalorder %v876, %v2050
        %vm2089 = vcmp.lt.s32.totalorder %v872, %v2054
        %vm2090 = vcmp.lt.s32.totalorder %v873, %v2054
        %vm2091 = vcmp.lt.s32.totalorder %v874, %v2054
        %vm2092 = vcmp.lt.s32.totalorder %v875, %v2054
        %vm2093 = vcmp.lt.s32.totalorder %v876, %v2054
        %vm2094 = vcmp.lt.s32.totalorder %v872, %v2058
        %vm2095 = vcmp.lt.s32.totalorder %v873, %v2058
        %vm2096 = vcmp.lt.s32.totalorder %v874, %v2058
        %vm2097 = vcmp.lt.s32.totalorder %v875, %v2058
        %vm2098 = vcmp.lt.s32.totalorder %v876, %v2058
        %vm2099 = vmand %vm1987, %vm2059
        %vm2100 = vmand %vm1988, %vm2060
        %vm2101 = vmand %vm1989, %vm2061
        %vm2102 = vmand %vm1990, %vm2062
        %vm2103 = vmand %vm1991, %vm2063
        %vm2104 = vmand %vm1992, %vm2064
        %vm2105 = vmand %vm1993, %vm2065
        %vm2106 = vmand %vm1994, %vm2066
        %vm2107 = vmand %vm1995, %vm2067
        %vm2108 = vmand %vm1996, %vm2068
        %vm2109 = vmand %vm1997, %vm2069
        %vm2110 = vmand %vm1998, %vm2070
        %vm2111 = vmand %vm1999, %vm2071
        %vm2112 = vmand %vm2000, %vm2072
        %vm2113 = vmand %vm2001, %vm2073
        %vm2114 = vmand %vm2002, %vm2074
        %vm2115 = vmand %vm2003, %vm2075
        %vm2116 = vmand %vm2004, %vm2076
        %vm2117 = vmand %vm2005, %vm2077
        %vm2118 = vmand %vm2006, %vm2078
        %vm2119 = vmand %vm2007, %vm2079
        %vm2120 = vmand %vm2008, %vm2080
        %vm2121 = vmand %vm2009, %vm2081
        %vm2122 = vmand %vm2010, %vm2082
        %vm2123 = vmand %vm2011, %vm2083
        %vm2124 = vmand %vm2012, %vm2084
        %vm2125 = vmand %vm2013, %vm2085
        %vm2126 = vmand %vm2014, %vm2086
        %vm2127 = vmand %vm2015, %vm2087
        %vm2128 = vmand %vm2016, %vm2088
        %vm2129 = vmand %vm2017, %vm2089
        %vm2130 = vmand %vm2018, %vm2090
        %vm2131 = vmand %vm2019, %vm2091
        %vm2132 = vmand %vm2020, %vm2092
        %vm2133 = vmand %vm2021, %vm2093
        %vm2134 = vmand %vm2022, %vm2094
        %vm2135 = vmand %vm2023, %vm2095
        %vm2136 = vmand %vm2024, %vm2096
        %vm2137 = vmand %vm2025, %vm2097
        %vm2138 = vmand %vm2026, %vm2098
        %v2139 = vsel %vm2099, 1, 0
        %v2140 = vsel %vm2100, 1, 0
        %v2141 = vsel %vm2101, 1, 0
        %v2142 = vsel %vm2102, 1, 0
        %v2143 = vsel %vm2103, 1, 0
        %v2144 = vsel %vm2104, 1, 0
        %v2145 = vsel %vm2105, 1, 0
        %v2146 = vsel %vm2106, 1, 0
        %v2147 = vsel %vm2107, 1, 0
        %v2148 = vsel %vm2108, 1, 0
        %v2149 = vsel %vm2109, 1, 0
        %v2150 = vsel %vm2110, 1, 0
        %v2151 = vsel %vm2111, 1, 0
        %v2152 = vsel %vm2112, 1, 0
        %v2153 = vsel %vm2113, 1, 0
        %v2154 = vsel %vm2114, 1, 0
        %v2155 = vsel %vm2115, 1, 0
        %v2156 = vsel %vm2116, 1, 0
        %v2157 = vsel %vm2117, 1, 0
        %v2158 = vsel %vm2118, 1, 0
        %v2159 = vsel %vm2119, 1, 0
        %v2160 = vsel %vm2120, 1, 0
        %v2161 = vsel %vm2121, 1, 0
        %v2162 = vsel %vm2122, 1, 0
        %v2163 = vsel %vm2123, 1, 0
        %v2164 = vsel %vm2124, 1, 0
        %v2165 = vsel %vm2125, 1, 0
        %v2166 = vsel %vm2126, 1, 0
        %v2167 = vsel %vm2127, 1, 0
        %v2168 = vsel %vm2128, 1, 0
        %v2169 = vsel %vm2129, 1, 0
        %v2170 = vsel %vm2130, 1, 0
        %v2171 = vsel %vm2131, 1, 0
        %v2172 = vsel %vm2132, 1, 0
        %v2173 = vsel %vm2133, 1, 0
        %v2174 = vsel %vm2134, 1, 0
        %v2175 = vsel %vm2135, 1, 0
        %v2176 = vsel %vm2136, 1, 0
        %v2177 = vsel %vm2137, 1, 0
        %v2178 = vsel %vm2138, 1, 0
        %2179 = vset.pattern.permute.xlu0 0
        %2180 = vperm.xlu0 %2179, %v2139
        %v2181 = vpop.permute.xlu0 %2180
        %2182 = vset.pattern.permute.xlu0 0
        %2183 = vperm.xlu0 %2182, %v2140
        %v2184 = vpop.permute.xlu0 %2183
        %2185 = vset.pattern.permute.xlu0 0
        %2186 = vperm.xlu0 %2185, %v2141
        %v2187 = vpop.permute.xlu0 %2186
        %2188 = vset.pattern.permute.xlu0 0
        %2189 = vperm.xlu0 %2188, %v2142
        %v2190 = vpop.permute.xlu0 %2189
        %2191 = vset.pattern.permute.xlu0 0
        %2192 = vperm.xlu0 %2191, %v2143
        %v2193 = vpop.permute.xlu0 %2192
        %2194 = vset.pattern.permute.xlu0 0
        %2195 = vperm.xlu0 %2194, %v2144
        %v2196 = vpop.permute.xlu0 %2195
        %2197 = vset.pattern.permute.xlu0 0
        %2198 = vperm.xlu0 %2197, %v2145
        %v2199 = vpop.permute.xlu0 %2198
        %2200 = vset.pattern.permute.xlu0 0
        %2201 = vperm.xlu0 %2200, %v2146
        %v2202 = vpop.permute.xlu0 %2201
        %2203 = vset.pattern.permute.xlu0 0
        %2204 = vperm.xlu0 %2203, %v2147
        %v2205 = vpop.permute.xlu0 %2204
        %2206 = vset.pattern.permute.xlu0 0
        %2207 = vperm.xlu0 %2206, %v2148
        %v2208 = vpop.permute.xlu0 %2207
        %2209 = vset.pattern.permute.xlu0 0
        %2210 = vperm.xlu0 %2209, %v2149
        %v2211 = vpop.permute.xlu0 %2210
        %2212 = vset.pattern.permute.xlu0 0
        %2213 = vperm.xlu0 %2212, %v2150
        %v2214 = vpop.permute.xlu0 %2213
        %2215 = vset.pattern.permute.xlu0 0
        %2216 = vperm.xlu0 %2215, %v2151
        %v2217 = vpop.permute.xlu0 %2216
        %2218 = vset.pattern.permute.xlu0 0
        %2219 = vperm.xlu0 %2218, %v2152
        %v2220 = vpop.permute.xlu0 %2219
        %2221 = vset.pattern.permute.xlu0 0
        %2222 = vperm.xlu0 %2221, %v2153
        %v2223 = vpop.permute.xlu0 %2222
        %2224 = vset.pattern.permute.xlu0 0
        %2225 = vperm.xlu0 %2224, %v2154
        %v2226 = vpop.permute.xlu0 %2225
        %2227 = vset.pattern.permute.xlu0 0
        %2228 = vperm.xlu0 %2227, %v2155
        %v2229 = vpop.permute.xlu0 %2228
        %2230 = vset.pattern.permute.xlu0 0
        %2231 = vperm.xlu0 %2230, %v2156
        %v2232 = vpop.permute.xlu0 %2231
        %2233 = vset.pattern.permute.xlu0 0
        %2234 = vperm.xlu0 %2233, %v2157
        %v2235 = vpop.permute.xlu0 %2234
        %2236 = vset.pattern.permute.xlu0 0
        %2237 = vperm.xlu0 %2236, %v2158
        %v2238 = vpop.permute.xlu0 %2237
        %2239 = vset.pattern.permute.xlu0 0
        %2240 = vperm.xlu0 %2239, %v2159
        %v2241 = vpop.permute.xlu0 %2240
        %2242 = vset.pattern.permute.xlu0 0
        %2243 = vperm.xlu0 %2242, %v2160
        %v2244 = vpop.permute.xlu0 %2243
        %2245 = vset.pattern.permute.xlu0 0
        %2246 = vperm.xlu0 %2245, %v2161
        %v2247 = vpop.permute.xlu0 %2246
        %2248 = vset.pattern.permute.xlu0 0
        %2249 = vperm.xlu0 %2248, %v2162
        %v2250 = vpop.permute.xlu0 %2249
        %2251 = vset.pattern.permute.xlu0 0
        %2252 = vperm.xlu0 %2251, %v2163
        %v2253 = vpop.permute.xlu0 %2252
        %2254 = vset.pattern.permute.xlu0 0
        %2255 = vperm.xlu0 %2254, %v2164
        %v2256 = vpop.permute.xlu0 %2255
        %2257 = vset.pattern.permute.xlu0 0
        %2258 = vperm.xlu0 %2257, %v2165
        %v2259 = vpop.permute.xlu0 %2258
        %2260 = vset.pattern.permute.xlu0 0
        %2261 = vperm.xlu0 %2260, %v2166
        %v2262 = vpop.permute.xlu0 %2261
        %2263 = vset.pattern.permute.xlu0 0
        %2264 = vperm.xlu0 %2263, %v2167
        %v2265 = vpop.permute.xlu0 %2264
        %2266 = vset.pattern.permute.xlu0 0
        %2267 = vperm.xlu0 %2266, %v2168
        %v2268 = vpop.permute.xlu0 %2267
        %2269 = vset.pattern.permute.xlu0 0
        %2270 = vperm.xlu0 %2269, %v2169
        %v2271 = vpop.permute.xlu0 %2270
        %2272 = vset.pattern.permute.xlu0 0
        %2273 = vperm.xlu0 %2272, %v2170
        %v2274 = vpop.permute.xlu0 %2273
        %2275 = vset.pattern.permute.xlu0 0
        %2276 = vperm.xlu0 %2275, %v2171
        %v2277 = vpop.permute.xlu0 %2276
        %2278 = vset.pattern.permute.xlu0 0
        %2279 = vperm.xlu0 %2278, %v2172
        %v2280 = vpop.permute.xlu0 %2279
        %2281 = vset.pattern.permute.xlu0 0
        %2282 = vperm.xlu0 %2281, %v2173
        %v2283 = vpop.permute.xlu0 %2282
        %2284 = vset.pattern.permute.xlu0 0
        %2285 = vperm.xlu0 %2284, %v2174
        %v2286 = vpop.permute.xlu0 %2285
        %2287 = vset.pattern.permute.xlu0 0
        %2288 = vperm.xlu0 %2287, %v2175
        %v2289 = vpop.permute.xlu0 %2288
        %2290 = vset.pattern.permute.xlu0 0
        %2291 = vperm.xlu0 %2290, %v2176
        %v2292 = vpop.permute.xlu0 %2291
        %2293 = vset.pattern.permute.xlu0 0
        %2294 = vperm.xlu0 %2293, %v2177
        %v2295 = vpop.permute.xlu0 %2294
        %2296 = vset.pattern.permute.xlu0 0
        %2297 = vperm.xlu0 %2296, %v2178
        %v2298 = vpop.permute.xlu0 %2297
        %vm2299 = vcmp.eq.s32.totalorder %v2181, 1
        %vm2300 = vcmp.eq.s32.totalorder %v2184, 1
        %vm2301 = vcmp.eq.s32.totalorder %v2187, 1
        %vm2302 = vcmp.eq.s32.totalorder %v2190, 1
        %vm2303 = vcmp.eq.s32.totalorder %v2193, 1
        %vm2304 = vcmp.eq.s32.totalorder %v2196, 1
        %vm2305 = vcmp.eq.s32.totalorder %v2199, 1
        %vm2306 = vcmp.eq.s32.totalorder %v2202, 1
        %vm2307 = vcmp.eq.s32.totalorder %v2205, 1
        %vm2308 = vcmp.eq.s32.totalorder %v2208, 1
        %vm2309 = vcmp.eq.s32.totalorder %v2211, 1
        %vm2310 = vcmp.eq.s32.totalorder %v2214, 1
        %vm2311 = vcmp.eq.s32.totalorder %v2217, 1
        %vm2312 = vcmp.eq.s32.totalorder %v2220, 1
        %vm2313 = vcmp.eq.s32.totalorder %v2223, 1
        %vm2314 = vcmp.eq.s32.totalorder %v2226, 1
        %vm2315 = vcmp.eq.s32.totalorder %v2229, 1
        %vm2316 = vcmp.eq.s32.totalorder %v2232, 1
        %vm2317 = vcmp.eq.s32.totalorder %v2235, 1
        %vm2318 = vcmp.eq.s32.totalorder %v2238, 1
        %vm2319 = vcmp.eq.s32.totalorder %v2241, 1
        %vm2320 = vcmp.eq.s32.totalorder %v2244, 1
        %vm2321 = vcmp.eq.s32.totalorder %v2247, 1
        %vm2322 = vcmp.eq.s32.totalorder %v2250, 1
        %vm2323 = vcmp.eq.s32.totalorder %v2253, 1
        %vm2324 = vcmp.eq.s32.totalorder %v2256, 1
        %vm2325 = vcmp.eq.s32.totalorder %v2259, 1
        %vm2326 = vcmp.eq.s32.totalorder %v2262, 1
        %vm2327 = vcmp.eq.s32.totalorder %v2265, 1
        %vm2328 = vcmp.eq.s32.totalorder %v2268, 1
        %vm2329 = vcmp.eq.s32.totalorder %v2271, 1
        %vm2330 = vcmp.eq.s32.totalorder %v2274, 1
        %vm2331 = vcmp.eq.s32.totalorder %v2277, 1
        %vm2332 = vcmp.eq.s32.totalorder %v2280, 1
        %vm2333 = vcmp.eq.s32.totalorder %v2283, 1
        %vm2334 = vcmp.eq.s32.totalorder %v2286, 1
        %vm2335 = vcmp.eq.s32.totalorder %v2289, 1
        %vm2336 = vcmp.eq.s32.totalorder %v2292, 1
        %vm2337 = vcmp.eq.s32.totalorder %v2295, 1
        %vm2338 = vcmp.eq.s32.totalorder %v2298, 1
        %v2339 = vsel %vm2299, %v824, -1e+30
        %v2340 = vsel %vm2300, %v825, -1e+30
        %v2341 = vsel %vm2301, %v826, -1e+30
        %v2342 = vsel %vm2302, %v827, -1e+30
        %v2343 = vsel %vm2303, %v828, -1e+30
        %v2344 = vsel %vm2304, %v829, -1e+30
        %v2345 = vsel %vm2305, %v830, -1e+30
        %v2346 = vsel %vm2306, %v831, -1e+30
        %v2347 = vsel %vm2307, %v832, -1e+30
        %v2348 = vsel %vm2308, %v833, -1e+30
        %v2349 = vsel %vm2309, %v834, -1e+30
        %v2350 = vsel %vm2310, %v835, -1e+30
        %v2351 = vsel %vm2311, %v836, -1e+30
        %v2352 = vsel %vm2312, %v837, -1e+30
        %v2353 = vsel %vm2313, %v838, -1e+30
        %v2354 = vsel %vm2314, %v839, -1e+30
        %v2355 = vsel %vm2315, %v840, -1e+30
        %v2356 = vsel %vm2316, %v841, -1e+30
        %v2357 = vsel %vm2317, %v842, -1e+30
        %v2358 = vsel %vm2318, %v843, -1e+30
        %v2359 = vsel %vm2319, %v844, -1e+30
        %v2360 = vsel %vm2320, %v845, -1e+30
        %v2361 = vsel %vm2321, %v846, -1e+30
        %v2362 = vsel %vm2322, %v847, -1e+30
        %v2363 = vsel %vm2323, %v848, -1e+30
        %v2364 = vsel %vm2324, %v849, -1e+30
        %v2365 = vsel %vm2325, %v850, -1e+30
        %v2366 = vsel %vm2326, %v851, -1e+30
        %v2367 = vsel %vm2327, %v852, -1e+30
        %v2368 = vsel %vm2328, %v853, -1e+30
        %v2369 = vsel %vm2329, %v854, -1e+30
        %v2370 = vsel %vm2330, %v855, -1e+30
        %v2371 = vsel %vm2331, %v856, -1e+30
        %v2372 = vsel %vm2332, %v857, -1e+30
        %v2373 = vsel %vm2333, %v858, -1e+30
        %v2374 = vsel %vm2334, %v859, -1e+30
        %v2375 = vsel %vm2335, %v860, -1e+30
        %v2376 = vsel %vm2336, %v861, -1e+30
        %v2377 = vsel %vm2337, %v862, -1e+30
        %v2378 = vsel %vm2338, %v863, -1e+30
        %v2379 = vmax.f32 %v2339, %v2340
        %v2380 = vmax.f32 %v2379, %v2341
        %v2381 = vmax.f32 %v2380, %v2342
        %v2382 = vmax.f32 %v2381, %v2343
        %v2383 = vrot.slane %v2382, 4
        %v2384 = vmax.f32 %v2382, %v2383
        %v2385 = vrot.slane %v2384, 2
        %v2386 = vmax.f32 %v2384, %v2385
        %v2387 = vrot.slane %v2386, 1
        %v2388 = vmax.f32 %v2386, %v2387
        %v2389 = vmax.f32 %v2344, %v2345
        %v2390 = vmax.f32 %v2389, %v2346
        %v2391 = vmax.f32 %v2390, %v2347
        %v2392 = vmax.f32 %v2391, %v2348
        %v2393 = vrot.slane %v2392, 4
        %v2394 = vmax.f32 %v2392, %v2393
        %v2395 = vrot.slane %v2394, 2
        %v2396 = vmax.f32 %v2394, %v2395
        %v2397 = vrot.slane %v2396, 1
        %v2398 = vmax.f32 %v2396, %v2397
        %v2399 = vmax.f32 %v2349, %v2350
        %v2400 = vmax.f32 %v2399, %v2351
        %v2401 = vmax.f32 %v2400, %v2352
        %v2402 = vmax.f32 %v2401, %v2353
        %v2403 = vrot.slane %v2402, 4
        %v2404 = vmax.f32 %v2402, %v2403
        %v2405 = vrot.slane %v2404, 2
        %v2406 = vmax.f32 %v2404, %v2405
        %v2407 = vrot.slane %v2406, 1
        %v2408 = vmax.f32 %v2406, %v2407
        %v2409 = vmax.f32 %v2354, %v2355
        %v2410 = vmax.f32 %v2409, %v2356
        %v2411 = vmax.f32 %v2410, %v2357
        %v2412 = vmax.f32 %v2411, %v2358
        %v2413 = vrot.slane %v2412, 4
        %v2414 = vmax.f32 %v2412, %v2413
        %v2415 = vrot.slane %v2414, 2
        %v2416 = vmax.f32 %v2414, %v2415
        %v2417 = vrot.slane %v2416, 1
        %v2418 = vmax.f32 %v2416, %v2417
        %v2419 = vmax.f32 %v2359, %v2360
        %v2420 = vmax.f32 %v2419, %v2361
        %v2421 = vmax.f32 %v2420, %v2362
        %v2422 = vmax.f32 %v2421, %v2363
        %v2423 = vrot.slane %v2422, 4
        %v2424 = vmax.f32 %v2422, %v2423
        %v2425 = vrot.slane %v2424, 2
        %v2426 = vmax.f32 %v2424, %v2425
        %v2427 = vrot.slane %v2426, 1
        %v2428 = vmax.f32 %v2426, %v2427
        %v2429 = vmax.f32 %v2364, %v2365
        %v2430 = vmax.f32 %v2429, %v2366
        %v2431 = vmax.f32 %v2430, %v2367
        %v2432 = vmax.f32 %v2431, %v2368
        %v2433 = vrot.slane %v2432, 4
        %v2434 = vmax.f32 %v2432, %v2433
        %v2435 = vrot.slane %v2434, 2
        %v2436 = vmax.f32 %v2434, %v2435
        %v2437 = vrot.slane %v2436, 1
        %v2438 = vmax.f32 %v2436, %v2437
        %v2439 = vmax.f32 %v2369, %v2370
        %v2440 = vmax.f32 %v2439, %v2371
        %v2441 = vmax.f32 %v2440, %v2372
        %v2442 = vmax.f32 %v2441, %v2373
        %v2443 = vrot.slane %v2442, 4
        %v2444 = vmax.f32 %v2442, %v2443
        %v2445 = vrot.slane %v2444, 2
        %v2446 = vmax.f32 %v2444, %v2445
        %v2447 = vrot.slane %v2446, 1
        %v2448 = vmax.f32 %v2446, %v2447
        %v2449 = vmax.f32 %v2374, %v2375
        %v2450 = vmax.f32 %v2449, %v2376
        %v2451 = vmax.f32 %v2450, %v2377
        %v2452 = vmax.f32 %v2451, %v2378
        %v2453 = vrot.slane %v2452, 4
        %v2454 = vmax.f32 %v2452, %v2453
        %v2455 = vrot.slane %v2454, 2
        %v2456 = vmax.f32 %v2454, %v2455
        %v2457 = vrot.slane %v2456, 1
        %v2458 = vmax.f32 %v2456, %v2457
        %v2467 = vsel %vm1398, %v2398, %v2388
        %v2468 = vsel %vm1400, %v2408, %v2467
        %v2469 = vsel %vm1402, %v2418, %v2468
        %v2470 = vsel %vm1404, %v2428, %v2469
        %v2471 = vsel %vm1406, %v2438, %v2470
        %v2472 = vsel %vm1408, %v2448, %v2471
        %v2473 = vsel %vm1410, %v2458, %v2472
        %v2475 = vmax.f32 %v1946, %v2473
        %2476 = vst [vmem:[#allocation4] sm:$0xff] %v2475
        // Predicated region
        $region105: #{tpu_custom_call.1} parent=87 // pred_check
          %p2477 = pneg %p817
        $region106: #{tpu_custom_call.1} parent=87 // pred_check_branch
          %2479 = sbr.rel (%p2477) target = $region108
        $region107: #{tpu_custom_call.1} parent=87 // pred_region
          %v2480 = vld [vmem:[%s7] sm:$0xff]
          %v2481 = vld [vmem:[%s7 + $0x8] sm:$0xff]
          %v2482 = vld [vmem:[%s7 + $0x10] sm:$0xff]
          %v2483 = vld [vmem:[%s7 + $0x18] sm:$0xff]
          %v2484 = vld [vmem:[%s7 + $0x20] sm:$0xff]
          %v2485 = vld [vmem:[%s7 + $0x28] sm:$0xff]
          %v2486 = vld [vmem:[%s7 + $0x30] sm:$0xff]
          %v2487 = vld [vmem:[%s7 + $0x38] sm:$0xff]
          %v2488 = vld [vmem:[%s7 + $0x40] sm:$0xff]
          %v2489 = vld [vmem:[%s7 + $0x48] sm:$0xff]
          %v2490 = vld [vmem:[%s7 + $0x50] sm:$0xff]
          %v2491 = vld [vmem:[%s7 + $0x58] sm:$0xff]
          %v2492 = vld [vmem:[%s7 + $0x60] sm:$0xff]
          %v2493 = vld [vmem:[%s7 + $0x68] sm:$0xff]
          %v2494 = vld [vmem:[%s7 + $0x70] sm:$0xff]
          %v2495 = vld [vmem:[%s7 + $0x78] sm:$0xff]
          %v2496 = vld [vmem:[%s8] sm:$0xff]
          %v2497 = vld [vmem:[%s8 + $0x8] sm:$0xff]
          %v2498 = vld [vmem:[%s8 + $0x10] sm:$0xff]
          %v2499 = vld [vmem:[%s8 + $0x18] sm:$0xff]
          %v2500 = vld [vmem:[%s8 + $0x20] sm:$0xff]
          %v2501 = vld [vmem:[%s8 + $0x28] sm:$0xff]
          %v2502 = vld [vmem:[%s8 + $0x30] sm:$0xff]
          %v2503 = vld [vmem:[%s8 + $0x38] sm:$0xff]
          %v2504 = vld [vmem:[%s8 + $0x40] sm:$0xff]
          %v2505 = vld [vmem:[%s8 + $0x48] sm:$0xff]
          %v2506 = vld [vmem:[%s8 + $0x50] sm:$0xff]
          %v2507 = vld [vmem:[%s8 + $0x58] sm:$0xff]
          %v2508 = vld [vmem:[%s8 + $0x60] sm:$0xff]
          %v2509 = vld [vmem:[%s8 + $0x68] sm:$0xff]
          %v2510 = vld [vmem:[%s8 + $0x70] sm:$0xff]
          %v2511 = vld [vmem:[%s8 + $0x78] sm:$0xff]
          %v2512 = vld [vmem:[#allocation8] sm:$0xff]
          %v2513 = vld [vmem:[#allocation8 + $0x8] sm:$0xff]
          %v2514 = vld [vmem:[#allocation8 + $0x10] sm:$0xff]
          %v2515 = vld [vmem:[#allocation8 + $0x18] sm:$0xff]
          %v2516 = vld [vmem:[#allocation8 + $0x20] sm:$0xff]
          %v2517 = vld [vmem:[#allocation8 + $0x28] sm:$0xff]
          %v2518 = vld [vmem:[#allocation8 + $0x30] sm:$0xff]
          %v2519 = vld [vmem:[#allocation8 + $0x38] sm:$0xff]
          %v2520 = vld [vmem:[#allocation8 + $0x40] sm:$0xff]
          %v2521 = vld [vmem:[#allocation8 + $0x48] sm:$0xff]
          %v2522 = vld [vmem:[#allocation8 + $0x50] sm:$0xff]
          %v2523 = vld [vmem:[#allocation8 + $0x58] sm:$0xff]
          %v2524 = vld [vmem:[#allocation8 + $0x60] sm:$0xff]
          %v2525 = vld [vmem:[#allocation8 + $0x68] sm:$0xff]
          %v2526 = vld [vmem:[#allocation8 + $0x70] sm:$0xff]
          %v2527 = vld [vmem:[#allocation8 + $0x78] sm:$0xff]
          %v2528 = vld [vmem:[#allocation10] sm:$0xff]
          %v2529 = vld [vmem:[#allocation10 + $0x8] sm:$0xff]
          %v2530 = vld [vmem:[#allocation10 + $0x10] sm:$0xff]
          %v2531 = vld [vmem:[#allocation10 + $0x18] sm:$0xff]
          %v2532 = vld [vmem:[#allocation10 + $0x20] sm:$0xff]
          %v2533 = vld [vmem:[#allocation10 + $0x28] sm:$0xff]
          %v2534 = vld [vmem:[#allocation10 + $0x30] sm:$0xff]
          %v2535 = vld [vmem:[#allocation10 + $0x38] sm:$0xff]
          %v2536 = vld [vmem:[#allocation10 + $0x40] sm:$0xff]
          %v2537 = vld [vmem:[#allocation10 + $0x48] sm:$0xff]
          %v2538 = vld [vmem:[#allocation10 + $0x50] sm:$0xff]
          %v2539 = vld [vmem:[#allocation10 + $0x58] sm:$0xff]
          %v2540 = vld [vmem:[#allocation10 + $0x60] sm:$0xff]
          %v2541 = vld [vmem:[#allocation10 + $0x68] sm:$0xff]
          %v2542 = vld [vmem:[#allocation10 + $0x70] sm:$0xff]
          %v2543 = vld [vmem:[#allocation10 + $0x78] sm:$0xff]
          %v2544 = vld [vmem:[#allocation2] sm:$0xff]
          %v2545 = vld [vmem:[%s808] sm:$0xff]
          %v2546 = vld [vmem:[%s9] sm:$0x1]
          %v2547 = vld [vmem:[%s10] sm:$0xff]
          %v2548 = vld [vmem:[%s10 + $0x8] sm:$0xff]
          %v2549 = vld [vmem:[%s10 + $0x10] sm:$0xff]
          %v2550 = vld [vmem:[%s10 + $0x18] sm:$0xff]
          %v2551 = vld [vmem:[%s10 + $0x20] sm:$0xff]
          %v2552 = vld [vmem:[%s10 + $0x28] sm:$0xff]
          %v2553 = vld [vmem:[%s10 + $0x30] sm:$0xff]
          %v2554 = vld [vmem:[%s10 + $0x38] sm:$0xff]
          %v2555 = vld [vmem:[%s10 + $0x40] sm:$0xff]
          %v2556 = vld [vmem:[%s10 + $0x48] sm:$0xff]
          %v2557 = vld [vmem:[%s10 + $0x50] sm:$0xff]
          %v2558 = vld [vmem:[%s10 + $0x58] sm:$0xff]
          %v2559 = vld [vmem:[%s10 + $0x60] sm:$0xff]
          %v2560 = vld [vmem:[%s10 + $0x68] sm:$0xff]
          %v2561 = vld [vmem:[%s10 + $0x70] sm:$0xff]
          %v2562 = vld [vmem:[%s10 + $0x78] sm:$0xff]
          %v2563 = vld [vmem:[%s11] sm:$0x1]
          %2564 = vmatprep.subr.mxu0 0.0
          %2565 = vmatpush1.msra.mxu0 %v2511
          %2566 = vmatprep.subr.mxu0 0.0
          %2567 = vmatpush1.msra.mxu0 %v2510
          %2568 = vmatprep.subr.mxu0 0.0
          %2569 = vmatpush1.msra.mxu0 %v2509
          %2570 = vmatprep.subr.mxu0 0.0
          %2571 = vmatpush1.msra.mxu0 %v2508
          %2572 = vmatprep.subr.mxu0 0.0
          %2573 = vmatpush1.msra.mxu0 %v2507
          %2574 = vmatprep.subr.mxu0 0.0
          %2575 = vmatpush1.msra.mxu0 %v2506
          %2576 = vmatprep.subr.mxu0 0.0
          %2577 = vmatpush1.msra.mxu0 %v2505
          %2578 = vmatprep.subr.mxu0 0.0
          %2579 = vmatpush1.msra.mxu0 %v2504
          %2580 = vmatprep.subr.mxu0 0.0
          %2581 = vmatpush1.msra.mxu0 %v2503
          %2582 = vmatprep.subr.mxu0 0.0
          %2583 = vmatpush1.msra.mxu0 %v2502
          %2584 = vmatprep.subr.mxu0 0.0
          %2585 = vmatpush1.msra.mxu0 %v2501
          %2586 = vmatprep.subr.mxu0 0.0
          %2587 = vmatpush1.msra.mxu0 %v2500
          %2588 = vmatprep.subr.mxu0 0.0
          %2589 = vmatpush1.msra.mxu0 %v2499
          %2590 = vmatprep.subr.mxu0 0.0
          %2591 = vmatpush1.msra.mxu0 %v2498
          %2592 = vmatprep.subr.mxu0 0.0
          %2593 = vmatpush1.msra.mxu0 %v2497
          %2594 = vmatprep.subr.mxu0 0.0
          %2595 = vmatpush1.msra.mxu0 %v2496
          %2596 = vmatprep.subr.mxu0 0.0
          %2597 = vmatpush2.msra.mxu0 0.0
          %2598 = vmatprep.subr.mxu0 0.0
          %2599 = vmatpush2.msra.mxu0 0.0
          %2600 = vmatprep.subr.mxu0 0.0
          %2601 = vmatpush2.msra.mxu0 0.0
          %2602 = vmatprep.subr.mxu0 0.0
          %2603 = vmatpush2.msra.mxu0 0.0
          %2604 = vmatprep.subr.mxu0 0.0
          %2605 = vmatpush2.msra.mxu0 0.0
          %2606 = vmatprep.subr.mxu0 0.0
          %2607 = vmatpush2.msra.mxu0 0.0
          %2608 = vmatprep.subr.mxu0 0.0
          %2609 = vmatpush2.msra.mxu0 0.0
          %2610 = vmatprep.subr.mxu0 0.0
          %2611 = vmatpush2.msra.mxu0 0.0
          %2612 = vmatprep.subr.mxu0 0.0
          %2613 = vmatpush2.msra.mxu0 0.0
          %2614 = vmatprep.subr.mxu0 0.0
          %2615 = vmatpush2.msra.mxu0 0.0
          %2616 = vmatprep.subr.mxu0 0.0
          %2617 = vmatpush2.msra.mxu0 0.0
          %2618 = vmatprep.subr.mxu0 0.0
          %2619 = vmatpush2.msra.mxu0 0.0
          %2620 = vmatprep.subr.mxu0 0.0
          %2621 = vmatpush2.msra.mxu0 0.0
          %2622 = vmatprep.subr.mxu0 0.0
          %2623 = vmatpush2.msra.mxu0 0.0
          %2624 = vmatprep.subr.mxu0 0.0
          %2625 = vmatpush2.msra.mxu0 0.0
          %2626 = vmatprep.subr.mxu0 0.0
          %2627 = vmatpush2.msra.mxu0 0.0
          %2628 = vmatprep.mubr.f32.mxu0 0.0
          %2629 = vmatmul.mubr.f32.gmra.mxu0 %v2545
          %v2630 = vpop.f32.mrf.mxu0
          %v2631 = vadd.f32 0.0, %v2630
          %v2632 = vpop.f32.mrf.mxu0
          %2633 = vdwg.mxu0
          %2634 = vmatprep.subr.mxu0 0.0
          %2635 = vmatpush1.msra.mxu0 %v2495
          %2636 = vmatprep.subr.mxu0 0.0
          %2637 = vmatpush1.msra.mxu0 %v2494
          %2638 = vmatprep.subr.mxu0 0.0
          %2639 = vmatpush1.msra.mxu0 %v2493
          %2640 = vmatprep.subr.mxu0 0.0
          %2641 = vmatpush1.msra.mxu0 %v2492
          %2642 = vmatprep.subr.mxu0 0.0
          %2643 = vmatpush1.msra.mxu0 %v2491
          %2644 = vmatprep.subr.mxu0 0.0
          %2645 = vmatpush1.msra.mxu0 %v2490
          %2646 = vmatprep.subr.mxu0 0.0
          %2647 = vmatpush1.msra.mxu0 %v2489
          %2648 = vmatprep.subr.mxu0 0.0
          %2649 = vmatpush1.msra.mxu0 %v2488
          %2650 = vmatprep.subr.mxu0 0.0
          %2651 = vmatpush1.msra.mxu0 %v2487
          %2652 = vmatprep.subr.mxu0 0.0
          %2653 = vmatpush1.msra.mxu0 %v2486
          %2654 = vmatprep.subr.mxu0 0.0
          %2655 = vmatpush1.msra.mxu0 %v2485
          %2656 = vmatprep.subr.mxu0 0.0
          %2657 = vmatpush1.msra.mxu0 %v2484
          %2658 = vmatprep.subr.mxu0 0.0
          %2659 = vmatpush1.msra.mxu0 %v2483
          %2660 = vmatprep.subr.mxu0 0.0
          %2661 = vmatpush1.msra.mxu0 %v2482
          %2662 = vmatprep.subr.mxu0 0.0
          %2663 = vmatpush1.msra.mxu0 %v2481
          %2664 = vmatprep.subr.mxu0 0.0
          %2665 = vmatpush1.msra.mxu0 %v2480
          %2666 = vmatprep.subr.mxu0 0.0
          %2667 = vmatpush2.msra.mxu0 0.0
          %2668 = vmatprep.subr.mxu0 0.0
          %2669 = vmatpush2.msra.mxu0 0.0
          %2670 = vmatprep.subr.mxu0 0.0
          %2671 = vmatpush2.msra.mxu0 0.0
          %2672 = vmatprep.subr.mxu0 0.0
          %2673 = vmatpush2.msra.mxu0 0.0
          %2674 = vmatprep.subr.mxu0 0.0
          %2675 = vmatpush2.msra.mxu0 0.0
          %2676 = vmatprep.subr.mxu0 0.0
          %2677 = vmatpush2.msra.mxu0 0.0
          %2678 = vmatprep.subr.mxu0 0.0
          %2679 = vmatpush2.msra.mxu0 0.0
          %2680 = vmatprep.subr.mxu0 0.0
          %2681 = vmatpush2.msra.mxu0 0.0
          %2682 = vmatprep.subr.mxu0 0.0
          %2683 = vmatpush2.msra.mxu0 0.0
          %2684 = vmatprep.subr.mxu0 0.0
          %2685 = vmatpush2.msra.mxu0 0.0
          %2686 = vmatprep.subr.mxu0 0.0
          %2687 = vmatpush2.msra.mxu0 0.0
          %2688 = vmatprep.subr.mxu0 0.0
          %2689 = vmatpush2.msra.mxu0 0.0
          %2690 = vmatprep.subr.mxu0 0.0
          %2691 = vmatpush2.msra.mxu0 0.0
          %2692 = vmatprep.subr.mxu0 0.0
          %2693 = vmatpush2.msra.mxu0 0.0
          %2694 = vmatprep.subr.mxu0 0.0
          %2695 = vmatpush2.msra.mxu0 0.0
          %2696 = vmatprep.subr.mxu0 0.0
          %2697 = vmatpush2.msra.mxu0 0.0
          %2698 = vmatprep.mubr.f32.mxu0 0.0
          %2699 = vmatmul.mubr.f32.gmra.mxu0 %v2544
          %v2700 = vpop.f32.mrf.mxu0
          %v2701 = vadd.f32 %v2631, %v2700
          %v2702 = vpop.f32.mrf.mxu0
          %2703 = vdwg.mxu0
          %v2705 = vlaneseq
          %v2706 = vshrl.u32 %v2705, 7
          %v2707 = vsub.s32 0, %v2706
          %v2708 = vrot.slane %v2546, %v2707
          %v2710 = vadd.f32 %v2701, %v2708
          %v2711 = vmax.f32 %v2710, 0.0
          %v2713 = vlaneseq
          %v2714 = vshrl.u32 %v2713, 7
          %v2715 = vsub.s32 0, %v2714
          %v2716 = vrot.slane %v2563, %v2715
          %2718 = vmatprep.subr.mxu0 0.0
          %2719 = vmatpush1.msra.mxu0 %v2562
          %2720 = vmatprep.subr.mxu0 0.0
          %2721 = vmatpush1.msra.mxu0 %v2561
          %2722 = vmatprep.subr.mxu0 0.0
          %2723 = vmatpush1.msra.mxu0 %v2560
          %2724 = vmatprep.subr.mxu0 0.0
          %2725 = vmatpush1.msra.mxu0 %v2559
          %2726 = vmatprep.subr.mxu0 0.0
          %2727 = vmatpush1.msra.mxu0 %v2558
          %2728 = vmatprep.subr.mxu0 0.0
          %2729 = vmatpush1.msra.mxu0 %v2557
          %2730 = vmatprep.subr.mxu0 0.0
          %2731 = vmatpush1.msra.mxu0 %v2556
          %2732 = vmatprep.subr.mxu0 0.0
          %2733 = vmatpush1.msra.mxu0 %v2555
          %2734 = vmatprep.subr.mxu0 0.0
          %2735 = vmatpush1.msra.mxu0 %v2554
          %2736 = vmatprep.subr.mxu0 0.0
          %2737 = vmatpush1.msra.mxu0 %v2553
          %2738 = vmatprep.subr.mxu0 0.0
          %2739 = vmatpush1.msra.mxu0 %v2552
          %2740 = vmatprep.subr.mxu0 0.0
          %2741 = vmatpush1.msra.mxu0 %v2551
          %2742 = vmatprep.subr.mxu0 0.0
          %2743 = vmatpush1.msra.mxu0 %v2550
          %2744 = vmatprep.subr.mxu0 0.0
          %2745 = vmatpush1.msra.mxu0 %v2549
          %2746 = vmatprep.subr.mxu0 0.0
          %2747 = vmatpush1.msra.mxu0 %v2548
          %2748 = vmatprep.subr.mxu0 0.0
          %2749 = vmatpush1.msra.mxu0 %v2547
          %2750 = vmatprep.subr.mxu0 0.0
          %2751 = vmatpush2.msra.mxu0 0.0
          %2752 = vmatprep.subr.mxu0 0.0
          %2753 = vmatpush2.msra.mxu0 0.0
          %2754 = vmatprep.subr.mxu0 0.0
          %2755 = vmatpush2.msra.mxu0 0.0
          %2756 = vmatprep.subr.mxu0 0.0
          %2757 = vmatpush2.msra.mxu0 0.0
          %2758 = vmatprep.subr.mxu0 0.0
          %2759 = vmatpush2.msra.mxu0 0.0
          %2760 = vmatprep.subr.mxu0 0.0
          %2761 = vmatpush2.msra.mxu0 0.0
          %2762 = vmatprep.subr.mxu0 0.0
          %2763 = vmatpush2.msra.mxu0 0.0
          %2764 = vmatprep.subr.mxu0 0.0
          %2765 = vmatpush2.msra.mxu0 0.0
          %2766 = vmatprep.subr.mxu0 0.0
          %2767 = vmatpush2.msra.mxu0 0.0
          %2768 = vmatprep.subr.mxu0 0.0
          %2769 = vmatpush2.msra.mxu0 0.0
          %2770 = vmatprep.subr.mxu0 0.0
          %2771 = vmatpush2.msra.mxu0 0.0
          %2772 = vmatprep.subr.mxu0 0.0
          %2773 = vmatpush2.msra.mxu0 0.0
          %2774 = vmatprep.subr.mxu0 0.0
          %2775 = vmatpush2.msra.mxu0 0.0
          %2776 = vmatprep.subr.mxu0 0.0
          %2777 = vmatpush2.msra.mxu0 0.0
          %2778 = vmatprep.subr.mxu0 0.0
          %2779 = vmatpush2.msra.mxu0 0.0
          %2780 = vmatprep.subr.mxu0 0.0
          %2781 = vmatpush2.msra.mxu0 0.0
          %2782 = vmatprep.mubr.f32.mxu0 0.0
          %2783 = vmatmul.mubr.f32.gmra.mxu0 %v2711
          %v2784 = vpop.f32.mrf.mxu0
          %v2785 = vadd.f32 %v2716, %v2784
          %v2786 = vpop.f32.mrf.mxu0
          %2787 = vdwg.mxu0
          %2789 = vrot.lane.b32.xlu0 %v2785, 127
          %v2790 = vpop.permute.xlu0 %2789
          %v2792 = vsub.f32 %v2785, %v2790
          %v2793 = vmax.f32 %v2792, 0.0
          %v2794 = vand.u32 2147483647, %v2792
          %v2795 = vsub.f32 0.0, %v2794
          %v2796 = vmul.f32 %v2795, 1.442695
          %v2797 = vpow.pop %v2796
          %v2798 = vadd.f32 %v2797, 1.0
          %v2799 = vlog2.pop %v2798
          %v2800 = vmul.f32 %v2799, 0.6931472
          %v2801 = vadd.f32 %v2793, %v2800
          %v2802 = vld [vmem:[#allocation3] sm:$0xff]
          %v2803 = vld [vmem:[%s812] sm:$0xff]
          %v2804 = vld [vmem:[%s14] sm:$0x1]
          %v2805 = vld [vmem:[%s15] sm:$0xff]
          %v2806 = vld [vmem:[%s15 + $0x8] sm:$0xff]
          %v2807 = vld [vmem:[%s15 + $0x10] sm:$0xff]
          %v2808 = vld [vmem:[%s15 + $0x18] sm:$0xff]
          %v2809 = vld [vmem:[%s15 + $0x20] sm:$0xff]
          %v2810 = vld [vmem:[%s15 + $0x28] sm:$0xff]
          %v2811 = vld [vmem:[%s15 + $0x30] sm:$0xff]
          %v2812 = vld [vmem:[%s15 + $0x38] sm:$0xff]
          %v2813 = vld [vmem:[%s15 + $0x40] sm:$0xff]
          %v2814 = vld [vmem:[%s15 + $0x48] sm:$0xff]
          %v2815 = vld [vmem:[%s15 + $0x50] sm:$0xff]
          %v2816 = vld [vmem:[%s15 + $0x58] sm:$0xff]
          %v2817 = vld [vmem:[%s15 + $0x60] sm:$0xff]
          %v2818 = vld [vmem:[%s15 + $0x68] sm:$0xff]
          %v2819 = vld [vmem:[%s15 + $0x70] sm:$0xff]
          %v2820 = vld [vmem:[%s15 + $0x78] sm:$0xff]
          %v2821 = vld [vmem:[%s16] sm:$0x1]
          %2822 = vmatprep.subr.mxu0 0.0
          %2823 = vmatpush1.msra.mxu0 %v2543
          %2824 = vmatprep.subr.mxu0 0.0
          %2825 = vmatpush1.msra.mxu0 %v2542
          %2826 = vmatprep.subr.mxu0 0.0
          %2827 = vmatpush1.msra.mxu0 %v2541
          %2828 = vmatprep.subr.mxu0 0.0
          %2829 = vmatpush1.msra.mxu0 %v2540
          %2830 = vmatprep.subr.mxu0 0.0
          %2831 = vmatpush1.msra.mxu0 %v2539
          %2832 = vmatprep.subr.mxu0 0.0
          %2833 = vmatpush1.msra.mxu0 %v2538
          %2834 = vmatprep.subr.mxu0 0.0
          %2835 = vmatpush1.msra.mxu0 %v2537
          %2836 = vmatprep.subr.mxu0 0.0
          %2837 = vmatpush1.msra.mxu0 %v2536
          %2838 = vmatprep.subr.mxu0 0.0
          %2839 = vmatpush1.msra.mxu0 %v2535
          %2840 = vmatprep.subr.mxu0 0.0
          %2841 = vmatpush1.msra.mxu0 %v2534
          %2842 = vmatprep.subr.mxu0 0.0
          %2843 = vmatpush1.msra.mxu0 %v2533
          %2844 = vmatprep.subr.mxu0 0.0
          %2845 = vmatpush1.msra.mxu0 %v2532
          %2846 = vmatprep.subr.mxu0 0.0
          %2847 = vmatpush1.msra.mxu0 %v2531
          %2848 = vmatprep.subr.mxu0 0.0
          %2849 = vmatpush1.msra.mxu0 %v2530
          %2850 = vmatprep.subr.mxu0 0.0
          %2851 = vmatpush1.msra.mxu0 %v2529
          %2852 = vmatprep.subr.mxu0 0.0
          %2853 = vmatpush1.msra.mxu0 %v2528
          %2854 = vmatprep.subr.mxu0 0.0
          %2855 = vmatpush2.msra.mxu0 0.0
          %2856 = vmatprep.subr.mxu0 0.0
          %2857 = vmatpush2.msra.mxu0 0.0
          %2858 = vmatprep.subr.mxu0 0.0
          %2859 = vmatpush2.msra.mxu0 0.0
          %2860 = vmatprep.subr.mxu0 0.0
          %2861 = vmatpush2.msra.mxu0 0.0
          %2862 = vmatprep.subr.mxu0 0.0
          %2863 = vmatpush2.msra.mxu0 0.0
          %2864 = vmatprep.subr.mxu0 0.0
          %2865 = vmatpush2.msra.mxu0 0.0
          %2866 = vmatprep.subr.mxu0 0.0
          %2867 = vmatpush2.msra.mxu0 0.0
          %2868 = vmatprep.subr.mxu0 0.0
          %2869 = vmatpush2.msra.mxu0 0.0
          %2870 = vmatprep.subr.mxu0 0.0
          %2871 = vmatpush2.msra.mxu0 0.0
          %2872 = vmatprep.subr.mxu0 0.0
          %2873 = vmatpush2.msra.mxu0 0.0
          %2874 = vmatprep.subr.mxu0 0.0
          %2875 = vmatpush2.msra.mxu0 0.0
          %2876 = vmatprep.subr.mxu0 0.0
          %2877 = vmatpush2.msra.mxu0 0.0
          %2878 = vmatprep.subr.mxu0 0.0
          %2879 = vmatpush2.msra.mxu0 0.0
          %2880 = vmatprep.subr.mxu0 0.0
          %2881 = vmatpush2.msra.mxu0 0.0
          %2882 = vmatprep.subr.mxu0 0.0
          %2883 = vmatpush2.msra.mxu0 0.0
          %2884 = vmatprep.subr.mxu0 0.0
          %2885 = vmatpush2.msra.mxu0 0.0
          %2886 = vmatprep.mubr.f32.mxu0 0.0
          %2887 = vmatmul.mubr.f32.gmra.mxu0 %v2803
          %v2888 = vpop.f32.mrf.mxu0
          %v2889 = vadd.f32 0.0, %v2888
          %v2890 = vpop.f32.mrf.mxu0
          %2891 = vdwg.mxu0
          %2892 = vmatprep.subr.mxu0 0.0
          %2893 = vmatpush1.msra.mxu0 %v2527
          %2894 = vmatprep.subr.mxu0 0.0
          %2895 = vmatpush1.msra.mxu0 %v2526
          %2896 = vmatprep.subr.mxu0 0.0
          %2897 = vmatpush1.msra.mxu0 %v2525
          %2898 = vmatprep.subr.mxu0 0.0
          %2899 = vmatpush1.msra.mxu0 %v2524
          %2900 = vmatprep.subr.mxu0 0.0
          %2901 = vmatpush1.msra.mxu0 %v2523
          %2902 = vmatprep.subr.mxu0 0.0
          %2903 = vmatpush1.msra.mxu0 %v2522
          %2904 = vmatprep.subr.mxu0 0.0
          %2905 = vmatpush1.msra.mxu0 %v2521
          %2906 = vmatprep.subr.mxu0 0.0
          %2907 = vmatpush1.msra.mxu0 %v2520
          %2908 = vmatprep.subr.mxu0 0.0
          %2909 = vmatpush1.msra.mxu0 %v2519
          %2910 = vmatprep.subr.mxu0 0.0
          %2911 = vmatpush1.msra.mxu0 %v2518
          %2912 = vmatprep.subr.mxu0 0.0
          %2913 = vmatpush1.msra.mxu0 %v2517
          %2914 = vmatprep.subr.mxu0 0.0
          %2915 = vmatpush1.msra.mxu0 %v2516
          %2916 = vmatprep.subr.mxu0 0.0
          %2917 = vmatpush1.msra.mxu0 %v2515
          %2918 = vmatprep.subr.mxu0 0.0
          %2919 = vmatpush1.msra.mxu0 %v2514
          %2920 = vmatprep.subr.mxu0 0.0
          %2921 = vmatpush1.msra.mxu0 %v2513
          %2922 = vmatprep.subr.mxu0 0.0
          %2923 = vmatpush1.msra.mxu0 %v2512
          %2924 = vmatprep.subr.mxu0 0.0
          %2925 = vmatpush2.msra.mxu0 0.0
          %2926 = vmatprep.subr.mxu0 0.0
          %2927 = vmatpush2.msra.mxu0 0.0
          %2928 = vmatprep.subr.mxu0 0.0
          %2929 = vmatpush2.msra.mxu0 0.0
          %2930 = vmatprep.subr.mxu0 0.0
          %2931 = vmatpush2.msra.mxu0 0.0
          %2932 = vmatprep.subr.mxu0 0.0
          %2933 = vmatpush2.msra.mxu0 0.0
          %2934 = vmatprep.subr.mxu0 0.0
          %2935 = vmatpush2.msra.mxu0 0.0
          %2936 = vmatprep.subr.mxu0 0.0
          %2937 = vmatpush2.msra.mxu0 0.0
          %2938 = vmatprep.subr.mxu0 0.0
          %2939 = vmatpush2.msra.mxu0 0.0
          %2940 = vmatprep.subr.mxu0 0.0
          %2941 = vmatpush2.msra.mxu0 0.0
          %2942 = vmatprep.subr.mxu0 0.0
          %2943 = vmatpush2.msra.mxu0 0.0
          %2944 = vmatprep.subr.mxu0 0.0
          %2945 = vmatpush2.msra.mxu0 0.0
          %2946 = vmatprep.subr.mxu0 0.0
          %2947 = vmatpush2.msra.mxu0 0.0
          %2948 = vmatprep.subr.mxu0 0.0
          %2949 = vmatpush2.msra.mxu0 0.0
          %2950 = vmatprep.subr.mxu0 0.0
          %2951 = vmatpush2.msra.mxu0 0.0
          %2952 = vmatprep.subr.mxu0 0.0
          %2953 = vmatpush2.msra.mxu0 0.0
          %2954 = vmatprep.subr.mxu0 0.0
          %2955 = vmatpush2.msra.mxu0 0.0
          %2956 = vmatprep.mubr.f32.mxu0 0.0
          %2957 = vmatmul.mubr.f32.gmra.mxu0 %v2802
          %v2958 = vpop.f32.mrf.mxu0
          %v2959 = vadd.f32 %v2889, %v2958
          %v2960 = vpop.f32.mrf.mxu0
          %2961 = vdwg.mxu0
          %v2963 = vlaneseq
          %v2964 = vshrl.u32 %v2963, 7
          %v2965 = vsub.s32 0, %v2964
          %v2966 = vrot.slane %v2804, %v2965
          %v2968 = vadd.f32 %v2959, %v2966
          %v2969 = vmax.f32 %v2968, 0.0
          %v2971 = vlaneseq
          %v2972 = vshrl.u32 %v2971, 7
          %v2973 = vsub.s32 0, %v2972
          %v2974 = vrot.slane %v2821, %v2973
          %2976 = vmatprep.subr.mxu0 0.0
          %2977 = vmatpush1.msra.mxu0 %v2820
          %2978 = vmatprep.subr.mxu0 0.0
          %2979 = vmatpush1.msra.mxu0 %v2819
          %2980 = vmatprep.subr.mxu0 0.0
          %2981 = vmatpush1.msra.mxu0 %v2818
          %2982 = vmatprep.subr.mxu0 0.0
          %2983 = vmatpush1.msra.mxu0 %v2817
          %2984 = vmatprep.subr.mxu0 0.0
          %2985 = vmatpush1.msra.mxu0 %v2816
          %2986 = vmatprep.subr.mxu0 0.0
          %2987 = vmatpush1.msra.mxu0 %v2815
          %2988 = vmatprep.subr.mxu0 0.0
          %2989 = vmatpush1.msra.mxu0 %v2814
          %2990 = vmatprep.subr.mxu0 0.0
          %2991 = vmatpush1.msra.mxu0 %v2813
          %2992 = vmatprep.subr.mxu0 0.0
          %2993 = vmatpush1.msra.mxu0 %v2812
          %2994 = vmatprep.subr.mxu0 0.0
          %2995 = vmatpush1.msra.mxu0 %v2811
          %2996 = vmatprep.subr.mxu0 0.0
          %2997 = vmatpush1.msra.mxu0 %v2810
          %2998 = vmatprep.subr.mxu0 0.0
          %2999 = vmatpush1.msra.mxu0 %v2809
          %3000 = vmatprep.subr.mxu0 0.0
          %3001 = vmatpush1.msra.mxu0 %v2808
          %3002 = vmatprep.subr.mxu0 0.0
          %3003 = vmatpush1.msra.mxu0 %v2807
          %3004 = vmatprep.subr.mxu0 0.0
          %3005 = vmatpush1.msra.mxu0 %v2806
          %3006 = vmatprep.subr.mxu0 0.0
          %3007 = vmatpush1.msra.mxu0 %v2805
          %3008 = vmatprep.subr.mxu0 0.0
          %3009 = vmatpush2.msra.mxu0 0.0
          %3010 = vmatprep.subr.mxu0 0.0
          %3011 = vmatpush2.msra.mxu0 0.0
          %3012 = vmatprep.subr.mxu0 0.0
          %3013 = vmatpush2.msra.mxu0 0.0
          %3014 = vmatprep.subr.mxu0 0.0
          %3015 = vmatpush2.msra.mxu0 0.0
          %3016 = vmatprep.subr.mxu0 0.0
          %3017 = vmatpush2.msra.mxu0 0.0
          %3018 = vmatprep.subr.mxu0 0.0
          %3019 = vmatpush2.msra.mxu0 0.0
          %3020 = vmatprep.subr.mxu0 0.0
          %3021 = vmatpush2.msra.mxu0 0.0
          %3022 = vmatprep.subr.mxu0 0.0
          %3023 = vmatpush2.msra.mxu0 0.0
          %3024 = vmatprep.subr.mxu0 0.0
          %3025 = vmatpush2.msra.mxu0 0.0
          %3026 = vmatprep.subr.mxu0 0.0
          %3027 = vmatpush2.msra.mxu0 0.0
          %3028 = vmatprep.subr.mxu0 0.0
          %3029 = vmatpush2.msra.mxu0 0.0
          %3030 = vmatprep.subr.mxu0 0.0
          %3031 = vmatpush2.msra.mxu0 0.0
          %3032 = vmatprep.subr.mxu0 0.0
          %3033 = vmatpush2.msra.mxu0 0.0
          %3034 = vmatprep.subr.mxu0 0.0
          %3035 = vmatpush2.msra.mxu0 0.0
          %3036 = vmatprep.subr.mxu0 0.0
          %3037 = vmatpush2.msra.mxu0 0.0
          %3038 = vmatprep.subr.mxu0 0.0
          %3039 = vmatpush2.msra.mxu0 0.0
          %3040 = vmatprep.mubr.f32.mxu0 0.0
          %3041 = vmatmul.mubr.f32.gmra.mxu0 %v2969
          %v3042 = vpop.f32.mrf.mxu0
          %v3043 = vadd.f32 %v2974, %v3042
          %v3044 = vpop.f32.mrf.mxu0
          %3045 = vdwg.mxu0
          %3047 = vrot.lane.b32.xlu0 %v3043, 127
          %v3048 = vpop.permute.xlu0 %3047
          %v3050 = vsub.f32 %v3043, %v3048
          %v3051 = vmax.f32 %v3050, 0.0
          %v3052 = vand.u32 2147483647, %v3050
          %v3053 = vsub.f32 0.0, %v3052
          %v3054 = vmul.f32 %v3053, 1.442695
          %v3055 = vpow.pop %v3054
          %v3056 = vadd.f32 %v3055, 1.0
          %v3057 = vlog2.pop %v3056
          %v3058 = vmul.f32 %v3057, 0.6931472
          %v3059 = vadd.f32 %v3051, %v3058
          %v3060 = vld [vmem:[#allocation4] sm:$0xff]
          %v3061 = vld [vmem:[%s816] sm:$0xff]
          %3062 = vmatprep.subr.mxu0 0.0
          %3063 = vmatpush1.msra.mxu0 %v2543
          %3064 = vmatprep.subr.mxu0 0.0
          %3065 = vmatpush1.msra.mxu0 %v2542
          %3066 = vmatprep.subr.mxu0 0.0
          %3067 = vmatpush1.msra.mxu0 %v2541
          %3068 = vmatprep.subr.mxu0 0.0
          %3069 = vmatpush1.msra.mxu0 %v2540
          %3070 = vmatprep.subr.mxu0 0.0
          %3071 = vmatpush1.msra.mxu0 %v2539
          %3072 = vmatprep.subr.mxu0 0.0
          %3073 = vmatpush1.msra.mxu0 %v2538
          %3074 = vmatprep.subr.mxu0 0.0
          %3075 = vmatpush1.msra.mxu0 %v2537
          %3076 = vmatprep.subr.mxu0 0.0
          %3077 = vmatpush1.msra.mxu0 %v2536
          %3078 = vmatprep.subr.mxu0 0.0
          %3079 = vmatpush1.msra.mxu0 %v2535
          %3080 = vmatprep.subr.mxu0 0.0
          %3081 = vmatpush1.msra.mxu0 %v2534
          %3082 = vmatprep.subr.mxu0 0.0
          %3083 = vmatpush1.msra.mxu0 %v2533
          %3084 = vmatprep.subr.mxu0 0.0
          %3085 = vmatpush1.msra.mxu0 %v2532
          %3086 = vmatprep.subr.mxu0 0.0
          %3087 = vmatpush1.msra.mxu0 %v2531
          %3088 = vmatprep.subr.mxu0 0.0
          %3089 = vmatpush1.msra.mxu0 %v2530
          %3090 = vmatprep.subr.mxu0 0.0
          %3091 = vmatpush1.msra.mxu0 %v2529
          %3092 = vmatprep.subr.mxu0 0.0
          %3093 = vmatpush1.msra.mxu0 %v2528
          %3094 = vmatprep.subr.mxu0 0.0
          %3095 = vmatpush2.msra.mxu0 0.0
          %3096 = vmatprep.subr.mxu0 0.0
          %3097 = vmatpush2.msra.mxu0 0.0
          %3098 = vmatprep.subr.mxu0 0.0
          %3099 = vmatpush2.msra.mxu0 0.0
          %3100 = vmatprep.subr.mxu0 0.0
          %3101 = vmatpush2.msra.mxu0 0.0
          %3102 = vmatprep.subr.mxu0 0.0
          %3103 = vmatpush2.msra.mxu0 0.0
          %3104 = vmatprep.subr.mxu0 0.0
          %3105 = vmatpush2.msra.mxu0 0.0
          %3106 = vmatprep.subr.mxu0 0.0
          %3107 = vmatpush2.msra.mxu0 0.0
          %3108 = vmatprep.subr.mxu0 0.0
          %3109 = vmatpush2.msra.mxu0 0.0
          %3110 = vmatprep.subr.mxu0 0.0
          %3111 = vmatpush2.msra.mxu0 0.0
          %3112 = vmatprep.subr.mxu0 0.0
          %3113 = vmatpush2.msra.mxu0 0.0
          %3114 = vmatprep.subr.mxu0 0.0
          %3115 = vmatpush2.msra.mxu0 0.0
          %3116 = vmatprep.subr.mxu0 0.0
          %3117 = vmatpush2.msra.mxu0 0.0
          %3118 = vmatprep.subr.mxu0 0.0
          %3119 = vmatpush2.msra.mxu0 0.0
          %3120 = vmatprep.subr.mxu0 0.0
          %3121 = vmatpush2.msra.mxu0 0.0
          %3122 = vmatprep.subr.mxu0 0.0
          %3123 = vmatpush2.msra.mxu0 0.0
          %3124 = vmatprep.subr.mxu0 0.0
          %3125 = vmatpush2.msra.mxu0 0.0
          %3126 = vmatprep.mubr.f32.mxu0 0.0
          %3127 = vmatmul.mubr.f32.gmra.mxu0 %v3061
          %v3128 = vpop.f32.mrf.mxu0
          %v3129 = vadd.f32 0.0, %v3128
          %v3130 = vpop.f32.mrf.mxu0
          %3131 = vdwg.mxu0
          %3132 = vmatprep.subr.mxu0 0.0
          %3133 = vmatpush1.msra.mxu0 %v2527
          %3134 = vmatprep.subr.mxu0 0.0
          %3135 = vmatpush1.msra.mxu0 %v2526
          %3136 = vmatprep.subr.mxu0 0.0
          %3137 = vmatpush1.msra.mxu0 %v2525
          %3138 = vmatprep.subr.mxu0 0.0
          %3139 = vmatpush1.msra.mxu0 %v2524
          %3140 = vmatprep.subr.mxu0 0.0
          %3141 = vmatpush1.msra.mxu0 %v2523
          %3142 = vmatprep.subr.mxu0 0.0
          %3143 = vmatpush1.msra.mxu0 %v2522
          %3144 = vmatprep.subr.mxu0 0.0
          %3145 = vmatpush1.msra.mxu0 %v2521
          %3146 = vmatprep.subr.mxu0 0.0
          %3147 = vmatpush1.msra.mxu0 %v2520
          %3148 = vmatprep.subr.mxu0 0.0
          %3149 = vmatpush1.msra.mxu0 %v2519
          %3150 = vmatprep.subr.mxu0 0.0
          %3151 = vmatpush1.msra.mxu0 %v2518
          %3152 = vmatprep.subr.mxu0 0.0
          %3153 = vmatpush1.msra.mxu0 %v2517
          %3154 = vmatprep.subr.mxu0 0.0
          %3155 = vmatpush1.msra.mxu0 %v2516
          %3156 = vmatprep.subr.mxu0 0.0
          %3157 = vmatpush1.msra.mxu0 %v2515
          %3158 = vmatprep.subr.mxu0 0.0
          %3159 = vmatpush1.msra.mxu0 %v2514
          %3160 = vmatprep.subr.mxu0 0.0
          %3161 = vmatpush1.msra.mxu0 %v2513
          %3162 = vmatprep.subr.mxu0 0.0
          %3163 = vmatpush1.msra.mxu0 %v2512
          %3164 = vmatprep.subr.mxu0 0.0
          %3165 = vmatpush2.msra.mxu0 0.0
          %3166 = vmatprep.subr.mxu0 0.0
          %3167 = vmatpush2.msra.mxu0 0.0
          %3168 = vmatprep.subr.mxu0 0.0
          %3169 = vmatpush2.msra.mxu0 0.0
          %3170 = vmatprep.subr.mxu0 0.0
          %3171 = vmatpush2.msra.mxu0 0.0
          %3172 = vmatprep.subr.mxu0 0.0
          %3173 = vmatpush2.msra.mxu0 0.0
          %3174 = vmatprep.subr.mxu0 0.0
          %3175 = vmatpush2.msra.mxu0 0.0
          %3176 = vmatprep.subr.mxu0 0.0
          %3177 = vmatpush2.msra.mxu0 0.0
          %3178 = vmatprep.subr.mxu0 0.0
          %3179 = vmatpush2.msra.mxu0 0.0
          %3180 = vmatprep.subr.mxu0 0.0
          %3181 = vmatpush2.msra.mxu0 0.0
          %3182 = vmatprep.subr.mxu0 0.0
          %3183 = vmatpush2.msra.mxu0 0.0
          %3184 = vmatprep.subr.mxu0 0.0
          %3185 = vmatpush2.msra.mxu0 0.0
          %3186 = vmatprep.subr.mxu0 0.0
          %3187 = vmatpush2.msra.mxu0 0.0
          %3188 = vmatprep.subr.mxu0 0.0
          %3189 = vmatpush2.msra.mxu0 0.0
          %3190 = vmatprep.subr.mxu0 0.0
          %3191 = vmatpush2.msra.mxu0 0.0
          %3192 = vmatprep.subr.mxu0 0.0
          %3193 = vmatpush2.msra.mxu0 0.0
          %3194 = vmatprep.subr.mxu0 0.0
          %3195 = vmatpush2.msra.mxu0 0.0
          %3196 = vmatprep.mubr.f32.mxu0 0.0
          %3197 = vmatmul.mubr.f32.gmra.mxu0 %v3060
          %v3198 = vpop.f32.mrf.mxu0
          %v3199 = vadd.f32 %v3129, %v3198
          %v3200 = vpop.f32.mrf.mxu0
          %3201 = vdwg.mxu0
          %v3202 = vadd.f32 %v3199, %v2966
          %v3203 = vmax.f32 %v3202, 0.0
          %3204 = vmatprep.subr.mxu0 0.0
          %3205 = vmatpush1.msra.mxu0 %v2820
          %3206 = vmatprep.subr.mxu0 0.0
          %3207 = vmatpush1.msra.mxu0 %v2819
          %3208 = vmatprep.subr.mxu0 0.0
          %3209 = vmatpush1.msra.mxu0 %v2818
          %3210 = vmatprep.subr.mxu0 0.0
          %3211 = vmatpush1.msra.mxu0 %v2817
          %3212 = vmatprep.subr.mxu0 0.0
          %3213 = vmatpush1.msra.mxu0 %v2816
          %3214 = vmatprep.subr.mxu0 0.0
          %3215 = vmatpush1.msra.mxu0 %v2815
          %3216 = vmatprep.subr.mxu0 0.0
          %3217 = vmatpush1.msra.mxu0 %v2814
          %3218 = vmatprep.subr.mxu0 0.0
          %3219 = vmatpush1.msra.mxu0 %v2813
          %3220 = vmatprep.subr.mxu0 0.0
          %3221 = vmatpush1.msra.mxu0 %v2812
          %3222 = vmatprep.subr.mxu0 0.0
          %3223 = vmatpush1.msra.mxu0 %v2811
          %3224 = vmatprep.subr.mxu0 0.0
          %3225 = vmatpush1.msra.mxu0 %v2810
          %3226 = vmatprep.subr.mxu0 0.0
          %3227 = vmatpush1.msra.mxu0 %v2809
          %3228 = vmatprep.subr.mxu0 0.0
          %3229 = vmatpush1.msra.mxu0 %v2808
          %3230 = vmatprep.subr.mxu0 0.0
          %3231 = vmatpush1.msra.mxu0 %v2807
          %3232 = vmatprep.subr.mxu0 0.0
          %3233 = vmatpush1.msra.mxu0 %v2806
          %3234 = vmatprep.subr.mxu0 0.0
          %3235 = vmatpush1.msra.mxu0 %v2805
          %3236 = vmatprep.subr.mxu0 0.0
          %3237 = vmatpush2.msra.mxu0 0.0
          %3238 = vmatprep.subr.mxu0 0.0
          %3239 = vmatpush2.msra.mxu0 0.0
          %3240 = vmatprep.subr.mxu0 0.0
          %3241 = vmatpush2.msra.mxu0 0.0
          %3242 = vmatprep.subr.mxu0 0.0
          %3243 = vmatpush2.msra.mxu0 0.0
          %3244 = vmatprep.subr.mxu0 0.0
          %3245 = vmatpush2.msra.mxu0 0.0
          %3246 = vmatprep.subr.mxu0 0.0
          %3247 = vmatpush2.msra.mxu0 0.0
          %3248 = vmatprep.subr.mxu0 0.0
          %3249 = vmatpush2.msra.mxu0 0.0
          %3250 = vmatprep.subr.mxu0 0.0
          %3251 = vmatpush2.msra.mxu0 0.0
          %3252 = vmatprep.subr.mxu0 0.0
          %3253 = vmatpush2.msra.mxu0 0.0
          %3254 = vmatprep.subr.mxu0 0.0
          %3255 = vmatpush2.msra.mxu0 0.0
          %3256 = vmatprep.subr.mxu0 0.0
          %3257 = vmatpush2.msra.mxu0 0.0
          %3258 = vmatprep.subr.mxu0 0.0
          %3259 = vmatpush2.msra.mxu0 0.0
          %3260 = vmatprep.subr.mxu0 0.0
          %3261 = vmatpush2.msra.mxu0 0.0
          %3262 = vmatprep.subr.mxu0 0.0
          %3263 = vmatpush2.msra.mxu0 0.0
          %3264 = vmatprep.subr.mxu0 0.0
          %3265 = vmatpush2.msra.mxu0 0.0
          %3266 = vmatprep.subr.mxu0 0.0
          %3267 = vmatpush2.msra.mxu0 0.0
          %3268 = vmatprep.mubr.f32.mxu0 0.0
          %3269 = vmatmul.mubr.f32.gmra.mxu0 %v3203
          %v3270 = vpop.f32.mrf.mxu0
          %v3271 = vadd.f32 %v2974, %v3270
          %v3272 = vpop.f32.mrf.mxu0
          %3273 = vdwg.mxu0
          %3275 = vrot.lane.b32.xlu0 %v3271, 127
          %v3276 = vpop.permute.xlu0 %3275
          %v3278 = vsub.f32 %v3271, %v3276
          %v3279 = vmax.f32 %v3278, 0.0
          %v3280 = vand.u32 2147483647, %v3278
          %v3281 = vsub.f32 0.0, %v3280
          %v3282 = vmul.f32 %v3281, 1.442695
          %v3283 = vpow.pop %v3282
          %v3284 = vadd.f32 %v3283, 1.0
          %v3285 = vlog2.pop %v3284
          %v3286 = vmul.f32 %v3285, 0.6931472
          %v3287 = vadd.f32 %v3279, %v3286
          %3289 = vset.pattern.permute.xlu0 0
          %3290 = vperm.xlu0 %3289, %v2801
          %v3291 = vpop.permute.xlu0 %3290
          %3293 = vst [vmem:[%s765] sm:$0xff] %v3291
          %3295 = vset.pattern.permute.xlu0 0
          %3296 = vperm.xlu0 %3295, %v3059
          %v3297 = vpop.permute.xlu0 %3296
          %3299 = vst [vmem:[%s772] sm:$0xff] %v3297
          %3301 = vset.pattern.permute.xlu0 0
          %3302 = vperm.xlu0 %3301, %v3287
          %v3303 = vpop.permute.xlu0 %3302
          %3305 = vst [vmem:[%s779] sm:$0xff] %v3303
        $region108: #{tpu_custom_call.1} parent=87 // pred_fallthru
          _
        %s3306 = sand.u32 %s455, 1
        %s3307 = scalar_lea.sflag [#allocation7], %s3306
        %s3308 = sand.u32 %s455, 1
        %s3309 = smul.addr %s3308, 8
        %s3310 = scalar_lea.vmem [#allocation11], %s3309
        %s3311 = sand.u32 %s41, 1
        %s3312 = scalar_lea.sflag [#allocation13], %s3311
        %s3313 = sand.u32 %s481, 1
        %s3314 = smul.addr %s3313, 8
        %s3315 = scalar_lea.vmem [#allocation12], %s3314
        %s3316 = sand.u32 %s41, 1
        %s3317 = scalar_lea.sflag [#allocation13], %s3316
        %s3318 = sand.u32 %s507, 1
        %s3319 = smul.addr %s3318, 8
        %s3320 = scalar_lea.vmem [#allocation14], %s3319
        // Predicated region
        $region109: #{tpu_custom_call.1} parent=87 // pred_check
          %p3321 = pneg %p465
        $region110: #{tpu_custom_call.1} parent=87 // pred_check_branch
          %3323 = sbr.rel (%p3321) target = $region112
        $region111: #{tpu_custom_call.1} parent=87 // pred_region
          %s3325 = ssub.s32 128, 128
          %3326 = vsyncadd %s3307, %s3325
          %s3327 = smul.addr %s45, 128
          %s3328 = scalar_lea.hbm %s17, %s3327
          %s3330 = sshll.u32 %s3310, 4
          %s3331 = int_to_ptr.vmem [resolvable:$true] %s3330
          %3333 = dma.vmem_to_hbm [thread:$0]  %s3331, 128, %s3328, %s3307
        $region112: #{tpu_custom_call.1} parent=87 // pred_fallthru
          _
        // Predicated region
        $region113: #{tpu_custom_call.1} parent=87 // pred_check
          %p3334 = pneg %p491
        $region114: #{tpu_custom_call.1} parent=87 // pred_check_branch
          %3336 = sbr.rel (%p3334) target = $region116
        $region115: #{tpu_custom_call.1} parent=87 // pred_region
          %s3338 = ssub.s32 128, 128
          %3339 = vsyncadd %s3312, %s3338
          %s3340 = smul.addr %s45, 128
          %s3341 = scalar_lea.hbm %s18, %s3340
          %s3343 = sshll.u32 %s3315, 4
          %s3344 = int_to_ptr.vmem [resolvable:$true] %s3343
          %3346 = dma.vmem_to_hbm [thread:$0]  %s3344, 128, %s3341, %s3312
        $region116: #{tpu_custom_call.1} parent=87 // pred_fallthru
          _
        // Predicated region
        $region117: #{tpu_custom_call.1} parent=87 // pred_check
          %p3347 = pneg %p517
        $region118: #{tpu_custom_call.1} parent=87 // pred_check_branch
          %3349 = sbr.rel (%p3347) target = $region120
        $region119: #{tpu_custom_call.1} parent=87 // pred_region
          %s3351 = ssub.s32 128, 128
          %3352 = vsyncadd %s3317, %s3351
          %s3353 = smul.addr %s45, 128
          %s3354 = scalar_lea.hbm %s19, %s3353
          %s3356 = sshll.u32 %s3320, 4
          %s3357 = int_to_ptr.vmem [resolvable:$true] %s3356
          %3359 = dma.vmem_to_hbm [thread:$0]  %s3357, 128, %s3354, %s3317
        $region120: #{tpu_custom_call.1} parent=87 // pred_fallthru
          _
      $region88: #{tpu_custom_call.1} parent=5 // pred_fallthru
        _
      %p3360 = scmp.le.s32.totalorder 2, %s36
      // Predicated region
      $region121: #{tpu_custom_call.1} parent=5 // pred_check
        %p3361 = pneg %p3360
      $region122: #{tpu_custom_call.1} parent=5 // pred_check_branch
        %3363 = sbr.rel (%p3361) target = $region124
      $region123: #{tpu_custom_call.1} parent=5 // pred_region
        %s3364 = ssub.s32 %s36, 2
        // Predicated region
        $region125: #{tpu_custom_call.1} parent=123 // pred_check
          %p3365 = pneg %p471
        $region126: #{tpu_custom_call.1} parent=123 // pred_check_branch
          %3367 = sbr.rel (%p3365) target = $region128
        $region127: #{tpu_custom_call.1} parent=123 // pred_region
          %s3368 = sand.u32 %s456, 1
          %s3369 = scalar_lea.sflag [#allocation7], %s3368
          %s3370 = sand.u32 %s456, 1
          %s3371 = smul.addr %s3370, 8
          %s3372 = scalar_lea.vmem [#allocation11], %s3371
          %3373 = dma.done %s3369, 128
        $region128: #{tpu_custom_call.1} parent=123 // pred_fallthru
          _
        // Predicated region
        $region129: #{tpu_custom_call.1} parent=123 // pred_check
          %p3374 = pneg %p497
        $region130: #{tpu_custom_call.1} parent=123 // pred_check_branch
          %3376 = sbr.rel (%p3374) target = $region132
        $region131: #{tpu_custom_call.1} parent=123 // pred_region
          %s3377 = sand.u32 %s42, 1
          %s3378 = scalar_lea.sflag [#allocation13], %s3377
          %s3379 = sand.u32 %s482, 1
          %s3380 = smul.addr %s3379, 8
          %s3381 = scalar_lea.vmem [#allocation12], %s3380
          %3382 = dma.done %s3378, 128
        $region132: #{tpu_custom_call.1} parent=123 // pred_fallthru
          _
        // Predicated region
        $region133: #{tpu_custom_call.1} parent=123 // pred_check
          %p3383 = pneg %p523
        $region134: #{tpu_custom_call.1} parent=123 // pred_check_branch
          %3385 = sbr.rel (%p3383) target = $region136
        $region135: #{tpu_custom_call.1} parent=123 // pred_region
          %s3386 = sand.u32 %s42, 1
          %s3387 = scalar_lea.sflag [#allocation13], %s3386
          %s3388 = sand.u32 %s508, 1
          %s3389 = smul.addr %s3388, 8
          %s3390 = scalar_lea.vmem [#allocation14], %s3389
          %3391 = dma.done %s3387, 128
        $region136: #{tpu_custom_call.1} parent=123 // pred_fallthru
          _
      $region124: #{tpu_custom_call.1} parent=5 // pred_fallthru
        _
    $region6: #{tpu_custom_call.1} parent=1 // loop_footer
      %s40 = sadd.s32 1, %s36
    $region7: #{tpu_custom_call.1} parent=1 // loop_footer_branch
      %35 = sbr.rel target = $region3
    $region8: #{tpu_custom_call.1} parent=1 // loop_exit
      _
    %3392 = vsyncpa [#allocation6], 1
    %s3393 = scalar_lea.sflag [#allocation6], 1
    %3394 = vsyncpa %s3393, 1
    %3395 = vsyncpa [#allocation9], 1
    %3396 = vsyncpa [#allocation7], 1
    %s3397 = scalar_lea.sflag [#allocation7], 1
    %3398 = vsyncpa %s3397, 1
    %3399 = vsyncpa [#allocation13], 1
    %s3400 = scalar_lea.sflag [#allocation13], 1
    %3401 = vsyncpa %s3400, 1

// kernel: tpu_custom_call.1
$region0: #{tpu_custom_call.1}
  #allocation0 [shape = 'u32[]', space=smem, size = 0x4, offset = 0x4, fixed_abs, tag = 'smem constant byte address 0x4 - core index']
  #allocation1 [shape = 'u32[144,128]{1,0:T(1,128)}', space=vmem, size = 0x12000, scoped, tag = 'internal scratch']
  #allocation2 [shape = 'f32[8,128]{1,0:T(8,128)}', space=vmem, size = 0x1000, scoped, tag = 'scratch operand']
  #allocation3 [shape = 'f32[8,128]{1,0:T(8,128)}', space=vmem, size = 0x1000, scoped, tag = 'scratch operand']
  #allocation4 [shape = 'f32[8,128]{1,0:T(8,128)}', space=vmem, size = 0x1000, scoped, tag = 'scratch operand']
  %s0 = inlined_call_operand.hbm [shape: f32[12,40,128], index: 0, kind: input, shape index: {}]
  %s1 = inlined_call_operand.vmem [shape: s32[16,2,1], index: 1, kind: input, shape index: {}]
  %s2 = inlined_call_operand.vmem [shape: s32[16,2,1], index: 2, kind: input, shape index: {}]
  %s3 = inlined_call_operand.vmem [shape: s32[16,2,1], index: 3, kind: input, shape index: {}]
  %s4 = inlined_call_operand.vmem [shape: f32[16,128], index: 4, kind: input, shape index: {}]
  %s5 = inlined_call_operand.vmem [shape: f32[16,128], index: 5, kind: input, shape index: {}]
  %s6 = inlined_call_operand.vmem [shape: f32[16,128], index: 6, kind: input, shape index: {}]
  %s7 = inlined_call_operand.vmem [shape: f32[128,128], index: 7, kind: input, shape index: {}]
  %s8 = inlined_call_operand.vmem [shape: f32[128,128], index: 8, kind: input, shape index: {}]
  %s9 = inlined_call_operand.vmem [shape: f32[1,128], index: 9, kind: input, shape index: {}]
  %s10 = inlined_call_operand.vmem [shape: f32[128,2], index: 10, kind: input, shape index: {}]
  %s11 = inlined_call_operand.vmem [shape: f32[1,2], index: 11, kind: input, shape index: {}]
  %s12 = inlined_call_operand.hbm [shape: f32[128,128], index: 12, kind: input, shape index: {}]
  %s13 = inlined_call_operand.hbm [shape: f32[128,128], index: 13, kind: input, shape index: {}]
  %s14 = inlined_call_operand.vmem [shape: f32[1,128], index: 14, kind: input, shape index: {}]
  %s15 = inlined_call_operand.vmem [shape: f32[128,2], index: 15, kind: input, shape index: {}]
  %s16 = inlined_call_operand.vmem [shape: f32[1,2], index: 16, kind: input, shape index: {}]
  %s17 = inlined_call_operand.hbm [shape: f32[16,128], index: 17, kind: output, shape index: {0}]
  %s18 = inlined_call_operand.hbm [shape: f32[16,128], index: 18, kind: output, shape index: {1}]
  %s19 = inlined_call_operand.hbm [shape: f32[16,128], index: 19, kind: output, shape index: {2}]
  %20 = xla_tuple %s17, %s18, %s19
  %s21 = sld [smem:[#allocation0]]
  $region137: #{tpu_custom_call.1} parent=0
    _
  %s23 = ssub.s32 1, %s21
  %s24 = scalar_select 0, %s23, %s21
  $region1: #{tpu_custom_call.1} parent=0
    #allocation5 [shape = 'u8[327680]{0}', space=vmem, size = 0x50000, scoped, tag = 'input window, operand 0']
    #allocation6 [shape = 's32[2]{0}', space=sflag, size = 0x8, scoped, tag = 'scoped memory for tpu_custom_call.1']
    #allocation7 [shape = 's32[2]{0}', space=sflag, size = 0x8, scoped, tag = 'scoped memory for tpu_custom_call.1']
    #allocation8 [shape = 'u8[65536]{0}', space=vmem, size = 0x10000, scoped, tag = 'input window, operand 12, single buffered']
    #allocation9 [shape = 's32[1]{0}', space=sflag, size = 0x4, scoped, tag = 'scoped memory for tpu_custom_call.1']
    #allocation10 [shape = 'u8[65536]{0}', space=vmem, size = 0x10000, scoped, tag = 'input window, operand 13, single buffered']
    #allocation11 [shape = 'u8[8192]{0}', space=vmem, size = 0x2000, scoped, tag = 'output window, operand 0']
    #allocation12 [shape = 'u8[8192]{0}', space=vmem, size = 0x2000, scoped, tag = 'output window, operand 1']
    #allocation13 [shape = 's32[2]{0}', space=sflag, size = 0x8, scoped, tag = 'scoped memory for tpu_custom_call.1']
    #allocation14 [shape = 'u8[8192]{0}', space=vmem, size = 0x2000, scoped, tag = 'output window, operand 2']
    %25 = vsyncpa [#allocation6], 0
    %s26 = scalar_lea.sflag [#allocation6], 1
    %27 = vsyncpa %s26, 0
    %28 = vsyncpa [#allocation9], 0
    %29 = vsyncpa [#allocation7], 0
    %s30 = scalar_lea.sflag [#allocation7], 1
    %31 = vsyncpa %s30, 0
    %32 = vsyncpa [#allocation13], 0
    %s33 = scalar_lea.sflag [#allocation13], 1
    %34 = vsyncpa %s33, 0
    loop: start=0, step=1, limit=4
    $region2: #{tpu_custom_call.1} parent=1 // loop_pre_header
      _
    $region3: #{tpu_custom_call.1} parent=1 // loop_header
      %s36 = sphi 0, %s40
      %p37 = scmp.ge.s32.totalorder %s36, 4
      %s43 = sphi 0, %s55
      %s44 = sphi 0, %s51
      %s45 = sphi 0, %s43
      %s46 = sphi 0, %s44
      %s47 = sphi 0, %s45
      %s48 = sphi 0, %s46
      %s60 = sphi 0, %s62
      %s63 = sphi 0, %s60
      %s64 = sphi 0, %s63
      %s80 = sphi 0, %s64
      %s86 = sphi 0, %s88
      %s89 = sphi 0, %s86
      %s90 = sphi 0, %s89
      %s106 = sphi 0, %s90
      %s112 = sphi 0, %s114
      %s115 = sphi 0, %s112
      %s116 = sphi 0, %s115
      %s132 = sphi 0, %s116
      %s138 = sphi 0, %s140
      %s141 = sphi 0, %s138
      %s142 = sphi 0, %s141
      %s158 = sphi 0, %s142
      %s164 = sphi 0, %s166
      %s167 = sphi 0, %s164
      %s168 = sphi 0, %s167
      %s184 = sphi 0, %s168
      %s190 = sphi 0, %s192
      %s193 = sphi 0, %s190
      %s194 = sphi 0, %s193
      %s210 = sphi 0, %s194
      %s216 = sphi 0, %s218
      %s219 = sphi 0, %s216
      %s220 = sphi 0, %s219
      %s236 = sphi 0, %s220
      %s240 = sphi 0, %s240
      %s242 = sphi 0, %s240
      %s243 = sphi 0, %s242
      %s257 = sphi 0, %s243
      %s261 = sphi 0, %s261
      %s263 = sphi 0, %s261
      %s264 = sphi 0, %s263
      %s278 = sphi 0, %s264
      %s282 = sphi 0, %s282
      %s284 = sphi 0, %s282
      %s285 = sphi 0, %s284
      %s299 = sphi 0, %s285
      %s303 = sphi 0, %s303
      %s305 = sphi 0, %s303
      %s306 = sphi 0, %s305
      %s320 = sphi 0, %s306
      %s324 = sphi 0, %s324
      %s326 = sphi 0, %s324
      %s327 = sphi 0, %s326
      %s341 = sphi 0, %s327
      %s345 = sphi 0, %s345
      %s347 = sphi 0, %s345
      %s348 = sphi 0, %s347
      %s362 = sphi 0, %s348
      %s366 = sphi 0, %s366
      %s368 = sphi 0, %s366
      %s369 = sphi 0, %s368
      %s383 = sphi 0, %s369
      %s387 = sphi 0, %s387
      %s389 = sphi 0, %s387
      %s390 = sphi 0, %s389
      %s404 = sphi 0, %s390
      %s408 = sphi 0, %s408
      %s410 = sphi 0, %s408
      %s411 = sphi 0, %s410
      %s425 = sphi 0, %s411
      %s429 = sphi 0, %s429
      %s431 = sphi 0, %s429
      %s432 = sphi 0, %s431
      %s446 = sphi 0, %s432
      %s452 = sphi 0, %s454
      %s455 = sphi 0, %s452
      %s456 = sphi 0, %s455
      %s472 = sphi 0, %s456
      %s478 = sphi 0, %s480
      %s481 = sphi 0, %s478
      %s482 = sphi 0, %s481
      %s498 = sphi 0, %s482
      %s504 = sphi 0, %s506
      %s507 = sphi 0, %s504
      %s508 = sphi 0, %s507
      %s524 = sphi 0, %s508
    $region4: #{tpu_custom_call.1} parent=1 // loop_header_branch
      %39 = sbr.rel (%p37) target = $region8
    $region5: #{tpu_custom_call.1} parent=1 // loop_body
      %s41 = ssub.s32 %s36, 1
      %s42 = ssub.s32 %s36, 2
      %s49 = sadd.s32 1, %s44
      %p50 = scmp.ge.s32.totalorder %s49, 1
      %s51 = scalar_select %p50, 0, %s49
      %s52 = sadd.s32 1, %s43
      %s53 = scalar_select %p50, %s52, %s43
      %p54 = scmp.ge.s32.totalorder %s53, 2
      %s55 = scalar_select %p54, 0, %s53
      %s56 = ssub.s32 %s43, %s55
      %s57 = ssub.s32 %s44, %s51
      %s58 = sor.u32 %s56, %s57
      %p59 = scmp.eq.s32.totalorder %s58, 0
      %s61 = sadd.s32 %s60, 1
      %s62 = scalar_select %p59, %s60, %s61
      %p65 = pneg %p59
      %p66 = scmp.eq.s32.totalorder %s36, 1
      %p67 = por %p65, %p66
      %p68 = scmp.ne.s32.totalorder %s60, %s63
      %p69 = scmp.eq.s32.totalorder %s36, 0
      %p70 = por %p68, %p69
      %p71 = scmp.ne.s32.totalorder %s60, %s63
      %p72 = scmp.eq.s32.totalorder %s41, 1
      %p73 = por %p71, %p72
      %p74 = scmp.ne.s32.totalorder %s63, %s64
      %p75 = scmp.eq.s32.totalorder %s41, 0
      %p76 = por %p74, %p75
      %p77 = scmp.ne.s32.totalorder %s63, %s64
      %p78 = scmp.eq.s32.totalorder %s42, 1
      %p79 = por %p77, %p78
      %p81 = scmp.ne.s32.totalorder %s64, %s80
      %p82 = scmp.eq.s32.totalorder %s42, 0
      %p83 = por %p81, %p82
      %s84 = ssub.s32 %s43, %s55
      %p85 = scmp.eq.s32.totalorder %s84, 0
      %s87 = sadd.s32 %s86, 1
      %s88 = scalar_select %p85, %s86, %s87
      %p91 = pneg %p85
      %p92 = scmp.eq.s32.totalorder %s36, 1
      %p93 = por %p91, %p92
      %p94 = scmp.ne.s32.totalorder %s86, %s89
      %p95 = scmp.eq.s32.totalorder %s36, 0
      %p96 = por %p94, %p95
      %p97 = scmp.ne.s32.totalorder %s86, %s89
      %p98 = scmp.eq.s32.totalorder %s41, 1
      %p99 = por %p97, %p98
      %p100 = scmp.ne.s32.totalorder %s89, %s90
      %p101 = scmp.eq.s32.totalorder %s41, 0
      %p102 = por %p100, %p101
      %p103 = scmp.ne.s32.totalorder %s89, %s90
      %p104 = scmp.eq.s32.totalorder %s42, 1
      %p105 = por %p103, %p104
      %p107 = scmp.ne.s32.totalorder %s90, %s106
      %p108 = scmp.eq.s32.totalorder %s42, 0
      %p109 = por %p107, %p108
      %s110 = ssub.s32 %s43, %s55
      %p111 = scmp.eq.s32.totalorder %s110, 0
      %s113 = sadd.s32 %s112, 1
      %s114 = scalar_select %p111, %s112, %s113
      %p117 = pneg %p111
      %p118 = scmp.eq.s32.totalorder %s36, 1
      %p119 = por %p117, %p118
      %p120 = scmp.ne.s32.totalorder %s112, %s115
      %p121 = scmp.eq.s32.totalorder %s36, 0
      %p122 = por %p120, %p121
      %p123 = scmp.ne.s32.totalorder %s112, %s115
      %p124 = scmp.eq.s32.totalorder %s41, 1
      %p125 = por %p123, %p124
      %p126 = scmp.ne.s32.totalorder %s115, %s116
      %p127 = scmp.eq.s32.totalorder %s41, 0
      %p128 = por %p126, %p127
      %p129 = scmp.ne.s32.totalorder %s115, %s116
      %p130 = scmp.eq.s32.totalorder %s42, 1
      %p131 = por %p129, %p130
      %p133 = scmp.ne.s32.totalorder %s116, %s132
      %p134 = scmp.eq.s32.totalorder %s42, 0
      %p135 = por %p133, %p134
      %s136 = ssub.s32 %s43, %s55
      %p137 = scmp.eq.s32.totalorder %s136, 0
      %s139 = sadd.s32 %s138, 1
      %s140 = scalar_select %p137, %s138, %s139
      %p143 = pneg %p137
      %p144 = scmp.eq.s32.totalorder %s36, 1
      %p145 = por %p143, %p144
      %p146 = scmp.ne.s32.totalorder %s138, %s141
      %p147 = scmp.eq.s32.totalorder %s36, 0
      %p148 = por %p146, %p147
      %p149 = scmp.ne.s32.totalorder %s138, %s141
      %p150 = scmp.eq.s32.totalorder %s41, 1
      %p151 = por %p149, %p150
      %p152 = scmp.ne.s32.totalorder %s141, %s142
      %p153 = scmp.eq.s32.totalorder %s41, 0
      %p154 = por %p152, %p153
      %p155 = scmp.ne.s32.totalorder %s141, %s142
      %p156 = scmp.eq.s32.totalorder %s42, 1
      %p157 = por %p155, %p156
      %p159 = scmp.ne.s32.totalorder %s142, %s158
      %p160 = scmp.eq.s32.totalorder %s42, 0
      %p161 = por %p159, %p160
      %s162 = ssub.s32 %s43, %s55
      %p163 = scmp.eq.s32.totalorder %s162, 0
      %s165 = sadd.s32 %s164, 1
      %s166 = scalar_select %p163, %s164, %s165
      %p169 = pneg %p163
      %p170 = scmp.eq.s32.totalorder %s36, 1
      %p171 = por %p169, %p170
      %p172 = scmp.ne.s32.totalorder %s164, %s167
      %p173 = scmp.eq.s32.totalorder %s36, 0
      %p174 = por %p172, %p173
      %p175 = scmp.ne.s32.totalorder %s164, %s167
      %p176 = scmp.eq.s32.totalorder %s41, 1
      %p177 = por %p175, %p176
      %p178 = scmp.ne.s32.totalorder %s167, %s168
      %p179 = scmp.eq.s32.totalorder %s41, 0
      %p180 = por %p178, %p179
      %p181 = scmp.ne.s32.totalorder %s167, %s168
      %p182 = scmp.eq.s32.totalorder %s42, 1
      %p183 = por %p181, %p182
      %p185 = scmp.ne.s32.totalorder %s168, %s184
      %p186 = scmp.eq.s32.totalorder %s42, 0
      %p187 = por %p185, %p186
      %s188 = ssub.s32 %s43, %s55
      %p189 = scmp.eq.s32.totalorder %s188, 0
      %s191 = sadd.s32 %s190, 1
      %s192 = scalar_select %p189, %s190, %s191
      %p195 = pneg %p189
      %p196 = scmp.eq.s32.totalorder %s36, 1
      %p197 = por %p195, %p196
      %p198 = scmp.ne.s32.totalorder %s190, %s193
      %p199 = scmp.eq.s32.totalorder %s36, 0
      %p200 = por %p198, %p199
      %p201 = scmp.ne.s32.totalorder %s190, %s193
      %p202 = scmp.eq.s32.totalorder %s41, 1
      %p203 = por %p201, %p202
      %p204 = scmp.ne.s32.totalorder %s193, %s194
      %p205 = scmp.eq.s32.totalorder %s41, 0
      %p206 = por %p204, %p205
      %p207 = scmp.ne.s32.totalorder %s193, %s194
      %p208 = scmp.eq.s32.totalorder %s42, 1
      %p209 = por %p207, %p208
      %p211 = scmp.ne.s32.totalorder %s194, %s210
      %p212 = scmp.eq.s32.totalorder %s42, 0
      %p213 = por %p211, %p212
      %s214 = ssub.s32 %s43, %s55
      %p215 = scmp.eq.s32.totalorder %s214, 0
      %s217 = sadd.s32 %s216, 1
      %s218 = scalar_select %p215, %s216, %s217
      %p221 = pneg %p215
      %p222 = scmp.eq.s32.totalorder %s36, 1
      %p223 = por %p221, %p222
      %p224 = scmp.ne.s32.totalorder %s216, %s219
      %p225 = scmp.eq.s32.totalorder %s36, 0
      %p226 = por %p224, %p225
      %p227 = scmp.ne.s32.totalorder %s216, %s219
      %p228 = scmp.eq.s32.totalorder %s41, 1
      %p229 = por %p227, %p228
      %p230 = scmp.ne.s32.totalorder %s219, %s220
      %p231 = scmp.eq.s32.totalorder %s41, 0
      %p232 = por %p230, %p231
      %p233 = scmp.ne.s32.totalorder %s219, %s220
      %p234 = scmp.eq.s32.totalorder %s42, 1
      %p235 = por %p233, %p234
      %p237 = scmp.ne.s32.totalorder %s220, %s236
      %p238 = scmp.eq.s32.totalorder %s42, 0
      %p239 = por %p237, %p238
      %s241 = sadd.s32 %s240, 1
      %p244 = scmp.eq.s32.totalorder %s36, 1
      %p245 = scmp.ne.s32.totalorder %s240, %s242
      %p246 = scmp.eq.s32.totalorder %s36, 0
      %p247 = por %p245, %p246
      %p248 = scmp.ne.s32.totalorder %s240, %s242
      %p249 = scmp.eq.s32.totalorder %s41, 1
      %p250 = por %p248, %p249
      %p251 = scmp.ne.s32.totalorder %s242, %s243
      %p252 = scmp.eq.s32.totalorder %s41, 0
      %p253 = por %p251, %p252
      %p254 = scmp.ne.s32.totalorder %s242, %s243
      %p255 = scmp.eq.s32.totalorder %s42, 1
      %p256 = por %p254, %p255
      %p258 = scmp.ne.s32.totalorder %s243, %s257
      %p259 = scmp.eq.s32.totalorder %s42, 0
      %p260 = por %p258, %p259
      %s262 = sadd.s32 %s261, 1
      %p265 = scmp.eq.s32.totalorder %s36, 1
      %p266 = scmp.ne.s32.totalorder %s261, %s263
      %p267 = scmp.eq.s32.totalorder %s36, 0
      %p268 = por %p266, %p267
      %p269 = scmp.ne.s32.totalorder %s261, %s263
      %p270 = scmp.eq.s32.totalorder %s41, 1
      %p271 = por %p269, %p270
      %p272 = scmp.ne.s32.totalorder %s263, %s264
      %p273 = scmp.eq.s32.totalorder %s41, 0
      %p274 = por %p272, %p273
      %p275 = scmp.ne.s32.totalorder %s263, %s264
      %p276 = scmp.eq.s32.totalorder %s42, 1
      %p277 = por %p275, %p276
      %p279 = scmp.ne.s32.totalorder %s264, %s278
      %p280 = scmp.eq.s32.totalorder %s42, 0
      %p281 = por %p279, %p280
      %s283 = sadd.s32 %s282, 1
      %p286 = scmp.eq.s32.totalorder %s36, 1
      %p287 = scmp.ne.s32.totalorder %s282, %s284
      %p288 = scmp.eq.s32.totalorder %s36, 0
      %p289 = por %p287, %p288
      %p290 = scmp.ne.s32.totalorder %s282, %s284
      %p291 = scmp.eq.s32.totalorder %s41, 1
      %p292 = por %p290, %p291
      %p293 = scmp.ne.s32.totalorder %s284, %s285
      %p294 = scmp.eq.s32.totalorder %s41, 0
      %p295 = por %p293, %p294
      %p296 = scmp.ne.s32.totalorder %s284, %s285
      %p297 = scmp.eq.s32.totalorder %s42, 1
      %p298 = por %p296, %p297
      %p300 = scmp.ne.s32.totalorder %s285, %s299
      %p301 = scmp.eq.s32.totalorder %s42, 0
      %p302 = por %p300, %p301
      %s304 = sadd.s32 %s303, 1
      %p307 = scmp.eq.s32.totalorder %s36, 1
      %p308 = scmp.ne.s32.totalorder %s303, %s305
      %p309 = scmp.eq.s32.totalorder %s36, 0
      %p310 = por %p308, %p309
      %p311 = scmp.ne.s32.totalorder %s303, %s305
      %p312 = scmp.eq.s32.totalorder %s41, 1
      %p313 = por %p311, %p312
      %p314 = scmp.ne.s32.totalorder %s305, %s306
      %p315 = scmp.eq.s32.totalorder %s41, 0
      %p316 = por %p314, %p315
      %p317 = scmp.ne.s32.totalorder %s305, %s306
      %p318 = scmp.eq.s32.totalorder %s42, 1
      %p319 = por %p317, %p318
      %p321 = scmp.ne.s32.totalorder %s306, %s320
      %p322 = scmp.eq.s32.totalorder %s42, 0
      %p323 = por %p321, %p322
      %s325 = sadd.s32 %s324, 1
      %p328 = scmp.eq.s32.totalorder %s36, 1
      %p329 = scmp.ne.s32.totalorder %s324, %s326
      %p330 = scmp.eq.s32.totalorder %s36, 0
      %p331 = por %p329, %p330
      %p332 = scmp.ne.s32.totalorder %s324, %s326
      %p333 = scmp.eq.s32.totalorder %s41, 1
      %p334 = por %p332, %p333
      %p335 = scmp.ne.s32.totalorder %s326, %s327
      %p336 = scmp.eq.s32.totalorder %s41, 0
      %p337 = por %p335, %p336
      %p338 = scmp.ne.s32.totalorder %s326, %s327
      %p339 = scmp.eq.s32.totalorder %s42, 1
      %p340 = por %p338, %p339
      %p342 = scmp.ne.s32.totalorder %s327, %s341
      %p343 = scmp.eq.s32.totalorder %s42, 0
      %p344 = por %p342, %p343
      %s346 = sadd.s32 %s345, 1
      %p349 = scmp.eq.s32.totalorder %s36, 1
      %p350 = scmp.ne.s32.totalorder %s345, %s347
      %p351 = scmp.eq.s32.totalorder %s36, 0
      %p352 = por %p350, %p351
      %p353 = scmp.ne.s32.totalorder %s345, %s347
      %p354 = scmp.eq.s32.totalorder %s41, 1
      %p355 = por %p353, %p354
      %p356 = scmp.ne.s32.totalorder %s347, %s348
      %p357 = scmp.eq.s32.totalorder %s41, 0
      %p358 = por %p356, %p357
      %p359 = scmp.ne.s32.totalorder %s347, %s348
      %p360 = scmp.eq.s32.totalorder %s42, 1
      %p361 = por %p359, %p360
      %p363 = scmp.ne.s32.totalorder %s348, %s362
      %p364 = scmp.eq.s32.totalorder %s42, 0
      %p365 = por %p363, %p364
      %s367 = sadd.s32 %s366, 1
      %p370 = scmp.eq.s32.totalorder %s36, 1
      %p371 = scmp.ne.s32.totalorder %s366, %s368
      %p372 = scmp.eq.s32.totalorder %s36, 0
      %p373 = por %p371, %p372
      %p374 = scmp.ne.s32.totalorder %s366, %s368
      %p375 = scmp.eq.s32.totalorder %s41, 1
      %p376 = por %p374, %p375
      %p377 = scmp.ne.s32.totalorder %s368, %s369
      %p378 = scmp.eq.s32.totalorder %s41, 0
      %p379 = por %p377, %p378
      %p380 = scmp.ne.s32.totalorder %s368, %s369
      %p381 = scmp.eq.s32.totalorder %s42, 1
      %p382 = por %p380, %p381
      %p384 = scmp.ne.s32.totalorder %s369, %s383
      %p385 = scmp.eq.s32.totalorder %s42, 0
      %p386 = por %p384, %p385
      %s388 = sadd.s32 %s387, 1
      %p391 = scmp.eq.s32.totalorder %s36, 1
      %p392 = scmp.ne.s32.totalorder %s387, %s389
      %p393 = scmp.eq.s32.totalorder %s36, 0
      %p394 = por %p392, %p393
      %p395 = scmp.ne.s32.totalorder %s387, %s389
      %p396 = scmp.eq.s32.totalorder %s41, 1
      %p397 = por %p395, %p396
      %p398 = scmp.ne.s32.totalorder %s389, %s390
      %p399 = scmp.eq.s32.totalorder %s41, 0
      %p400 = por %p398, %p399
      %p401 = scmp.ne.s32.totalorder %s389, %s390
      %p402 = scmp.eq.s32.totalorder %s42, 1
      %p403 = por %p401, %p402
      %p405 = scmp.ne.s32.totalorder %s390, %s404
      %p406 = scmp.eq.s32.totalorder %s42, 0
      %p407 = por %p405, %p406
      %s409 = sadd.s32 %s408, 1
      %p412 = scmp.eq.s32.totalorder %s36, 1
      %p413 = scmp.ne.s32.totalorder %s408, %s410
      %p414 = scmp.eq.s32.totalorder %s36, 0
      %p415 = por %p413, %p414
      %p416 = scmp.ne.s32.totalorder %s408, %s410
      %p417 = scmp.eq.s32.totalorder %s41, 1
      %p418 = por %p416, %p417
      %p419 = scmp.ne.s32.totalorder %s410, %s411
      %p420 = scmp.eq.s32.totalorder %s41, 0
      %p421 = por %p419, %p420
      %p422 = scmp.ne.s32.totalorder %s410, %s411
      %p423 = scmp.eq.s32.totalorder %s42, 1
      %p424 = por %p422, %p423
      %p426 = scmp.ne.s32.totalorder %s411, %s425
      %p427 = scmp.eq.s32.totalorder %s42, 0
      %p428 = por %p426, %p427
      %s430 = sadd.s32 %s429, 1
      %p433 = scmp.eq.s32.totalorder %s36, 1
      %p434 = scmp.ne.s32.totalorder %s429, %s431
      %p435 = scmp.eq.s32.totalorder %s36, 0
      %p436 = por %p434, %p435
      %p437 = scmp.ne.s32.totalorder %s429, %s431
      %p438 = scmp.eq.s32.totalorder %s41, 1
      %p439 = por %p437, %p438
      %p440 = scmp.ne.s32.totalorder %s431, %s432
      %p441 = scmp.eq.s32.totalorder %s41, 0
      %p442 = por %p440, %p441
      %p443 = scmp.ne.s32.totalorder %s431, %s432
      %p444 = scmp.eq.s32.totalorder %s42, 1
      %p445 = por %p443, %p444
      %p447 = scmp.ne.s32.totalorder %s432, %s446
      %p448 = scmp.eq.s32.totalorder %s42, 0
      %p449 = por %p447, %p448
      %s450 = ssub.s32 %s43, %s55
      %p451 = scmp.eq.s32.totalorder %s450, 0
      %s453 = sadd.s32 %s452, 1
      %s454 = scalar_select %p451, %s452, %s453
      %p457 = pneg %p451
      %p458 = scmp.eq.s32.totalorder %s36, 1
      %p459 = por %p457, %p458
      %p460 = scmp.ne.s32.totalorder %s452, %s455
      %p461 = scmp.eq.s32.totalorder %s36, 0
      %p462 = por %p460, %p461
      %p463 = scmp.ne.s32.totalorder %s452, %s455
      %p464 = scmp.eq.s32.totalorder %s41, 1
      %p465 = por %p463, %p464
      %p466 = scmp.ne.s32.totalorder %s455, %s456
      %p467 = scmp.eq.s32.totalorder %s41, 0
      %p468 = por %p466, %p467
      %p469 = scmp.ne.s32.totalorder %s455, %s456
      %p470 = scmp.eq.s32.totalorder %s42, 1
      %p471 = por %p469, %p470
      %p473 = scmp.ne.s32.totalorder %s456, %s472
      %p474 = scmp.eq.s32.totalorder %s42, 0
      %p475 = por %p473, %p474
      %s476 = ssub.s32 %s43, %s55
      %p477 = scmp.eq.s32.totalorder %s476, 0
      %s479 = sadd.s32 %s478, 1
      %s480 = scalar_select %p477, %s478, %s479
      %p483 = pneg %p477
      %p484 = scmp.eq.s32.totalorder %s36, 1
      %p485 = por %p483, %p484
      %p486 = scmp.ne.s32.totalorder %s478, %s481
      %p487 = scmp.eq.s32.totalorder %s36, 0
      %p488 = por %p486, %p487
      %p489 = scmp.ne.s32.totalorder %s478, %s481
      %p490 = scmp.eq.s32.totalorder %s41, 1
      %p491 = por %p489, %p490
      %p492 = scmp.ne.s32.totalorder %s481, %s482
      %p493 = scmp.eq.s32.totalorder %s41, 0
      %p494 = por %p492, %p493
      %p495 = scmp.ne.s32.totalorder %s481, %s482
      %p496 = scmp.eq.s32.totalorder %s42, 1
      %p497 = por %p495, %p496
      %p499 = scmp.ne.s32.totalorder %s482, %s498
      %p500 = scmp.eq.s32.totalorder %s42, 0
      %p501 = por %p499, %p500
      %s502 = ssub.s32 %s43, %s55
      %p503 = scmp.eq.s32.totalorder %s502, 0
      %s505 = sadd.s32 %s504, 1
      %s506 = scalar_select %p503, %s504, %s505
      %p509 = pneg %p503
      %p510 = scmp.eq.s32.totalorder %s36, 1
      %p511 = por %p509, %p510
      %p512 = scmp.ne.s32.totalorder %s504, %s507
      %p513 = scmp.eq.s32.totalorder %s36, 0
      %p514 = por %p512, %p513
      %p515 = scmp.ne.s32.totalorder %s504, %s507
      %p516 = scmp.eq.s32.totalorder %s41, 1
      %p517 = por %p515, %p516
      %p518 = scmp.ne.s32.totalorder %s507, %s508
      %p519 = scmp.eq.s32.totalorder %s41, 0
      %p520 = por %p518, %p519
      %p521 = scmp.ne.s32.totalorder %s507, %s508
      %p522 = scmp.eq.s32.totalorder %s42, 1
      %p523 = por %p521, %p522
      %p525 = scmp.ne.s32.totalorder %s508, %s524
      %p526 = scmp.eq.s32.totalorder %s42, 0
      %p527 = por %p525, %p526
      %p528 = scmp.le.s32.totalorder 1, %s36
      %p529 = scmp.lt.s32.totalorder %s36, 3
      %p530 = pnand %p528, %p529
      %p531 = pneg %p530
      // Predicated region
      $region9: #{tpu_custom_call.1} parent=5 // pred_check
        _
      $region10: #{tpu_custom_call.1} parent=5 // pred_check_branch
        %533 = sbr.rel (%p530) target = $region12
      $region11: #{tpu_custom_call.1} parent=5 // pred_region
        %s534 = ssub.s32 %s36, 1
        // Predicated region
        $region13: #{tpu_custom_call.1} parent=11 // pred_check
          %p535 = pneg %p253
        $region14: #{tpu_custom_call.1} parent=11 // pred_check_branch
          %537 = sbr.rel (%p535) target = $region16
        $region15: #{tpu_custom_call.1} parent=11 // pred_region
          _
        $region16: #{tpu_custom_call.1} parent=11 // pred_fallthru
          _
        // Predicated region
        $region17: #{tpu_custom_call.1} parent=11 // pred_check
          %p538 = pneg %p274
        $region18: #{tpu_custom_call.1} parent=11 // pred_check_branch
          %540 = sbr.rel (%p538) target = $region20
        $region19: #{tpu_custom_call.1} parent=11 // pred_region
          _
        $region20: #{tpu_custom_call.1} parent=11 // pred_fallthru
          _
        // Predicated region
        $region21: #{tpu_custom_call.1} parent=11 // pred_check
          %p541 = pneg %p295
        $region22: #{tpu_custom_call.1} parent=11 // pred_check_branch
          %543 = sbr.rel (%p541) target = $region24
        $region23: #{tpu_custom_call.1} parent=11 // pred_region
          _
        $region24: #{tpu_custom_call.1} parent=11 // pred_fallthru
          _
        // Predicated region
        $region25: #{tpu_custom_call.1} parent=11 // pred_check
          %p544 = pneg %p316
        $region26: #{tpu_custom_call.1} parent=11 // pred_check_branch
          %546 = sbr.rel (%p544) target = $region28
        $region27: #{tpu_custom_call.1} parent=11 // pred_region
          _
        $region28: #{tpu_custom_call.1} parent=11 // pred_fallthru
          _
        // Predicated region
        $region29: #{tpu_custom_call.1} parent=11 // pred_check
          %p547 = pneg %p337
        $region30: #{tpu_custom_call.1} parent=11 // pred_check_branch
          %549 = sbr.rel (%p547) target = $region32
        $region31: #{tpu_custom_call.1} parent=11 // pred_region
          _
        $region32: #{tpu_custom_call.1} parent=11 // pred_fallthru
          _
        // Predicated region
        $region33: #{tpu_custom_call.1} parent=11 // pred_check
          %p550 = pneg %p358
        $region34: #{tpu_custom_call.1} parent=11 // pred_check_branch
          %552 = sbr.rel (%p550) target = $region36
        $region35: #{tpu_custom_call.1} parent=11 // pred_region
          %s554 = ssub.s32 2048, 2048
          %555 = vsyncadd [#allocation9], %s554
          %s556 = sshll.u32 [#allocation8], 4
          %s557 = int_to_ptr.vmem [resolvable:$true] %s556
          %562 = dma.hbm_to_vmem [thread:$0]  %s12, 2048, %s557, [#allocation9], 128, 128, 8
        $region36: #{tpu_custom_call.1} parent=11 // pred_fallthru
          _
        // Predicated region
        $region37: #{tpu_custom_call.1} parent=11 // pred_check
          %p563 = pneg %p379
        $region38: #{tpu_custom_call.1} parent=11 // pred_check_branch
          %565 = sbr.rel (%p563) target = $region40
        $region39: #{tpu_custom_call.1} parent=11 // pred_region
          %s567 = ssub.s32 2048, 2048
          %568 = vsyncadd [#allocation9], %s567
          %s569 = sshll.u32 [#allocation10], 4
          %s570 = int_to_ptr.vmem [resolvable:$true] %s569
          %575 = dma.hbm_to_vmem [thread:$0]  %s13, 2048, %s570, [#allocation9], 128, 128, 8
        $region40: #{tpu_custom_call.1} parent=11 // pred_fallthru
          _
        // Predicated region
        $region41: #{tpu_custom_call.1} parent=11 // pred_check
          %p576 = pneg %p400
        $region42: #{tpu_custom_call.1} parent=11 // pred_check_branch
          %578 = sbr.rel (%p576) target = $region44
        $region43: #{tpu_custom_call.1} parent=11 // pred_region
          _
        $region44: #{tpu_custom_call.1} parent=11 // pred_fallthru
          _
        // Predicated region
        $region45: #{tpu_custom_call.1} parent=11 // pred_check
          %p579 = pneg %p421
        $region46: #{tpu_custom_call.1} parent=11 // pred_check_branch
          %581 = sbr.rel (%p579) target = $region48
        $region47: #{tpu_custom_call.1} parent=11 // pred_region
          _
        $region48: #{tpu_custom_call.1} parent=11 // pred_fallthru
          _
        // Predicated region
        $region49: #{tpu_custom_call.1} parent=11 // pred_check
          %p582 = pneg %p442
        $region50: #{tpu_custom_call.1} parent=11 // pred_check_branch
          %584 = sbr.rel (%p582) target = $region52
        $region51: #{tpu_custom_call.1} parent=11 // pred_region
          _
        $region52: #{tpu_custom_call.1} parent=11 // pred_fallthru
          _
      $region12: #{tpu_custom_call.1} parent=5 // pred_fallthru
        _
      %p585 = scmp.lt.s32.totalorder %s36, 2
      // Predicated region
      $region53: #{tpu_custom_call.1} parent=5 // pred_check
        %p586 = pneg %p585
      $region54: #{tpu_custom_call.1} parent=5 // pred_check_branch
        %588 = sbr.rel (%p586) target = $region56
      $region55: #{tpu_custom_call.1} parent=5 // pred_region
        // Predicated region
        $region57: #{tpu_custom_call.1} parent=55 // pred_check
          %p589 = pneg %p70
        $region58: #{tpu_custom_call.1} parent=55 // pred_check_branch
          %591 = sbr.rel (%p589) target = $region60
        $region59: #{tpu_custom_call.1} parent=55 // pred_region
          %s592 = sand.u32 %s60, 1
          %s593 = scalar_lea.sflag [#allocation6], %s592
          %s594 = sand.u32 %s60, 1
          %s595 = smul.addr %s594, 320
          %s596 = scalar_lea.vmem [#allocation5], %s595
          %s597 = smul.u32 8, %s43
          %s598 = smul.u32 5, %s44
          %s599 = ssub.s32 12, %s597
          %p600 = scmp.lt.s32.totalorder %s599, 8
          %s601 = scalar_select %p600, %s599, 8
          %s602 = smul.u32 128, %s601
          %s603 = smul.u32 %s602, 5
          %s605 = ssub.s32 5120, %s603
          %606 = vsyncadd %s593, %s605
          %p607 = scmp.ne.s32.totalorder 0, %s603
          %s608 = smul.addr %s597, 5
          %s609 = sadd.s32 %s598, %s608
          %s610 = smul.addr %s609, 128
          %s611 = scalar_lea.hbm %s0, %s610
          %s612 = smul.u32 %s601, 5
          %s613 = smul.u32 8, %s612
          %s614 = sshll.u32 %s596, 4
          %s615 = int_to_ptr.vmem [resolvable:$true] %s614
          %s616 = sshll.u32 %s613, 4
          %620 = dma.hbm_to_vmem [thread:$0]  (%p607), %s611, %s616, %s615, %s593, 128, 128, 8
        $region60: #{tpu_custom_call.1} parent=55 // pred_fallthru
          _
        // Predicated region
        $region61: #{tpu_custom_call.1} parent=55 // pred_check
          %p621 = pneg %p96
        $region62: #{tpu_custom_call.1} parent=55 // pred_check_branch
          %623 = sbr.rel (%p621) target = $region64
        $region63: #{tpu_custom_call.1} parent=55 // pred_region
          %s624 = smul.u32 8, %s43
          %p625 = scmp.lt.s32.totalorder %s624, 15
          %s626 = scalar_select %p625, %s624, 15
          %s627 = smul.addr %s626, 2
          %s628 = scalar_lea.vmem %s1, %s627
          %s629 = smul.u32 8, %s43
        $region64: #{tpu_custom_call.1} parent=55 // pred_fallthru
          _
        // Predicated region
        $region65: #{tpu_custom_call.1} parent=55 // pred_check
          %p630 = pneg %p122
        $region66: #{tpu_custom_call.1} parent=55 // pred_check_branch
          %632 = sbr.rel (%p630) target = $region68
        $region67: #{tpu_custom_call.1} parent=55 // pred_region
          %s633 = smul.u32 8, %s43
          %p634 = scmp.lt.s32.totalorder %s633, 15
          %s635 = scalar_select %p634, %s633, 15
          %s636 = smul.addr %s635, 2
          %s637 = scalar_lea.vmem %s2, %s636
          %s638 = smul.u32 8, %s43
        $region68: #{tpu_custom_call.1} parent=55 // pred_fallthru
          _
        // Predicated region
        $region69: #{tpu_custom_call.1} parent=55 // pred_check
          %p639 = pneg %p148
        $region70: #{tpu_custom_call.1} parent=55 // pred_check_branch
          %641 = sbr.rel (%p639) target = $region72
        $region71: #{tpu_custom_call.1} parent=55 // pred_region
          %s642 = smul.u32 8, %s43
          %p643 = scmp.lt.s32.totalorder %s642, 15
          %s644 = scalar_select %p643, %s642, 15
          %s645 = smul.addr %s644, 2
          %s646 = scalar_lea.vmem %s3, %s645
          %s647 = smul.u32 8, %s43
        $region72: #{tpu_custom_call.1} parent=55 // pred_fallthru
          _
        // Predicated region
        $region73: #{tpu_custom_call.1} parent=55 // pred_check
          %p648 = pneg %p174
        $region74: #{tpu_custom_call.1} parent=55 // pred_check_branch
          %650 = sbr.rel (%p648) target = $region76
        $region75: #{tpu_custom_call.1} parent=55 // pred_region
          %p651 = scmp.lt.s32.totalorder %s43, 1
          %s652 = scalar_select %p651, %s43, 1
          %s653 = smul.addr %s652, 8
          %s654 = scalar_lea.vmem %s4, %s653
        $region76: #{tpu_custom_call.1} parent=55 // pred_fallthru
          _
        // Predicated region
        $region77: #{tpu_custom_call.1} parent=55 // pred_check
          %p655 = pneg %p200
        $region78: #{tpu_custom_call.1} parent=55 // pred_check_branch
          %657 = sbr.rel (%p655) target = $region80
        $region79: #{tpu_custom_call.1} parent=55 // pred_region
          %p658 = scmp.lt.s32.totalorder %s43, 1
          %s659 = scalar_select %p658, %s43, 1
          %s660 = smul.addr %s659, 8
          %s661 = scalar_lea.vmem %s5, %s660
        $region80: #{tpu_custom_call.1} parent=55 // pred_fallthru
          _
        // Predicated region
        $region81: #{tpu_custom_call.1} parent=55 // pred_check
          %p662 = pneg %p226
        $region82: #{tpu_custom_call.1} parent=55 // pred_check_branch
          %664 = sbr.rel (%p662) target = $region84
        $region83: #{tpu_custom_call.1} parent=55 // pred_region
          %p665 = scmp.lt.s32.totalorder %s43, 1
          %s666 = scalar_select %p665, %s43, 1
          %s667 = smul.addr %s666, 8
          %s668 = scalar_lea.vmem %s6, %s667
        $region84: #{tpu_custom_call.1} parent=55 // pred_fallthru
          _
      $region56: #{tpu_custom_call.1} parent=5 // pred_fallthru
        _
      %p669 = scmp.le.s32.totalorder 1, %s36
      %p670 = scmp.lt.s32.totalorder %s36, 3
      %p671 = pnand %p669, %p670
      %p672 = pneg %p671
      // Predicated region
      $region85: #{tpu_custom_call.1} parent=5 // pred_check
        _
      $region86: #{tpu_custom_call.1} parent=5 // pred_check_branch
        %674 = sbr.rel (%p671) target = $region88
      $region87: #{tpu_custom_call.1} parent=5 // pred_region
        %s675 = ssub.s32 %s36, 1
        %s676 = sand.u32 %s63, 1
        %s677 = scalar_lea.sflag [#allocation6], %s676
        %s678 = sand.u32 %s63, 1
        %s679 = smul.addr %s678, 320
        %s680 = scalar_lea.vmem [#allocation5], %s679
        // Predicated region
        $region89: #{tpu_custom_call.1} parent=87 // pred_check
          %p681 = pneg %p76
        $region90: #{tpu_custom_call.1} parent=87 // pred_check_branch
          %683 = sbr.rel (%p681) target = $region92
        $region91: #{tpu_custom_call.1} parent=87 // pred_region
          %684 = dma.done %s677, 5120
        $region92: #{tpu_custom_call.1} parent=87 // pred_fallthru
          _
        // Predicated region
        $region93: #{tpu_custom_call.1} parent=87 // pred_check
          %p685 = pneg %p358
        $region94: #{tpu_custom_call.1} parent=87 // pred_check_branch
          %687 = sbr.rel (%p685) target = $region96
        $region95: #{tpu_custom_call.1} parent=87 // pred_region
          %688 = dma.done [#allocation9], 2048
        $region96: #{tpu_custom_call.1} parent=87 // pred_fallthru
          _
        // Predicated region
        $region97: #{tpu_custom_call.1} parent=87 // pred_check
          %p689 = pneg %p379
        $region98: #{tpu_custom_call.1} parent=87 // pred_check_branch
          %691 = sbr.rel (%p689) target = $region100
        $region99: #{tpu_custom_call.1} parent=87 // pred_region
          %692 = dma.done [#allocation9], 2048
        $region100: #{tpu_custom_call.1} parent=87 // pred_fallthru
          _
        %s693 = sand.u32 %s63, 1
        %s694 = scalar_lea.sflag [#allocation6], %s693
        %s695 = sand.u32 %s63, 1
        %s696 = smul.addr %s695, 320
        %s697 = scalar_lea.vmem [#allocation5], %s696
        %p698 = pneg %p76
        %p699 = pneg %p73
        %s700 = smul.u32 8, %s45
        %p701 = scmp.lt.s32.totalorder %s700, 15
        %s702 = scalar_select %p701, %s700, 15
        %s703 = smul.addr %s702, 2
        %s704 = scalar_lea.vmem %s1, %s703
        %p705 = pneg %p102
        %p706 = pneg %p99
        %s707 = smul.u32 8, %s45
        %p708 = scmp.lt.s32.totalorder %s707, 15
        %s709 = scalar_select %p708, %s707, 15
        %s710 = smul.addr %s709, 2
        %s711 = scalar_lea.vmem %s2, %s710
        %p712 = pneg %p128
        %p713 = pneg %p125
        %s714 = smul.u32 8, %s45
        %p715 = scmp.lt.s32.totalorder %s714, 15
        %s716 = scalar_select %p715, %s714, 15
        %s717 = smul.addr %s716, 2
        %s718 = scalar_lea.vmem %s3, %s717
        %p719 = pneg %p154
        %p720 = pneg %p151
        %p721 = scmp.lt.s32.totalorder %s45, 1
        %s722 = scalar_select %p721, %s45, 1
        %s723 = smul.addr %s722, 8
        %s724 = scalar_lea.vmem %s4, %s723
        %p725 = pneg %p180
        %p726 = pneg %p177
        %p727 = scmp.lt.s32.totalorder %s45, 1
        %s728 = scalar_select %p727, %s45, 1
        %s729 = smul.addr %s728, 8
        %s730 = scalar_lea.vmem %s5, %s729
        %p731 = pneg %p206
        %p732 = pneg %p203
        %p733 = scmp.lt.s32.totalorder %s45, 1
        %s734 = scalar_select %p733, %s45, 1
        %s735 = smul.addr %s734, 8
        %s736 = scalar_lea.vmem %s6, %s735
        %p737 = pneg %p232
        %p738 = pneg %p229
        %p739 = pneg %p253
        %p740 = pneg %p250
        %p741 = pneg %p274
        %p742 = pneg %p271
        %p743 = pneg %p295
        %p744 = pneg %p292
        %p745 = pneg %p316
        %p746 = pneg %p313
        %p747 = pneg %p337
        %p748 = pneg %p334
        %p749 = pneg %p358
        %p750 = pneg %p355
        %p751 = pneg %p379
        %p752 = pneg %p376
        %p753 = pneg %p400
        %p754 = pneg %p397
        %p755 = pneg %p421
        %p756 = pneg %p418
        %p757 = pneg %p442
        %p758 = pneg %p439
        %p759 = pneg %p468
        %p760 = pneg %p465
        %s761 = sand.u32 %s455, 1
        %s762 = scalar_lea.sflag [#allocation7], %s761
        %s763 = sand.u32 %s455, 1
        %s764 = smul.addr %s763, 8
        %s765 = scalar_lea.vmem [#allocation11], %s764
        %p766 = pneg %p494
        %p767 = pneg %p491
        %s768 = sand.u32 %s41, 1
        %s769 = scalar_lea.sflag [#allocation13], %s768
        %s770 = sand.u32 %s481, 1
        %s771 = smul.addr %s770, 8
        %s772 = scalar_lea.vmem [#allocation12], %s771
        %p773 = pneg %p520
        %p774 = pneg %p517
        %s775 = sand.u32 %s41, 1
        %s776 = scalar_lea.sflag [#allocation13], %s775
        %s777 = sand.u32 %s507, 1
        %s778 = smul.addr %s777, 8
        %s779 = scalar_lea.vmem [#allocation14], %s778
        %s780 = smul.u32 8, %s45
        %s781 = smul.u32 5, %s46
        %s782 = ssub.s32 12, %s780
        %p783 = scmp.lt.s32.totalorder %s782, 8
        %s784 = scalar_select %p783, %s782, 8
        %s785 = smul.u32 128, %s784
        %s786 = smul.u32 %s785, 5
        %s787 = smul.u32 8, %s45
        %p788 = scmp.lt.s32.totalorder %s787, 15
        %s789 = scalar_select %p788, %s787, 15
        %s790 = smul.addr %s789, 2
        %s791 = scalar_lea.vmem %s1, %s790
        %s792 = smul.u32 8, %s45
        %s793 = smul.u32 8, %s45
        %p794 = scmp.lt.s32.totalorder %s793, 15
        %s795 = scalar_select %p794, %s793, 15
        %s796 = smul.addr %s795, 2
        %s797 = scalar_lea.vmem %s2, %s796
        %s798 = smul.u32 8, %s45
        %s799 = smul.u32 8, %s45
        %p800 = scmp.lt.s32.totalorder %s799, 15
        %s801 = scalar_select %p800, %s799, 15
        %s802 = smul.addr %s801, 2
        %s803 = scalar_lea.vmem %s3, %s802
        %s804 = smul.u32 8, %s45
        %p805 = scmp.lt.s32.totalorder %s45, 1
        %s806 = scalar_select %p805, %s45, 1
        %s807 = smul.addr %s806, 8
        %s808 = scalar_lea.vmem %s4, %s807
        %p809 = scmp.lt.s32.totalorder %s45, 1
        %s810 = scalar_select %p809, %s45, 1
        %s811 = smul.addr %s810, 8
        %s812 = scalar_lea.vmem %s5, %s811
        %p813 = scmp.lt.s32.totalorder %s45, 1
        %s814 = scalar_select %p813, %s45, 1
        %s815 = smul.addr %s814, 8
        %s816 = scalar_lea.vmem %s6, %s815
        %p817 = scmp.eq.s32.totalorder %s46, 0
        // Predicated region
        $region101: #{tpu_custom_call.1} parent=87 // pred_check
          %p818 = pneg %p817
        $region102: #{tpu_custom_call.1} parent=87 // pred_check_branch
          %820 = sbr.rel (%p818) target = $region104
        $region103: #{tpu_custom_call.1} parent=87 // pred_region
          %821 = vst [vmem:[#allocation2] sm:$0xff] -1e+30
          %822 = vst [vmem:[#allocation3] sm:$0xff] -1e+30
          %823 = vst [vmem:[#allocation4] sm:$0xff] -1e+30
        $region104: #{tpu_custom_call.1} parent=87 // pred_fallthru
          _
        %v824 = vld [vmem:[%s680] sm:$0xff]
        %v825 = vld [vmem:[%s680 + $0x8] sm:$0xff]
        %v826 = vld [vmem:[%s680 + $0x10] sm:$0xff]
        %v827 = vld [vmem:[%s680 + $0x18] sm:$0xff]
        %v828 = vld [vmem:[%s680 + $0x20] sm:$0xff]
        %v829 = vld [vmem:[%s680 + $0x28] sm:$0xff]
        %v830 = vld [vmem:[%s680 + $0x30] sm:$0xff]
        %v831 = vld [vmem:[%s680 + $0x38] sm:$0xff]
        %v832 = vld [vmem:[%s680 + $0x40] sm:$0xff]
        %v833 = vld [vmem:[%s680 + $0x48] sm:$0xff]
        %v834 = vld [vmem:[%s680 + $0x50] sm:$0xff]
        %v835 = vld [vmem:[%s680 + $0x58] sm:$0xff]
        %v836 = vld [vmem:[%s680 + $0x60] sm:$0xff]
        %v837 = vld [vmem:[%s680 + $0x68] sm:$0xff]
        %v838 = vld [vmem:[%s680 + $0x70] sm:$0xff]
        %v839 = vld [vmem:[%s680 + $0x78] sm:$0xff]
        %v840 = vld [vmem:[%s680 + $0x80] sm:$0xff]
        %v841 = vld [vmem:[%s680 + $0x88] sm:$0xff]
        %v842 = vld [vmem:[%s680 + $0x90] sm:$0xff]
        %v843 = vld [vmem:[%s680 + $0x98] sm:$0xff]
        %v844 = vld [vmem:[%s680 + $0xa0] sm:$0xff]
        %v845 = vld [vmem:[%s680 + $0xa8] sm:$0xff]
        %v846 = vld [vmem:[%s680 + $0xb0] sm:$0xff]
        %v847 = vld [vmem:[%s680 + $0xb8] sm:$0xff]
        %v848 = vld [vmem:[%s680 + $0xc0] sm:$0xff]
        %v849 = vld [vmem:[%s680 + $0xc8] sm:$0xff]
        %v850 = vld [vmem:[%s680 + $0xd0] sm:$0xff]
        %v851 = vld [vmem:[%s680 + $0xd8] sm:$0xff]
        %v852 = vld [vmem:[%s680 + $0xe0] sm:$0xff]
        %v853 = vld [vmem:[%s680 + $0xe8] sm:$0xff]
        %v854 = vld [vmem:[%s680 + $0xf0] sm:$0xff]
        %v855 = vld [vmem:[%s680 + $0xf8] sm:$0xff]
        %v856 = vld [vmem:[%s680 + $0x100] sm:$0xff]
        %v857 = vld [vmem:[%s680 + $0x108] sm:$0xff]
        %v858 = vld [vmem:[%s680 + $0x110] sm:$0xff]
        %v859 = vld [vmem:[%s680 + $0x118] sm:$0xff]
        %v860 = vld [vmem:[%s680 + $0x120] sm:$0xff]
        %v861 = vld [vmem:[%s680 + $0x128] sm:$0xff]
        %v862 = vld [vmem:[%s680 + $0x130] sm:$0xff]
        %v863 = vld [vmem:[%s680 + $0x138] sm:$0xff]
        %s864 = smul.u32 %s46, 40
        %v865 = vlaneseq
        %v866 = vshrl.u32 %v865, 7
        %v867 = vadd.s32 %v866, 8
        %v868 = vadd.s32 %v866, 16
        %v869 = vadd.s32 %v866, 24
        %v870 = vadd.s32 %v866, 32
        %v871 = vstv %s864
        %v872 = vadd.s32 %v871, %v866
        %v873 = vadd.s32 %v871, %v867
        %v874 = vadd.s32 %v871, %v868
        %v875 = vadd.s32 %v871, %v869
        %v876 = vadd.s32 %v871, %v870
        %v877 = vld [vmem:[#allocation2] sm:$0xff]
        %v878 = vld [vmem:[%s791] sm:$0x3]
        %v879 = vld [vmem:[%s791 + $0x2] sm:$0x3]
        %v880 = vld [vmem:[%s791 + $0x4] sm:$0x3]
        %v881 = vld [vmem:[%s791 + $0x6] sm:$0x3]
        %v882 = vld [vmem:[%s791 + $0x8] sm:$0x3]
        %v883 = vld [vmem:[%s791 + $0xa] sm:$0x3]
        %v884 = vld [vmem:[%s791 + $0xc] sm:$0x3]
        %v885 = vld [vmem:[%s791 + $0xe] sm:$0x3]
        %v886 = vlaneseq
        %v887 = vshrl.u32 %v886, 7
        %v888 = vsub.s32 0, %v887
        %v889 = vrot.slane %v878, %v888
        %v890 = vlaneseq
        %v891 = vshrl.u32 %v890, 7
        %v892 = vsub.s32 0, %v891
        %v893 = vrot.slane %v879, %v892
        %v894 = vlaneseq
        %v895 = vshrl.u32 %v894, 7
        %v896 = vsub.s32 0, %v895
        %v897 = vrot.slane %v880, %v896
        %v898 = vlaneseq
        %v899 = vshrl.u32 %v898, 7
        %v900 = vsub.s32 0, %v899
        %v901 = vrot.slane %v881, %v900
        %v902 = vlaneseq
        %v903 = vshrl.u32 %v902, 7
        %v904 = vsub.s32 0, %v903
        %v905 = vrot.slane %v882, %v904
        %v906 = vlaneseq
        %v907 = vshrl.u32 %v906, 7
        %v908 = vsub.s32 0, %v907
        %v909 = vrot.slane %v883, %v908
        %v910 = vlaneseq
        %v911 = vshrl.u32 %v910, 7
        %v912 = vsub.s32 0, %v911
        %v913 = vrot.slane %v884, %v912
        %v914 = vlaneseq
        %v915 = vshrl.u32 %v914, 7
        %v916 = vsub.s32 0, %v915
        %v917 = vrot.slane %v885, %v916
        %vm918 = vcmp.ge.s32.totalorder %v872, %v889
        %vm919 = vcmp.ge.s32.totalorder %v873, %v889
        %vm920 = vcmp.ge.s32.totalorder %v874, %v889
        %vm921 = vcmp.ge.s32.totalorder %v875, %v889
        %vm922 = vcmp.ge.s32.totalorder %v876, %v889
        %vm923 = vcmp.ge.s32.totalorder %v872, %v893
        %vm924 = vcmp.ge.s32.totalorder %v873, %v893
        %vm925 = vcmp.ge.s32.totalorder %v874, %v893
        %vm926 = vcmp.ge.s32.totalorder %v875, %v893
        %vm927 = vcmp.ge.s32.totalorder %v876, %v893
        %vm928 = vcmp.ge.s32.totalorder %v872, %v897
        %vm929 = vcmp.ge.s32.totalorder %v873, %v897
        %vm930 = vcmp.ge.s32.totalorder %v874, %v897
        %vm931 = vcmp.ge.s32.totalorder %v875, %v897
        %vm932 = vcmp.ge.s32.totalorder %v876, %v897
        %vm933 = vcmp.ge.s32.totalorder %v872, %v901
        %vm934 = vcmp.ge.s32.totalorder %v873, %v901
        %vm935 = vcmp.ge.s32.totalorder %v874, %v901
        %vm936 = vcmp.ge.s32.totalorder %v875, %v901
        %vm937 = vcmp.ge.s32.totalorder %v876, %v901
        %vm938 = vcmp.ge.s32.totalorder %v872, %v905
        %vm939 = vcmp.ge.s32.totalorder %v873, %v905
        %vm940 = vcmp.ge.s32.totalorder %v874, %v905
        %vm941 = vcmp.ge.s32.totalorder %v875, %v905
        %vm942 = vcmp.ge.s32.totalorder %v876, %v905
        %vm943 = vcmp.ge.s32.totalorder %v872, %v909
        %vm944 = vcmp.ge.s32.totalorder %v873, %v909
        %vm945 = vcmp.ge.s32.totalorder %v874, %v909
        %vm946 = vcmp.ge.s32.totalorder %v875, %v909
        %vm947 = vcmp.ge.s32.totalorder %v876, %v909
        %vm948 = vcmp.ge.s32.totalorder %v872, %v913
        %vm949 = vcmp.ge.s32.totalorder %v873, %v913
        %vm950 = vcmp.ge.s32.totalorder %v874, %v913
        %vm951 = vcmp.ge.s32.totalorder %v875, %v913
        %vm952 = vcmp.ge.s32.totalorder %v876, %v913
        %vm953 = vcmp.ge.s32.totalorder %v872, %v917
        %vm954 = vcmp.ge.s32.totalorder %v873, %v917
        %vm955 = vcmp.ge.s32.totalorder %v874, %v917
        %vm956 = vcmp.ge.s32.totalorder %v875, %v917
        %vm957 = vcmp.ge.s32.totalorder %v876, %v917
        %v958 = vlaneseq
        %v959 = vshrl.u32 %v958, 7
        %v960 = vsub.s32 1, %v959
        %v961 = vrot.slane %v878, %v960
        %v962 = vlaneseq
        %v963 = vshrl.u32 %v962, 7
        %v964 = vsub.s32 1, %v963
        %v965 = vrot.slane %v879, %v964
        %v966 = vlaneseq
        %v967 = vshrl.u32 %v966, 7
        %v968 = vsub.s32 1, %v967
        %v969 = vrot.slane %v880, %v968
        %v970 = vlaneseq
        %v971 = vshrl.u32 %v970, 7
        %v972 = vsub.s32 1, %v971
        %v973 = vrot.slane %v881, %v972
        %v974 = vlaneseq
        %v975 = vshrl.u32 %v974, 7
        %v976 = vsub.s32 1, %v975
        %v977 = vrot.slane %v882, %v976
        %v978 = vlaneseq
        %v979 = vshrl.u32 %v978, 7
        %v980 = vsub.s32 1, %v979
        %v981 = vrot.slane %v883, %v980
        %v982 = vlaneseq
        %v983 = vshrl.u32 %v982, 7
        %v984 = vsub.s32 1, %v983
        %v985 = vrot.slane %v884, %v984
        %v986 = vlaneseq
        %v987 = vshrl.u32 %v986, 7
        %v988 = vsub.s32 1, %v987
        %v989 = vrot.slane %v885, %v988
        %vm990 = vcmp.lt.s32.totalorder %v872, %v961
        %vm991 = vcmp.lt.s32.totalorder %v873, %v961
        %vm992 = vcmp.lt.s32.totalorder %v874, %v961
        %vm993 = vcmp.lt.s32.totalorder %v875, %v961
        %vm994 = vcmp.lt.s32.totalorder %v876, %v961
        %vm995 = vcmp.lt.s32.totalorder %v872, %v965
        %vm996 = vcmp.lt.s32.totalorder %v873, %v965
        %vm997 = vcmp.lt.s32.totalorder %v874, %v965
        %vm998 = vcmp.lt.s32.totalorder %v875, %v965
        %vm999 = vcmp.lt.s32.totalorder %v876, %v965
        %vm1000 = vcmp.lt.s32.totalorder %v872, %v969
        %vm1001 = vcmp.lt.s32.totalorder %v873, %v969
        %vm1002 = vcmp.lt.s32.totalorder %v874, %v969
        %vm1003 = vcmp.lt.s32.totalorder %v875, %v969
        %vm1004 = vcmp.lt.s32.totalorder %v876, %v969
        %vm1005 = vcmp.lt.s32.totalorder %v872, %v973
        %vm1006 = vcmp.lt.s32.totalorder %v873, %v973
        %vm1007 = vcmp.lt.s32.totalorder %v874, %v973
        %vm1008 = vcmp.lt.s32.totalorder %v875, %v973
        %vm1009 = vcmp.lt.s32.totalorder %v876, %v973
        %vm1010 = vcmp.lt.s32.totalorder %v872, %v977
        %vm1011 = vcmp.lt.s32.totalorder %v873, %v977
        %vm1012 = vcmp.lt.s32.totalorder %v874, %v977
        %vm1013 = vcmp.lt.s32.totalorder %v875, %v977
        %vm1014 = vcmp.lt.s32.totalorder %v876, %v977
        %vm1015 = vcmp.lt.s32.totalorder %v872, %v981
        %vm1016 = vcmp.lt.s32.totalorder %v873, %v981
        %vm1017 = vcmp.lt.s32.totalorder %v874, %v981
        %vm1018 = vcmp.lt.s32.totalorder %v875, %v981
        %vm1019 = vcmp.lt.s32.totalorder %v876, %v981
        %vm1020 = vcmp.lt.s32.totalorder %v872, %v985
        %vm1021 = vcmp.lt.s32.totalorder %v873, %v985
        %vm1022 = vcmp.lt.s32.totalorder %v874, %v985
        %vm1023 = vcmp.lt.s32.totalorder %v875, %v985
        %vm1024 = vcmp.lt.s32.totalorder %v876, %v985
        %vm1025 = vcmp.lt.s32.totalorder %v872, %v989
        %vm1026 = vcmp.lt.s32.totalorder %v873, %v989
        %vm1027 = vcmp.lt.s32.totalorder %v874, %v989
        %vm1028 = vcmp.lt.s32.totalorder %v875, %v989
        %vm1029 = vcmp.lt.s32.totalorder %v876, %v989
        %vm1030 = vmand %vm918, %vm990
        %vm1031 = vmand %vm919, %vm991
        %vm1032 = vmand %vm920, %vm992
        %vm1033 = vmand %vm921, %vm993
        %vm1034 = vmand %vm922, %vm994
        %vm1035 = vmand %vm923, %vm995
        %vm1036 = vmand %vm924, %vm996
        %vm1037 = vmand %vm925, %vm997
        %vm1038 = vmand %vm926, %vm998
        %vm1039 = vmand %vm927, %vm999
        %vm1040 = vmand %vm928, %vm1000
        %vm1041 = vmand %vm929, %vm1001
        %vm1042 = vmand %vm930, %vm1002
        %vm1043 = vmand %vm931, %vm1003
        %vm1044 = vmand %vm932, %vm1004
        %vm1045 = vmand %vm933, %vm1005
        %vm1046 = vmand %vm934, %vm1006
        %vm1047 = vmand %vm935, %vm1007
        %vm1048 = vmand %vm936, %vm1008
        %vm1049 = vmand %vm937, %vm1009
        %vm1050 = vmand %vm938, %vm1010
        %vm1051 = vmand %vm939, %vm1011
        %vm1052 = vmand %vm940, %vm1012
        %vm1053 = vmand %vm941, %vm1013
        %vm1054 = vmand %vm942, %vm1014
        %vm1055 = vmand %vm943, %vm1015
        %vm1056 = vmand %vm944, %vm1016
        %vm1057 = vmand %vm945, %vm1017
        %vm1058 = vmand %vm946, %vm1018
        %vm1059 = vmand %vm947, %vm1019
        %vm1060 = vmand %vm948, %vm1020
        %vm1061 = vmand %vm949, %vm1021
        %vm1062 = vmand %vm950, %vm1022
        %vm1063 = vmand %vm951, %vm1023
        %vm1064 = vmand %vm952, %vm1024
        %vm1065 = vmand %vm953, %vm1025
        %vm1066 = vmand %vm954, %vm1026
        %vm1067 = vmand %vm955, %vm1027
        %vm1068 = vmand %vm956, %vm1028
        %vm1069 = vmand %vm957, %vm1029
        %v1070 = vsel %vm1030, 1, 0
        %v1071 = vsel %vm1031, 1, 0
        %v1072 = vsel %vm1032, 1, 0
        %v1073 = vsel %vm1033, 1, 0
        %v1074 = vsel %vm1034, 1, 0
        %v1075 = vsel %vm1035, 1, 0
        %v1076 = vsel %vm1036, 1, 0
        %v1077 = vsel %vm1037, 1, 0
        %v1078 = vsel %vm1038, 1, 0
        %v1079 = vsel %vm1039, 1, 0
        %v1080 = vsel %vm1040, 1, 0
        %v1081 = vsel %vm1041, 1, 0
        %v1082 = vsel %vm1042, 1, 0
        %v1083 = vsel %vm1043, 1, 0
        %v1084 = vsel %vm1044, 1, 0
        %v1085 = vsel %vm1045, 1, 0
        %v1086 = vsel %vm1046, 1, 0
        %v1087 = vsel %vm1047, 1, 0
        %v1088 = vsel %vm1048, 1, 0
        %v1089 = vsel %vm1049, 1, 0
        %v1090 = vsel %vm1050, 1, 0
        %v1091 = vsel %vm1051, 1, 0
        %v1092 = vsel %vm1052, 1, 0
        %v1093 = vsel %vm1053, 1, 0
        %v1094 = vsel %vm1054, 1, 0
        %v1095 = vsel %vm1055, 1, 0
        %v1096 = vsel %vm1056, 1, 0
        %v1097 = vsel %vm1057, 1, 0
        %v1098 = vsel %vm1058, 1, 0
        %v1099 = vsel %vm1059, 1, 0
        %v1100 = vsel %vm1060, 1, 0
        %v1101 = vsel %vm1061, 1, 0
        %v1102 = vsel %vm1062, 1, 0
        %v1103 = vsel %vm1063, 1, 0
        %v1104 = vsel %vm1064, 1, 0
        %v1105 = vsel %vm1065, 1, 0
        %v1106 = vsel %vm1066, 1, 0
        %v1107 = vsel %vm1067, 1, 0
        %v1108 = vsel %vm1068, 1, 0
        %v1109 = vsel %vm1069, 1, 0
        %1110 = vset.pattern.permute.xlu0 0
        %1111 = vperm.xlu0 %1110, %v1070
        %v1112 = vpop.permute.xlu0 %1111
        %1113 = vset.pattern.permute.xlu0 0
        %1114 = vperm.xlu0 %1113, %v1071
        %v1115 = vpop.permute.xlu0 %1114
        %1116 = vset.pattern.permute.xlu0 0
        %1117 = vperm.xlu0 %1116, %v1072
        %v1118 = vpop.permute.xlu0 %1117
        %1119 = vset.pattern.permute.xlu0 0
        %1120 = vperm.xlu0 %1119, %v1073
        %v1121 = vpop.permute.xlu0 %1120
        %1122 = vset.pattern.permute.xlu0 0
        %1123 = vperm.xlu0 %1122, %v1074
        %v1124 = vpop.permute.xlu0 %1123
        %1125 = vset.pattern.permute.xlu0 0
        %1126 = vperm.xlu0 %1125, %v1075
        %v1127 = vpop.permute.xlu0 %1126
        %1128 = vset.pattern.permute.xlu0 0
        %1129 = vperm.xlu0 %1128, %v1076
        %v1130 = vpop.permute.xlu0 %1129
        %1131 = vset.pattern.permute.xlu0 0
        %1132 = vperm.xlu0 %1131, %v1077
        %v1133 = vpop.permute.xlu0 %1132
        %1134 = vset.pattern.permute.xlu0 0
        %1135 = vperm.xlu0 %1134, %v1078
        %v1136 = vpop.permute.xlu0 %1135
        %1137 = vset.pattern.permute.xlu0 0
        %1138 = vperm.xlu0 %1137, %v1079
        %v1139 = vpop.permute.xlu0 %1138
        %1140 = vset.pattern.permute.xlu0 0
        %1141 = vperm.xlu0 %1140, %v1080
        %v1142 = vpop.permute.xlu0 %1141
        %1143 = vset.pattern.permute.xlu0 0
        %1144 = vperm.xlu0 %1143, %v1081
        %v1145 = vpop.permute.xlu0 %1144
        %1146 = vset.pattern.permute.xlu0 0
        %1147 = vperm.xlu0 %1146, %v1082
        %v1148 = vpop.permute.xlu0 %1147
        %1149 = vset.pattern.permute.xlu0 0
        %1150 = vperm.xlu0 %1149, %v1083
        %v1151 = vpop.permute.xlu0 %1150
        %1152 = vset.pattern.permute.xlu0 0
        %1153 = vperm.xlu0 %1152, %v1084
        %v1154 = vpop.permute.xlu0 %1153
        %1155 = vset.pattern.permute.xlu0 0
        %1156 = vperm.xlu0 %1155, %v1085
        %v1157 = vpop.permute.xlu0 %1156
        %1158 = vset.pattern.permute.xlu0 0
        %1159 = vperm.xlu0 %1158, %v1086
        %v1160 = vpop.permute.xlu0 %1159
        %1161 = vset.pattern.permute.xlu0 0
        %1162 = vperm.xlu0 %1161, %v1087
        %v1163 = vpop.permute.xlu0 %1162
        %1164 = vset.pattern.permute.xlu0 0
        %1165 = vperm.xlu0 %1164, %v1088
        %v1166 = vpop.permute.xlu0 %1165
        %1167 = vset.pattern.permute.xlu0 0
        %1168 = vperm.xlu0 %1167, %v1089
        %v1169 = vpop.permute.xlu0 %1168
        %1170 = vset.pattern.permute.xlu0 0
        %1171 = vperm.xlu0 %1170, %v1090
        %v1172 = vpop.permute.xlu0 %1171
        %1173 = vset.pattern.permute.xlu0 0
        %1174 = vperm.xlu0 %1173, %v1091
        %v1175 = vpop.permute.xlu0 %1174
        %1176 = vset.pattern.permute.xlu0 0
        %1177 = vperm.xlu0 %1176, %v1092
        %v1178 = vpop.permute.xlu0 %1177
        %1179 = vset.pattern.permute.xlu0 0
        %1180 = vperm.xlu0 %1179, %v1093
        %v1181 = vpop.permute.xlu0 %1180
        %1182 = vset.pattern.permute.xlu0 0
        %1183 = vperm.xlu0 %1182, %v1094
        %v1184 = vpop.permute.xlu0 %1183
        %1185 = vset.pattern.permute.xlu0 0
        %1186 = vperm.xlu0 %1185, %v1095
        %v1187 = vpop.permute.xlu0 %1186
        %1188 = vset.pattern.permute.xlu0 0
        %1189 = vperm.xlu0 %1188, %v1096
        %v1190 = vpop.permute.xlu0 %1189
        %1191 = vset.pattern.permute.xlu0 0
        %1192 = vperm.xlu0 %1191, %v1097
        %v1193 = vpop.permute.xlu0 %1192
        %1194 = vset.pattern.permute.xlu0 0
        %1195 = vperm.xlu0 %1194, %v1098
        %v1196 = vpop.permute.xlu0 %1195
        %1197 = vset.pattern.permute.xlu0 0
        %1198 = vperm.xlu0 %1197, %v1099
        %v1199 = vpop.permute.xlu0 %1198
        %1200 = vset.pattern.permute.xlu0 0
        %1201 = vperm.xlu0 %1200, %v1100
        %v1202 = vpop.permute.xlu0 %1201
        %1203 = vset.pattern.permute.xlu0 0
        %1204 = vperm.xlu0 %1203, %v1101
        %v1205 = vpop.permute.xlu0 %1204
        %1206 = vset.pattern.permute.xlu0 0
        %1207 = vperm.xlu0 %1206, %v1102
        %v1208 = vpop.permute.xlu0 %1207
        %1209 = vset.pattern.permute.xlu0 0
        %1210 = vperm.xlu0 %1209, %v1103
        %v1211 = vpop.permute.xlu0 %1210
        %1212 = vset.pattern.permute.xlu0 0
        %1213 = vperm.xlu0 %1212, %v1104
        %v1214 = vpop.permute.xlu0 %1213
        %1215 = vset.pattern.permute.xlu0 0
        %1216 = vperm.xlu0 %1215, %v1105
        %v1217 = vpop.permute.xlu0 %1216
        %1218 = vset.pattern.permute.xlu0 0
        %1219 = vperm.xlu0 %1218, %v1106
        %v1220 = vpop.permute.xlu0 %1219
        %1221 = vset.pattern.permute.xlu0 0
        %1222 = vperm.xlu0 %1221, %v1107
        %v1223 = vpop.permute.xlu0 %1222
        %1224 = vset.pattern.permute.xlu0 0
        %1225 = vperm.xlu0 %1224, %v1108
        %v1226 = vpop.permute.xlu0 %1225
        %1227 = vset.pattern.permute.xlu0 0
        %1228 = vperm.xlu0 %1227, %v1109
        %v1229 = vpop.permute.xlu0 %1228
        %vm1230 = vcmp.eq.s32.totalorder %v1112, 1
        %vm1231 = vcmp.eq.s32.totalorder %v1115, 1
        %vm1232 = vcmp.eq.s32.totalorder %v1118, 1
        %vm1233 = vcmp.eq.s32.totalorder %v1121, 1
        %vm1234 = vcmp.eq.s32.totalorder %v1124, 1
        %vm1235 = vcmp.eq.s32.totalorder %v1127, 1
        %vm1236 = vcmp.eq.s32.totalorder %v1130, 1
        %vm1237 = vcmp.eq.s32.totalorder %v1133, 1
        %vm1238 = vcmp.eq.s32.totalorder %v1136, 1
        %vm1239 = vcmp.eq.s32.totalorder %v1139, 1
        %vm1240 = vcmp.eq.s32.totalorder %v1142, 1
        %vm1241 = vcmp.eq.s32.totalorder %v1145, 1
        %vm1242 = vcmp.eq.s32.totalorder %v1148, 1
        %vm1243 = vcmp.eq.s32.totalorder %v1151, 1
        %vm1244 = vcmp.eq.s32.totalorder %v1154, 1
        %vm1245 = vcmp.eq.s32.totalorder %v1157, 1
        %vm1246 = vcmp.eq.s32.totalorder %v1160, 1
        %vm1247 = vcmp.eq.s32.totalorder %v1163, 1
        %vm1248 = vcmp.eq.s32.totalorder %v1166, 1
        %vm1249 = vcmp.eq.s32.totalorder %v1169, 1
        %vm1250 = vcmp.eq.s32.totalorder %v1172, 1
        %vm1251 = vcmp.eq.s32.totalorder %v1175, 1
        %vm1252 = vcmp.eq.s32.totalorder %v1178, 1
        %vm1253 = vcmp.eq.s32.totalorder %v1181, 1
        %vm1254 = vcmp.eq.s32.totalorder %v1184, 1
        %vm1255 = vcmp.eq.s32.totalorder %v1187, 1
        %vm1256 = vcmp.eq.s32.totalorder %v1190, 1
        %vm1257 = vcmp.eq.s32.totalorder %v1193, 1
        %vm1258 = vcmp.eq.s32.totalorder %v1196, 1
        %vm1259 = vcmp.eq.s32.totalorder %v1199, 1
        %vm1260 = vcmp.eq.s32.totalorder %v1202, 1
        %vm1261 = vcmp.eq.s32.totalorder %v1205, 1
        %vm1262 = vcmp.eq.s32.totalorder %v1208, 1
        %vm1263 = vcmp.eq.s32.totalorder %v1211, 1
        %vm1264 = vcmp.eq.s32.totalorder %v1214, 1
        %vm1265 = vcmp.eq.s32.totalorder %v1217, 1
        %vm1266 = vcmp.eq.s32.totalorder %v1220, 1
        %vm1267 = vcmp.eq.s32.totalorder %v1223, 1
        %vm1268 = vcmp.eq.s32.totalorder %v1226, 1
        %vm1269 = vcmp.eq.s32.totalorder %v1229, 1
        %v1270 = vsel %vm1230, %v824, -1e+30
        %v1271 = vsel %vm1231, %v825, -1e+30
        %v1272 = vsel %vm1232, %v826, -1e+30
        %v1273 = vsel %vm1233, %v827, -1e+30
        %v1274 = vsel %vm1234, %v828, -1e+30
        %v1275 = vsel %vm1235, %v829, -1e+30
        %v1276 = vsel %vm1236, %v830, -1e+30
        %v1277 = vsel %vm1237, %v831, -1e+30
        %v1278 = vsel %vm1238, %v832, -1e+30
        %v1279 = vsel %vm1239, %v833, -1e+30
        %v1280 = vsel %vm1240, %v834, -1e+30
        %v1281 = vsel %vm1241, %v835, -1e+30
        %v1282 = vsel %vm1242, %v836, -1e+30
        %v1283 = vsel %vm1243, %v837, -1e+30
        %v1284 = vsel %vm1244, %v838, -1e+30
        %v1285 = vsel %vm1245, %v839, -1e+30
        %v1286 = vsel %vm1246, %v840, -1e+30
        %v1287 = vsel %vm1247, %v841, -1e+30
        %v1288 = vsel %vm1248, %v842, -1e+30
        %v1289 = vsel %vm1249, %v843, -1e+30
        %v1290 = vsel %vm1250, %v844, -1e+30
        %v1291 = vsel %vm1251, %v845, -1e+30
        %v1292 = vsel %vm1252, %v846, -1e+30
        %v1293 = vsel %vm1253, %v847, -1e+30
        %v1294 = vsel %vm1254, %v848, -1e+30
        %v1295 = vsel %vm1255, %v849, -1e+30
        %v1296 = vsel %vm1256, %v850, -1e+30
        %v1297 = vsel %vm1257, %v851, -1e+30
        %v1298 = vsel %vm1258, %v852, -1e+30
        %v1299 = vsel %vm1259, %v853, -1e+30
        %v1300 = vsel %vm1260, %v854, -1e+30
        %v1301 = vsel %vm1261, %v855, -1e+30
        %v1302 = vsel %vm1262, %v856, -1e+30
        %v1303 = vsel %vm1263, %v857, -1e+30
        %v1304 = vsel %vm1264, %v858, -1e+30
        %v1305 = vsel %vm1265, %v859, -1e+30
        %v1306 = vsel %vm1266, %v860, -1e+30
        %v1307 = vsel %vm1267, %v861, -1e+30
        %v1308 = vsel %vm1268, %v862, -1e+30
        %v1309 = vsel %vm1269, %v863, -1e+30
        %v1310 = vmax.f32 %v1270, %v1271
        %v1311 = vmax.f32 %v1310, %v1272
        %v1312 = vmax.f32 %v1311, %v1273
        %v1313 = vmax.f32 %v1312, %v1274
        %v1314 = vrot.slane %v1313, 4
        %v1315 = vmax.f32 %v1313, %v1314
        %v1316 = vrot.slane %v1315, 2
        %v1317 = vmax.f32 %v1315, %v1316
        %v1318 = vrot.slane %v1317, 1
        %v1319 = vmax.f32 %v1317, %v1318
        %v1320 = vmax.f32 %v1275, %v1276
        %v1321 = vmax.f32 %v1320, %v1277
        %v1322 = vmax.f32 %v1321, %v1278
        %v1323 = vmax.f32 %v1322, %v1279
        %v1324 = vrot.slane %v1323, 4
        %v1325 = vmax.f32 %v1323, %v1324
        %v1326 = vrot.slane %v1325, 2
        %v1327 = vmax.f32 %v1325, %v1326
        %v1328 = vrot.slane %v1327, 1
        %v1329 = vmax.f32 %v1327, %v1328
        %v1330 = vmax.f32 %v1280, %v1281
        %v1331 = vmax.f32 %v1330, %v1282
        %v1332 = vmax.f32 %v1331, %v1283
        %v1333 = vmax.f32 %v1332, %v1284
        %v1334 = vrot.slane %v1333, 4
        %v1335 = vmax.f32 %v1333, %v1334
        %v1336 = vrot.slane %v1335, 2
        %v1337 = vmax.f32 %v1335, %v1336
        %v1338 = vrot.slane %v1337, 1
        %v1339 = vmax.f32 %v1337, %v1338
        %v1340 = vmax.f32 %v1285, %v1286
        %v1341 = vmax.f32 %v1340, %v1287
        %v1342 = vmax.f32 %v1341, %v1288
        %v1343 = vmax.f32 %v1342, %v1289
        %v1344 = vrot.slane %v1343, 4
        %v1345 = vmax.f32 %v1343, %v1344
        %v1346 = vrot.slane %v1345, 2
        %v1347 = vmax.f32 %v1345, %v1346
        %v1348 = vrot.slane %v1347, 1
        %v1349 = vmax.f32 %v1347, %v1348
        %v1350 = vmax.f32 %v1290, %v1291
        %v1351 = vmax.f32 %v1350, %v1292
        %v1352 = vmax.f32 %v1351, %v1293
        %v1353 = vmax.f32 %v1352, %v1294
        %v1354 = vrot.slane %v1353, 4
        %v1355 = vmax.f32 %v1353, %v1354
        %v1356 = vrot.slane %v1355, 2
        %v1357 = vmax.f32 %v1355, %v1356
        %v1358 = vrot.slane %v1357, 1
        %v1359 = vmax.f32 %v1357, %v1358
        %v1360 = vmax.f32 %v1295, %v1296
        %v1361 = vmax.f32 %v1360, %v1297
        %v1362 = vmax.f32 %v1361, %v1298
        %v1363 = vmax.f32 %v1362, %v1299
        %v1364 = vrot.slane %v1363, 4
        %v1365 = vmax.f32 %v1363, %v1364
        %v1366 = vrot.slane %v1365, 2
        %v1367 = vmax.f32 %v1365, %v1366
        %v1368 = vrot.slane %v1367, 1
        %v1369 = vmax.f32 %v1367, %v1368
        %v1370 = vmax.f32 %v1300, %v1301
        %v1371 = vmax.f32 %v1370, %v1302
        %v1372 = vmax.f32 %v1371, %v1303
        %v1373 = vmax.f32 %v1372, %v1304
        %v1374 = vrot.slane %v1373, 4
        %v1375 = vmax.f32 %v1373, %v1374
        %v1376 = vrot.slane %v1375, 2
        %v1377 = vmax.f32 %v1375, %v1376
        %v1378 = vrot.slane %v1377, 1
        %v1379 = vmax.f32 %v1377, %v1378
        %v1380 = vmax.f32 %v1305, %v1306
        %v1381 = vmax.f32 %v1380, %v1307
        %v1382 = vmax.f32 %v1381, %v1308
        %v1383 = vmax.f32 %v1382, %v1309
        %v1384 = vrot.slane %v1383, 4
        %v1385 = vmax.f32 %v1383, %v1384
        %v1386 = vrot.slane %v1385, 2
        %v1387 = vmax.f32 %v1385, %v1386
        %v1388 = vrot.slane %v1387, 1
        %v1389 = vmax.f32 %v1387, %v1388
        %vm1398 = vcmask 1041409
        %v1399 = vsel %vm1398, %v1329, %v1319
        %vm1400 = vcmask 1042434
        %v1401 = vsel %vm1400, %v1339, %v1399
        %vm1402 = vcmask 1043459
        %v1403 = vsel %vm1402, %v1349, %v1401
        %vm1404 = vcmask 1044484
        %v1405 = vsel %vm1404, %v1359, %v1403
        %vm1406 = vcmask 1045509
        %v1407 = vsel %vm1406, %v1369, %v1405
        %vm1408 = vcmask 1046534
        %v1409 = vsel %vm1408, %v1379, %v1407
        %vm1410 = vcmask 1047559
        %v1411 = vsel %vm1410, %v1389, %v1409
        %v1413 = vmax.f32 %v877, %v1411
        %1414 = vst [vmem:[#allocation2] sm:$0xff] %v1413
        %v1415 = vld [vmem:[#allocation3] sm:$0xff]
        %v1416 = vld [vmem:[%s797] sm:$0x3]
        %v1417 = vld [vmem:[%s797 + $0x2] sm:$0x3]
        %v1418 = vld [vmem:[%s797 + $0x4] sm:$0x3]
        %v1419 = vld [vmem:[%s797 + $0x6] sm:$0x3]
        %v1420 = vld [vmem:[%s797 + $0x8] sm:$0x3]
        %v1421 = vld [vmem:[%s797 + $0xa] sm:$0x3]
        %v1422 = vld [vmem:[%s797 + $0xc] sm:$0x3]
        %v1423 = vld [vmem:[%s797 + $0xe] sm:$0x3]
        %v1424 = vlaneseq
        %v1425 = vshrl.u32 %v1424, 7
        %v1426 = vsub.s32 0, %v1425
        %v1427 = vrot.slane %v1416, %v1426
        %v1428 = vlaneseq
        %v1429 = vshrl.u32 %v1428, 7
        %v1430 = vsub.s32 0, %v1429
        %v1431 = vrot.slane %v1417, %v1430
        %v1432 = vlaneseq
        %v1433 = vshrl.u32 %v1432, 7
        %v1434 = vsub.s32 0, %v1433
        %v1435 = vrot.slane %v1418, %v1434
        %v1436 = vlaneseq
        %v1437 = vshrl.u32 %v1436, 7
        %v1438 = vsub.s32 0, %v1437
        %v1439 = vrot.slane %v1419, %v1438
        %v1440 = vlaneseq
        %v1441 = vshrl.u32 %v1440, 7
        %v1442 = vsub.s32 0, %v1441
        %v1443 = vrot.slane %v1420, %v1442
        %v1444 = vlaneseq
        %v1445 = vshrl.u32 %v1444, 7
        %v1446 = vsub.s32 0, %v1445
        %v1447 = vrot.slane %v1421, %v1446
        %v1448 = vlaneseq
        %v1449 = vshrl.u32 %v1448, 7
        %v1450 = vsub.s32 0, %v1449
        %v1451 = vrot.slane %v1422, %v1450
        %v1452 = vlaneseq
        %v1453 = vshrl.u32 %v1452, 7
        %v1454 = vsub.s32 0, %v1453
        %v1455 = vrot.slane %v1423, %v1454
        %vm1456 = vcmp.ge.s32.totalorder %v872, %v1427
        %vm1457 = vcmp.ge.s32.totalorder %v873, %v1427
        %vm1458 = vcmp.ge.s32.totalorder %v874, %v1427
        %vm1459 = vcmp.ge.s32.totalorder %v875, %v1427
        %vm1460 = vcmp.ge.s32.totalorder %v876, %v1427
        %vm1461 = vcmp.ge.s32.totalorder %v872, %v1431
        %vm1462 = vcmp.ge.s32.totalorder %v873, %v1431
        %vm1463 = vcmp.ge.s32.totalorder %v874, %v1431
        %vm1464 = vcmp.ge.s32.totalorder %v875, %v1431
        %vm1465 = vcmp.ge.s32.totalorder %v876, %v1431
        %vm1466 = vcmp.ge.s32.totalorder %v872, %v1435
        %vm1467 = vcmp.ge.s32.totalorder %v873, %v1435
        %vm1468 = vcmp.ge.s32.totalorder %v874, %v1435
        %vm1469 = vcmp.ge.s32.totalorder %v875, %v1435
        %vm1470 = vcmp.ge.s32.totalorder %v876, %v1435
        %vm1471 = vcmp.ge.s32.totalorder %v872, %v1439
        %vm1472 = vcmp.ge.s32.totalorder %v873, %v1439
        %vm1473 = vcmp.ge.s32.totalorder %v874, %v1439
        %vm1474 = vcmp.ge.s32.totalorder %v875, %v1439
        %vm1475 = vcmp.ge.s32.totalorder %v876, %v1439
        %vm1476 = vcmp.ge.s32.totalorder %v872, %v1443
        %vm1477 = vcmp.ge.s32.totalorder %v873, %v1443
        %vm1478 = vcmp.ge.s32.totalorder %v874, %v1443
        %vm1479 = vcmp.ge.s32.totalorder %v875, %v1443
        %vm1480 = vcmp.ge.s32.totalorder %v876, %v1443
        %vm1481 = vcmp.ge.s32.totalorder %v872, %v1447
        %vm1482 = vcmp.ge.s32.totalorder %v873, %v1447
        %vm1483 = vcmp.ge.s32.totalorder %v874, %v1447
        %vm1484 = vcmp.ge.s32.totalorder %v875, %v1447
        %vm1485 = vcmp.ge.s32.totalorder %v876, %v1447
        %vm1486 = vcmp.ge.s32.totalorder %v872, %v1451
        %vm1487 = vcmp.ge.s32.totalorder %v873, %v1451
        %vm1488 = vcmp.ge.s32.totalorder %v874, %v1451
        %vm1489 = vcmp.ge.s32.totalorder %v875, %v1451
        %vm1490 = vcmp.ge.s32.totalorder %v876, %v1451
        %vm1491 = vcmp.ge.s32.totalorder %v872, %v1455
        %vm1492 = vcmp.ge.s32.totalorder %v873, %v1455
        %vm1493 = vcmp.ge.s32.totalorder %v874, %v1455
        %vm1494 = vcmp.ge.s32.totalorder %v875, %v1455
        %vm1495 = vcmp.ge.s32.totalorder %v876, %v1455
        %v1496 = vlaneseq
        %v1497 = vshrl.u32 %v1496, 7
        %v1498 = vsub.s32 1, %v1497
        %v1499 = vrot.slane %v1416, %v1498
        %v1500 = vlaneseq
        %v1501 = vshrl.u32 %v1500, 7
        %v1502 = vsub.s32 1, %v1501
        %v1503 = vrot.slane %v1417, %v1502
        %v1504 = vlaneseq
        %v1505 = vshrl.u32 %v1504, 7
        %v1506 = vsub.s32 1, %v1505
        %v1507 = vrot.slane %v1418, %v1506
        %v1508 = vlaneseq
        %v1509 = vshrl.u32 %v1508, 7
        %v1510 = vsub.s32 1, %v1509
        %v1511 = vrot.slane %v1419, %v1510
        %v1512 = vlaneseq
        %v1513 = vshrl.u32 %v1512, 7
        %v1514 = vsub.s32 1, %v1513
        %v1515 = vrot.slane %v1420, %v1514
        %v1516 = vlaneseq
        %v1517 = vshrl.u32 %v1516, 7
        %v1518 = vsub.s32 1, %v1517
        %v1519 = vrot.slane %v1421, %v1518
        %v1520 = vlaneseq
        %v1521 = vshrl.u32 %v1520, 7
        %v1522 = vsub.s32 1, %v1521
        %v1523 = vrot.slane %v1422, %v1522
        %v1524 = vlaneseq
        %v1525 = vshrl.u32 %v1524, 7
        %v1526 = vsub.s32 1, %v1525
        %v1527 = vrot.slane %v1423, %v1526
        %vm1528 = vcmp.lt.s32.totalorder %v872, %v1499
        %vm1529 = vcmp.lt.s32.totalorder %v873, %v1499
        %vm1530 = vcmp.lt.s32.totalorder %v874, %v1499
        %vm1531 = vcmp.lt.s32.totalorder %v875, %v1499
        %vm1532 = vcmp.lt.s32.totalorder %v876, %v1499
        %vm1533 = vcmp.lt.s32.totalorder %v872, %v1503
        %vm1534 = vcmp.lt.s32.totalorder %v873, %v1503
        %vm1535 = vcmp.lt.s32.totalorder %v874, %v1503
        %vm1536 = vcmp.lt.s32.totalorder %v875, %v1503
        %vm1537 = vcmp.lt.s32.totalorder %v876, %v1503
        %vm1538 = vcmp.lt.s32.totalorder %v872, %v1507
        %vm1539 = vcmp.lt.s32.totalorder %v873, %v1507
        %vm1540 = vcmp.lt.s32.totalorder %v874, %v1507
        %vm1541 = vcmp.lt.s32.totalorder %v875, %v1507
        %vm1542 = vcmp.lt.s32.totalorder %v876, %v1507
        %vm1543 = vcmp.lt.s32.totalorder %v872, %v1511
        %vm1544 = vcmp.lt.s32.totalorder %v873, %v1511
        %vm1545 = vcmp.lt.s32.totalorder %v874, %v1511
        %vm1546 = vcmp.lt.s32.totalorder %v875, %v1511
        %vm1547 = vcmp.lt.s32.totalorder %v876, %v1511
        %vm1548 = vcmp.lt.s32.totalorder %v872, %v1515
        %vm1549 = vcmp.lt.s32.totalorder %v873, %v1515
        %vm1550 = vcmp.lt.s32.totalorder %v874, %v1515
        %vm1551 = vcmp.lt.s32.totalorder %v875, %v1515
        %vm1552 = vcmp.lt.s32.totalorder %v876, %v1515
        %vm1553 = vcmp.lt.s32.totalorder %v872, %v1519
        %vm1554 = vcmp.lt.s32.totalorder %v873, %v1519
        %vm1555 = vcmp.lt.s32.totalorder %v874, %v1519
        %vm1556 = vcmp.lt.s32.totalorder %v875, %v1519
        %vm1557 = vcmp.lt.s32.totalorder %v876, %v1519
        %vm1558 = vcmp.lt.s32.totalorder %v872, %v1523
        %vm1559 = vcmp.lt.s32.totalorder %v873, %v1523
        %vm1560 = vcmp.lt.s32.totalorder %v874, %v1523
        %vm1561 = vcmp.lt.s32.totalorder %v875, %v1523
        %vm1562 = vcmp.lt.s32.totalorder %v876, %v1523
        %vm1563 = vcmp.lt.s32.totalorder %v872, %v1527
        %vm1564 = vcmp.lt.s32.totalorder %v873, %v1527
        %vm1565 = vcmp.lt.s32.totalorder %v874, %v1527
        %vm1566 = vcmp.lt.s32.totalorder %v875, %v1527
        %vm1567 = vcmp.lt.s32.totalorder %v876, %v1527
        %vm1568 = vmand %vm1456, %vm1528
        %vm1569 = vmand %vm1457, %vm1529
        %vm1570 = vmand %vm1458, %vm1530
        %vm1571 = vmand %vm1459, %vm1531
        %vm1572 = vmand %vm1460, %vm1532
        %vm1573 = vmand %vm1461, %vm1533
        %vm1574 = vmand %vm1462, %vm1534
        %vm1575 = vmand %vm1463, %vm1535
        %vm1576 = vmand %vm1464, %vm1536
        %vm1577 = vmand %vm1465, %vm1537
        %vm1578 = vmand %vm1466, %vm1538
        %vm1579 = vmand %vm1467, %vm1539
        %vm1580 = vmand %vm1468, %vm1540
        %vm1581 = vmand %vm1469, %vm1541
        %vm1582 = vmand %vm1470, %vm1542
        %vm1583 = vmand %vm1471, %vm1543
        %vm1584 = vmand %vm1472, %vm1544
        %vm1585 = vmand %vm1473, %vm1545
        %vm1586 = vmand %vm1474, %vm1546
        %vm1587 = vmand %vm1475, %vm1547
        %vm1588 = vmand %vm1476, %vm1548
        %vm1589 = vmand %vm1477, %vm1549
        %vm1590 = vmand %vm1478, %vm1550
        %vm1591 = vmand %vm1479, %vm1551
        %vm1592 = vmand %vm1480, %vm1552
        %vm1593 = vmand %vm1481, %vm1553
        %vm1594 = vmand %vm1482, %vm1554
        %vm1595 = vmand %vm1483, %vm1555
        %vm1596 = vmand %vm1484, %vm1556
        %vm1597 = vmand %vm1485, %vm1557
        %vm1598 = vmand %vm1486, %vm1558
        %vm1599 = vmand %vm1487, %vm1559
        %vm1600 = vmand %vm1488, %vm1560
        %vm1601 = vmand %vm1489, %vm1561
        %vm1602 = vmand %vm1490, %vm1562
        %vm1603 = vmand %vm1491, %vm1563
        %vm1604 = vmand %vm1492, %vm1564
        %vm1605 = vmand %vm1493, %vm1565
        %vm1606 = vmand %vm1494, %vm1566
        %vm1607 = vmand %vm1495, %vm1567
        %v1608 = vsel %vm1568, 1, 0
        %v1609 = vsel %vm1569, 1, 0
        %v1610 = vsel %vm1570, 1, 0
        %v1611 = vsel %vm1571, 1, 0
        %v1612 = vsel %vm1572, 1, 0
        %v1613 = vsel %vm1573, 1, 0
        %v1614 = vsel %vm1574, 1, 0
        %v1615 = vsel %vm1575, 1, 0
        %v1616 = vsel %vm1576, 1, 0
        %v1617 = vsel %vm1577, 1, 0
        %v1618 = vsel %vm1578, 1, 0
        %v1619 = vsel %vm1579, 1, 0
        %v1620 = vsel %vm1580, 1, 0
        %v1621 = vsel %vm1581, 1, 0
        %v1622 = vsel %vm1582, 1, 0
        %v1623 = vsel %vm1583, 1, 0
        %v1624 = vsel %vm1584, 1, 0
        %v1625 = vsel %vm1585, 1, 0
        %v1626 = vsel %vm1586, 1, 0
        %v1627 = vsel %vm1587, 1, 0
        %v1628 = vsel %vm1588, 1, 0
        %v1629 = vsel %vm1589, 1, 0
        %v1630 = vsel %vm1590, 1, 0
        %v1631 = vsel %vm1591, 1, 0
        %v1632 = vsel %vm1592, 1, 0
        %v1633 = vsel %vm1593, 1, 0
        %v1634 = vsel %vm1594, 1, 0
        %v1635 = vsel %vm1595, 1, 0
        %v1636 = vsel %vm1596, 1, 0
        %v1637 = vsel %vm1597, 1, 0
        %v1638 = vsel %vm1598, 1, 0
        %v1639 = vsel %vm1599, 1, 0
        %v1640 = vsel %vm1600, 1, 0
        %v1641 = vsel %vm1601, 1, 0
        %v1642 = vsel %vm1602, 1, 0
        %v1643 = vsel %vm1603, 1, 0
        %v1644 = vsel %vm1604, 1, 0
        %v1645 = vsel %vm1605, 1, 0
        %v1646 = vsel %vm1606, 1, 0
        %v1647 = vsel %vm1607, 1, 0
        %1648 = vset.pattern.permute.xlu0 0
        %1649 = vperm.xlu0 %1648, %v1608
        %v1650 = vpop.permute.xlu0 %1649
        %1651 = vset.pattern.permute.xlu0 0
        %1652 = vperm.xlu0 %1651, %v1609
        %v1653 = vpop.permute.xlu0 %1652
        %1654 = vset.pattern.permute.xlu0 0
        %1655 = vperm.xlu0 %1654, %v1610
        %v1656 = vpop.permute.xlu0 %1655
        %1657 = vset.pattern.permute.xlu0 0
        %1658 = vperm.xlu0 %1657, %v1611
        %v1659 = vpop.permute.xlu0 %1658
        %1660 = vset.pattern.permute.xlu0 0
        %1661 = vperm.xlu0 %1660, %v1612
        %v1662 = vpop.permute.xlu0 %1661
        %1663 = vset.pattern.permute.xlu0 0
        %1664 = vperm.xlu0 %1663, %v1613
        %v1665 = vpop.permute.xlu0 %1664
        %1666 = vset.pattern.permute.xlu0 0
        %1667 = vperm.xlu0 %1666, %v1614
        %v1668 = vpop.permute.xlu0 %1667
        %1669 = vset.pattern.permute.xlu0 0
        %1670 = vperm.xlu0 %1669, %v1615
        %v1671 = vpop.permute.xlu0 %1670
        %1672 = vset.pattern.permute.xlu0 0
        %1673 = vperm.xlu0 %1672, %v1616
        %v1674 = vpop.permute.xlu0 %1673
        %1675 = vset.pattern.permute.xlu0 0
        %1676 = vperm.xlu0 %1675, %v1617
        %v1677 = vpop.permute.xlu0 %1676
        %1678 = vset.pattern.permute.xlu0 0
        %1679 = vperm.xlu0 %1678, %v1618
        %v1680 = vpop.permute.xlu0 %1679
        %1681 = vset.pattern.permute.xlu0 0
        %1682 = vperm.xlu0 %1681, %v1619
        %v1683 = vpop.permute.xlu0 %1682
        %1684 = vset.pattern.permute.xlu0 0
        %1685 = vperm.xlu0 %1684, %v1620
        %v1686 = vpop.permute.xlu0 %1685
        %1687 = vset.pattern.permute.xlu0 0
        %1688 = vperm.xlu0 %1687, %v1621
        %v1689 = vpop.permute.xlu0 %1688
        %1690 = vset.pattern.permute.xlu0 0
        %1691 = vperm.xlu0 %1690, %v1622
        %v1692 = vpop.permute.xlu0 %1691
        %1693 = vset.pattern.permute.xlu0 0
        %1694 = vperm.xlu0 %1693, %v1623
        %v1695 = vpop.permute.xlu0 %1694
        %1696 = vset.pattern.permute.xlu0 0
        %1697 = vperm.xlu0 %1696, %v1624
        %v1698 = vpop.permute.xlu0 %1697
        %1699 = vset.pattern.permute.xlu0 0
        %1700 = vperm.xlu0 %1699, %v1625
        %v1701 = vpop.permute.xlu0 %1700
        %1702 = vset.pattern.permute.xlu0 0
        %1703 = vperm.xlu0 %1702, %v1626
        %v1704 = vpop.permute.xlu0 %1703
        %1705 = vset.pattern.permute.xlu0 0
        %1706 = vperm.xlu0 %1705, %v1627
        %v1707 = vpop.permute.xlu0 %1706
        %1708 = vset.pattern.permute.xlu0 0
        %1709 = vperm.xlu0 %1708, %v1628
        %v1710 = vpop.permute.xlu0 %1709
        %1711 = vset.pattern.permute.xlu0 0
        %1712 = vperm.xlu0 %1711, %v1629
        %v1713 = vpop.permute.xlu0 %1712
        %1714 = vset.pattern.permute.xlu0 0
        %1715 = vperm.xlu0 %1714, %v1630
        %v1716 = vpop.permute.xlu0 %1715
        %1717 = vset.pattern.permute.xlu0 0
        %1718 = vperm.xlu0 %1717, %v1631
        %v1719 = vpop.permute.xlu0 %1718
        %1720 = vset.pattern.permute.xlu0 0
        %1721 = vperm.xlu0 %1720, %v1632
        %v1722 = vpop.permute.xlu0 %1721
        %1723 = vset.pattern.permute.xlu0 0
        %1724 = vperm.xlu0 %1723, %v1633
        %v1725 = vpop.permute.xlu0 %1724
        %1726 = vset.pattern.permute.xlu0 0
        %1727 = vperm.xlu0 %1726, %v1634
        %v1728 = vpop.permute.xlu0 %1727
        %1729 = vset.pattern.permute.xlu0 0
        %1730 = vperm.xlu0 %1729, %v1635
        %v1731 = vpop.permute.xlu0 %1730
        %1732 = vset.pattern.permute.xlu0 0
        %1733 = vperm.xlu0 %1732, %v1636
        %v1734 = vpop.permute.xlu0 %1733
        %1735 = vset.pattern.permute.xlu0 0
        %1736 = vperm.xlu0 %1735, %v1637
        %v1737 = vpop.permute.xlu0 %1736
        %1738 = vset.pattern.permute.xlu0 0
        %1739 = vperm.xlu0 %1738, %v1638
        %v1740 = vpop.permute.xlu0 %1739
        %1741 = vset.pattern.permute.xlu0 0
        %1742 = vperm.xlu0 %1741, %v1639
        %v1743 = vpop.permute.xlu0 %1742
        %1744 = vset.pattern.permute.xlu0 0
        %1745 = vperm.xlu0 %1744, %v1640
        %v1746 = vpop.permute.xlu0 %1745
        %1747 = vset.pattern.permute.xlu0 0
        %1748 = vperm.xlu0 %1747, %v1641
        %v1749 = vpop.permute.xlu0 %1748
        %1750 = vset.pattern.permute.xlu0 0
        %1751 = vperm.xlu0 %1750, %v1642
        %v1752 = vpop.permute.xlu0 %1751
        %1753 = vset.pattern.permute.xlu0 0
        %1754 = vperm.xlu0 %1753, %v1643
        %v1755 = vpop.permute.xlu0 %1754
        %1756 = vset.pattern.permute.xlu0 0
        %1757 = vperm.xlu0 %1756, %v1644
        %v1758 = vpop.permute.xlu0 %1757
        %1759 = vset.pattern.permute.xlu0 0
        %1760 = vperm.xlu0 %1759, %v1645
        %v1761 = vpop.permute.xlu0 %1760
        %1762 = vset.pattern.permute.xlu0 0
        %1763 = vperm.xlu0 %1762, %v1646
        %v1764 = vpop.permute.xlu0 %1763
        %1765 = vset.pattern.permute.xlu0 0
        %1766 = vperm.xlu0 %1765, %v1647
        %v1767 = vpop.permute.xlu0 %1766
        %vm1768 = vcmp.eq.s32.totalorder %v1650, 1
        %vm1769 = vcmp.eq.s32.totalorder %v1653, 1
        %vm1770 = vcmp.eq.s32.totalorder %v1656, 1
        %vm1771 = vcmp.eq.s32.totalorder %v1659, 1
        %vm1772 = vcmp.eq.s32.totalorder %v1662, 1
        %vm1773 = vcmp.eq.s32.totalorder %v1665, 1
        %vm1774 = vcmp.eq.s32.totalorder %v1668, 1
        %vm1775 = vcmp.eq.s32.totalorder %v1671, 1
        %vm1776 = vcmp.eq.s32.totalorder %v1674, 1
        %vm1777 = vcmp.eq.s32.totalorder %v1677, 1
        %vm1778 = vcmp.eq.s32.totalorder %v1680, 1
        %vm1779 = vcmp.eq.s32.totalorder %v1683, 1
        %vm1780 = vcmp.eq.s32.totalorder %v1686, 1
        %vm1781 = vcmp.eq.s32.totalorder %v1689, 1
        %vm1782 = vcmp.eq.s32.totalorder %v1692, 1
        %vm1783 = vcmp.eq.s32.totalorder %v1695, 1
        %vm1784 = vcmp.eq.s32.totalorder %v1698, 1
        %vm1785 = vcmp.eq.s32.totalorder %v1701, 1
        %vm1786 = vcmp.eq.s32.totalorder %v1704, 1
        %vm1787 = vcmp.eq.s32.totalorder %v1707, 1
        %vm1788 = vcmp.eq.s32.totalorder %v1710, 1
        %vm1789 = vcmp.eq.s32.totalorder %v1713, 1
        %vm1790 = vcmp.eq.s32.totalorder %v1716, 1
        %vm1791 = vcmp.eq.s32.totalorder %v1719, 1
        %vm1792 = vcmp.eq.s32.totalorder %v1722, 1
        %vm1793 = vcmp.eq.s32.totalorder %v1725, 1
        %vm1794 = vcmp.eq.s32.totalorder %v1728, 1
        %vm1795 = vcmp.eq.s32.totalorder %v1731, 1
        %vm1796 = vcmp.eq.s32.totalorder %v1734, 1
        %vm1797 = vcmp.eq.s32.totalorder %v1737, 1
        %vm1798 = vcmp.eq.s32.totalorder %v1740, 1
        %vm1799 = vcmp.eq.s32.totalorder %v1743, 1
        %vm1800 = vcmp.eq.s32.totalorder %v1746, 1
        %vm1801 = vcmp.eq.s32.totalorder %v1749, 1
        %vm1802 = vcmp.eq.s32.totalorder %v1752, 1
        %vm1803 = vcmp.eq.s32.totalorder %v1755, 1
        %vm1804 = vcmp.eq.s32.totalorder %v1758, 1
        %vm1805 = vcmp.eq.s32.totalorder %v1761, 1
        %vm1806 = vcmp.eq.s32.totalorder %v1764, 1
        %vm1807 = vcmp.eq.s32.totalorder %v1767, 1
        %v1808 = vsel %vm1768, %v824, -1e+30
        %v1809 = vsel %vm1769, %v825, -1e+30
        %v1810 = vsel %vm1770, %v826, -1e+30
        %v1811 = vsel %vm1771, %v827, -1e+30
        %v1812 = vsel %vm1772, %v828, -1e+30
        %v1813 = vsel %vm1773, %v829, -1e+30
        %v1814 = vsel %vm1774, %v830, -1e+30
        %v1815 = vsel %vm1775, %v831, -1e+30
        %v1816 = vsel %vm1776, %v832, -1e+30
        %v1817 = vsel %vm1777, %v833, -1e+30
        %v1818 = vsel %vm1778, %v834, -1e+30
        %v1819 = vsel %vm1779, %v835, -1e+30
        %v1820 = vsel %vm1780, %v836, -1e+30
        %v1821 = vsel %vm1781, %v837, -1e+30
        %v1822 = vsel %vm1782, %v838, -1e+30
        %v1823 = vsel %vm1783, %v839, -1e+30
        %v1824 = vsel %vm1784, %v840, -1e+30
        %v1825 = vsel %vm1785, %v841, -1e+30
        %v1826 = vsel %vm1786, %v842, -1e+30
        %v1827 = vsel %vm1787, %v843, -1e+30
        %v1828 = vsel %vm1788, %v844, -1e+30
        %v1829 = vsel %vm1789, %v845, -1e+30
        %v1830 = vsel %vm1790, %v846, -1e+30
        %v1831 = vsel %vm1791, %v847, -1e+30
        %v1832 = vsel %vm1792, %v848, -1e+30
        %v1833 = vsel %vm1793, %v849, -1e+30
        %v1834 = vsel %vm1794, %v850, -1e+30
        %v1835 = vsel %vm1795, %v851, -1e+30
        %v1836 = vsel %vm1796, %v852, -1e+30
        %v1837 = vsel %vm1797, %v853, -1e+30
        %v1838 = vsel %vm1798, %v854, -1e+30
        %v1839 = vsel %vm1799, %v855, -1e+30
        %v1840 = vsel %vm1800, %v856, -1e+30
        %v1841 = vsel %vm1801, %v857, -1e+30
        %v1842 = vsel %vm1802, %v858, -1e+30
        %v1843 = vsel %vm1803, %v859, -1e+30
        %v1844 = vsel %vm1804, %v860, -1e+30
        %v1845 = vsel %vm1805, %v861, -1e+30
        %v1846 = vsel %vm1806, %v862, -1e+30
        %v1847 = vsel %vm1807, %v863, -1e+30
        %v1848 = vmax.f32 %v1808, %v1809
        %v1849 = vmax.f32 %v1848, %v1810
        %v1850 = vmax.f32 %v1849, %v1811
        %v1851 = vmax.f32 %v1850, %v1812
        %v1852 = vrot.slane %v1851, 4
        %v1853 = vmax.f32 %v1851, %v1852
        %v1854 = vrot.slane %v1853, 2
        %v1855 = vmax.f32 %v1853, %v1854
        %v1856 = vrot.slane %v1855, 1
        %v1857 = vmax.f32 %v1855, %v1856
        %v1858 = vmax.f32 %v1813, %v1814
        %v1859 = vmax.f32 %v1858, %v1815
        %v1860 = vmax.f32 %v1859, %v1816
        %v1861 = vmax.f32 %v1860, %v1817
        %v1862 = vrot.slane %v1861, 4
        %v1863 = vmax.f32 %v1861, %v1862
        %v1864 = vrot.slane %v1863, 2
        %v1865 = vmax.f32 %v1863, %v1864
        %v1866 = vrot.slane %v1865, 1
        %v1867 = vmax.f32 %v1865, %v1866
        %v1868 = vmax.f32 %v1818, %v1819
        %v1869 = vmax.f32 %v1868, %v1820
        %v1870 = vmax.f32 %v1869, %v1821
        %v1871 = vmax.f32 %v1870, %v1822
        %v1872 = vrot.slane %v1871, 4
        %v1873 = vmax.f32 %v1871, %v1872
        %v1874 = vrot.slane %v1873, 2
        %v1875 = vmax.f32 %v1873, %v1874
        %v1876 = vrot.slane %v1875, 1
        %v1877 = vmax.f32 %v1875, %v1876
        %v1878 = vmax.f32 %v1823, %v1824
        %v1879 = vmax.f32 %v1878, %v1825
        %v1880 = vmax.f32 %v1879, %v1826
        %v1881 = vmax.f32 %v1880, %v1827
        %v1882 = vrot.slane %v1881, 4
        %v1883 = vmax.f32 %v1881, %v1882
        %v1884 = vrot.slane %v1883, 2
        %v1885 = vmax.f32 %v1883, %v1884
        %v1886 = vrot.slane %v1885, 1
        %v1887 = vmax.f32 %v1885, %v1886
        %v1888 = vmax.f32 %v1828, %v1829
        %v1889 = vmax.f32 %v1888, %v1830
        %v1890 = vmax.f32 %v1889, %v1831
        %v1891 = vmax.f32 %v1890, %v1832
        %v1892 = vrot.slane %v1891, 4
        %v1893 = vmax.f32 %v1891, %v1892
        %v1894 = vrot.slane %v1893, 2
        %v1895 = vmax.f32 %v1893, %v1894
        %v1896 = vrot.slane %v1895, 1
        %v1897 = vmax.f32 %v1895, %v1896
        %v1898 = vmax.f32 %v1833, %v1834
        %v1899 = vmax.f32 %v1898, %v1835
        %v1900 = vmax.f32 %v1899, %v1836
        %v1901 = vmax.f32 %v1900, %v1837
        %v1902 = vrot.slane %v1901, 4
        %v1903 = vmax.f32 %v1901, %v1902
        %v1904 = vrot.slane %v1903, 2
        %v1905 = vmax.f32 %v1903, %v1904
        %v1906 = vrot.slane %v1905, 1
        %v1907 = vmax.f32 %v1905, %v1906
        %v1908 = vmax.f32 %v1838, %v1839
        %v1909 = vmax.f32 %v1908, %v1840
        %v1910 = vmax.f32 %v1909, %v1841
        %v1911 = vmax.f32 %v1910, %v1842
        %v1912 = vrot.slane %v1911, 4
        %v1913 = vmax.f32 %v1911, %v1912
        %v1914 = vrot.slane %v1913, 2
        %v1915 = vmax.f32 %v1913, %v1914
        %v1916 = vrot.slane %v1915, 1
        %v1917 = vmax.f32 %v1915, %v1916
        %v1918 = vmax.f32 %v1843, %v1844
        %v1919 = vmax.f32 %v1918, %v1845
        %v1920 = vmax.f32 %v1919, %v1846
        %v1921 = vmax.f32 %v1920, %v1847
        %v1922 = vrot.slane %v1921, 4
        %v1923 = vmax.f32 %v1921, %v1922
        %v1924 = vrot.slane %v1923, 2
        %v1925 = vmax.f32 %v1923, %v1924
        %v1926 = vrot.slane %v1925, 1
        %v1927 = vmax.f32 %v1925, %v1926
        %v1936 = vsel %vm1398, %v1867, %v1857
        %v1937 = vsel %vm1400, %v1877, %v1936
        %v1938 = vsel %vm1402, %v1887, %v1937
        %v1939 = vsel %vm1404, %v1897, %v1938
        %v1940 = vsel %vm1406, %v1907, %v1939
        %v1941 = vsel %vm1408, %v1917, %v1940
        %v1942 = vsel %vm1410, %v1927, %v1941
        %v1944 = vmax.f32 %v1415, %v1942
        %1945 = vst [vmem:[#allocation3] sm:$0xff] %v1944
        %v1946 = vld [vmem:[#allocation4] sm:$0xff]
        %v1947 = vld [vmem:[%s803] sm:$0x3]
        %v1948 = vld [vmem:[%s803 + $0x2] sm:$0x3]
        %v1949 = vld [vmem:[%s803 + $0x4] sm:$0x3]
        %v1950 = vld [vmem:[%s803 + $0x6] sm:$0x3]
        %v1951 = vld [vmem:[%s803 + $0x8] sm:$0x3]
        %v1952 = vld [vmem:[%s803 + $0xa] sm:$0x3]
        %v1953 = vld [vmem:[%s803 + $0xc] sm:$0x3]
        %v1954 = vld [vmem:[%s803 + $0xe] sm:$0x3]
        %v1955 = vlaneseq
        %v1956 = vshrl.u32 %v1955, 7
        %v1957 = vsub.s32 0, %v1956
        %v1958 = vrot.slane %v1947, %v1957
        %v1959 = vlaneseq
        %v1960 = vshrl.u32 %v1959, 7
        %v1961 = vsub.s32 0, %v1960
        %v1962 = vrot.slane %v1948, %v1961
        %v1963 = vlaneseq
        %v1964 = vshrl.u32 %v1963, 7
        %v1965 = vsub.s32 0, %v1964
        %v1966 = vrot.slane %v1949, %v1965
        %v1967 = vlaneseq
        %v1968 = vshrl.u32 %v1967, 7
        %v1969 = vsub.s32 0, %v1968
        %v1970 = vrot.slane %v1950, %v1969
        %v1971 = vlaneseq
        %v1972 = vshrl.u32 %v1971, 7
        %v1973 = vsub.s32 0, %v1972
        %v1974 = vrot.slane %v1951, %v1973
        %v1975 = vlaneseq
        %v1976 = vshrl.u32 %v1975, 7
        %v1977 = vsub.s32 0, %v1976
        %v1978 = vrot.slane %v1952, %v1977
        %v1979 = vlaneseq
        %v1980 = vshrl.u32 %v1979, 7
        %v1981 = vsub.s32 0, %v1980
        %v1982 = vrot.slane %v1953, %v1981
        %v1983 = vlaneseq
        %v1984 = vshrl.u32 %v1983, 7
        %v1985 = vsub.s32 0, %v1984
        %v1986 = vrot.slane %v1954, %v1985
        %vm1987 = vcmp.ge.s32.totalorder %v872, %v1958
        %vm1988 = vcmp.ge.s32.totalorder %v873, %v1958
        %vm1989 = vcmp.ge.s32.totalorder %v874, %v1958
        %vm1990 = vcmp.ge.s32.totalorder %v875, %v1958
        %vm1991 = vcmp.ge.s32.totalorder %v876, %v1958
        %vm1992 = vcmp.ge.s32.totalorder %v872, %v1962
        %vm1993 = vcmp.ge.s32.totalorder %v873, %v1962
        %vm1994 = vcmp.ge.s32.totalorder %v874, %v1962
        %vm1995 = vcmp.ge.s32.totalorder %v875, %v1962
        %vm1996 = vcmp.ge.s32.totalorder %v876, %v1962
        %vm1997 = vcmp.ge.s32.totalorder %v872, %v1966
        %vm1998 = vcmp.ge.s32.totalorder %v873, %v1966
        %vm1999 = vcmp.ge.s32.totalorder %v874, %v1966
        %vm2000 = vcmp.ge.s32.totalorder %v875, %v1966
        %vm2001 = vcmp.ge.s32.totalorder %v876, %v1966
        %vm2002 = vcmp.ge.s32.totalorder %v872, %v1970
        %vm2003 = vcmp.ge.s32.totalorder %v873, %v1970
        %vm2004 = vcmp.ge.s32.totalorder %v874, %v1970
        %vm2005 = vcmp.ge.s32.totalorder %v875, %v1970
        %vm2006 = vcmp.ge.s32.totalorder %v876, %v1970
        %vm2007 = vcmp.ge.s32.totalorder %v872, %v1974
        %vm2008 = vcmp.ge.s32.totalorder %v873, %v1974
        %vm2009 = vcmp.ge.s32.totalorder %v874, %v1974
        %vm2010 = vcmp.ge.s32.totalorder %v875, %v1974
        %vm2011 = vcmp.ge.s32.totalorder %v876, %v1974
        %vm2012 = vcmp.ge.s32.totalorder %v872, %v1978
        %vm2013 = vcmp.ge.s32.totalorder %v873, %v1978
        %vm2014 = vcmp.ge.s32.totalorder %v874, %v1978
        %vm2015 = vcmp.ge.s32.totalorder %v875, %v1978
        %vm2016 = vcmp.ge.s32.totalorder %v876, %v1978
        %vm2017 = vcmp.ge.s32.totalorder %v872, %v1982
        %vm2018 = vcmp.ge.s32.totalorder %v873, %v1982
        %vm2019 = vcmp.ge.s32.totalorder %v874, %v1982
        %vm2020 = vcmp.ge.s32.totalorder %v875, %v1982
        %vm2021 = vcmp.ge.s32.totalorder %v876, %v1982
        %vm2022 = vcmp.ge.s32.totalorder %v872, %v1986
        %vm2023 = vcmp.ge.s32.totalorder %v873, %v1986
        %vm2024 = vcmp.ge.s32.totalorder %v874, %v1986
        %vm2025 = vcmp.ge.s32.totalorder %v875, %v1986
        %vm2026 = vcmp.ge.s32.totalorder %v876, %v1986
        %v2027 = vlaneseq
        %v2028 = vshrl.u32 %v2027, 7
        %v2029 = vsub.s32 1, %v2028
        %v2030 = vrot.slane %v1947, %v2029
        %v2031 = vlaneseq
        %v2032 = vshrl.u32 %v2031, 7
        %v2033 = vsub.s32 1, %v2032
        %v2034 = vrot.slane %v1948, %v2033
        %v2035 = vlaneseq
        %v2036 = vshrl.u32 %v2035, 7
        %v2037 = vsub.s32 1, %v2036
        %v2038 = vrot.slane %v1949, %v2037
        %v2039 = vlaneseq
        %v2040 = vshrl.u32 %v2039, 7
        %v2041 = vsub.s32 1, %v2040
        %v2042 = vrot.slane %v1950, %v2041
        %v2043 = vlaneseq
        %v2044 = vshrl.u32 %v2043, 7
        %v2045 = vsub.s32 1, %v2044
        %v2046 = vrot.slane %v1951, %v2045
        %v2047 = vlaneseq
        %v2048 = vshrl.u32 %v2047, 7
        %v2049 = vsub.s32 1, %v2048
        %v2050 = vrot.slane %v1952, %v2049
        %v2051 = vlaneseq
        %v2052 = vshrl.u32 %v2051, 7
        %v2053 = vsub.s32 1, %v2052
        %v2054 = vrot.slane %v1953, %v2053
        %v2055 = vlaneseq
        %v2056 = vshrl.u32 %v2055, 7
        %v2057 = vsub.s32 1, %v2056
        %v2058 = vrot.slane %v1954, %v2057
        %vm2059 = vcmp.lt.s32.totalorder %v872, %v2030
        %vm2060 = vcmp.lt.s32.totalorder %v873, %v2030
        %vm2061 = vcmp.lt.s32.totalorder %v874, %v2030
        %vm2062 = vcmp.lt.s32.totalorder %v875, %v2030
        %vm2063 = vcmp.lt.s32.totalorder %v876, %v2030
        %vm2064 = vcmp.lt.s32.totalorder %v872, %v2034
        %vm2065 = vcmp.lt.s32.totalorder %v873, %v2034
        %vm2066 = vcmp.lt.s32.totalorder %v874, %v2034
        %vm2067 = vcmp.lt.s32.totalorder %v875, %v2034
        %vm2068 = vcmp.lt.s32.totalorder %v876, %v2034
        %vm2069 = vcmp.lt.s32.totalorder %v872, %v2038
        %vm2070 = vcmp.lt.s32.totalorder %v873, %v2038
        %vm2071 = vcmp.lt.s32.totalorder %v874, %v2038
        %vm2072 = vcmp.lt.s32.totalorder %v875, %v2038
        %vm2073 = vcmp.lt.s32.totalorder %v876, %v2038
        %vm2074 = vcmp.lt.s32.totalorder %v872, %v2042
        %vm2075 = vcmp.lt.s32.totalorder %v873, %v2042
        %vm2076 = vcmp.lt.s32.totalorder %v874, %v2042
        %vm2077 = vcmp.lt.s32.totalorder %v875, %v2042
        %vm2078 = vcmp.lt.s32.totalorder %v876, %v2042
        %vm2079 = vcmp.lt.s32.totalorder %v872, %v2046
        %vm2080 = vcmp.lt.s32.totalorder %v873, %v2046
        %vm2081 = vcmp.lt.s32.totalorder %v874, %v2046
        %vm2082 = vcmp.lt.s32.totalorder %v875, %v2046
        %vm2083 = vcmp.lt.s32.totalorder %v876, %v2046
        %vm2084 = vcmp.lt.s32.totalorder %v872, %v2050
        %vm2085 = vcmp.lt.s32.totalorder %v873, %v2050
        %vm2086 = vcmp.lt.s32.totalorder %v874, %v2050
        %vm2087 = vcmp.lt.s32.totalorder %v875, %v2050
        %vm2088 = vcmp.lt.s32.totalorder %v876, %v2050
        %vm2089 = vcmp.lt.s32.totalorder %v872, %v2054
        %vm2090 = vcmp.lt.s32.totalorder %v873, %v2054
        %vm2091 = vcmp.lt.s32.totalorder %v874, %v2054
        %vm2092 = vcmp.lt.s32.totalorder %v875, %v2054
        %vm2093 = vcmp.lt.s32.totalorder %v876, %v2054
        %vm2094 = vcmp.lt.s32.totalorder %v872, %v2058
        %vm2095 = vcmp.lt.s32.totalorder %v873, %v2058
        %vm2096 = vcmp.lt.s32.totalorder %v874, %v2058
        %vm2097 = vcmp.lt.s32.totalorder %v875, %v2058
        %vm2098 = vcmp.lt.s32.totalorder %v876, %v2058
        %vm2099 = vmand %vm1987, %vm2059
        %vm2100 = vmand %vm1988, %vm2060
        %vm2101 = vmand %vm1989, %vm2061
        %vm2102 = vmand %vm1990, %vm2062
        %vm2103 = vmand %vm1991, %vm2063
        %vm2104 = vmand %vm1992, %vm2064
        %vm2105 = vmand %vm1993, %vm2065
        %vm2106 = vmand %vm1994, %vm2066
        %vm2107 = vmand %vm1995, %vm2067
        %vm2108 = vmand %vm1996, %vm2068
        %vm2109 = vmand %vm1997, %vm2069
        %vm2110 = vmand %vm1998, %vm2070
        %vm2111 = vmand %vm1999, %vm2071
        %vm2112 = vmand %vm2000, %vm2072
        %vm2113 = vmand %vm2001, %vm2073
        %vm2114 = vmand %vm2002, %vm2074
        %vm2115 = vmand %vm2003, %vm2075
        %vm2116 = vmand %vm2004, %vm2076
        %vm2117 = vmand %vm2005, %vm2077
        %vm2118 = vmand %vm2006, %vm2078
        %vm2119 = vmand %vm2007, %vm2079
        %vm2120 = vmand %vm2008, %vm2080
        %vm2121 = vmand %vm2009, %vm2081
        %vm2122 = vmand %vm2010, %vm2082
        %vm2123 = vmand %vm2011, %vm2083
        %vm2124 = vmand %vm2012, %vm2084
        %vm2125 = vmand %vm2013, %vm2085
        %vm2126 = vmand %vm2014, %vm2086
        %vm2127 = vmand %vm2015, %vm2087
        %vm2128 = vmand %vm2016, %vm2088
        %vm2129 = vmand %vm2017, %vm2089
        %vm2130 = vmand %vm2018, %vm2090
        %vm2131 = vmand %vm2019, %vm2091
        %vm2132 = vmand %vm2020, %vm2092
        %vm2133 = vmand %vm2021, %vm2093
        %vm2134 = vmand %vm2022, %vm2094
        %vm2135 = vmand %vm2023, %vm2095
        %vm2136 = vmand %vm2024, %vm2096
        %vm2137 = vmand %vm2025, %vm2097
        %vm2138 = vmand %vm2026, %vm2098
        %v2139 = vsel %vm2099, 1, 0
        %v2140 = vsel %vm2100, 1, 0
        %v2141 = vsel %vm2101, 1, 0
        %v2142 = vsel %vm2102, 1, 0
        %v2143 = vsel %vm2103, 1, 0
        %v2144 = vsel %vm2104, 1, 0
        %v2145 = vsel %vm2105, 1, 0
        %v2146 = vsel %vm2106, 1, 0
        %v2147 = vsel %vm2107, 1, 0
        %v2148 = vsel %vm2108, 1, 0
        %v2149 = vsel %vm2109, 1, 0
        %v2150 = vsel %vm2110, 1, 0
        %v2151 = vsel %vm2111, 1, 0
        %v2152 = vsel %vm2112, 1, 0
        %v2153 = vsel %vm2113, 1, 0
        %v2154 = vsel %vm2114, 1, 0
        %v2155 = vsel %vm2115, 1, 0
        %v2156 = vsel %vm2116, 1, 0
        %v2157 = vsel %vm2117, 1, 0
        %v2158 = vsel %vm2118, 1, 0
        %v2159 = vsel %vm2119, 1, 0
        %v2160 = vsel %vm2120, 1, 0
        %v2161 = vsel %vm2121, 1, 0
        %v2162 = vsel %vm2122, 1, 0
        %v2163 = vsel %vm2123, 1, 0
        %v2164 = vsel %vm2124, 1, 0
        %v2165 = vsel %vm2125, 1, 0
        %v2166 = vsel %vm2126, 1, 0
        %v2167 = vsel %vm2127, 1, 0
        %v2168 = vsel %vm2128, 1, 0
        %v2169 = vsel %vm2129, 1, 0
        %v2170 = vsel %vm2130, 1, 0
        %v2171 = vsel %vm2131, 1, 0
        %v2172 = vsel %vm2132, 1, 0
        %v2173 = vsel %vm2133, 1, 0
        %v2174 = vsel %vm2134, 1, 0
        %v2175 = vsel %vm2135, 1, 0
        %v2176 = vsel %vm2136, 1, 0
        %v2177 = vsel %vm2137, 1, 0
        %v2178 = vsel %vm2138, 1, 0
        %2179 = vset.pattern.permute.xlu0 0
        %2180 = vperm.xlu0 %2179, %v2139
        %v2181 = vpop.permute.xlu0 %2180
        %2182 = vset.pattern.permute.xlu0 0
        %2183 = vperm.xlu0 %2182, %v2140
        %v2184 = vpop.permute.xlu0 %2183
        %2185 = vset.pattern.permute.xlu0 0
        %2186 = vperm.xlu0 %2185, %v2141
        %v2187 = vpop.permute.xlu0 %2186
        %2188 = vset.pattern.permute.xlu0 0
        %2189 = vperm.xlu0 %2188, %v2142
        %v2190 = vpop.permute.xlu0 %2189
        %2191 = vset.pattern.permute.xlu0 0
        %2192 = vperm.xlu0 %2191, %v2143
        %v2193 = vpop.permute.xlu0 %2192
        %2194 = vset.pattern.permute.xlu0 0
        %2195 = vperm.xlu0 %2194, %v2144
        %v2196 = vpop.permute.xlu0 %2195
        %2197 = vset.pattern.permute.xlu0 0
        %2198 = vperm.xlu0 %2197, %v2145
        %v2199 = vpop.permute.xlu0 %2198
        %2200 = vset.pattern.permute.xlu0 0
        %2201 = vperm.xlu0 %2200, %v2146
        %v2202 = vpop.permute.xlu0 %2201
        %2203 = vset.pattern.permute.xlu0 0
        %2204 = vperm.xlu0 %2203, %v2147
        %v2205 = vpop.permute.xlu0 %2204
        %2206 = vset.pattern.permute.xlu0 0
        %2207 = vperm.xlu0 %2206, %v2148
        %v2208 = vpop.permute.xlu0 %2207
        %2209 = vset.pattern.permute.xlu0 0
        %2210 = vperm.xlu0 %2209, %v2149
        %v2211 = vpop.permute.xlu0 %2210
        %2212 = vset.pattern.permute.xlu0 0
        %2213 = vperm.xlu0 %2212, %v2150
        %v2214 = vpop.permute.xlu0 %2213
        %2215 = vset.pattern.permute.xlu0 0
        %2216 = vperm.xlu0 %2215, %v2151
        %v2217 = vpop.permute.xlu0 %2216
        %2218 = vset.pattern.permute.xlu0 0
        %2219 = vperm.xlu0 %2218, %v2152
        %v2220 = vpop.permute.xlu0 %2219
        %2221 = vset.pattern.permute.xlu0 0
        %2222 = vperm.xlu0 %2221, %v2153
        %v2223 = vpop.permute.xlu0 %2222
        %2224 = vset.pattern.permute.xlu0 0
        %2225 = vperm.xlu0 %2224, %v2154
        %v2226 = vpop.permute.xlu0 %2225
        %2227 = vset.pattern.permute.xlu0 0
        %2228 = vperm.xlu0 %2227, %v2155
        %v2229 = vpop.permute.xlu0 %2228
        %2230 = vset.pattern.permute.xlu0 0
        %2231 = vperm.xlu0 %2230, %v2156
        %v2232 = vpop.permute.xlu0 %2231
        %2233 = vset.pattern.permute.xlu0 0
        %2234 = vperm.xlu0 %2233, %v2157
        %v2235 = vpop.permute.xlu0 %2234
        %2236 = vset.pattern.permute.xlu0 0
        %2237 = vperm.xlu0 %2236, %v2158
        %v2238 = vpop.permute.xlu0 %2237
        %2239 = vset.pattern.permute.xlu0 0
        %2240 = vperm.xlu0 %2239, %v2159
        %v2241 = vpop.permute.xlu0 %2240
        %2242 = vset.pattern.permute.xlu0 0
        %2243 = vperm.xlu0 %2242, %v2160
        %v2244 = vpop.permute.xlu0 %2243
        %2245 = vset.pattern.permute.xlu0 0
        %2246 = vperm.xlu0 %2245, %v2161
        %v2247 = vpop.permute.xlu0 %2246
        %2248 = vset.pattern.permute.xlu0 0
        %2249 = vperm.xlu0 %2248, %v2162
        %v2250 = vpop.permute.xlu0 %2249
        %2251 = vset.pattern.permute.xlu0 0
        %2252 = vperm.xlu0 %2251, %v2163
        %v2253 = vpop.permute.xlu0 %2252
        %2254 = vset.pattern.permute.xlu0 0
        %2255 = vperm.xlu0 %2254, %v2164
        %v2256 = vpop.permute.xlu0 %2255
        %2257 = vset.pattern.permute.xlu0 0
        %2258 = vperm.xlu0 %2257, %v2165
        %v2259 = vpop.permute.xlu0 %2258
        %2260 = vset.pattern.permute.xlu0 0
        %2261 = vperm.xlu0 %2260, %v2166
        %v2262 = vpop.permute.xlu0 %2261
        %2263 = vset.pattern.permute.xlu0 0
        %2264 = vperm.xlu0 %2263, %v2167
        %v2265 = vpop.permute.xlu0 %2264
        %2266 = vset.pattern.permute.xlu0 0
        %2267 = vperm.xlu0 %2266, %v2168
        %v2268 = vpop.permute.xlu0 %2267
        %2269 = vset.pattern.permute.xlu0 0
        %2270 = vperm.xlu0 %2269, %v2169
        %v2271 = vpop.permute.xlu0 %2270
        %2272 = vset.pattern.permute.xlu0 0
        %2273 = vperm.xlu0 %2272, %v2170
        %v2274 = vpop.permute.xlu0 %2273
        %2275 = vset.pattern.permute.xlu0 0
        %2276 = vperm.xlu0 %2275, %v2171
        %v2277 = vpop.permute.xlu0 %2276
        %2278 = vset.pattern.permute.xlu0 0
        %2279 = vperm.xlu0 %2278, %v2172
        %v2280 = vpop.permute.xlu0 %2279
        %2281 = vset.pattern.permute.xlu0 0
        %2282 = vperm.xlu0 %2281, %v2173
        %v2283 = vpop.permute.xlu0 %2282
        %2284 = vset.pattern.permute.xlu0 0
        %2285 = vperm.xlu0 %2284, %v2174
        %v2286 = vpop.permute.xlu0 %2285
        %2287 = vset.pattern.permute.xlu0 0
        %2288 = vperm.xlu0 %2287, %v2175
        %v2289 = vpop.permute.xlu0 %2288
        %2290 = vset.pattern.permute.xlu0 0
        %2291 = vperm.xlu0 %2290, %v2176
        %v2292 = vpop.permute.xlu0 %2291
        %2293 = vset.pattern.permute.xlu0 0
        %2294 = vperm.xlu0 %2293, %v2177
        %v2295 = vpop.permute.xlu0 %2294
        %2296 = vset.pattern.permute.xlu0 0
        %2297 = vperm.xlu0 %2296, %v2178
        %v2298 = vpop.permute.xlu0 %2297
        %vm2299 = vcmp.eq.s32.totalorder %v2181, 1
        %vm2300 = vcmp.eq.s32.totalorder %v2184, 1
        %vm2301 = vcmp.eq.s32.totalorder %v2187, 1
        %vm2302 = vcmp.eq.s32.totalorder %v2190, 1
        %vm2303 = vcmp.eq.s32.totalorder %v2193, 1
        %vm2304 = vcmp.eq.s32.totalorder %v2196, 1
        %vm2305 = vcmp.eq.s32.totalorder %v2199, 1
        %vm2306 = vcmp.eq.s32.totalorder %v2202, 1
        %vm2307 = vcmp.eq.s32.totalorder %v2205, 1
        %vm2308 = vcmp.eq.s32.totalorder %v2208, 1
        %vm2309 = vcmp.eq.s32.totalorder %v2211, 1
        %vm2310 = vcmp.eq.s32.totalorder %v2214, 1
        %vm2311 = vcmp.eq.s32.totalorder %v2217, 1
        %vm2312 = vcmp.eq.s32.totalorder %v2220, 1
        %vm2313 = vcmp.eq.s32.totalorder %v2223, 1
        %vm2314 = vcmp.eq.s32.totalorder %v2226, 1
        %vm2315 = vcmp.eq.s32.totalorder %v2229, 1
        %vm2316 = vcmp.eq.s32.totalorder %v2232, 1
        %vm2317 = vcmp.eq.s32.totalorder %v2235, 1
        %vm2318 = vcmp.eq.s32.totalorder %v2238, 1
        %vm2319 = vcmp.eq.s32.totalorder %v2241, 1
        %vm2320 = vcmp.eq.s32.totalorder %v2244, 1
        %vm2321 = vcmp.eq.s32.totalorder %v2247, 1
        %vm2322 = vcmp.eq.s32.totalorder %v2250, 1
        %vm2323 = vcmp.eq.s32.totalorder %v2253, 1
        %vm2324 = vcmp.eq.s32.totalorder %v2256, 1
        %vm2325 = vcmp.eq.s32.totalorder %v2259, 1
        %vm2326 = vcmp.eq.s32.totalorder %v2262, 1
        %vm2327 = vcmp.eq.s32.totalorder %v2265, 1
        %vm2328 = vcmp.eq.s32.totalorder %v2268, 1
        %vm2329 = vcmp.eq.s32.totalorder %v2271, 1
        %vm2330 = vcmp.eq.s32.totalorder %v2274, 1
        %vm2331 = vcmp.eq.s32.totalorder %v2277, 1
        %vm2332 = vcmp.eq.s32.totalorder %v2280, 1
        %vm2333 = vcmp.eq.s32.totalorder %v2283, 1
        %vm2334 = vcmp.eq.s32.totalorder %v2286, 1
        %vm2335 = vcmp.eq.s32.totalorder %v2289, 1
        %vm2336 = vcmp.eq.s32.totalorder %v2292, 1
        %vm2337 = vcmp.eq.s32.totalorder %v2295, 1
        %vm2338 = vcmp.eq.s32.totalorder %v2298, 1
        %v2339 = vsel %vm2299, %v824, -1e+30
        %v2340 = vsel %vm2300, %v825, -1e+30
        %v2341 = vsel %vm2301, %v826, -1e+30
        %v2342 = vsel %vm2302, %v827, -1e+30
        %v2343 = vsel %vm2303, %v828, -1e+30
        %v2344 = vsel %vm2304, %v829, -1e+30
        %v2345 = vsel %vm2305, %v830, -1e+30
        %v2346 = vsel %vm2306, %v831, -1e+30
        %v2347 = vsel %vm2307, %v832, -1e+30
        %v2348 = vsel %vm2308, %v833, -1e+30
        %v2349 = vsel %vm2309, %v834, -1e+30
        %v2350 = vsel %vm2310, %v835, -1e+30
        %v2351 = vsel %vm2311, %v836, -1e+30
        %v2352 = vsel %vm2312, %v837, -1e+30
        %v2353 = vsel %vm2313, %v838, -1e+30
        %v2354 = vsel %vm2314, %v839, -1e+30
        %v2355 = vsel %vm2315, %v840, -1e+30
        %v2356 = vsel %vm2316, %v841, -1e+30
        %v2357 = vsel %vm2317, %v842, -1e+30
        %v2358 = vsel %vm2318, %v843, -1e+30
        %v2359 = vsel %vm2319, %v844, -1e+30
        %v2360 = vsel %vm2320, %v845, -1e+30
        %v2361 = vsel %vm2321, %v846, -1e+30
        %v2362 = vsel %vm2322, %v847, -1e+30
        %v2363 = vsel %vm2323, %v848, -1e+30
        %v2364 = vsel %vm2324, %v849, -1e+30
        %v2365 = vsel %vm2325, %v850, -1e+30
        %v2366 = vsel %vm2326, %v851, -1e+30
        %v2367 = vsel %vm2327, %v852, -1e+30
        %v2368 = vsel %vm2328, %v853, -1e+30
        %v2369 = vsel %vm2329, %v854, -1e+30
        %v2370 = vsel %vm2330, %v855, -1e+30
        %v2371 = vsel %vm2331, %v856, -1e+30
        %v2372 = vsel %vm2332, %v857, -1e+30
        %v2373 = vsel %vm2333, %v858, -1e+30
        %v2374 = vsel %vm2334, %v859, -1e+30
        %v2375 = vsel %vm2335, %v860, -1e+30
        %v2376 = vsel %vm2336, %v861, -1e+30
        %v2377 = vsel %vm2337, %v862, -1e+30
        %v2378 = vsel %vm2338, %v863, -1e+30
        %v2379 = vmax.f32 %v2339, %v2340
        %v2380 = vmax.f32 %v2379, %v2341
        %v2381 = vmax.f32 %v2380, %v2342
        %v2382 = vmax.f32 %v2381, %v2343
        %v2383 = vrot.slane %v2382, 4
        %v2384 = vmax.f32 %v2382, %v2383
        %v2385 = vrot.slane %v2384, 2
        %v2386 = vmax.f32 %v2384, %v2385
        %v2387 = vrot.slane %v2386, 1
        %v2388 = vmax.f32 %v2386, %v2387
        %v2389 = vmax.f32 %v2344, %v2345
        %v2390 = vmax.f32 %v2389, %v2346
        %v2391 = vmax.f32 %v2390, %v2347
        %v2392 = vmax.f32 %v2391, %v2348
        %v2393 = vrot.slane %v2392, 4
        %v2394 = vmax.f32 %v2392, %v2393
        %v2395 = vrot.slane %v2394, 2
        %v2396 = vmax.f32 %v2394, %v2395
        %v2397 = vrot.slane %v2396, 1
        %v2398 = vmax.f32 %v2396, %v2397
        %v2399 = vmax.f32 %v2349, %v2350
        %v2400 = vmax.f32 %v2399, %v2351
        %v2401 = vmax.f32 %v2400, %v2352
        %v2402 = vmax.f32 %v2401, %v2353
        %v2403 = vrot.slane %v2402, 4
        %v2404 = vmax.f32 %v2402, %v2403
        %v2405 = vrot.slane %v2404, 2
        %v2406 = vmax.f32 %v2404, %v2405
        %v2407 = vrot.slane %v2406, 1
        %v2408 = vmax.f32 %v2406, %v2407
        %v2409 = vmax.f32 %v2354, %v2355
        %v2410 = vmax.f32 %v2409, %v2356
        %v2411 = vmax.f32 %v2410, %v2357
        %v2412 = vmax.f32 %v2411, %v2358
        %v2413 = vrot.slane %v2412, 4
        %v2414 = vmax.f32 %v2412, %v2413
        %v2415 = vrot.slane %v2414, 2
        %v2416 = vmax.f32 %v2414, %v2415
        %v2417 = vrot.slane %v2416, 1
        %v2418 = vmax.f32 %v2416, %v2417
        %v2419 = vmax.f32 %v2359, %v2360
        %v2420 = vmax.f32 %v2419, %v2361
        %v2421 = vmax.f32 %v2420, %v2362
        %v2422 = vmax.f32 %v2421, %v2363
        %v2423 = vrot.slane %v2422, 4
        %v2424 = vmax.f32 %v2422, %v2423
        %v2425 = vrot.slane %v2424, 2
        %v2426 = vmax.f32 %v2424, %v2425
        %v2427 = vrot.slane %v2426, 1
        %v2428 = vmax.f32 %v2426, %v2427
        %v2429 = vmax.f32 %v2364, %v2365
        %v2430 = vmax.f32 %v2429, %v2366
        %v2431 = vmax.f32 %v2430, %v2367
        %v2432 = vmax.f32 %v2431, %v2368
        %v2433 = vrot.slane %v2432, 4
        %v2434 = vmax.f32 %v2432, %v2433
        %v2435 = vrot.slane %v2434, 2
        %v2436 = vmax.f32 %v2434, %v2435
        %v2437 = vrot.slane %v2436, 1
        %v2438 = vmax.f32 %v2436, %v2437
        %v2439 = vmax.f32 %v2369, %v2370
        %v2440 = vmax.f32 %v2439, %v2371
        %v2441 = vmax.f32 %v2440, %v2372
        %v2442 = vmax.f32 %v2441, %v2373
        %v2443 = vrot.slane %v2442, 4
        %v2444 = vmax.f32 %v2442, %v2443
        %v2445 = vrot.slane %v2444, 2
        %v2446 = vmax.f32 %v2444, %v2445
        %v2447 = vrot.slane %v2446, 1
        %v2448 = vmax.f32 %v2446, %v2447
        %v2449 = vmax.f32 %v2374, %v2375
        %v2450 = vmax.f32 %v2449, %v2376
        %v2451 = vmax.f32 %v2450, %v2377
        %v2452 = vmax.f32 %v2451, %v2378
        %v2453 = vrot.slane %v2452, 4
        %v2454 = vmax.f32 %v2452, %v2453
        %v2455 = vrot.slane %v2454, 2
        %v2456 = vmax.f32 %v2454, %v2455
        %v2457 = vrot.slane %v2456, 1
        %v2458 = vmax.f32 %v2456, %v2457
        %v2467 = vsel %vm1398, %v2398, %v2388
        %v2468 = vsel %vm1400, %v2408, %v2467
        %v2469 = vsel %vm1402, %v2418, %v2468
        %v2470 = vsel %vm1404, %v2428, %v2469
        %v2471 = vsel %vm1406, %v2438, %v2470
        %v2472 = vsel %vm1408, %v2448, %v2471
        %v2473 = vsel %vm1410, %v2458, %v2472
        %v2475 = vmax.f32 %v1946, %v2473
        %2476 = vst [vmem:[#allocation4] sm:$0xff] %v2475
        // Predicated region
        $region105: #{tpu_custom_call.1} parent=87 // pred_check
          %p2477 = pneg %p817
        $region106: #{tpu_custom_call.1} parent=87 // pred_check_branch
          %2479 = sbr.rel (%p2477) target = $region108
        $region107: #{tpu_custom_call.1} parent=87 // pred_region
          %v2480 = vld [vmem:[%s7] sm:$0xff]
          %v2481 = vld [vmem:[%s7 + $0x8] sm:$0xff]
          %v2482 = vld [vmem:[%s7 + $0x10] sm:$0xff]
          %v2483 = vld [vmem:[%s7 + $0x18] sm:$0xff]
          %v2484 = vld [vmem:[%s7 + $0x20] sm:$0xff]
          %v2485 = vld [vmem:[%s7 + $0x28] sm:$0xff]
          %v2486 = vld [vmem:[%s7 + $0x30] sm:$0xff]
          %v2487 = vld [vmem:[%s7 + $0x38] sm:$0xff]
          %v2488 = vld [vmem:[%s7 + $0x40] sm:$0xff]
          %v2489 = vld [vmem:[%s7 + $0x48] sm:$0xff]
          %v2490 = vld [vmem:[%s7 + $0x50] sm:$0xff]
          %v2491 = vld [vmem:[%s7 + $0x58] sm:$0xff]
          %v2492 = vld [vmem:[%s7 + $0x60] sm:$0xff]
          %v2493 = vld [vmem:[%s7 + $0x68] sm:$0xff]
          %v2494 = vld [vmem:[%s7 + $0x70] sm:$0xff]
          %v2495 = vld [vmem:[%s7 + $0x78] sm:$0xff]
          %v2496 = vld [vmem:[%s8] sm:$0xff]
          %v2497 = vld [vmem:[%s8 + $0x8] sm:$0xff]
          %v2498 = vld [vmem:[%s8 + $0x10] sm:$0xff]
          %v2499 = vld [vmem:[%s8 + $0x18] sm:$0xff]
          %v2500 = vld [vmem:[%s8 + $0x20] sm:$0xff]
          %v2501 = vld [vmem:[%s8 + $0x28] sm:$0xff]
          %v2502 = vld [vmem:[%s8 + $0x30] sm:$0xff]
          %v2503 = vld [vmem:[%s8 + $0x38] sm:$0xff]
          %v2504 = vld [vmem:[%s8 + $0x40] sm:$0xff]
          %v2505 = vld [vmem:[%s8 + $0x48] sm:$0xff]
          %v2506 = vld [vmem:[%s8 + $0x50] sm:$0xff]
          %v2507 = vld [vmem:[%s8 + $0x58] sm:$0xff]
          %v2508 = vld [vmem:[%s8 + $0x60] sm:$0xff]
          %v2509 = vld [vmem:[%s8 + $0x68] sm:$0xff]
          %v2510 = vld [vmem:[%s8 + $0x70] sm:$0xff]
          %v2511 = vld [vmem:[%s8 + $0x78] sm:$0xff]
          %v2512 = vld [vmem:[#allocation8] sm:$0xff]
          %v2513 = vld [vmem:[#allocation8 + $0x8] sm:$0xff]
          %v2514 = vld [vmem:[#allocation8 + $0x10] sm:$0xff]
          %v2515 = vld [vmem:[#allocation8 + $0x18] sm:$0xff]
          %v2516 = vld [vmem:[#allocation8 + $0x20] sm:$0xff]
          %v2517 = vld [vmem:[#allocation8 + $0x28] sm:$0xff]
          %v2518 = vld [vmem:[#allocation8 + $0x30] sm:$0xff]
          %v2519 = vld [vmem:[#allocation8 + $0x38] sm:$0xff]
          %v2520 = vld [vmem:[#allocation8 + $0x40] sm:$0xff]
          %v2521 = vld [vmem:[#allocation8 + $0x48] sm:$0xff]
          %v2522 = vld [vmem:[#allocation8 + $0x50] sm:$0xff]
          %v2523 = vld [vmem:[#allocation8 + $0x58] sm:$0xff]
          %v2524 = vld [vmem:[#allocation8 + $0x60] sm:$0xff]
          %v2525 = vld [vmem:[#allocation8 + $0x68] sm:$0xff]
          %v2526 = vld [vmem:[#allocation8 + $0x70] sm:$0xff]
          %v2527 = vld [vmem:[#allocation8 + $0x78] sm:$0xff]
          %v2528 = vld [vmem:[#allocation10] sm:$0xff]
          %v2529 = vld [vmem:[#allocation10 + $0x8] sm:$0xff]
          %v2530 = vld [vmem:[#allocation10 + $0x10] sm:$0xff]
          %v2531 = vld [vmem:[#allocation10 + $0x18] sm:$0xff]
          %v2532 = vld [vmem:[#allocation10 + $0x20] sm:$0xff]
          %v2533 = vld [vmem:[#allocation10 + $0x28] sm:$0xff]
          %v2534 = vld [vmem:[#allocation10 + $0x30] sm:$0xff]
          %v2535 = vld [vmem:[#allocation10 + $0x38] sm:$0xff]
          %v2536 = vld [vmem:[#allocation10 + $0x40] sm:$0xff]
          %v2537 = vld [vmem:[#allocation10 + $0x48] sm:$0xff]
          %v2538 = vld [vmem:[#allocation10 + $0x50] sm:$0xff]
          %v2539 = vld [vmem:[#allocation10 + $0x58] sm:$0xff]
          %v2540 = vld [vmem:[#allocation10 + $0x60] sm:$0xff]
          %v2541 = vld [vmem:[#allocation10 + $0x68] sm:$0xff]
          %v2542 = vld [vmem:[#allocation10 + $0x70] sm:$0xff]
          %v2543 = vld [vmem:[#allocation10 + $0x78] sm:$0xff]
          %v2544 = vld [vmem:[#allocation2] sm:$0xff]
          %v2545 = vld [vmem:[%s808] sm:$0xff]
          %v2546 = vld [vmem:[%s9] sm:$0x1]
          %v2547 = vld [vmem:[%s10] sm:$0xff]
          %v2548 = vld [vmem:[%s10 + $0x8] sm:$0xff]
          %v2549 = vld [vmem:[%s10 + $0x10] sm:$0xff]
          %v2550 = vld [vmem:[%s10 + $0x18] sm:$0xff]
          %v2551 = vld [vmem:[%s10 + $0x20] sm:$0xff]
          %v2552 = vld [vmem:[%s10 + $0x28] sm:$0xff]
          %v2553 = vld [vmem:[%s10 + $0x30] sm:$0xff]
          %v2554 = vld [vmem:[%s10 + $0x38] sm:$0xff]
          %v2555 = vld [vmem:[%s10 + $0x40] sm:$0xff]
          %v2556 = vld [vmem:[%s10 + $0x48] sm:$0xff]
          %v2557 = vld [vmem:[%s10 + $0x50] sm:$0xff]
          %v2558 = vld [vmem:[%s10 + $0x58] sm:$0xff]
          %v2559 = vld [vmem:[%s10 + $0x60] sm:$0xff]
          %v2560 = vld [vmem:[%s10 + $0x68] sm:$0xff]
          %v2561 = vld [vmem:[%s10 + $0x70] sm:$0xff]
          %v2562 = vld [vmem:[%s10 + $0x78] sm:$0xff]
          %v2563 = vld [vmem:[%s11] sm:$0x1]
          %2564 = vmatprep.subr.mxu0 0.0
          %2565 = vmatpush1.msra.mxu0 %v2511
          %2566 = vmatprep.subr.mxu0 0.0
          %2567 = vmatpush1.msra.mxu0 %v2510
          %2568 = vmatprep.subr.mxu0 0.0
          %2569 = vmatpush1.msra.mxu0 %v2509
          %2570 = vmatprep.subr.mxu0 0.0
          %2571 = vmatpush1.msra.mxu0 %v2508
          %2572 = vmatprep.subr.mxu0 0.0
          %2573 = vmatpush1.msra.mxu0 %v2507
          %2574 = vmatprep.subr.mxu0 0.0
          %2575 = vmatpush1.msra.mxu0 %v2506
          %2576 = vmatprep.subr.mxu0 0.0
          %2577 = vmatpush1.msra.mxu0 %v2505
          %2578 = vmatprep.subr.mxu0 0.0
          %2579 = vmatpush1.msra.mxu0 %v2504
          %2580 = vmatprep.subr.mxu0 0.0
          %2581 = vmatpush1.msra.mxu0 %v2503
          %2582 = vmatprep.subr.mxu0 0.0
          %2583 = vmatpush1.msra.mxu0 %v2502
          %2584 = vmatprep.subr.mxu0 0.0
          %2585 = vmatpush1.msra.mxu0 %v2501
          %2586 = vmatprep.subr.mxu0 0.0
          %2587 = vmatpush1.msra.mxu0 %v2500
          %2588 = vmatprep.subr.mxu0 0.0
          %2589 = vmatpush1.msra.mxu0 %v2499
          %2590 = vmatprep.subr.mxu0 0.0
          %2591 = vmatpush1.msra.mxu0 %v2498
          %2592 = vmatprep.subr.mxu0 0.0
          %2593 = vmatpush1.msra.mxu0 %v2497
          %2594 = vmatprep.subr.mxu0 0.0
          %2595 = vmatpush1.msra.mxu0 %v2496
          %2596 = vmatprep.subr.mxu0 0.0
          %2597 = vmatpush2.msra.mxu0 0.0
          %2598 = vmatprep.subr.mxu0 0.0
          %2599 = vmatpush2.msra.mxu0 0.0
          %2600 = vmatprep.subr.mxu0 0.0
          %2601 = vmatpush2.msra.mxu0 0.0
          %2602 = vmatprep.subr.mxu0 0.0
          %2603 = vmatpush2.msra.mxu0 0.0
          %2604 = vmatprep.subr.mxu0 0.0
          %2605 = vmatpush2.msra.mxu0 0.0
          %2606 = vmatprep.subr.mxu0 0.0
          %2607 = vmatpush2.msra.mxu0 0.0
          %2608 = vmatprep.subr.mxu0 0.0
          %2609 = vmatpush2.msra.mxu0 0.0
          %2610 = vmatprep.subr.mxu0 0.0
          %2611 = vmatpush2.msra.mxu0 0.0
          %2612 = vmatprep.subr.mxu0 0.0
          %2613 = vmatpush2.msra.mxu0 0.0
          %2614 = vmatprep.subr.mxu0 0.0
          %2615 = vmatpush2.msra.mxu0 0.0
          %2616 = vmatprep.subr.mxu0 0.0
          %2617 = vmatpush2.msra.mxu0 0.0
          %2618 = vmatprep.subr.mxu0 0.0
          %2619 = vmatpush2.msra.mxu0 0.0
          %2620 = vmatprep.subr.mxu0 0.0
          %2621 = vmatpush2.msra.mxu0 0.0
          %2622 = vmatprep.subr.mxu0 0.0
          %2623 = vmatpush2.msra.mxu0 0.0
          %2624 = vmatprep.subr.mxu0 0.0
          %2625 = vmatpush2.msra.mxu0 0.0
          %2626 = vmatprep.subr.mxu0 0.0
          %2627 = vmatpush2.msra.mxu0 0.0
          %2628 = vmatprep.mubr.f32.mxu0 0.0
          %2629 = vmatmul.mubr.f32.gmra.mxu0 %v2545
          %v2630 = vpop.f32.mrf.mxu0
          %v2631 = vadd.f32 0.0, %v2630
          %v2632 = vpop.f32.mrf.mxu0
          %2633 = vdwg.mxu0
          %2634 = vmatprep.subr.mxu0 0.0
          %2635 = vmatpush1.msra.mxu0 %v2495
          %2636 = vmatprep.subr.mxu0 0.0
          %2637 = vmatpush1.msra.mxu0 %v2494
          %2638 = vmatprep.subr.mxu0 0.0
          %2639 = vmatpush1.msra.mxu0 %v2493
          %2640 = vmatprep.subr.mxu0 0.0
          %2641 = vmatpush1.msra.mxu0 %v2492
          %2642 = vmatprep.subr.mxu0 0.0
          %2643 = vmatpush1.msra.mxu0 %v2491
          %2644 = vmatprep.subr.mxu0 0.0
          %2645 = vmatpush1.msra.mxu0 %v2490
          %2646 = vmatprep.subr.mxu0 0.0
          %2647 = vmatpush1.msra.mxu0 %v2489
          %2648 = vmatprep.subr.mxu0 0.0
          %2649 = vmatpush1.msra.mxu0 %v2488
          %2650 = vmatprep.subr.mxu0 0.0
          %2651 = vmatpush1.msra.mxu0 %v2487
          %2652 = vmatprep.subr.mxu0 0.0
          %2653 = vmatpush1.msra.mxu0 %v2486
          %2654 = vmatprep.subr.mxu0 0.0
          %2655 = vmatpush1.msra.mxu0 %v2485
          %2656 = vmatprep.subr.mxu0 0.0
          %2657 = vmatpush1.msra.mxu0 %v2484
          %2658 = vmatprep.subr.mxu0 0.0
          %2659 = vmatpush1.msra.mxu0 %v2483
          %2660 = vmatprep.subr.mxu0 0.0
          %2661 = vmatpush1.msra.mxu0 %v2482
          %2662 = vmatprep.subr.mxu0 0.0
          %2663 = vmatpush1.msra.mxu0 %v2481
          %2664 = vmatprep.subr.mxu0 0.0
          %2665 = vmatpush1.msra.mxu0 %v2480
          %2666 = vmatprep.subr.mxu0 0.0
          %2667 = vmatpush2.msra.mxu0 0.0
          %2668 = vmatprep.subr.mxu0 0.0
          %2669 = vmatpush2.msra.mxu0 0.0
          %2670 = vmatprep.subr.mxu0 0.0
          %2671 = vmatpush2.msra.mxu0 0.0
          %2672 = vmatprep.subr.mxu0 0.0
          %2673 = vmatpush2.msra.mxu0 0.0
          %2674 = vmatprep.subr.mxu0 0.0
          %2675 = vmatpush2.msra.mxu0 0.0
          %2676 = vmatprep.subr.mxu0 0.0
          %2677 = vmatpush2.msra.mxu0 0.0
          %2678 = vmatprep.subr.mxu0 0.0
          %2679 = vmatpush2.msra.mxu0 0.0
          %2680 = vmatprep.subr.mxu0 0.0
          %2681 = vmatpush2.msra.mxu0 0.0
          %2682 = vmatprep.subr.mxu0 0.0
          %2683 = vmatpush2.msra.mxu0 0.0
          %2684 = vmatprep.subr.mxu0 0.0
          %2685 = vmatpush2.msra.mxu0 0.0
          %2686 = vmatprep.subr.mxu0 0.0
          %2687 = vmatpush2.msra.mxu0 0.0
          %2688 = vmatprep.subr.mxu0 0.0
          %2689 = vmatpush2.msra.mxu0 0.0
          %2690 = vmatprep.subr.mxu0 0.0
          %2691 = vmatpush2.msra.mxu0 0.0
          %2692 = vmatprep.subr.mxu0 0.0
          %2693 = vmatpush2.msra.mxu0 0.0
          %2694 = vmatprep.subr.mxu0 0.0
          %2695 = vmatpush2.msra.mxu0 0.0
          %2696 = vmatprep.subr.mxu0 0.0
          %2697 = vmatpush2.msra.mxu0 0.0
          %2698 = vmatprep.mubr.f32.mxu0 0.0
          %2699 = vmatmul.mubr.f32.gmra.mxu0 %v2544
          %v2700 = vpop.f32.mrf.mxu0
          %v2701 = vadd.f32 %v2631, %v2700
          %v2702 = vpop.f32.mrf.mxu0
          %2703 = vdwg.mxu0
          %v2705 = vlaneseq
          %v2706 = vshrl.u32 %v2705, 7
          %v2707 = vsub.s32 0, %v2706
          %v2708 = vrot.slane %v2546, %v2707
          %v2710 = vadd.f32 %v2701, %v2708
          %v2711 = vmax.f32 %v2710, 0.0
          %v2713 = vlaneseq
          %v2714 = vshrl.u32 %v2713, 7
          %v2715 = vsub.s32 0, %v2714
          %v2716 = vrot.slane %v2563, %v2715
          %2718 = vmatprep.subr.mxu0 0.0
          %2719 = vmatpush1.msra.mxu0 %v2562
          %2720 = vmatprep.subr.mxu0 0.0
          %2721 = vmatpush1.msra.mxu0 %v2561
          %2722 = vmatprep.subr.mxu0 0.0
          %2723 = vmatpush1.msra.mxu0 %v2560
          %2724 = vmatprep.subr.mxu0 0.0
          %2725 = vmatpush1.msra.mxu0 %v2559
          %2726 = vmatprep.subr.mxu0 0.0
          %2727 = vmatpush1.msra.mxu0 %v2558
          %2728 = vmatprep.subr.mxu0 0.0
          %2729 = vmatpush1.msra.mxu0 %v2557
          %2730 = vmatprep.subr.mxu0 0.0
          %2731 = vmatpush1.msra.mxu0 %v2556
          %2732 = vmatprep.subr.mxu0 0.0
          %2733 = vmatpush1.msra.mxu0 %v2555
          %2734 = vmatprep.subr.mxu0 0.0
          %2735 = vmatpush1.msra.mxu0 %v2554
          %2736 = vmatprep.subr.mxu0 0.0
          %2737 = vmatpush1.msra.mxu0 %v2553
          %2738 = vmatprep.subr.mxu0 0.0
          %2739 = vmatpush1.msra.mxu0 %v2552
          %2740 = vmatprep.subr.mxu0 0.0
          %2741 = vmatpush1.msra.mxu0 %v2551
          %2742 = vmatprep.subr.mxu0 0.0
          %2743 = vmatpush1.msra.mxu0 %v2550
          %2744 = vmatprep.subr.mxu0 0.0
          %2745 = vmatpush1.msra.mxu0 %v2549
          %2746 = vmatprep.subr.mxu0 0.0
          %2747 = vmatpush1.msra.mxu0 %v2548
          %2748 = vmatprep.subr.mxu0 0.0
          %2749 = vmatpush1.msra.mxu0 %v2547
          %2750 = vmatprep.subr.mxu0 0.0
          %2751 = vmatpush2.msra.mxu0 0.0
          %2752 = vmatprep.subr.mxu0 0.0
          %2753 = vmatpush2.msra.mxu0 0.0
          %2754 = vmatprep.subr.mxu0 0.0
          %2755 = vmatpush2.msra.mxu0 0.0
          %2756 = vmatprep.subr.mxu0 0.0
          %2757 = vmatpush2.msra.mxu0 0.0
          %2758 = vmatprep.subr.mxu0 0.0
          %2759 = vmatpush2.msra.mxu0 0.0
          %2760 = vmatprep.subr.mxu0 0.0
          %2761 = vmatpush2.msra.mxu0 0.0
          %2762 = vmatprep.subr.mxu0 0.0
          %2763 = vmatpush2.msra.mxu0 0.0
          %2764 = vmatprep.subr.mxu0 0.0
          %2765 = vmatpush2.msra.mxu0 0.0
          %2766 = vmatprep.subr.mxu0 0.0
          %2767 = vmatpush2.msra.mxu0 0.0
          %2768 = vmatprep.subr.mxu0 0.0
          %2769 = vmatpush2.msra.mxu0 0.0
          %2770 = vmatprep.subr.mxu0 0.0
          %2771 = vmatpush2.msra.mxu0 0.0
          %2772 = vmatprep.subr.mxu0 0.0
          %2773 = vmatpush2.msra.mxu0 0.0
          %2774 = vmatprep.subr.mxu0 0.0
          %2775 = vmatpush2.msra.mxu0 0.0
          %2776 = vmatprep.subr.mxu0 0.0
          %2777 = vmatpush2.msra.mxu0 0.0
          %2778 = vmatprep.subr.mxu0 0.0
          %2779 = vmatpush2.msra.mxu0 0.0
          %2780 = vmatprep.subr.mxu0 0.0
          %2781 = vmatpush2.msra.mxu0 0.0
          %2782 = vmatprep.mubr.f32.mxu0 0.0
          %2783 = vmatmul.mubr.f32.gmra.mxu0 %v2711
          %v2784 = vpop.f32.mrf.mxu0
          %v2785 = vadd.f32 %v2716, %v2784
          %v2786 = vpop.f32.mrf.mxu0
          %2787 = vdwg.mxu0
          %2789 = vrot.lane.b32.xlu0 %v2785, 127
          %v2790 = vpop.permute.xlu0 %2789
          %v2792 = vsub.f32 %v2785, %v2790
          %v2793 = vmax.f32 %v2792, 0.0
          %v2794 = vand.u32 2147483647, %v2792
          %v2795 = vsub.f32 0.0, %v2794
          %v2796 = vmul.f32 %v2795, 1.442695
          %v2797 = vpow.pop %v2796
          %v2798 = vadd.f32 %v2797, 1.0
          %v2799 = vlog2.pop %v2798
          %v2800 = vmul.f32 %v2799, 0.6931472
          %v2801 = vadd.f32 %v2793, %v2800
          %v2802 = vld [vmem:[#allocation3] sm:$0xff]
          %v2803 = vld [vmem:[%s812] sm:$0xff]
          %v2804 = vld [vmem:[%s14] sm:$0x1]
          %v2805 = vld [vmem:[%s15] sm:$0xff]
          %v2806 = vld [vmem:[%s15 + $0x8] sm:$0xff]
          %v2807 = vld [vmem:[%s15 + $0x10] sm:$0xff]
          %v2808 = vld [vmem:[%s15 + $0x18] sm:$0xff]
          %v2809 = vld [vmem:[%s15 + $0x20] sm:$0xff]
          %v2810 = vld [vmem:[%s15 + $0x28] sm:$0xff]
          %v2811 = vld [vmem:[%s15 + $0x30] sm:$0xff]
          %v2812 = vld [vmem:[%s15 + $0x38] sm:$0xff]
          %v2813 = vld [vmem:[%s15 + $0x40] sm:$0xff]
          %v2814 = vld [vmem:[%s15 + $0x48] sm:$0xff]
          %v2815 = vld [vmem:[%s15 + $0x50] sm:$0xff]
          %v2816 = vld [vmem:[%s15 + $0x58] sm:$0xff]
          %v2817 = vld [vmem:[%s15 + $0x60] sm:$0xff]
          %v2818 = vld [vmem:[%s15 + $0x68] sm:$0xff]
          %v2819 = vld [vmem:[%s15 + $0x70] sm:$0xff]
          %v2820 = vld [vmem:[%s15 + $0x78] sm:$0xff]
          %v2821 = vld [vmem:[%s16] sm:$0x1]
          %2822 = vmatprep.subr.mxu0 0.0
          %2823 = vmatpush1.msra.mxu0 %v2543
          %2824 = vmatprep.subr.mxu0 0.0
          %2825 = vmatpush1.msra.mxu0 %v2542
          %2826 = vmatprep.subr.mxu0 0.0
          %2827 = vmatpush1.msra.mxu0 %v2541
          %2828 = vmatprep.subr.mxu0 0.0
          %2829 = vmatpush1.msra.mxu0 %v2540
          %2830 = vmatprep.subr.mxu0 0.0
          %2831 = vmatpush1.msra.mxu0 %v2539
          %2832 = vmatprep.subr.mxu0 0.0
          %2833 = vmatpush1.msra.mxu0 %v2538
          %2834 = vmatprep.subr.mxu0 0.0
          %2835 = vmatpush1.msra.mxu0 %v2537
          %2836 = vmatprep.subr.mxu0 0.0
          %2837 = vmatpush1.msra.mxu0 %v2536
          %2838 = vmatprep.subr.mxu0 0.0
          %2839 = vmatpush1.msra.mxu0 %v2535
          %2840 = vmatprep.subr.mxu0 0.0
          %2841 = vmatpush1.msra.mxu0 %v2534
          %2842 = vmatprep.subr.mxu0 0.0
          %2843 = vmatpush1.msra.mxu0 %v2533
          %2844 = vmatprep.subr.mxu0 0.0
          %2845 = vmatpush1.msra.mxu0 %v2532
          %2846 = vmatprep.subr.mxu0 0.0
          %2847 = vmatpush1.msra.mxu0 %v2531
          %2848 = vmatprep.subr.mxu0 0.0
          %2849 = vmatpush1.msra.mxu0 %v2530
          %2850 = vmatprep.subr.mxu0 0.0
          %2851 = vmatpush1.msra.mxu0 %v2529
          %2852 = vmatprep.subr.mxu0 0.0
          %2853 = vmatpush1.msra.mxu0 %v2528
          %2854 = vmatprep.subr.mxu0 0.0
          %2855 = vmatpush2.msra.mxu0 0.0
          %2856 = vmatprep.subr.mxu0 0.0
          %2857 = vmatpush2.msra.mxu0 0.0
          %2858 = vmatprep.subr.mxu0 0.0
          %2859 = vmatpush2.msra.mxu0 0.0
          %2860 = vmatprep.subr.mxu0 0.0
          %2861 = vmatpush2.msra.mxu0 0.0
          %2862 = vmatprep.subr.mxu0 0.0
          %2863 = vmatpush2.msra.mxu0 0.0
          %2864 = vmatprep.subr.mxu0 0.0
          %2865 = vmatpush2.msra.mxu0 0.0
          %2866 = vmatprep.subr.mxu0 0.0
          %2867 = vmatpush2.msra.mxu0 0.0
          %2868 = vmatprep.subr.mxu0 0.0
          %2869 = vmatpush2.msra.mxu0 0.0
          %2870 = vmatprep.subr.mxu0 0.0
          %2871 = vmatpush2.msra.mxu0 0.0
          %2872 = vmatprep.subr.mxu0 0.0
          %2873 = vmatpush2.msra.mxu0 0.0
          %2874 = vmatprep.subr.mxu0 0.0
          %2875 = vmatpush2.msra.mxu0 0.0
          %2876 = vmatprep.subr.mxu0 0.0
          %2877 = vmatpush2.msra.mxu0 0.0
          %2878 = vmatprep.subr.mxu0 0.0
          %2879 = vmatpush2.msra.mxu0 0.0
          %2880 = vmatprep.subr.mxu0 0.0
          %2881 = vmatpush2.msra.mxu0 0.0
          %2882 = vmatprep.subr.mxu0 0.0
          %2883 = vmatpush2.msra.mxu0 0.0
          %2884 = vmatprep.subr.mxu0 0.0
          %2885 = vmatpush2.msra.mxu0 0.0
          %2886 = vmatprep.mubr.f32.mxu0 0.0
          %2887 = vmatmul.mubr.f32.gmra.mxu0 %v2803
          %v2888 = vpop.f32.mrf.mxu0
          %v2889 = vadd.f32 0.0, %v2888
          %v2890 = vpop.f32.mrf.mxu0
          %2891 = vdwg.mxu0
          %2892 = vmatprep.subr.mxu0 0.0
          %2893 = vmatpush1.msra.mxu0 %v2527
          %2894 = vmatprep.subr.mxu0 0.0
          %2895 = vmatpush1.msra.mxu0 %v2526
          %2896 = vmatprep.subr.mxu0 0.0
          %2897 = vmatpush1.msra.mxu0 %v2525
          %2898 = vmatprep.subr.mxu0 0.0
          %2899 = vmatpush1.msra.mxu0 %v2524
          %2900 = vmatprep.subr.mxu0 0.0
          %2901 = vmatpush1.msra.mxu0 %v2523
          %2902 = vmatprep.subr.mxu0 0.0
          %2903 = vmatpush1.msra.mxu0 %v2522
          %2904 = vmatprep.subr.mxu0 0.0
          %2905 = vmatpush1.msra.mxu0 %v2521
          %2906 = vmatprep.subr.mxu0 0.0
          %2907 = vmatpush1.msra.mxu0 %v2520
          %2908 = vmatprep.subr.mxu0 0.0
          %2909 = vmatpush1.msra.mxu0 %v2519
          %2910 = vmatprep.subr.mxu0 0.0
          %2911 = vmatpush1.msra.mxu0 %v2518
          %2912 = vmatprep.subr.mxu0 0.0
          %2913 = vmatpush1.msra.mxu0 %v2517
          %2914 = vmatprep.subr.mxu0 0.0
          %2915 = vmatpush1.msra.mxu0 %v2516
          %2916 = vmatprep.subr.mxu0 0.0
          %2917 = vmatpush1.msra.mxu0 %v2515
          %2918 = vmatprep.subr.mxu0 0.0
          %2919 = vmatpush1.msra.mxu0 %v2514
          %2920 = vmatprep.subr.mxu0 0.0
          %2921 = vmatpush1.msra.mxu0 %v2513
          %2922 = vmatprep.subr.mxu0 0.0
          %2923 = vmatpush1.msra.mxu0 %v2512
          %2924 = vmatprep.subr.mxu0 0.0
          %2925 = vmatpush2.msra.mxu0 0.0
          %2926 = vmatprep.subr.mxu0 0.0
          %2927 = vmatpush2.msra.mxu0 0.0
          %2928 = vmatprep.subr.mxu0 0.0
          %2929 = vmatpush2.msra.mxu0 0.0
          %2930 = vmatprep.subr.mxu0 0.0
          %2931 = vmatpush2.msra.mxu0 0.0
          %2932 = vmatprep.subr.mxu0 0.0
          %2933 = vmatpush2.msra.mxu0 0.0
          %2934 = vmatprep.subr.mxu0 0.0
          %2935 = vmatpush2.msra.mxu0 0.0
          %2936 = vmatprep.subr.mxu0 0.0
          %2937 = vmatpush2.msra.mxu0 0.0
          %2938 = vmatprep.subr.mxu0 0.0
          %2939 = vmatpush2.msra.mxu0 0.0
          %2940 = vmatprep.subr.mxu0 0.0
          %2941 = vmatpush2.msra.mxu0 0.0
          %2942 = vmatprep.subr.mxu0 0.0
          %2943 = vmatpush2.msra.mxu0 0.0
          %2944 = vmatprep.subr.mxu0 0.0
          %2945 = vmatpush2.msra.mxu0 0.0
          %2946 = vmatprep.subr.mxu0 0.0
          %2947 = vmatpush2.msra.mxu0 0.0
          %2948 = vmatprep.subr.mxu0 0.0
          %2949 = vmatpush2.msra.mxu0 0.0
          %2950 = vmatprep.subr.mxu0 0.0
          %2951 = vmatpush2.msra.mxu0 0.0
          %2952 = vmatprep.subr.mxu0 0.0
          %2953 = vmatpush2.msra.mxu0 0.0
          %2954 = vmatprep.subr.mxu0 0.0
          %2955 = vmatpush2.msra.mxu0 0.0
          %2956 = vmatprep.mubr.f32.mxu0 0.0
          %2957 = vmatmul.mubr.f32.gmra.mxu0 %v2802
          %v2958 = vpop.f32.mrf.mxu0
          %v2959 = vadd.f32 %v2889, %v2958
          %v2960 = vpop.f32.mrf.mxu0
          %2961 = vdwg.mxu0
          %v2963 = vlaneseq
          %v2964 = vshrl.u32 %v2963, 7
          %v2965 = vsub.s32 0, %v2964
          %v2966 = vrot.slane %v2804, %v2965
          %v2968 = vadd.f32 %v2959, %v2966
          %v2969 = vmax.f32 %v2968, 0.0
          %v2971 = vlaneseq
          %v2972 = vshrl.u32 %v2971, 7
          %v2973 = vsub.s32 0, %v2972
          %v2974 = vrot.slane %v2821, %v2973
          %2976 = vmatprep.subr.mxu0 0.0
          %2977 = vmatpush1.msra.mxu0 %v2820
          %2978 = vmatprep.subr.mxu0 0.0
          %2979 = vmatpush1.msra.mxu0 %v2819
          %2980 = vmatprep.subr.mxu0 0.0
          %2981 = vmatpush1.msra.mxu0 %v2818
          %2982 = vmatprep.subr.mxu0 0.0
          %2983 = vmatpush1.msra.mxu0 %v2817
          %2984 = vmatprep.subr.mxu0 0.0
          %2985 = vmatpush1.msra.mxu0 %v2816
          %2986 = vmatprep.subr.mxu0 0.0
          %2987 = vmatpush1.msra.mxu0 %v2815
          %2988 = vmatprep.subr.mxu0 0.0
          %2989 = vmatpush1.msra.mxu0 %v2814
          %2990 = vmatprep.subr.mxu0 0.0
          %2991 = vmatpush1.msra.mxu0 %v2813
          %2992 = vmatprep.subr.mxu0 0.0
          %2993 = vmatpush1.msra.mxu0 %v2812
          %2994 = vmatprep.subr.mxu0 0.0
          %2995 = vmatpush1.msra.mxu0 %v2811
          %2996 = vmatprep.subr.mxu0 0.0
          %2997 = vmatpush1.msra.mxu0 %v2810
          %2998 = vmatprep.subr.mxu0 0.0
          %2999 = vmatpush1.msra.mxu0 %v2809
          %3000 = vmatprep.subr.mxu0 0.0
          %3001 = vmatpush1.msra.mxu0 %v2808
          %3002 = vmatprep.subr.mxu0 0.0
          %3003 = vmatpush1.msra.mxu0 %v2807
          %3004 = vmatprep.subr.mxu0 0.0
          %3005 = vmatpush1.msra.mxu0 %v2806
          %3006 = vmatprep.subr.mxu0 0.0
          %3007 = vmatpush1.msra.mxu0 %v2805
          %3008 = vmatprep.subr.mxu0 0.0
          %3009 = vmatpush2.msra.mxu0 0.0
          %3010 = vmatprep.subr.mxu0 0.0
          %3011 = vmatpush2.msra.mxu0 0.0
          %3012 = vmatprep.subr.mxu0 0.0
          %3013 = vmatpush2.msra.mxu0 0.0
          %3014 = vmatprep.subr.mxu0 0.0
          %3015 = vmatpush2.msra.mxu0 0.0
          %3016 = vmatprep.subr.mxu0 0.0
          %3017 = vmatpush2.msra.mxu0 0.0
          %3018 = vmatprep.subr.mxu0 0.0
          %3019 = vmatpush2.msra.mxu0 0.0
          %3020 = vmatprep.subr.mxu0 0.0
          %3021 = vmatpush2.msra.mxu0 0.0
          %3022 = vmatprep.subr.mxu0 0.0
          %3023 = vmatpush2.msra.mxu0 0.0
          %3024 = vmatprep.subr.mxu0 0.0
          %3025 = vmatpush2.msra.mxu0 0.0
          %3026 = vmatprep.subr.mxu0 0.0
          %3027 = vmatpush2.msra.mxu0 0.0
          %3028 = vmatprep.subr.mxu0 0.0
          %3029 = vmatpush2.msra.mxu0 0.0
          %3030 = vmatprep.subr.mxu0 0.0
          %3031 = vmatpush2.msra.mxu0 0.0
          %3032 = vmatprep.subr.mxu0 0.0
          %3033 = vmatpush2.msra.mxu0 0.0
          %3034 = vmatprep.subr.mxu0 0.0
          %3035 = vmatpush2.msra.mxu0 0.0
          %3036 = vmatprep.subr.mxu0 0.0
          %3037 = vmatpush2.msra.mxu0 0.0
          %3038 = vmatprep.subr.mxu0 0.0
          %3039 = vmatpush2.msra.mxu0 0.0
          %3040 = vmatprep.mubr.f32.mxu0 0.0
          %3041 = vmatmul.mubr.f32.gmra.mxu0 %v2969
          %v3042 = vpop.f32.mrf.mxu0
          %v3043 = vadd.f32 %v2974, %v3042
          %v3044 = vpop.f32.mrf.mxu0
          %3045 = vdwg.mxu0
          %3047 = vrot.lane.b32.xlu0 %v3043, 127
          %v3048 = vpop.permute.xlu0 %3047
          %v3050 = vsub.f32 %v3043, %v3048
          %v3051 = vmax.f32 %v3050, 0.0
          %v3052 = vand.u32 2147483647, %v3050
          %v3053 = vsub.f32 0.0, %v3052
          %v3054 = vmul.f32 %v3053, 1.442695
          %v3055 = vpow.pop %v3054
          %v3056 = vadd.f32 %v3055, 1.0
          %v3057 = vlog2.pop %v3056
          %v3058 = vmul.f32 %v3057, 0.6931472
          %v3059 = vadd.f32 %v3051, %v3058
          %v3060 = vld [vmem:[#allocation4] sm:$0xff]
          %v3061 = vld [vmem:[%s816] sm:$0xff]
          %3062 = vmatprep.subr.mxu0 0.0
          %3063 = vmatpush1.msra.mxu0 %v2543
          %3064 = vmatprep.subr.mxu0 0.0
          %3065 = vmatpush1.msra.mxu0 %v2542
          %3066 = vmatprep.subr.mxu0 0.0
          %3067 = vmatpush1.msra.mxu0 %v2541
          %3068 = vmatprep.subr.mxu0 0.0
          %3069 = vmatpush1.msra.mxu0 %v2540
          %3070 = vmatprep.subr.mxu0 0.0
          %3071 = vmatpush1.msra.mxu0 %v2539
          %3072 = vmatprep.subr.mxu0 0.0
          %3073 = vmatpush1.msra.mxu0 %v2538
          %3074 = vmatprep.subr.mxu0 0.0
          %3075 = vmatpush1.msra.mxu0 %v2537
          %3076 = vmatprep.subr.mxu0 0.0
          %3077 = vmatpush1.msra.mxu0 %v2536
          %3078 = vmatprep.subr.mxu0 0.0
          %3079 = vmatpush1.msra.mxu0 %v2535
          %3080 = vmatprep.subr.mxu0 0.0
          %3081 = vmatpush1.msra.mxu0 %v2534
          %3082 = vmatprep.subr.mxu0 0.0
          %3083 = vmatpush1.msra.mxu0 %v2533
          %3084 = vmatprep.subr.mxu0 0.0
          %3085 = vmatpush1.msra.mxu0 %v2532
          %3086 = vmatprep.subr.mxu0 0.0
          %3087 = vmatpush1.msra.mxu0 %v2531
          %3088 = vmatprep.subr.mxu0 0.0
          %3089 = vmatpush1.msra.mxu0 %v2530
          %3090 = vmatprep.subr.mxu0 0.0
          %3091 = vmatpush1.msra.mxu0 %v2529
          %3092 = vmatprep.subr.mxu0 0.0
          %3093 = vmatpush1.msra.mxu0 %v2528
          %3094 = vmatprep.subr.mxu0 0.0
          %3095 = vmatpush2.msra.mxu0 0.0
          %3096 = vmatprep.subr.mxu0 0.0
          %3097 = vmatpush2.msra.mxu0 0.0
          %3098 = vmatprep.subr.mxu0 0.0
          %3099 = vmatpush2.msra.mxu0 0.0
          %3100 = vmatprep.subr.mxu0 0.0
          %3101 = vmatpush2.msra.mxu0 0.0
          %3102 = vmatprep.subr.mxu0 0.0
          %3103 = vmatpush2.msra.mxu0 0.0
          %3104 = vmatprep.subr.mxu0 0.0
          %3105 = vmatpush2.msra.mxu0 0.0
          %3106 = vmatprep.subr.mxu0 0.0
          %3107 = vmatpush2.msra.mxu0 0.0
          %3108 = vmatprep.subr.mxu0 0.0
          %3109 = vmatpush2.msra.mxu0 0.0
          %3110 = vmatprep.subr.mxu0 0.0
          %3111 = vmatpush2.msra.mxu0 0.0
          %3112 = vmatprep.subr.mxu0 0.0
          %3113 = vmatpush2.msra.mxu0 0.0
          %3114 = vmatprep.subr.mxu0 0.0
          %3115 = vmatpush2.msra.mxu0 0.0
          %3116 = vmatprep.subr.mxu0 0.0
          %3117 = vmatpush2.msra.mxu0 0.0
          %3118 = vmatprep.subr.mxu0 0.0
          %3119 = vmatpush2.msra.mxu0 0.0
          %3120 = vmatprep.subr.mxu0 0.0
          %3121 = vmatpush2.msra.mxu0 0.0
          %3122 = vmatprep.subr.mxu0 0.0
          %3123 = vmatpush2.msra.mxu0 0.0
          %3124 = vmatprep.subr.mxu0 0.0
          %3125 = vmatpush2.msra.mxu0 0.0
          %3126 = vmatprep.mubr.f32.mxu0 0.0
          %3127 = vmatmul.mubr.f32.gmra.mxu0 %v3061
          %v3128 = vpop.f32.mrf.mxu0
          %v3129 = vadd.f32 0.0, %v3128
          %v3130 = vpop.f32.mrf.mxu0
          %3131 = vdwg.mxu0
          %3132 = vmatprep.subr.mxu0 0.0
          %3133 = vmatpush1.msra.mxu0 %v2527
          %3134 = vmatprep.subr.mxu0 0.0
          %3135 = vmatpush1.msra.mxu0 %v2526
          %3136 = vmatprep.subr.mxu0 0.0
          %3137 = vmatpush1.msra.mxu0 %v2525
          %3138 = vmatprep.subr.mxu0 0.0
          %3139 = vmatpush1.msra.mxu0 %v2524
          %3140 = vmatprep.subr.mxu0 0.0
          %3141 = vmatpush1.msra.mxu0 %v2523
          %3142 = vmatprep.subr.mxu0 0.0
          %3143 = vmatpush1.msra.mxu0 %v2522
          %3144 = vmatprep.subr.mxu0 0.0
          %3145 = vmatpush1.msra.mxu0 %v2521
          %3146 = vmatprep.subr.mxu0 0.0
          %3147 = vmatpush1.msra.mxu0 %v2520
          %3148 = vmatprep.subr.mxu0 0.0
          %3149 = vmatpush1.msra.mxu0 %v2519
          %3150 = vmatprep.subr.mxu0 0.0
          %3151 = vmatpush1.msra.mxu0 %v2518
          %3152 = vmatprep.subr.mxu0 0.0
          %3153 = vmatpush1.msra.mxu0 %v2517
          %3154 = vmatprep.subr.mxu0 0.0
          %3155 = vmatpush1.msra.mxu0 %v2516
          %3156 = vmatprep.subr.mxu0 0.0
          %3157 = vmatpush1.msra.mxu0 %v2515
          %3158 = vmatprep.subr.mxu0 0.0
          %3159 = vmatpush1.msra.mxu0 %v2514
          %3160 = vmatprep.subr.mxu0 0.0
          %3161 = vmatpush1.msra.mxu0 %v2513
          %3162 = vmatprep.subr.mxu0 0.0
          %3163 = vmatpush1.msra.mxu0 %v2512
          %3164 = vmatprep.subr.mxu0 0.0
          %3165 = vmatpush2.msra.mxu0 0.0
          %3166 = vmatprep.subr.mxu0 0.0
          %3167 = vmatpush2.msra.mxu0 0.0
          %3168 = vmatprep.subr.mxu0 0.0
          %3169 = vmatpush2.msra.mxu0 0.0
          %3170 = vmatprep.subr.mxu0 0.0
          %3171 = vmatpush2.msra.mxu0 0.0
          %3172 = vmatprep.subr.mxu0 0.0
          %3173 = vmatpush2.msra.mxu0 0.0
          %3174 = vmatprep.subr.mxu0 0.0
          %3175 = vmatpush2.msra.mxu0 0.0
          %3176 = vmatprep.subr.mxu0 0.0
          %3177 = vmatpush2.msra.mxu0 0.0
          %3178 = vmatprep.subr.mxu0 0.0
          %3179 = vmatpush2.msra.mxu0 0.0
          %3180 = vmatprep.subr.mxu0 0.0
          %3181 = vmatpush2.msra.mxu0 0.0
          %3182 = vmatprep.subr.mxu0 0.0
          %3183 = vmatpush2.msra.mxu0 0.0
          %3184 = vmatprep.subr.mxu0 0.0
          %3185 = vmatpush2.msra.mxu0 0.0
          %3186 = vmatprep.subr.mxu0 0.0
          %3187 = vmatpush2.msra.mxu0 0.0
          %3188 = vmatprep.subr.mxu0 0.0
          %3189 = vmatpush2.msra.mxu0 0.0
          %3190 = vmatprep.subr.mxu0 0.0
          %3191 = vmatpush2.msra.mxu0 0.0
          %3192 = vmatprep.subr.mxu0 0.0
          %3193 = vmatpush2.msra.mxu0 0.0
          %3194 = vmatprep.subr.mxu0 0.0
          %3195 = vmatpush2.msra.mxu0 0.0
          %3196 = vmatprep.mubr.f32.mxu0 0.0
          %3197 = vmatmul.mubr.f32.gmra.mxu0 %v3060
          %v3198 = vpop.f32.mrf.mxu0
          %v3199 = vadd.f32 %v3129, %v3198
          %v3200 = vpop.f32.mrf.mxu0
          %3201 = vdwg.mxu0
          %v3202 = vadd.f32 %v3199, %v2966
          %v3203 = vmax.f32 %v3202, 0.0
          %3204 = vmatprep.subr.mxu0 0.0
          %3205 = vmatpush1.msra.mxu0 %v2820
          %3206 = vmatprep.subr.mxu0 0.0
          %3207 = vmatpush1.msra.mxu0 %v2819
          %3208 = vmatprep.subr.mxu0 0.0
          %3209 = vmatpush1.msra.mxu0 %v2818
          %3210 = vmatprep.subr.mxu0 0.0
          %3211 = vmatpush1.msra.mxu0 %v2817
          %3212 = vmatprep.subr.mxu0 0.0
          %3213 = vmatpush1.msra.mxu0 %v2816
          %3214 = vmatprep.subr.mxu0 0.0
          %3215 = vmatpush1.msra.mxu0 %v2815
          %3216 = vmatprep.subr.mxu0 0.0
          %3217 = vmatpush1.msra.mxu0 %v2814
          %3218 = vmatprep.subr.mxu0 0.0
          %3219 = vmatpush1.msra.mxu0 %v2813
          %3220 = vmatprep.subr.mxu0 0.0
          %3221 = vmatpush1.msra.mxu0 %v2812
          %3222 = vmatprep.subr.mxu0 0.0
          %3223 = vmatpush1.msra.mxu0 %v2811
          %3224 = vmatprep.subr.mxu0 0.0
          %3225 = vmatpush1.msra.mxu0 %v2810
          %3226 = vmatprep.subr.mxu0 0.0
          %3227 = vmatpush1.msra.mxu0 %v2809
          %3228 = vmatprep.subr.mxu0 0.0
          %3229 = vmatpush1.msra.mxu0 %v2808
          %3230 = vmatprep.subr.mxu0 0.0
          %3231 = vmatpush1.msra.mxu0 %v2807
          %3232 = vmatprep.subr.mxu0 0.0
          %3233 = vmatpush1.msra.mxu0 %v2806
          %3234 = vmatprep.subr.mxu0 0.0
          %3235 = vmatpush1.msra.mxu0 %v2805
          %3236 = vmatprep.subr.mxu0 0.0
          %3237 = vmatpush2.msra.mxu0 0.0
          %3238 = vmatprep.subr.mxu0 0.0
          %3239 = vmatpush2.msra.mxu0 0.0
          %3240 = vmatprep.subr.mxu0 0.0
          %3241 = vmatpush2.msra.mxu0 0.0
          %3242 = vmatprep.subr.mxu0 0.0
          %3243 = vmatpush2.msra.mxu0 0.0
          %3244 = vmatprep.subr.mxu0 0.0
          %3245 = vmatpush2.msra.mxu0 0.0
          %3246 = vmatprep.subr.mxu0 0.0
          %3247 = vmatpush2.msra.mxu0 0.0
          %3248 = vmatprep.subr.mxu0 0.0
          %3249 = vmatpush2.msra.mxu0 0.0
          %3250 = vmatprep.subr.mxu0 0.0
          %3251 = vmatpush2.msra.mxu0 0.0
          %3252 = vmatprep.subr.mxu0 0.0
          %3253 = vmatpush2.msra.mxu0 0.0
          %3254 = vmatprep.subr.mxu0 0.0
          %3255 = vmatpush2.msra.mxu0 0.0
          %3256 = vmatprep.subr.mxu0 0.0
          %3257 = vmatpush2.msra.mxu0 0.0
          %3258 = vmatprep.subr.mxu0 0.0
          %3259 = vmatpush2.msra.mxu0 0.0
          %3260 = vmatprep.subr.mxu0 0.0
          %3261 = vmatpush2.msra.mxu0 0.0
          %3262 = vmatprep.subr.mxu0 0.0
          %3263 = vmatpush2.msra.mxu0 0.0
          %3264 = vmatprep.subr.mxu0 0.0
          %3265 = vmatpush2.msra.mxu0 0.0
          %3266 = vmatprep.subr.mxu0 0.0
          %3267 = vmatpush2.msra.mxu0 0.0
          %3268 = vmatprep.mubr.f32.mxu0 0.0
          %3269 = vmatmul.mubr.f32.gmra.mxu0 %v3203
          %v3270 = vpop.f32.mrf.mxu0
          %v3271 = vadd.f32 %v2974, %v3270
          %v3272 = vpop.f32.mrf.mxu0
          %3273 = vdwg.mxu0
          %3275 = vrot.lane.b32.xlu0 %v3271, 127
          %v3276 = vpop.permute.xlu0 %3275
          %v3278 = vsub.f32 %v3271, %v3276
          %v3279 = vmax.f32 %v3278, 0.0
          %v3280 = vand.u32 2147483647, %v3278
          %v3281 = vsub.f32 0.0, %v3280
          %v3282 = vmul.f32 %v3281, 1.442695
          %v3283 = vpow.pop %v3282
          %v3284 = vadd.f32 %v3283, 1.0
          %v3285 = vlog2.pop %v3284
          %v3286 = vmul.f32 %v3285, 0.6931472
          %v3287 = vadd.f32 %v3279, %v3286
          %3289 = vset.pattern.permute.xlu0 0
          %3290 = vperm.xlu0 %3289, %v2801
          %v3291 = vpop.permute.xlu0 %3290
          %3293 = vst [vmem:[%s765] sm:$0xff] %v3291
          %3295 = vset.pattern.permute.xlu0 0
          %3296 = vperm.xlu0 %3295, %v3059
          %v3297 = vpop.permute.xlu0 %3296
          %3299 = vst [vmem:[%s772] sm:$0xff] %v3297
          %3301 = vset.pattern.permute.xlu0 0
          %3302 = vperm.xlu0 %3301, %v3287
          %v3303 = vpop.permute.xlu0 %3302
          %3305 = vst [vmem:[%s779] sm:$0xff] %v3303
        $region108: #{tpu_custom_call.1} parent=87 // pred_fallthru
          _
        %s3306 = sand.u32 %s455, 1
        %s3307 = scalar_lea.sflag [#allocation7], %s3306
        %s3308 = sand.u32 %s455, 1
        %s3309 = smul.addr %s3308, 8
        %s3310 = scalar_lea.vmem [#allocation11], %s3309
        %s3311 = sand.u32 %s41, 1
        %s3312 = scalar_lea.sflag [#allocation13], %s3311
        %s3313 = sand.u32 %s481, 1
        %s3314 = smul.addr %s3313, 8
        %s3315 = scalar_lea.vmem [#allocation12], %s3314
        %s3316 = sand.u32 %s41, 1
        %s3317 = scalar_lea.sflag [#allocation13], %s3316
        %s3318 = sand.u32 %s507, 1
        %s3319 = smul.addr %s3318, 8
        %s3320 = scalar_lea.vmem [#allocation14], %s3319
        // Predicated region
        $region109: #{tpu_custom_call.1} parent=87 // pred_check
          %p3321 = pneg %p465
        $region110: #{tpu_custom_call.1} parent=87 // pred_check_branch
          %3323 = sbr.rel (%p3321) target = $region112
        $region111: #{tpu_custom_call.1} parent=87 // pred_region
          %s3325 = ssub.s32 128, 128
          %3326 = vsyncadd %s3307, %s3325
          %s3327 = smul.addr %s45, 128
          %s3328 = scalar_lea.hbm %s17, %s3327
          %s3330 = sshll.u32 %s3310, 4
          %s3331 = int_to_ptr.vmem [resolvable:$true] %s3330
          %3333 = dma.vmem_to_hbm [thread:$0]  %s3331, 128, %s3328, %s3307
        $region112: #{tpu_custom_call.1} parent=87 // pred_fallthru
          _
        // Predicated region
        $region113: #{tpu_custom_call.1} parent=87 // pred_check
          %p3334 = pneg %p491
        $region114: #{tpu_custom_call.1} parent=87 // pred_check_branch
          %3336 = sbr.rel (%p3334) target = $region116
        $region115: #{tpu_custom_call.1} parent=87 // pred_region
          %s3338 = ssub.s32 128, 128
          %3339 = vsyncadd %s3312, %s3338
          %s3340 = smul.addr %s45, 128
          %s3341 = scalar_lea.hbm %s18, %s3340
          %s3343 = sshll.u32 %s3315, 4
          %s3344 = int_to_ptr.vmem [resolvable:$true] %s3343
          %3346 = dma.vmem_to_hbm [thread:$0]  %s3344, 128, %s3341, %s3312
        $region116: #{tpu_custom_call.1} parent=87 // pred_fallthru
          _
        // Predicated region
        $region117: #{tpu_custom_call.1} parent=87 // pred_check
          %p3347 = pneg %p517
        $region118: #{tpu_custom_call.1} parent=87 // pred_check_branch
          %3349 = sbr.rel (%p3347) target = $region120
        $region119: #{tpu_custom_call.1} parent=87 // pred_region
          %s3351 = ssub.s32 128, 128
          %3352 = vsyncadd %s3317, %s3351
          %s3353 = smul.addr %s45, 128
          %s3354 = scalar_lea.hbm %s19, %s3353
          %s3356 = sshll.u32 %s3320, 4
          %s3357 = int_to_ptr.vmem [resolvable:$true] %s3356
          %3359 = dma.vmem_to_hbm [thread:$0]  %s3357, 128, %s3354, %s3317
        $region120: #{tpu_custom_call.1} parent=87 // pred_fallthru
          _
      $region88: #{tpu_custom_call.1} parent=5 // pred_fallthru
        _
      %p3360 = scmp.le.s32.totalorder 2, %s36
      // Predicated region
      $region121: #{tpu_custom_call.1} parent=5 // pred_check
        %p3361 = pneg %p3360
      $region122: #{tpu_custom_call.1} parent=5 // pred_check_branch
        %3363 = sbr.rel (%p3361) target = $region124
      $region123: #{tpu_custom_call.1} parent=5 // pred_region
        %s3364 = ssub.s32 %s36, 2
        // Predicated region
        $region125: #{tpu_custom_call.1} parent=123 // pred_check
          %p3365 = pneg %p471
        $region126: #{tpu_custom_call.1} parent=123 // pred_check_branch
          %3367 = sbr.rel (%p3365) target = $region128
        $region127: #{tpu_custom_call.1} parent=123 // pred_region
          %s3368 = sand.u32 %s456, 1
          %s3369 = scalar_lea.sflag [#allocation7], %s3368
          %s3370 = sand.u32 %s456, 1
          %s3371 = smul.addr %s3370, 8
          %s3372 = scalar_lea.vmem [#allocation11], %s3371
          %3373 = dma.done %s3369, 128
        $region128: #{tpu_custom_call.1} parent=123 // pred_fallthru
          _
        // Predicated region
        $region129: #{tpu_custom_call.1} parent=123 // pred_check
          %p3374 = pneg %p497
        $region130: #{tpu_custom_call.1} parent=123 // pred_check_branch
          %3376 = sbr.rel (%p3374) target = $region132
        $region131: #{tpu_custom_call.1} parent=123 // pred_region
          %s3377 = sand.u32 %s42, 1
          %s3378 = scalar_lea.sflag [#allocation13], %s3377
          %s3379 = sand.u32 %s482, 1
          %s3380 = smul.addr %s3379, 8
          %s3381 = scalar_lea.vmem [#allocation12], %s3380
          %3382 = dma.done %s3378, 128
        $region132: #{tpu_custom_call.1} parent=123 // pred_fallthru
          _
        // Predicated region
        $region133: #{tpu_custom_call.1} parent=123 // pred_check
          %p3383 = pneg %p523
        $region134: #{tpu_custom_call.1} parent=123 // pred_check_branch
          %3385 = sbr.rel (%p3383) target = $region136
        $region135: #{tpu_custom_call.1} parent=123 // pred_region
          %s3386 = sand.u32 %s42, 1
          %s3387 = scalar_lea.sflag [#allocation13], %s3386
          %s3388 = sand.u32 %s508, 1
          %s3389 = smul.addr %s3388, 8
          %s3390 = scalar_lea.vmem [#allocation14], %s3389
          %3391 = dma.done %s3387, 128
        $region136: #{tpu_custom_call.1} parent=123 // pred_fallthru
          _
      $region124: #{tpu_custom_call.1} parent=5 // pred_fallthru
        _
    $region6: #{tpu_custom_call.1} parent=1 // loop_footer
      %s40 = sadd.s32 1, %s36
    $region7: #{tpu_custom_call.1} parent=1 // loop_footer_branch
      %35 = sbr.rel target = $region3
    $region8: #{tpu_custom_call.1} parent=1 // loop_exit
      _
    %3392 = vsyncpa [#allocation6], 1
    %s3393 = scalar_lea.sflag [#allocation6], 1
    %3394 = vsyncpa %s3393, 1
    %3395 = vsyncpa [#allocation9], 1
    %3396 = vsyncpa [#allocation7], 1
    %s3397 = scalar_lea.sflag [#allocation7], 1
    %3398 = vsyncpa %s3397, 1
    %3399 = vsyncpa [#allocation13], 1
    %s3400 = scalar_lea.sflag [#allocation13], 1
    %3401 = vsyncpa %s3400, 1

</llo_original>
